<compile_context>
chip_gen: v7x
topology: tpu7x:2x2x1
jax: 0.10.0
libtpu: 0.0.40
codegen_flags: <defaults>
</compile_context>

<pallas_src>
import jax
import jax.numpy as jnp
from jax import lax
from jax.experimental import pallas as pl
from jax.experimental.pallas import tpu as pltpu


# ------------------------------ in-kernel ops ------------------------------

def _mish_fast(x):
    # mish(x) = x * tanh(softplus(x)) = x * (w^2 - 1) / (w^2 + 1), w = 1 + e^x
    # clamp the exp argument so w^2 cannot overflow f32 (mish(x) ~= x there).
    w = 1.0 + jnp.exp(jnp.minimum(x, 30.0))
    w2 = w * w
    return x * (w2 - 1.0) * pl.reciprocal(w2 + 1.0, approx=True)


def _round_up(v, m):
    return ((v + m - 1) // m) * m


# ----------------------------- fused kernel --------------------------------

def _make_fused_kernel(H, W, G, ch, c2):
    """cv1 (3x3+BN+Mish) -> cv2 (3x3+BN+Mish) -> concat -> cv3 (1x1+BN+Mish).

    Activations use a guarded padded-flat channels-last layout of length
    L=(H+2)*(W+2) with G zero guard rows on each side, so every 3x3 tap is a
    statically-shifted slice feeding a bf16 MXU matmul (f32 accumulation).
    cv1's activation never leaves VMEM; cv3's weight is split into its
    x1 / x2 halves so the channel concat is two accumulated matmuls.
    """
    Wp = W + 2
    L = (H + 2) * Wp          # padded-flat image length
    Hin = H * Wp              # interior rows (ph in [1, H]), all columns

    def kernel(x_ref, w1_ref, b1_ref, w2_ref, b2_ref,
               w3a_ref, w3b_ref, b3_ref, o_ref, x1_scr):
        # ------------------ cv1: 3x3 conv (folded BN) + Mish ---------------
        acc1 = jnp.zeros((L, ch), jnp.float32)
        for t in range(9):
            kh, kw = t // 3, t % 3
            off = (kh - 1) * Wp + (kw - 1)
            tap = x_ref[0, G + off:G + off + L, :]            # (L, cin) bf16
            acc1 = acc1 + jnp.dot(tap, w1_ref[t],
                                  preferred_element_type=jnp.float32)

        # interior mask generated in-register (no lane-padded HBM stream).
        # Float formulation is exact at these magnitudes and avoids vector
        # integer div/mod.
        ii = lax.broadcasted_iota(jnp.int32, (L, 1), 0).astype(jnp.float32)
        ph = jnp.floor((ii + 0.5) * (1.0 / Wp))
        pw = ii - ph * Wp
        interior = ((ph >= 1.0) & (ph <= float(H)) &
                    (pw >= 1.0) & (pw <= float(W)))
        y1 = jnp.where(interior, _mish_fast(acc1 + b1_ref[...]), 0.0)

        # cv1 activation stays VMEM-resident; zero the guard rows so cv2's
        # shifted taps read zeros outside the padded image.
        zg = jnp.zeros((G, ch), x1_scr.dtype)
        x1_scr[:G, :] = zg
        x1_scr[G + L:, :] = zg
        x1_scr[G:G + L, :] = y1.astype(x1_scr.dtype)

        # ---------- cv2 (3x3 + BN + Mish) fused with concat + cv3 ----------
        base = G + Wp                           # first interior row (ph = 1)
        acc2 = jnp.zeros((Hin, ch), jnp.float32)
        for t in range(9):
            kh, kw = t // 3, t % 3
            off = (kh - 1) * Wp + (kw - 1)
            tap = x1_scr[base + off:base + off + Hin, :]      # (Hin, ch) bf16
            acc2 = acc2 + jnp.dot(tap, w2_ref[t],
                                  preferred_element_type=jnp.float32)
        x2 = _mish_fast(acc2 + b2_ref[...])                   # (Hin, ch) f32

        # channel concat expressed as two accumulated matmuls (never in HBM)
        x1c = x1_scr[base:base + Hin, :]
        acc3 = jnp.dot(x1c, w3a_ref[...], preferred_element_type=jnp.float32)
        acc3 = acc3 + jnp.dot(x2.astype(jnp.bfloat16), w3b_ref[...],
                              preferred_element_type=jnp.float32)
        o_ref[0] = _mish_fast(acc3 + b3_ref[...]).astype(o_ref.dtype)

    return kernel


# -------------------- weight layout conversion (glue) ----------------------

def _w3x3_taps(w):   # torch [co, ci, 3, 3] -> [9, ci, co], tap-major (kh*3+kw)
    co, ci, kh, kw = w.shape
    return jnp.transpose(w, (2, 3, 1, 0)).reshape(kh * kw, ci, co)


def _w1x1(w):        # torch [co, ci, 1, 1] -> [ci, co]
    return jnp.transpose(w[:, :, 0, 0], (1, 0))


# --------------------------- parameter creation -----------------------------

def _bn_affine(key, c, eps=1e-5):
    k1, k2, k3, k4 = jax.random.split(key, 4)
    gamma = 1.0 + 0.1 * jax.random.normal(k1, (c,), jnp.float32)
    beta = 0.1 * jax.random.normal(k2, (c,), jnp.float32)
    mean = 0.1 * jax.random.normal(k3, (c,), jnp.float32)
    var = jax.random.uniform(k4, (c,), jnp.float32, 0.5, 1.5)
    scale = gamma / jnp.sqrt(var + eps)
    bias = beta - mean * scale
    return scale, bias


def _conv_w(key, co, ci, kh, kw):
    fan_in = ci * kh * kw
    return jax.random.normal(key, (co, ci, kh, kw), jnp.float32) / jnp.sqrt(fan_in)


def init_vovcsp_params(key, c1, c2):
    ch = c2 // 2                       # c_ // 2 with c_ = c2
    ks = jax.random.split(key, 6)
    return {
        "cv1_w": _conv_w(ks[0], ch, c1 // 2, 3, 3), "cv1_bn": _bn_affine(ks[1], ch),
        "cv2_w": _conv_w(ks[2], ch, ch, 3, 3),      "cv2_bn": _bn_affine(ks[3], ch),
        "cv3_w": _conv_w(ks[4], c2, 2 * ch, 1, 1),  "cv3_bn": _bn_affine(ks[5], c2),
    }


# ------------------------------ VoVCSP forward ------------------------------

def vovcsp_pallas(x, p):
    N, C1, H, W = x.shape
    cin = C1 // 2
    ch = p["cv1_w"].shape[0]
    c2 = p["cv3_w"].shape[0]
    Wp = W + 2
    L = (H + 2) * Wp                  # padded-flat image length
    Hin = H * Wp                      # interior rows only
    G = _round_up(W + 3, 8)           # sublane-aligned guard offset
    Lg_in = L + 2 * G
    f32, bf16 = jnp.float32, jnp.bfloat16

    # thin XLA prologue: second channel chunk -> NHWC -> spatial zero-pad ->
    # flatten -> sublane-aligned guards (bf16 to halve pad/copy bytes)
    x1 = jnp.transpose(x[:, cin:, :, :].astype(bf16), (0, 2, 3, 1))
    xp = jnp.pad(x1, ((0, 0), (1, 1), (1, 1), (0, 0))).reshape(N, L, cin)
    a0 = jnp.pad(xp, ((0, 0), (G, G), (0, 0)))

    # fold eval-mode BN scales into the weights (one bias vector per conv)
    s1, t1 = p["cv1_bn"]
    s2, t2 = p["cv2_bn"]
    s3, t3 = p["cv3_bn"]
    w1 = (_w3x3_taps(p["cv1_w"]) * s1[None, None, :]).astype(bf16)
    b1 = t1.reshape(1, ch).astype(f32)
    w2 = (_w3x3_taps(p["cv2_w"]) * s2[None, None, :]).astype(bf16)
    b2 = t2.reshape(1, ch).astype(f32)
    w3 = _w1x1(p["cv3_w"]) * s3[None, :]
    w3a = w3[:ch, :].astype(bf16)                               # x1 half
    w3b = w3[ch:, :].astype(bf16)                               # x2 half
    b3 = t3.reshape(1, c2).astype(f32)

    out_flat = pl.pallas_call(
        _make_fused_kernel(H, W, G, ch, c2),
        out_shape=jax.ShapeDtypeStruct((N, Hin, c2), f32),
        grid_spec=pltpu.PrefetchScalarGridSpec(
            num_scalar_prefetch=0,
            grid=(N,),
            in_specs=[
                pl.BlockSpec((1, Lg_in, cin), lambda n: (n, 0, 0)),
                pl.BlockSpec((9, cin, ch), lambda n: (0, 0, 0)),
                pl.BlockSpec((1, ch), lambda n: (0, 0)),
                pl.BlockSpec((9, ch, ch), lambda n: (0, 0, 0)),
                pl.BlockSpec((1, ch), lambda n: (0, 0)),
                pl.BlockSpec((ch, c2), lambda n: (0, 0)),
                pl.BlockSpec((ch, c2), lambda n: (0, 0)),
                pl.BlockSpec((1, c2), lambda n: (0, 0)),
            ],
            out_specs=pl.BlockSpec((1, Hin, c2), lambda n: (n, 0, 0)),
            scratch_shapes=[pltpu.VMEM((L + 2 * G, ch), bf16)],
        ),
        compiler_params=pltpu.CompilerParams(
            dimension_semantics=("parallel",),
            vmem_limit_bytes=48 * 1024 * 1024,
        ),
    )(a0, w1, b1, w2, b2, w3a, w3b, b3)

    # thin epilogue: drop left/right pad columns, back to NCHW
    out = out_flat.reshape(N, H, Wp, c2)[:, :, 1:W + 1, :]
    return jnp.transpose(out, (0, 3, 1, 2))


# ---------------------- pure-JAX reference (NCHW, f32) ----------------------

def vovcsp_reference(x, p):
    dn = ("NCHW", "OIHW", "NCHW")

    def conv(v, w, pad):
        return jax.lax.conv_general_dilated(v, w, (1, 1), pad,
                                            dimension_numbers=dn)

    def bn(v, sb):
        s, b = sb
        return v * s[None, :, None, None] + b[None, :, None, None]

    def mish(v):
        return v * jnp.tanh(jax.nn.softplus(v))

    _, x1 = jnp.split(x, 2, axis=1)
    a = mish(bn(conv(x1, p["cv1_w"], ((1, 1), (1, 1))), p["cv1_bn"]))
    b = mish(bn(conv(a, p["cv2_w"], ((1, 1), (1, 1))), p["cv2_bn"]))
    cat = jnp.concatenate([a, b], axis=1)
    return mish(bn(conv(cat, p["cv3_w"], ((0, 0), (0, 0))), p["cv3_bn"]))


# ----------------------------------- main ------------------------------------

if __name__ == "__main__":
    key = jax.random.PRNGKey(0)
    kx, kp = jax.random.split(key)
    N, c1, H, W = 2, 4, 16, 16
    c2 = 8
    x = jax.random.normal(kx, (N, c1, H, W), jnp.float32)
    params = init_vovcsp_params(kp, c1, c2)

    out = jax.block_until_ready(vovcsp_pallas(x, params))
    ref = jax.block_until_ready(vovcsp_reference(x, params))

    assert out.shape == (N, c2, H, W), out.shape
    max_err = float(jnp.max(jnp.abs(out - ref)))
    # bf16 MXU operands + bf16 VMEM-resident intermediate + approx-recip Mish
    assert max_err < 1e-1, f"mismatch vs f32 reference: {max_err}"
    print("KERNEL_OK")
</pallas_src>

<mosaic_0001>
module attributes {stable_mosaic.version = 11 : i64} {
  func.func @kernel(%arg0: i32, %arg1: memref<1x372x2xbf16, #tpu.memory_space<vmem>>, %arg2: memref<9x2x4xbf16, #tpu.memory_space<vmem>>, %arg3: memref<1x4xf32, #tpu.memory_space<vmem>>, %arg4: memref<9x4x4xbf16, #tpu.memory_space<vmem>>, %arg5: memref<1x4xf32, #tpu.memory_space<vmem>>, %arg6: memref<4x8xbf16, #tpu.memory_space<vmem>>, %arg7: memref<4x8xbf16, #tpu.memory_space<vmem>>, %arg8: memref<1x8xf32, #tpu.memory_space<vmem>>, %arg9: memref<1x288x8xf32, #tpu.memory_space<vmem>>, %arg10: memref<372x4xbf16, #tpu.memory_space<vmem>>) attributes {dimension_semantics = [#tpu.dimension_semantics<parallel>], iteration_bounds = array<i64: 2>, scalar_prefetch = 0 : i64, scratch_operands = 1 : i64, tpu.core_type = #tpu.core_type<tc>, window_params = [{transform_indices = @transform_0, window_bounds = array<i64: 1, 372, 2>}, {pipeline_mode = #tpu.pipeline_mode<synchronous>, transform_indices = @transform_1, window_bounds = array<i64: 9, 2, 4>}, {pipeline_mode = #tpu.pipeline_mode<synchronous>, transform_indices = @transform_2, window_bounds = array<i64: 1, 4>}, {pipeline_mode = #tpu.pipeline_mode<synchronous>, transform_indices = @transform_3, window_bounds = array<i64: 9, 4, 4>}, {pipeline_mode = #tpu.pipeline_mode<synchronous>, transform_indices = @transform_4, window_bounds = array<i64: 1, 4>}, {pipeline_mode = #tpu.pipeline_mode<synchronous>, transform_indices = @transform_5, window_bounds = array<i64: 4, 8>}, {pipeline_mode = #tpu.pipeline_mode<synchronous>, transform_indices = @transform_6, window_bounds = array<i64: 4, 8>}, {pipeline_mode = #tpu.pipeline_mode<synchronous>, transform_indices = @transform_7, window_bounds = array<i64: 1, 8>}, {transform_indices = @transform_8, window_bounds = array<i64: 1, 288, 8>}]} {
    %cst = arith.constant 0.000000e+00 : f32
    %0 = vector.broadcast %cst : f32 to vector<324x4xf32>
    %c0 = arith.constant 0 : index
    %c5 = arith.constant 5 : index
    %c0_0 = arith.constant 0 : index
    %1 = vector.load %arg1[%c0, %c5, %c0_0] : memref<1x372x2xbf16, #tpu.memory_space<vmem>>, vector<1x324x2xbf16>
    %2 = vector.shape_cast %1 : vector<1x324x2xbf16> to vector<324x2xbf16>
    %c0_1 = arith.constant 0 : index
    %c0_2 = arith.constant 0 : index
    %c0_3 = arith.constant 0 : index
    %3 = vector.load %arg2[%c0_1, %c0_2, %c0_3] : memref<9x2x4xbf16, #tpu.memory_space<vmem>>, vector<1x2x4xbf16>
    %4 = vector.shape_cast %3 : vector<1x2x4xbf16> to vector<2x4xbf16>
    %cst_4 = arith.constant dense<0.000000e+00> : vector<324x4xf32>
    %5 = tpu.matmul %2, %4, %cst_4 {dimension_numbers = #tpu.dot_dimension_numbers<[1], [0], [0], [1], [0, 0, 1, 1], [], []>} : vector<324x2xbf16>, vector<2x4xbf16>, vector<324x4xf32> -> vector<324x4xf32>
    %6 = arith.addf %0, %5 : vector<324x4xf32>
    %c0_5 = arith.constant 0 : index
    %c6 = arith.constant 6 : index
    %c0_6 = arith.constant 0 : index
    %7 = vector.load %arg1[%c0_5, %c6, %c0_6] : memref<1x372x2xbf16, #tpu.memory_space<vmem>>, vector<1x324x2xbf16>
    %8 = vector.shape_cast %7 : vector<1x324x2xbf16> to vector<324x2xbf16>
    %c1 = arith.constant 1 : index
    %c0_7 = arith.constant 0 : index
    %c0_8 = arith.constant 0 : index
    %9 = vector.load %arg2[%c1, %c0_7, %c0_8] : memref<9x2x4xbf16, #tpu.memory_space<vmem>>, vector<1x2x4xbf16>
    %10 = vector.shape_cast %9 : vector<1x2x4xbf16> to vector<2x4xbf16>
    %cst_9 = arith.constant dense<0.000000e+00> : vector<324x4xf32>
    %11 = tpu.matmul %8, %10, %cst_9 {dimension_numbers = #tpu.dot_dimension_numbers<[1], [0], [0], [1], [0, 0, 1, 1], [], []>} : vector<324x2xbf16>, vector<2x4xbf16>, vector<324x4xf32> -> vector<324x4xf32>
    %12 = arith.addf %6, %11 : vector<324x4xf32>
    %c0_10 = arith.constant 0 : index
    %c7 = arith.constant 7 : index
    %c0_11 = arith.constant 0 : index
    %13 = vector.load %arg1[%c0_10, %c7, %c0_11] : memref<1x372x2xbf16, #tpu.memory_space<vmem>>, vector<1x324x2xbf16>
    %14 = vector.shape_cast %13 : vector<1x324x2xbf16> to vector<324x2xbf16>
    %c2 = arith.constant 2 : index
    %c0_12 = arith.constant 0 : index
    %c0_13 = arith.constant 0 : index
    %15 = vector.load %arg2[%c2, %c0_12, %c0_13] : memref<9x2x4xbf16, #tpu.memory_space<vmem>>, vector<1x2x4xbf16>
    %16 = vector.shape_cast %15 : vector<1x2x4xbf16> to vector<2x4xbf16>
    %cst_14 = arith.constant dense<0.000000e+00> : vector<324x4xf32>
    %17 = tpu.matmul %14, %16, %cst_14 {dimension_numbers = #tpu.dot_dimension_numbers<[1], [0], [0], [1], [0, 0, 1, 1], [], []>} : vector<324x2xbf16>, vector<2x4xbf16>, vector<324x4xf32> -> vector<324x4xf32>
    %18 = arith.addf %12, %17 : vector<324x4xf32>
    %c0_15 = arith.constant 0 : index
    %c23 = arith.constant 23 : index
    %c0_16 = arith.constant 0 : index
    %19 = vector.load %arg1[%c0_15, %c23, %c0_16] : memref<1x372x2xbf16, #tpu.memory_space<vmem>>, vector<1x324x2xbf16>
    %20 = vector.shape_cast %19 : vector<1x324x2xbf16> to vector<324x2xbf16>
    %c3 = arith.constant 3 : index
    %c0_17 = arith.constant 0 : index
    %c0_18 = arith.constant 0 : index
    %21 = vector.load %arg2[%c3, %c0_17, %c0_18] : memref<9x2x4xbf16, #tpu.memory_space<vmem>>, vector<1x2x4xbf16>
    %22 = vector.shape_cast %21 : vector<1x2x4xbf16> to vector<2x4xbf16>
    %cst_19 = arith.constant dense<0.000000e+00> : vector<324x4xf32>
    %23 = tpu.matmul %20, %22, %cst_19 {dimension_numbers = #tpu.dot_dimension_numbers<[1], [0], [0], [1], [0, 0, 1, 1], [], []>} : vector<324x2xbf16>, vector<2x4xbf16>, vector<324x4xf32> -> vector<324x4xf32>
    %24 = arith.addf %18, %23 : vector<324x4xf32>
    %c0_20 = arith.constant 0 : index
    %c24 = arith.constant 24 : index
    %c0_21 = arith.constant 0 : index
    %25 = vector.load %arg1[%c0_20, %c24, %c0_21] : memref<1x372x2xbf16, #tpu.memory_space<vmem>>, vector<1x324x2xbf16>
    %26 = vector.shape_cast %25 : vector<1x324x2xbf16> to vector<324x2xbf16>
    %c4 = arith.constant 4 : index
    %c0_22 = arith.constant 0 : index
    %c0_23 = arith.constant 0 : index
    %27 = vector.load %arg2[%c4, %c0_22, %c0_23] : memref<9x2x4xbf16, #tpu.memory_space<vmem>>, vector<1x2x4xbf16>
    %28 = vector.shape_cast %27 : vector<1x2x4xbf16> to vector<2x4xbf16>
    %cst_24 = arith.constant dense<0.000000e+00> : vector<324x4xf32>
    %29 = tpu.matmul %26, %28, %cst_24 {dimension_numbers = #tpu.dot_dimension_numbers<[1], [0], [0], [1], [0, 0, 1, 1], [], []>} : vector<324x2xbf16>, vector<2x4xbf16>, vector<324x4xf32> -> vector<324x4xf32>
    %30 = arith.addf %24, %29 : vector<324x4xf32>
    %c0_25 = arith.constant 0 : index
    %c25 = arith.constant 25 : index
    %c0_26 = arith.constant 0 : index
    %31 = vector.load %arg1[%c0_25, %c25, %c0_26] : memref<1x372x2xbf16, #tpu.memory_space<vmem>>, vector<1x324x2xbf16>
    %32 = vector.shape_cast %31 : vector<1x324x2xbf16> to vector<324x2xbf16>
    %c5_27 = arith.constant 5 : index
    %c0_28 = arith.constant 0 : index
    %c0_29 = arith.constant 0 : index
    %33 = vector.load %arg2[%c5_27, %c0_28, %c0_29] : memref<9x2x4xbf16, #tpu.memory_space<vmem>>, vector<1x2x4xbf16>
    %34 = vector.shape_cast %33 : vector<1x2x4xbf16> to vector<2x4xbf16>
    %cst_30 = arith.constant dense<0.000000e+00> : vector<324x4xf32>
    %35 = tpu.matmul %32, %34, %cst_30 {dimension_numbers = #tpu.dot_dimension_numbers<[1], [0], [0], [1], [0, 0, 1, 1], [], []>} : vector<324x2xbf16>, vector<2x4xbf16>, vector<324x4xf32> -> vector<324x4xf32>
    %36 = arith.addf %30, %35 : vector<324x4xf32>
    %c0_31 = arith.constant 0 : index
    %c41 = arith.constant 41 : index
    %c0_32 = arith.constant 0 : index
    %37 = vector.load %arg1[%c0_31, %c41, %c0_32] : memref<1x372x2xbf16, #tpu.memory_space<vmem>>, vector<1x324x2xbf16>
    %38 = vector.shape_cast %37 : vector<1x324x2xbf16> to vector<324x2xbf16>
    %c6_33 = arith.constant 6 : index
    %c0_34 = arith.constant 0 : index
    %c0_35 = arith.constant 0 : index
    %39 = vector.load %arg2[%c6_33, %c0_34, %c0_35] : memref<9x2x4xbf16, #tpu.memory_space<vmem>>, vector<1x2x4xbf16>
    %40 = vector.shape_cast %39 : vector<1x2x4xbf16> to vector<2x4xbf16>
    %cst_36 = arith.constant dense<0.000000e+00> : vector<324x4xf32>
    %41 = tpu.matmul %38, %40, %cst_36 {dimension_numbers = #tpu.dot_dimension_numbers<[1], [0], [0], [1], [0, 0, 1, 1], [], []>} : vector<324x2xbf16>, vector<2x4xbf16>, vector<324x4xf32> -> vector<324x4xf32>
    %42 = arith.addf %36, %41 : vector<324x4xf32>
    %c0_37 = arith.constant 0 : index
    %c42 = arith.constant 42 : index
    %c0_38 = arith.constant 0 : index
    %43 = vector.load %arg1[%c0_37, %c42, %c0_38] : memref<1x372x2xbf16, #tpu.memory_space<vmem>>, vector<1x324x2xbf16>
    %44 = vector.shape_cast %43 : vector<1x324x2xbf16> to vector<324x2xbf16>
    %c7_39 = arith.constant 7 : index
    %c0_40 = arith.constant 0 : index
    %c0_41 = arith.constant 0 : index
    %45 = vector.load %arg2[%c7_39, %c0_40, %c0_41] : memref<9x2x4xbf16, #tpu.memory_space<vmem>>, vector<1x2x4xbf16>
    %46 = vector.shape_cast %45 : vector<1x2x4xbf16> to vector<2x4xbf16>
    %cst_42 = arith.constant dense<0.000000e+00> : vector<324x4xf32>
    %47 = tpu.matmul %44, %46, %cst_42 {dimension_numbers = #tpu.dot_dimension_numbers<[1], [0], [0], [1], [0, 0, 1, 1], [], []>} : vector<324x2xbf16>, vector<2x4xbf16>, vector<324x4xf32> -> vector<324x4xf32>
    %48 = arith.addf %42, %47 : vector<324x4xf32>
    %c0_43 = arith.constant 0 : index
    %c43 = arith.constant 43 : index
    %c0_44 = arith.constant 0 : index
    %49 = vector.load %arg1[%c0_43, %c43, %c0_44] : memref<1x372x2xbf16, #tpu.memory_space<vmem>>, vector<1x324x2xbf16>
    %50 = vector.shape_cast %49 : vector<1x324x2xbf16> to vector<324x2xbf16>
    %c8 = arith.constant 8 : index
    %c0_45 = arith.constant 0 : index
    %c0_46 = arith.constant 0 : index
    %51 = vector.load %arg2[%c8, %c0_45, %c0_46] : memref<9x2x4xbf16, #tpu.memory_space<vmem>>, vector<1x2x4xbf16>
    %52 = vector.shape_cast %51 : vector<1x2x4xbf16> to vector<2x4xbf16>
    %cst_47 = arith.constant dense<0.000000e+00> : vector<324x4xf32>
    %53 = tpu.matmul %50, %52, %cst_47 {dimension_numbers = #tpu.dot_dimension_numbers<[1], [0], [0], [1], [0, 0, 1, 1], [], []>} : vector<324x2xbf16>, vector<2x4xbf16>, vector<324x4xf32> -> vector<324x4xf32>
    %54 = arith.addf %48, %53 : vector<324x4xf32>
    %55 = tpu.iota {dimensions = array<i32: 0>} : vector<324x1xi32>
    %56 = arith.sitofp %55 : vector<324x1xi32> to vector<324x1xf32>
    %cst_48 = arith.constant 5.000000e-01 : f32
    %57 = vector.broadcast %cst_48 : f32 to vector<324x1xf32>
    %58 = arith.addf %56, %57 : vector<324x1xf32>
    %cst_49 = arith.constant 0.055555556 : f32
    %59 = vector.broadcast %cst_49 : f32 to vector<324x1xf32>
    %60 = arith.mulf %58, %59 : vector<324x1xf32>
    %61 = math.floor %60 : vector<324x1xf32>
    %cst_50 = arith.constant 1.800000e+01 : f32
    %62 = vector.broadcast %cst_50 : f32 to vector<324x1xf32>
    %63 = arith.mulf %61, %62 : vector<324x1xf32>
    %64 = arith.subf %56, %63 : vector<324x1xf32>
    %cst_51 = arith.constant 1.000000e+00 : f32
    %65 = vector.broadcast %cst_51 : f32 to vector<324x1xf32>
    %66 = arith.cmpf oge, %61, %65 : vector<324x1xf32>
    %cst_52 = arith.constant 1.600000e+01 : f32
    %67 = vector.broadcast %cst_52 : f32 to vector<324x1xf32>
    %68 = arith.cmpf ole, %61, %67 : vector<324x1xf32>
    %69 = arith.andi %66, %68 : vector<324x1xi1>
    %cst_53 = arith.constant 1.000000e+00 : f32
    %70 = vector.broadcast %cst_53 : f32 to vector<324x1xf32>
    %71 = arith.cmpf oge, %64, %70 : vector<324x1xf32>
    %72 = arith.andi %69, %71 : vector<324x1xi1>
    %cst_54 = arith.constant 1.600000e+01 : f32
    %73 = vector.broadcast %cst_54 : f32 to vector<324x1xf32>
    %74 = arith.cmpf ole, %64, %73 : vector<324x1xf32>
    %75 = arith.andi %72, %74 : vector<324x1xi1>
    %c0_55 = arith.constant 0 : index
    %c0_56 = arith.constant 0 : index
    %76 = vector.load %arg3[%c0_55, %c0_56] : memref<1x4xf32, #tpu.memory_space<vmem>>, vector<1x4xf32>
    %77 = vector.broadcast %76 : vector<1x4xf32> to vector<324x4xf32>
    %78 = arith.addf %54, %77 : vector<324x4xf32>
    %cst_57 = arith.constant 3.000000e+01 : f32
    %79 = vector.broadcast %cst_57 : f32 to vector<324x4xf32>
    %80 = arith.minimumf %78, %79 : vector<324x4xf32>
    %81 = math.exp %80 : vector<324x4xf32>
    %cst_58 = arith.constant 1.000000e+00 : f32
    %82 = vector.broadcast %cst_58 : f32 to vector<324x4xf32>
    %83 = arith.addf %82, %81 : vector<324x4xf32>
    %84 = arith.mulf %83, %83 : vector<324x4xf32>
    %cst_59 = arith.constant 1.000000e+00 : f32
    %85 = vector.broadcast %cst_59 : f32 to vector<324x4xf32>
    %86 = arith.subf %84, %85 : vector<324x4xf32>
    %87 = arith.mulf %78, %86 : vector<324x4xf32>
    %cst_60 = arith.constant 1.000000e+00 : f32
    %88 = vector.broadcast %cst_60 : f32 to vector<324x4xf32>
    %89 = arith.addf %84, %88 : vector<324x4xf32>
    %90 = tpu.reciprocal %89 {approx = true} : vector<324x4xf32> -> vector<324x4xf32>
    %91 = arith.mulf %87, %90 : vector<324x4xf32>
    %cst_61 = arith.constant 0.000000e+00 : f32
    %92 = vector.shape_cast %75 : vector<324x1xi1> to vector<324x1xi1>
    %93 = vector.broadcast %92 : vector<324x1xi1> to vector<324x4xi1>
    %94 = vector.broadcast %cst_61 : f32 to vector<324x4xf32>
    %95 = arith.select %93, %91, %94 : vector<324x4xi1>, vector<324x4xf32>
    %cst_62 = arith.constant 0.000000e+00 : bf16
    %96 = vector.broadcast %cst_62 : bf16 to vector<24x4xbf16>
    %c0_63 = arith.constant 0 : index
    %c0_64 = arith.constant 0 : index
    %97 = vector.load %arg10[%c0_63, %c0_64] : memref<372x4xbf16, #tpu.memory_space<vmem>>, vector<24x4xbf16>
    tpu.vector_store %arg10[%c0_63, %c0_64], %96 {strides = array<i32>} : memref<372x4xbf16, #tpu.memory_space<vmem>>, vector<24x4xbf16>,
    %c348 = arith.constant 348 : index
    %c0_65 = arith.constant 0 : index
    %98 = vector.load %arg10[%c348, %c0_65] : memref<372x4xbf16, #tpu.memory_space<vmem>>, vector<24x4xbf16>
    tpu.vector_store %arg10[%c348, %c0_65], %96 {strides = array<i32>} : memref<372x4xbf16, #tpu.memory_space<vmem>>, vector<24x4xbf16>,
    %99 = arith.truncf %95 : vector<324x4xf32> to vector<324x4xbf16>
    %c24_66 = arith.constant 24 : index
    %c0_67 = arith.constant 0 : index
    %100 = vector.load %arg10[%c24_66, %c0_67] : memref<372x4xbf16, #tpu.memory_space<vmem>>, vector<324x4xbf16>
    tpu.vector_store %arg10[%c24_66, %c0_67], %99 {strides = array<i32>} : memref<372x4xbf16, #tpu.memory_space<vmem>>, vector<324x4xbf16>,
    %cst_68 = arith.constant 0.000000e+00 : f32
    %101 = vector.broadcast %cst_68 : f32 to vector<288x4xf32>
    %c23_69 = arith.constant 23 : index
    %c0_70 = arith.constant 0 : index
    %102 = vector.load %arg10[%c23_69, %c0_70] : memref<372x4xbf16, #tpu.memory_space<vmem>>, vector<288x4xbf16>
    %c0_71 = arith.constant 0 : index
    %c0_72 = arith.constant 0 : index
    %c0_73 = arith.constant 0 : index
    %103 = vector.load %arg4[%c0_71, %c0_72, %c0_73] : memref<9x4x4xbf16, #tpu.memory_space<vmem>>, vector<1x4x4xbf16>
    %104 = vector.shape_cast %103 : vector<1x4x4xbf16> to vector<4x4xbf16>
    %cst_74 = arith.constant dense<0.000000e+00> : vector<288x4xf32>
    %105 = tpu.matmul %102, %104, %cst_74 {dimension_numbers = #tpu.dot_dimension_numbers<[1], [0], [0], [1], [0, 0, 1, 1], [], []>} : vector<288x4xbf16>, vector<4x4xbf16>, vector<288x4xf32> -> vector<288x4xf32>
    %106 = arith.addf %101, %105 : vector<288x4xf32>
    %c24_75 = arith.constant 24 : index
    %c0_76 = arith.constant 0 : index
    %107 = vector.load %arg10[%c24_75, %c0_76] : memref<372x4xbf16, #tpu.memory_space<vmem>>, vector<288x4xbf16>
    %c1_77 = arith.constant 1 : index
    %c0_78 = arith.constant 0 : index
    %c0_79 = arith.constant 0 : index
    %108 = vector.load %arg4[%c1_77, %c0_78, %c0_79] : memref<9x4x4xbf16, #tpu.memory_space<vmem>>, vector<1x4x4xbf16>
    %109 = vector.shape_cast %108 : vector<1x4x4xbf16> to vector<4x4xbf16>
    %cst_80 = arith.constant dense<0.000000e+00> : vector<288x4xf32>
    %110 = tpu.matmul %107, %109, %cst_80 {dimension_numbers = #tpu.dot_dimension_numbers<[1], [0], [0], [1], [0, 0, 1, 1], [], []>} : vector<288x4xbf16>, vector<4x4xbf16>, vector<288x4xf32> -> vector<288x4xf32>
    %111 = arith.addf %106, %110 : vector<288x4xf32>
    %c25_81 = arith.constant 25 : index
    %c0_82 = arith.constant 0 : index
    %112 = vector.load %arg10[%c25_81, %c0_82] : memref<372x4xbf16, #tpu.memory_space<vmem>>, vector<288x4xbf16>
    %c2_83 = arith.constant 2 : index
    %c0_84 = arith.constant 0 : index
    %c0_85 = arith.constant 0 : index
    %113 = vector.load %arg4[%c2_83, %c0_84, %c0_85] : memref<9x4x4xbf16, #tpu.memory_space<vmem>>, vector<1x4x4xbf16>
    %114 = vector.shape_cast %113 : vector<1x4x4xbf16> to vector<4x4xbf16>
    %cst_86 = arith.constant dense<0.000000e+00> : vector<288x4xf32>
    %115 = tpu.matmul %112, %114, %cst_86 {dimension_numbers = #tpu.dot_dimension_numbers<[1], [0], [0], [1], [0, 0, 1, 1], [], []>} : vector<288x4xbf16>, vector<4x4xbf16>, vector<288x4xf32> -> vector<288x4xf32>
    %116 = arith.addf %111, %115 : vector<288x4xf32>
    %c41_87 = arith.constant 41 : index
    %c0_88 = arith.constant 0 : index
    %117 = vector.load %arg10[%c41_87, %c0_88] : memref<372x4xbf16, #tpu.memory_space<vmem>>, vector<288x4xbf16>
    %c3_89 = arith.constant 3 : index
    %c0_90 = arith.constant 0 : index
    %c0_91 = arith.constant 0 : index
    %118 = vector.load %arg4[%c3_89, %c0_90, %c0_91] : memref<9x4x4xbf16, #tpu.memory_space<vmem>>, vector<1x4x4xbf16>
    %119 = vector.shape_cast %118 : vector<1x4x4xbf16> to vector<4x4xbf16>
    %cst_92 = arith.constant dense<0.000000e+00> : vector<288x4xf32>
    %120 = tpu.matmul %117, %119, %cst_92 {dimension_numbers = #tpu.dot_dimension_numbers<[1], [0], [0], [1], [0, 0, 1, 1], [], []>} : vector<288x4xbf16>, vector<4x4xbf16>, vector<288x4xf32> -> vector<288x4xf32>
    %121 = arith.addf %116, %120 : vector<288x4xf32>
    %c42_93 = arith.constant 42 : index
    %c0_94 = arith.constant 0 : index
    %122 = vector.load %arg10[%c42_93, %c0_94] : memref<372x4xbf16, #tpu.memory_space<vmem>>, vector<288x4xbf16>
    %c4_95 = arith.constant 4 : index
    %c0_96 = arith.constant 0 : index
    %c0_97 = arith.constant 0 : index
    %123 = vector.load %arg4[%c4_95, %c0_96, %c0_97] : memref<9x4x4xbf16, #tpu.memory_space<vmem>>, vector<1x4x4xbf16>
    %124 = vector.shape_cast %123 : vector<1x4x4xbf16> to vector<4x4xbf16>
    %cst_98 = arith.constant dense<0.000000e+00> : vector<288x4xf32>
    %125 = tpu.matmul %122, %124, %cst_98 {dimension_numbers = #tpu.dot_dimension_numbers<[1], [0], [0], [1], [0, 0, 1, 1], [], []>} : vector<288x4xbf16>, vector<4x4xbf16>, vector<288x4xf32> -> vector<288x4xf32>
    %126 = arith.addf %121, %125 : vector<288x4xf32>
    %c43_99 = arith.constant 43 : index
    %c0_100 = arith.constant 0 : index
    %127 = vector.load %arg10[%c43_99, %c0_100] : memref<372x4xbf16, #tpu.memory_space<vmem>>, vector<288x4xbf16>
    %c5_101 = arith.constant 5 : index
    %c0_102 = arith.constant 0 : index
    %c0_103 = arith.constant 0 : index
    %128 = vector.load %arg4[%c5_101, %c0_102, %c0_103] : memref<9x4x4xbf16, #tpu.memory_space<vmem>>, vector<1x4x4xbf16>
    %129 = vector.shape_cast %128 : vector<1x4x4xbf16> to vector<4x4xbf16>
    %cst_104 = arith.constant dense<0.000000e+00> : vector<288x4xf32>
    %130 = tpu.matmul %127, %129, %cst_104 {dimension_numbers = #tpu.dot_dimension_numbers<[1], [0], [0], [1], [0, 0, 1, 1], [], []>} : vector<288x4xbf16>, vector<4x4xbf16>, vector<288x4xf32> -> vector<288x4xf32>
    %131 = arith.addf %126, %130 : vector<288x4xf32>
    %c59 = arith.constant 59 : index
    %c0_105 = arith.constant 0 : index
    %132 = vector.load %arg10[%c59, %c0_105] : memref<372x4xbf16, #tpu.memory_space<vmem>>, vector<288x4xbf16>
    %c6_106 = arith.constant 6 : index
    %c0_107 = arith.constant 0 : index
    %c0_108 = arith.constant 0 : index
    %133 = vector.load %arg4[%c6_106, %c0_107, %c0_108] : memref<9x4x4xbf16, #tpu.memory_space<vmem>>, vector<1x4x4xbf16>
    %134 = vector.shape_cast %133 : vector<1x4x4xbf16> to vector<4x4xbf16>
    %cst_109 = arith.constant dense<0.000000e+00> : vector<288x4xf32>
    %135 = tpu.matmul %132, %134, %cst_109 {dimension_numbers = #tpu.dot_dimension_numbers<[1], [0], [0], [1], [0, 0, 1, 1], [], []>} : vector<288x4xbf16>, vector<4x4xbf16>, vector<288x4xf32> -> vector<288x4xf32>
    %136 = arith.addf %131, %135 : vector<288x4xf32>
    %c60 = arith.constant 60 : index
    %c0_110 = arith.constant 0 : index
    %137 = vector.load %arg10[%c60, %c0_110] : memref<372x4xbf16, #tpu.memory_space<vmem>>, vector<288x4xbf16>
    %c7_111 = arith.constant 7 : index
    %c0_112 = arith.constant 0 : index
    %c0_113 = arith.constant 0 : index
    %138 = vector.load %arg4[%c7_111, %c0_112, %c0_113] : memref<9x4x4xbf16, #tpu.memory_space<vmem>>, vector<1x4x4xbf16>
    %139 = vector.shape_cast %138 : vector<1x4x4xbf16> to vector<4x4xbf16>
    %cst_114 = arith.constant dense<0.000000e+00> : vector<288x4xf32>
    %140 = tpu.matmul %137, %139, %cst_114 {dimension_numbers = #tpu.dot_dimension_numbers<[1], [0], [0], [1], [0, 0, 1, 1], [], []>} : vector<288x4xbf16>, vector<4x4xbf16>, vector<288x4xf32> -> vector<288x4xf32>
    %141 = arith.addf %136, %140 : vector<288x4xf32>
    %c61 = arith.constant 61 : index
    %c0_115 = arith.constant 0 : index
    %142 = vector.load %arg10[%c61, %c0_115] : memref<372x4xbf16, #tpu.memory_space<vmem>>, vector<288x4xbf16>
    %c8_116 = arith.constant 8 : index
    %c0_117 = arith.constant 0 : index
    %c0_118 = arith.constant 0 : index
    %143 = vector.load %arg4[%c8_116, %c0_117, %c0_118] : memref<9x4x4xbf16, #tpu.memory_space<vmem>>, vector<1x4x4xbf16>
    %144 = vector.shape_cast %143 : vector<1x4x4xbf16> to vector<4x4xbf16>
    %cst_119 = arith.constant dense<0.000000e+00> : vector<288x4xf32>
    %145 = tpu.matmul %142, %144, %cst_119 {dimension_numbers = #tpu.dot_dimension_numbers<[1], [0], [0], [1], [0, 0, 1, 1], [], []>} : vector<288x4xbf16>, vector<4x4xbf16>, vector<288x4xf32> -> vector<288x4xf32>
    %146 = arith.addf %141, %145 : vector<288x4xf32>
    %c0_120 = arith.constant 0 : index
    %c0_121 = arith.constant 0 : index
    %147 = vector.load %arg5[%c0_120, %c0_121] : memref<1x4xf32, #tpu.memory_space<vmem>>, vector<1x4xf32>
    %148 = vector.broadcast %147 : vector<1x4xf32> to vector<288x4xf32>
    %149 = arith.addf %146, %148 : vector<288x4xf32>
    %cst_122 = arith.constant 3.000000e+01 : f32
    %150 = vector.broadcast %cst_122 : f32 to vector<288x4xf32>
    %151 = arith.minimumf %149, %150 : vector<288x4xf32>
    %152 = math.exp %151 : vector<288x4xf32>
    %cst_123 = arith.constant 1.000000e+00 : f32
    %153 = vector.broadcast %cst_123 : f32 to vector<288x4xf32>
    %154 = arith.addf %153, %152 : vector<288x4xf32>
    %155 = arith.mulf %154, %154 : vector<288x4xf32>
    %cst_124 = arith.constant 1.000000e+00 : f32
    %156 = vector.broadcast %cst_124 : f32 to vector<288x4xf32>
    %157 = arith.subf %155, %156 : vector<288x4xf32>
    %158 = arith.mulf %149, %157 : vector<288x4xf32>
    %cst_125 = arith.constant 1.000000e+00 : f32
    %159 = vector.broadcast %cst_125 : f32 to vector<288x4xf32>
    %160 = arith.addf %155, %159 : vector<288x4xf32>
    %161 = tpu.reciprocal %160 {approx = true} : vector<288x4xf32> -> vector<288x4xf32>
    %162 = arith.mulf %158, %161 : vector<288x4xf32>
    %c42_126 = arith.constant 42 : index
    %c0_127 = arith.constant 0 : index
    %163 = vector.load %arg10[%c42_126, %c0_127] : memref<372x4xbf16, #tpu.memory_space<vmem>>, vector<288x4xbf16>
    %c0_128 = arith.constant 0 : index
    %c0_129 = arith.constant 0 : index
    %164 = vector.load %arg6[%c0_128, %c0_129] : memref<4x8xbf16, #tpu.memory_space<vmem>>, vector<4x8xbf16>
    %cst_130 = arith.constant dense<0.000000e+00> : vector<288x8xf32>
    %165 = tpu.matmul %163, %164, %cst_130 {dimension_numbers = #tpu.dot_dimension_numbers<[1], [0], [0], [1], [0, 0, 1, 1], [], []>} : vector<288x4xbf16>, vector<4x8xbf16>, vector<288x8xf32> -> vector<288x8xf32>
    %166 = arith.truncf %162 : vector<288x4xf32> to vector<288x4xbf16>
    %c0_131 = arith.constant 0 : index
    %c0_132 = arith.constant 0 : index
    %167 = vector.load %arg7[%c0_131, %c0_132] : memref<4x8xbf16, #tpu.memory_space<vmem>>, vector<4x8xbf16>
    %cst_133 = arith.constant dense<0.000000e+00> : vector<288x8xf32>
    %168 = tpu.matmul %166, %167, %cst_133 {dimension_numbers = #tpu.dot_dimension_numbers<[1], [0], [0], [1], [0, 0, 1, 1], [], []>} : vector<288x4xbf16>, vector<4x8xbf16>, vector<288x8xf32> -> vector<288x8xf32>
    %169 = arith.addf %165, %168 : vector<288x8xf32>
    %c0_134 = arith.constant 0 : index
    %c0_135 = arith.constant 0 : index
    %170 = vector.load %arg8[%c0_134, %c0_135] : memref<1x8xf32, #tpu.memory_space<vmem>>, vector<1x8xf32>
    %171 = vector.broadcast %170 : vector<1x8xf32> to vector<288x8xf32>
    %172 = arith.addf %169, %171 : vector<288x8xf32>
    %cst_136 = arith.constant 3.000000e+01 : f32
    %173 = vector.broadcast %cst_136 : f32 to vector<288x8xf32>
    %174 = arith.minimumf %172, %173 : vector<288x8xf32>
    %175 = math.exp %174 : vector<288x8xf32>
    %cst_137 = arith.constant 1.000000e+00 : f32
    %176 = vector.broadcast %cst_137 : f32 to vector<288x8xf32>
    %177 = arith.addf %176, %175 : vector<288x8xf32>
    %178 = arith.mulf %177, %177 : vector<288x8xf32>
    %cst_138 = arith.constant 1.000000e+00 : f32
    %179 = vector.broadcast %cst_138 : f32 to vector<288x8xf32>
    %180 = arith.subf %178, %179 : vector<288x8xf32>
    %181 = arith.mulf %172, %180 : vector<288x8xf32>
    %cst_139 = arith.constant 1.000000e+00 : f32
    %182 = vector.broadcast %cst_139 : f32 to vector<288x8xf32>
    %183 = arith.addf %178, %182 : vector<288x8xf32>
    %184 = tpu.reciprocal %183 {approx = true} : vector<288x8xf32> -> vector<288x8xf32>
    %185 = arith.mulf %181, %184 : vector<288x8xf32>
    %c0_140 = arith.constant 0 : index
    %c0_141 = arith.constant 0 : index
    %c0_142 = arith.constant 0 : index
    %186 = vector.load %arg9[%c0_140, %c0_141, %c0_142] : memref<1x288x8xf32, #tpu.memory_space<vmem>>, vector<1x288x8xf32>
    %187 = vector.shape_cast %186 : vector<1x288x8xf32> to vector<288x8xf32>
    %188 = vector.shape_cast %185 : vector<288x8xf32> to vector<1x288x8xf32>
    tpu.vector_store %arg9[%c0_140, %c0_141, %c0_142], %188 {strides = array<i32>} : memref<1x288x8xf32, #tpu.memory_space<vmem>>, vector<1x288x8xf32>,
    return
  }
  func.func @transform_0(%arg0: i32) -> (i32, i32, i32) {
    %c0_i32 = arith.constant 0 : i32
    %c0_i32_0 = arith.constant 0 : i32
    %c0_i32_1 = arith.constant 0 : i32
    return %arg0, %c0_i32, %c0_i32_0 : i32, i32, i32
  }
  func.func @transform_1(%arg0: i32) -> (i32, i32, i32) {
    %c0_i32 = arith.constant 0 : i32
    %c0_i32_0 = arith.constant 0 : i32
    %c0_i32_1 = arith.constant 0 : i32
    %c0_i32_2 = arith.constant 0 : i32
    return %c0_i32, %c0_i32_0, %c0_i32_1 : i32, i32, i32
  }
  func.func @transform_2(%arg0: i32) -> (i32, i32) {
    %c0_i32 = arith.constant 0 : i32
    %c0_i32_0 = arith.constant 0 : i32
    %c0_i32_1 = arith.constant 0 : i32
    return %c0_i32, %c0_i32_0 : i32, i32
  }
  func.func @transform_3(%arg0: i32) -> (i32, i32, i32) {
    %c0_i32 = arith.constant 0 : i32
    %c0_i32_0 = arith.constant 0 : i32
    %c0_i32_1 = arith.constant 0 : i32
    %c0_i32_2 = arith.constant 0 : i32
    return %c0_i32, %c0_i32_0, %c0_i32_1 : i32, i32, i32
  }
  func.func @transform_4(%arg0: i32) -> (i32, i32) {
    %c0_i32 = arith.constant 0 : i32
    %c0_i32_0 = arith.constant 0 : i32
    %c0_i32_1 = arith.constant 0 : i32
    return %c0_i32, %c0_i32_0 : i32, i32
  }
  func.func @transform_5(%arg0: i32) -> (i32, i32) {
    %c0_i32 = arith.constant 0 : i32
    %c0_i32_0 = arith.constant 0 : i32
    %c0_i32_1 = arith.constant 0 : i32
    return %c0_i32, %c0_i32_0 : i32, i32
  }
  func.func @transform_6(%arg0: i32) -> (i32, i32) {
    %c0_i32 = arith.constant 0 : i32
    %c0_i32_0 = arith.constant 0 : i32
    %c0_i32_1 = arith.constant 0 : i32
    return %c0_i32, %c0_i32_0 : i32, i32
  }
  func.func @transform_7(%arg0: i32) -> (i32, i32) {
    %c0_i32 = arith.constant 0 : i32
    %c0_i32_0 = arith.constant 0 : i32
    %c0_i32_1 = arith.constant 0 : i32
    return %c0_i32, %c0_i32_0 : i32, i32
  }
  func.func @transform_8(%arg0: i32) -> (i32, i32, i32) {
    %c0_i32 = arith.constant 0 : i32
    %c0_i32_0 = arith.constant 0 : i32
    %c0_i32_1 = arith.constant 0 : i32
    return %arg0, %c0_i32, %c0_i32_0 : i32, i32, i32
  }
}

</mosaic_0001>

<llo_original>
// kernel: tpu_custom_call.1
$region0: #{tpu_custom_call.1}
  #allocation0 [shape = 'u32[]', space=smem, size = 0x4, offset = 0x4, fixed_abs, tag = 'smem constant byte address 0x4 - core index']
  #allocation1 [shape = 'u32[144,128]{1,0:T(1,128)}', space=vmem, size = 0x12000, scoped, tag = 'internal scratch']
  #allocation2 [shape = 'bf16[372,4]{1,0:T(8,128)(2,1)}', space=vmem, size = 0x17800, scoped, tag = 'scratch operand']
  %s0 = inlined_call_operand.vmem [shape: bf16[2,372,2], index: 0, kind: input, shape index: {}]
  %s1 = inlined_call_operand.vmem [shape: bf16[9,2,4], index: 1, kind: input, shape index: {}]
  %s2 = inlined_call_operand.vmem [shape: f32[1,4], index: 2, kind: input, shape index: {}]
  %s3 = inlined_call_operand.vmem [shape: bf16[9,4,4], index: 3, kind: input, shape index: {}]
  %s4 = inlined_call_operand.vmem [shape: f32[1,4], index: 4, kind: input, shape index: {}]
  %s5 = inlined_call_operand.vmem [shape: bf16[4,8], index: 5, kind: input, shape index: {}]
  %s6 = inlined_call_operand.vmem [shape: bf16[4,8], index: 6, kind: input, shape index: {}]
  %s7 = inlined_call_operand.vmem [shape: f32[1,8], index: 7, kind: input, shape index: {}]
  %s8 = inlined_call_operand.vmem [shape: f32[2,288,8], index: 8, kind: output, shape index: {}]
  %s9 = sld [smem:[#allocation0]]
  $region65: #{tpu_custom_call.1} parent=0
    _
  %s11 = ssub.s32 1, %s9
  %s12 = scalar_select 0, %s11, %s9
  loop: start=0, step=1, limit=4
  $region2: #{tpu_custom_call.1} parent=0 // loop_pre_header
    _
  $region3: #{tpu_custom_call.1} parent=0 // loop_header
    %s14 = sphi 0, %s18
    %p15 = scmp.ge.s32.totalorder %s14, 4
    %s24 = sphi 0, %s26
    %s27 = sphi 0, %s24
    %s28 = sphi 0, %s27
    %s44 = sphi 0, %s28
    %s48 = sphi 0, %s48
    %s50 = sphi 0, %s48
    %s51 = sphi 0, %s50
    %s65 = sphi 0, %s51
    %s69 = sphi 0, %s69
    %s71 = sphi 0, %s69
    %s72 = sphi 0, %s71
    %s86 = sphi 0, %s72
    %s90 = sphi 0, %s90
    %s92 = sphi 0, %s90
    %s93 = sphi 0, %s92
    %s107 = sphi 0, %s93
    %s111 = sphi 0, %s111
    %s113 = sphi 0, %s111
    %s114 = sphi 0, %s113
    %s128 = sphi 0, %s114
    %s132 = sphi 0, %s132
    %s134 = sphi 0, %s132
    %s135 = sphi 0, %s134
    %s149 = sphi 0, %s135
    %s153 = sphi 0, %s153
    %s155 = sphi 0, %s153
    %s156 = sphi 0, %s155
    %s170 = sphi 0, %s156
    %s174 = sphi 0, %s174
    %s176 = sphi 0, %s174
    %s177 = sphi 0, %s176
    %s191 = sphi 0, %s177
    %s197 = sphi 0, %s199
    %s200 = sphi 0, %s197
    %s201 = sphi 0, %s200
    %s217 = sphi 0, %s201
  $region4: #{tpu_custom_call.1} parent=0 // loop_header_branch
    %17 = sbr.rel (%p15) target = $region8
  $region5: #{tpu_custom_call.1} parent=0 // loop_body
    %s19 = ssub.s32 %s14, 1
    %s20 = ssub.s32 %s14, 2
    %s21 = sadd.s32 %s14, 1
    %s22 = ssub.s32 %s14, %s21
    %p23 = scmp.eq.s32.totalorder %s22, 0
    %s25 = sadd.s32 %s24, 1
    %s26 = scalar_select %p23, %s24, %s25
    %p29 = pneg %p23
    %p30 = scmp.eq.s32.totalorder %s14, 1
    %p31 = por %p29, %p30
    %p32 = scmp.ne.s32.totalorder %s24, %s27
    %p33 = scmp.eq.s32.totalorder %s14, 0
    %p34 = por %p32, %p33
    %p35 = scmp.ne.s32.totalorder %s24, %s27
    %p36 = scmp.eq.s32.totalorder %s19, 1
    %p37 = por %p35, %p36
    %p38 = scmp.ne.s32.totalorder %s27, %s28
    %p39 = scmp.eq.s32.totalorder %s19, 0
    %p40 = por %p38, %p39
    %p41 = scmp.ne.s32.totalorder %s27, %s28
    %p42 = scmp.eq.s32.totalorder %s20, 1
    %p43 = por %p41, %p42
    %p45 = scmp.ne.s32.totalorder %s28, %s44
    %p46 = scmp.eq.s32.totalorder %s20, 0
    %p47 = por %p45, %p46
    %s49 = sadd.s32 %s48, 1
    %p52 = scmp.eq.s32.totalorder %s14, 1
    %p53 = scmp.ne.s32.totalorder %s48, %s50
    %p54 = scmp.eq.s32.totalorder %s14, 0
    %p55 = por %p53, %p54
    %p56 = scmp.ne.s32.totalorder %s48, %s50
    %p57 = scmp.eq.s32.totalorder %s19, 1
    %p58 = por %p56, %p57
    %p59 = scmp.ne.s32.totalorder %s50, %s51
    %p60 = scmp.eq.s32.totalorder %s19, 0
    %p61 = por %p59, %p60
    %p62 = scmp.ne.s32.totalorder %s50, %s51
    %p63 = scmp.eq.s32.totalorder %s20, 1
    %p64 = por %p62, %p63
    %p66 = scmp.ne.s32.totalorder %s51, %s65
    %p67 = scmp.eq.s32.totalorder %s20, 0
    %p68 = por %p66, %p67
    %s70 = sadd.s32 %s69, 1
    %p73 = scmp.eq.s32.totalorder %s14, 1
    %p74 = scmp.ne.s32.totalorder %s69, %s71
    %p75 = scmp.eq.s32.totalorder %s14, 0
    %p76 = por %p74, %p75
    %p77 = scmp.ne.s32.totalorder %s69, %s71
    %p78 = scmp.eq.s32.totalorder %s19, 1
    %p79 = por %p77, %p78
    %p80 = scmp.ne.s32.totalorder %s71, %s72
    %p81 = scmp.eq.s32.totalorder %s19, 0
    %p82 = por %p80, %p81
    %p83 = scmp.ne.s32.totalorder %s71, %s72
    %p84 = scmp.eq.s32.totalorder %s20, 1
    %p85 = por %p83, %p84
    %p87 = scmp.ne.s32.totalorder %s72, %s86
    %p88 = scmp.eq.s32.totalorder %s20, 0
    %p89 = por %p87, %p88
    %s91 = sadd.s32 %s90, 1
    %p94 = scmp.eq.s32.totalorder %s14, 1
    %p95 = scmp.ne.s32.totalorder %s90, %s92
    %p96 = scmp.eq.s32.totalorder %s14, 0
    %p97 = por %p95, %p96
    %p98 = scmp.ne.s32.totalorder %s90, %s92
    %p99 = scmp.eq.s32.totalorder %s19, 1
    %p100 = por %p98, %p99
    %p101 = scmp.ne.s32.totalorder %s92, %s93
    %p102 = scmp.eq.s32.totalorder %s19, 0
    %p103 = por %p101, %p102
    %p104 = scmp.ne.s32.totalorder %s92, %s93
    %p105 = scmp.eq.s32.totalorder %s20, 1
    %p106 = por %p104, %p105
    %p108 = scmp.ne.s32.totalorder %s93, %s107
    %p109 = scmp.eq.s32.totalorder %s20, 0
    %p110 = por %p108, %p109
    %s112 = sadd.s32 %s111, 1
    %p115 = scmp.eq.s32.totalorder %s14, 1
    %p116 = scmp.ne.s32.totalorder %s111, %s113
    %p117 = scmp.eq.s32.totalorder %s14, 0
    %p118 = por %p116, %p117
    %p119 = scmp.ne.s32.totalorder %s111, %s113
    %p120 = scmp.eq.s32.totalorder %s19, 1
    %p121 = por %p119, %p120
    %p122 = scmp.ne.s32.totalorder %s113, %s114
    %p123 = scmp.eq.s32.totalorder %s19, 0
    %p124 = por %p122, %p123
    %p125 = scmp.ne.s32.totalorder %s113, %s114
    %p126 = scmp.eq.s32.totalorder %s20, 1
    %p127 = por %p125, %p126
    %p129 = scmp.ne.s32.totalorder %s114, %s128
    %p130 = scmp.eq.s32.totalorder %s20, 0
    %p131 = por %p129, %p130
    %s133 = sadd.s32 %s132, 1
    %p136 = scmp.eq.s32.totalorder %s14, 1
    %p137 = scmp.ne.s32.totalorder %s132, %s134
    %p138 = scmp.eq.s32.totalorder %s14, 0
    %p139 = por %p137, %p138
    %p140 = scmp.ne.s32.totalorder %s132, %s134
    %p141 = scmp.eq.s32.totalorder %s19, 1
    %p142 = por %p140, %p141
    %p143 = scmp.ne.s32.totalorder %s134, %s135
    %p144 = scmp.eq.s32.totalorder %s19, 0
    %p145 = por %p143, %p144
    %p146 = scmp.ne.s32.totalorder %s134, %s135
    %p147 = scmp.eq.s32.totalorder %s20, 1
    %p148 = por %p146, %p147
    %p150 = scmp.ne.s32.totalorder %s135, %s149
    %p151 = scmp.eq.s32.totalorder %s20, 0
    %p152 = por %p150, %p151
    %s154 = sadd.s32 %s153, 1
    %p157 = scmp.eq.s32.totalorder %s14, 1
    %p158 = scmp.ne.s32.totalorder %s153, %s155
    %p159 = scmp.eq.s32.totalorder %s14, 0
    %p160 = por %p158, %p159
    %p161 = scmp.ne.s32.totalorder %s153, %s155
    %p162 = scmp.eq.s32.totalorder %s19, 1
    %p163 = por %p161, %p162
    %p164 = scmp.ne.s32.totalorder %s155, %s156
    %p165 = scmp.eq.s32.totalorder %s19, 0
    %p166 = por %p164, %p165
    %p167 = scmp.ne.s32.totalorder %s155, %s156
    %p168 = scmp.eq.s32.totalorder %s20, 1
    %p169 = por %p167, %p168
    %p171 = scmp.ne.s32.totalorder %s156, %s170
    %p172 = scmp.eq.s32.totalorder %s20, 0
    %p173 = por %p171, %p172
    %s175 = sadd.s32 %s174, 1
    %p178 = scmp.eq.s32.totalorder %s14, 1
    %p179 = scmp.ne.s32.totalorder %s174, %s176
    %p180 = scmp.eq.s32.totalorder %s14, 0
    %p181 = por %p179, %p180
    %p182 = scmp.ne.s32.totalorder %s174, %s176
    %p183 = scmp.eq.s32.totalorder %s19, 1
    %p184 = por %p182, %p183
    %p185 = scmp.ne.s32.totalorder %s176, %s177
    %p186 = scmp.eq.s32.totalorder %s19, 0
    %p187 = por %p185, %p186
    %p188 = scmp.ne.s32.totalorder %s176, %s177
    %p189 = scmp.eq.s32.totalorder %s20, 1
    %p190 = por %p188, %p189
    %p192 = scmp.ne.s32.totalorder %s177, %s191
    %p193 = scmp.eq.s32.totalorder %s20, 0
    %p194 = por %p192, %p193
    %s195 = ssub.s32 %s14, %s21
    %p196 = scmp.eq.s32.totalorder %s195, 0
    %s198 = sadd.s32 %s197, 1
    %s199 = scalar_select %p196, %s197, %s198
    %p202 = pneg %p196
    %p203 = scmp.eq.s32.totalorder %s14, 1
    %p204 = por %p202, %p203
    %p205 = scmp.ne.s32.totalorder %s197, %s200
    %p206 = scmp.eq.s32.totalorder %s14, 0
    %p207 = por %p205, %p206
    %p208 = scmp.ne.s32.totalorder %s197, %s200
    %p209 = scmp.eq.s32.totalorder %s19, 1
    %p210 = por %p208, %p209
    %p211 = scmp.ne.s32.totalorder %s200, %s201
    %p212 = scmp.eq.s32.totalorder %s19, 0
    %p213 = por %p211, %p212
    %p214 = scmp.ne.s32.totalorder %s200, %s201
    %p215 = scmp.eq.s32.totalorder %s20, 1
    %p216 = por %p214, %p215
    %p218 = scmp.ne.s32.totalorder %s201, %s217
    %p219 = scmp.eq.s32.totalorder %s20, 0
    %p220 = por %p218, %p219
    %p221 = scmp.le.s32.totalorder 1, %s14
    %p222 = scmp.lt.s32.totalorder %s14, 3
    %p223 = pnand %p221, %p222
    %p224 = pneg %p223
    // Predicated region
    $region9: #{tpu_custom_call.1} parent=5 // pred_check
      _
    $region10: #{tpu_custom_call.1} parent=5 // pred_check_branch
      %226 = sbr.rel (%p223) target = $region12
    $region11: #{tpu_custom_call.1} parent=5 // pred_region
      %s227 = ssub.s32 %s14, 1
      // Predicated region
      $region13: #{tpu_custom_call.1} parent=11 // pred_check
        %p228 = pneg %p61
      $region14: #{tpu_custom_call.1} parent=11 // pred_check_branch
        %230 = sbr.rel (%p228) target = $region16
      $region15: #{tpu_custom_call.1} parent=11 // pred_region
        _
      $region16: #{tpu_custom_call.1} parent=11 // pred_fallthru
        _
      // Predicated region
      $region17: #{tpu_custom_call.1} parent=11 // pred_check
        %p231 = pneg %p82
      $region18: #{tpu_custom_call.1} parent=11 // pred_check_branch
        %233 = sbr.rel (%p231) target = $region20
      $region19: #{tpu_custom_call.1} parent=11 // pred_region
        _
      $region20: #{tpu_custom_call.1} parent=11 // pred_fallthru
        _
      // Predicated region
      $region21: #{tpu_custom_call.1} parent=11 // pred_check
        %p234 = pneg %p103
      $region22: #{tpu_custom_call.1} parent=11 // pred_check_branch
        %236 = sbr.rel (%p234) target = $region24
      $region23: #{tpu_custom_call.1} parent=11 // pred_region
        _
      $region24: #{tpu_custom_call.1} parent=11 // pred_fallthru
        _
      // Predicated region
      $region25: #{tpu_custom_call.1} parent=11 // pred_check
        %p237 = pneg %p124
      $region26: #{tpu_custom_call.1} parent=11 // pred_check_branch
        %239 = sbr.rel (%p237) target = $region28
      $region27: #{tpu_custom_call.1} parent=11 // pred_region
        _
      $region28: #{tpu_custom_call.1} parent=11 // pred_fallthru
        _
      // Predicated region
      $region29: #{tpu_custom_call.1} parent=11 // pred_check
        %p240 = pneg %p145
      $region30: #{tpu_custom_call.1} parent=11 // pred_check_branch
        %242 = sbr.rel (%p240) target = $region32
      $region31: #{tpu_custom_call.1} parent=11 // pred_region
        _
      $region32: #{tpu_custom_call.1} parent=11 // pred_fallthru
        _
      // Predicated region
      $region33: #{tpu_custom_call.1} parent=11 // pred_check
        %p243 = pneg %p166
      $region34: #{tpu_custom_call.1} parent=11 // pred_check_branch
        %245 = sbr.rel (%p243) target = $region36
      $region35: #{tpu_custom_call.1} parent=11 // pred_region
        _
      $region36: #{tpu_custom_call.1} parent=11 // pred_fallthru
        _
      // Predicated region
      $region37: #{tpu_custom_call.1} parent=11 // pred_check
        %p246 = pneg %p187
      $region38: #{tpu_custom_call.1} parent=11 // pred_check_branch
        %248 = sbr.rel (%p246) target = $region40
      $region39: #{tpu_custom_call.1} parent=11 // pred_region
        _
      $region40: #{tpu_custom_call.1} parent=11 // pred_fallthru
        _
    $region12: #{tpu_custom_call.1} parent=5 // pred_fallthru
      _
    %p249 = scmp.lt.s32.totalorder %s14, 2
    // Predicated region
    $region41: #{tpu_custom_call.1} parent=5 // pred_check
      %p250 = pneg %p249
    $region42: #{tpu_custom_call.1} parent=5 // pred_check_branch
      %252 = sbr.rel (%p250) target = $region44
    $region43: #{tpu_custom_call.1} parent=5 // pred_region
      // Predicated region
      $region45: #{tpu_custom_call.1} parent=43 // pred_check
        %p253 = pneg %p34
      $region46: #{tpu_custom_call.1} parent=43 // pred_check_branch
        %255 = sbr.rel (%p253) target = $region48
      $region47: #{tpu_custom_call.1} parent=43 // pred_region
        %p256 = scmp.lt.s32.totalorder %s14, 1
        %s257 = scalar_select %p256, %s14, 1
        %s258 = smul.addr %s257, 47
        %s259 = smul.addr %s258, 4
        %s260 = scalar_lea.vmem %s0, %s259
      $region48: #{tpu_custom_call.1} parent=43 // pred_fallthru
        _
    $region44: #{tpu_custom_call.1} parent=5 // pred_fallthru
      _
    %p261 = scmp.le.s32.totalorder 1, %s14
    %p262 = scmp.lt.s32.totalorder %s14, 3
    %p263 = pnand %p261, %p262
    %p264 = pneg %p263
    // Predicated region
    $region49: #{tpu_custom_call.1} parent=5 // pred_check
      _
    $region50: #{tpu_custom_call.1} parent=5 // pred_check_branch
      %266 = sbr.rel (%p263) target = $region52
    $region51: #{tpu_custom_call.1} parent=5 // pred_region
      %s267 = ssub.s32 %s14, 1
      %p268 = scmp.lt.s32.totalorder %s19, 1
      %s269 = scalar_select %p268, %s19, 1
      %s270 = smul.addr %s269, 47
      %s271 = smul.addr %s270, 4
      %s272 = scalar_lea.vmem %s0, %s271
      %p273 = pneg %p40
      %p274 = pneg %p37
      %p275 = pneg %p61
      %p276 = pneg %p58
      %p277 = pneg %p82
      %p278 = pneg %p79
      %p279 = pneg %p103
      %p280 = pneg %p100
      %p281 = pneg %p124
      %p282 = pneg %p121
      %p283 = pneg %p145
      %p284 = pneg %p142
      %p285 = pneg %p166
      %p286 = pneg %p163
      %p287 = pneg %p187
      %p288 = pneg %p184
      %p289 = pneg %p213
      %p290 = pneg %p210
      %p291 = scmp.lt.s32.totalorder %s19, 1
      %s292 = scalar_select %p291, %s19, 1
      %s293 = smul.addr %s292, 36
      %s294 = smul.addr %s293, 8
      %s295 = scalar_lea.vmem %s8, %s294
      %p296 = scmp.lt.s32.totalorder %s19, 1
      %s297 = scalar_select %p296, %s19, 1
      %s298 = smul.addr %s297, 47
      %s299 = smul.addr %s298, 4
      %s300 = scalar_lea.vmem %s0, %s299
      %p301 = scmp.lt.s32.totalorder %s19, 1
      %s302 = scalar_select %p301, %s19, 1
      %s303 = smul.addr %s302, 36
      %s304 = smul.addr %s303, 8
      %s305 = scalar_lea.vmem %s8, %s304
      %v307 = vld [vmem:[%s300] sm:$0xc]
      %v308 = vld [vmem:[%s300 + $0x4] sm:$0xf]
      %v309 = vld [vmem:[%s300 + $0x8] sm:$0xf]
      %v310 = vld [vmem:[%s300 + $0xc] sm:$0xf]
      %v311 = vld [vmem:[%s300 + $0x10] sm:$0xf]
      %v312 = vld [vmem:[%s300 + $0x14] sm:$0xf]
      %v313 = vld [vmem:[%s300 + $0x18] sm:$0xf]
      %v314 = vld [vmem:[%s300 + $0x1c] sm:$0xf]
      %v315 = vld [vmem:[%s300 + $0x20] sm:$0xf]
      %v316 = vld [vmem:[%s300 + $0x24] sm:$0xf]
      %v317 = vld [vmem:[%s300 + $0x28] sm:$0xf]
      %v318 = vld [vmem:[%s300 + $0x2c] sm:$0xf]
      %v319 = vld [vmem:[%s300 + $0x30] sm:$0xf]
      %v320 = vld [vmem:[%s300 + $0x34] sm:$0xf]
      %v321 = vld [vmem:[%s300 + $0x38] sm:$0xf]
      %v322 = vld [vmem:[%s300 + $0x3c] sm:$0xf]
      %v323 = vld [vmem:[%s300 + $0x40] sm:$0xf]
      %v324 = vld [vmem:[%s300 + $0x44] sm:$0xf]
      %v325 = vld [vmem:[%s300 + $0x48] sm:$0xf]
      %v326 = vld [vmem:[%s300 + $0x4c] sm:$0xf]
      %v327 = vld [vmem:[%s300 + $0x50] sm:$0xf]
      %v328 = vld [vmem:[%s300 + $0x54] sm:$0xf]
      %v329 = vld [vmem:[%s300 + $0x58] sm:$0xf]
      %v330 = vld [vmem:[%s300 + $0x5c] sm:$0xf]
      %v331 = vld [vmem:[%s300 + $0x60] sm:$0xf]
      %v332 = vld [vmem:[%s300 + $0x64] sm:$0xf]
      %v333 = vld [vmem:[%s300 + $0x68] sm:$0xf]
      %v334 = vld [vmem:[%s300 + $0x6c] sm:$0xf]
      %v335 = vld [vmem:[%s300 + $0x70] sm:$0xf]
      %v336 = vld [vmem:[%s300 + $0x74] sm:$0xf]
      %v337 = vld [vmem:[%s300 + $0x78] sm:$0xf]
      %v338 = vld [vmem:[%s300 + $0x7c] sm:$0xf]
      %v339 = vld [vmem:[%s300 + $0x80] sm:$0xf]
      %v340 = vld [vmem:[%s300 + $0x84] sm:$0xf]
      %v341 = vld [vmem:[%s300 + $0x88] sm:$0xf]
      %v342 = vld [vmem:[%s300 + $0x8c] sm:$0xf]
      %v343 = vld [vmem:[%s300 + $0x90] sm:$0xf]
      %v344 = vld [vmem:[%s300 + $0x94] sm:$0xf]
      %v345 = vld [vmem:[%s300 + $0x98] sm:$0xf]
      %v346 = vld [vmem:[%s300 + $0x9c] sm:$0xf]
      %v347 = vld [vmem:[%s300 + $0xa0] sm:$0xf]
      %v348 = vld [vmem:[%s300 + $0xa4] sm:$0x1]
      %v349 = vld [vmem:[%s1] sm:$0x1]
      %v350 = vld [vmem:[%s300] sm:$0x8]
      %s351 = scalar_lea.vmem %s1, 1
      %v352 = vld [vmem:[%s351] sm:$0x1]
      %v395 = vunpack.c.l.b16 %v350
      %v396 = vunpack.c.l.b16 %v308
      %v397 = vunpack.c.l.b16 %v309
      %v398 = vunpack.c.l.b16 %v310
      %v399 = vunpack.c.l.b16 %v311
      %v400 = vunpack.c.l.b16 %v312
      %v401 = vunpack.c.l.b16 %v313
      %v402 = vunpack.c.l.b16 %v314
      %v403 = vunpack.c.l.b16 %v315
      %v404 = vunpack.c.l.b16 %v316
      %v405 = vunpack.c.l.b16 %v317
      %v406 = vunpack.c.l.b16 %v318
      %v407 = vunpack.c.l.b16 %v319
      %v408 = vunpack.c.l.b16 %v320
      %v409 = vunpack.c.l.b16 %v321
      %v410 = vunpack.c.l.b16 %v322
      %v411 = vunpack.c.l.b16 %v323
      %v412 = vunpack.c.l.b16 %v324
      %v413 = vunpack.c.l.b16 %v325
      %v414 = vunpack.c.l.b16 %v326
      %v415 = vunpack.c.l.b16 %v327
      %v416 = vunpack.c.l.b16 %v328
      %v417 = vunpack.c.l.b16 %v329
      %v418 = vunpack.c.l.b16 %v330
      %v419 = vunpack.c.l.b16 %v331
      %v420 = vunpack.c.l.b16 %v332
      %v421 = vunpack.c.l.b16 %v333
      %v422 = vunpack.c.l.b16 %v334
      %v423 = vunpack.c.l.b16 %v335
      %v424 = vunpack.c.l.b16 %v336
      %v425 = vunpack.c.l.b16 %v337
      %v426 = vunpack.c.l.b16 %v338
      %v427 = vunpack.c.l.b16 %v339
      %v428 = vunpack.c.l.b16 %v340
      %v429 = vunpack.c.l.b16 %v341
      %v430 = vunpack.c.l.b16 %v342
      %v431 = vunpack.c.l.b16 %v343
      %v432 = vunpack.c.l.b16 %v344
      %v433 = vunpack.c.l.b16 %v345
      %v434 = vunpack.c.l.b16 %v346
      %v435 = vunpack.c.l.b16 %v347
      %v436 = vunpack.c.l.b16 %v348
      %v437 = vpack.c.b16 %v396, %v395
      %v438 = vpack.c.b16 %v398, %v397
      %v439 = vpack.c.b16 %v400, %v399
      %v440 = vpack.c.b16 %v402, %v401
      %v441 = vpack.c.b16 %v404, %v403
      %v442 = vpack.c.b16 %v406, %v405
      %v443 = vpack.c.b16 %v408, %v407
      %v444 = vpack.c.b16 %v410, %v409
      %v445 = vpack.c.b16 %v412, %v411
      %v446 = vpack.c.b16 %v414, %v413
      %v447 = vpack.c.b16 %v416, %v415
      %v448 = vpack.c.b16 %v418, %v417
      %v449 = vpack.c.b16 %v420, %v419
      %v450 = vpack.c.b16 %v422, %v421
      %v451 = vpack.c.b16 %v424, %v423
      %v452 = vpack.c.b16 %v426, %v425
      %v453 = vpack.c.b16 %v428, %v427
      %v454 = vpack.c.b16 %v430, %v429
      %v455 = vpack.c.b16 %v432, %v431
      %v456 = vpack.c.b16 %v434, %v433
      %v457 = vpack.c.b16 %v436, %v435
      %vm458 = vcmask 1044480
      %v459 = vrot.slane %v437, 3
      %v460 = vrot.slane %v438, 3
      %v461 = vsel %vm458, %v459, %v460
      %v462 = vrot.slane %v439, 3
      %v463 = vsel %vm458, %v460, %v462
      %v464 = vrot.slane %v440, 3
      %v465 = vsel %vm458, %v462, %v464
      %v466 = vrot.slane %v441, 3
      %v467 = vsel %vm458, %v464, %v466
      %v468 = vrot.slane %v442, 3
      %v469 = vsel %vm458, %v466, %v468
      %v470 = vrot.slane %v443, 3
      %v471 = vsel %vm458, %v468, %v470
      %v472 = vrot.slane %v444, 3
      %v473 = vsel %vm458, %v470, %v472
      %v474 = vrot.slane %v445, 3
      %v475 = vsel %vm458, %v472, %v474
      %v476 = vrot.slane %v446, 3
      %v477 = vsel %vm458, %v474, %v476
      %v478 = vrot.slane %v447, 3
      %v479 = vsel %vm458, %v476, %v478
      %v480 = vrot.slane %v448, 3
      %v481 = vsel %vm458, %v478, %v480
      %v482 = vrot.slane %v449, 3
      %v483 = vsel %vm458, %v480, %v482
      %v484 = vrot.slane %v450, 3
      %v485 = vsel %vm458, %v482, %v484
      %v486 = vrot.slane %v451, 3
      %v487 = vsel %vm458, %v484, %v486
      %v488 = vrot.slane %v452, 3
      %v489 = vsel %vm458, %v486, %v488
      %v490 = vrot.slane %v453, 3
      %v491 = vsel %vm458, %v488, %v490
      %v492 = vrot.slane %v454, 3
      %v493 = vsel %vm458, %v490, %v492
      %v494 = vrot.slane %v455, 3
      %v495 = vsel %vm458, %v492, %v494
      %v496 = vrot.slane %v456, 3
      %v497 = vsel %vm458, %v494, %v496
      %v498 = vrot.slane %v457, 3
      %v499 = vsel %vm458, %v496, %v498
      %vm500 = vcmask 15360
      %v502 = vsel %vm500, %v461, 0
      %v505 = vsel %vm500, %v463, 0
      %v508 = vsel %vm500, %v465, 0
      %v511 = vsel %vm500, %v467, 0
      %v514 = vsel %vm500, %v469, 0
      %v517 = vsel %vm500, %v471, 0
      %v520 = vsel %vm500, %v473, 0
      %v523 = vsel %vm500, %v475, 0
      %v526 = vsel %vm500, %v477, 0
      %v529 = vsel %vm500, %v479, 0
      %v532 = vsel %vm500, %v481, 0
      %v535 = vsel %vm500, %v483, 0
      %v538 = vsel %vm500, %v485, 0
      %v541 = vsel %vm500, %v487, 0
      %v544 = vsel %vm500, %v489, 0
      %v547 = vsel %vm500, %v491, 0
      %v550 = vsel %vm500, %v493, 0
      %v553 = vsel %vm500, %v495, 0
      %v556 = vsel %vm500, %v497, 0
      %v559 = vsel %vm500, %v499, 0
      %v562 = vsel %vm500, %v498, 0
      %vm564 = vcmask 1040384
      %v566 = vsel %vm564, %v352, 0
      %568 = vmatprep.subr.bf16.mxu0 0
      %569 = vmatpush1.bf16.msra.mxu0 %v566
      %570 = vmatprep.subr.bf16.mxu0 0
      %571 = vmatpush1.bf16.msra.mxu0 0
      %572 = vmatprep.subr.bf16.mxu0 0
      %573 = vmatpush1.bf16.msra.mxu0 0
      %574 = vmatprep.subr.bf16.mxu0 0
      %575 = vmatpush1.bf16.msra.mxu0 0
      %576 = vmatprep.subr.bf16.mxu0 0
      %577 = vmatpush1.bf16.msra.mxu0 0
      %578 = vmatprep.subr.bf16.mxu0 0
      %579 = vmatpush1.bf16.msra.mxu0 0
      %580 = vmatprep.subr.bf16.mxu0 0
      %581 = vmatpush1.bf16.msra.mxu0 0
      %582 = vmatprep.subr.bf16.mxu0 0
      %583 = vmatpush1.bf16.msra.mxu0 0
      %584 = vmatprep.subr.bf16.mxu0 0
      %585 = vmatpush1.bf16.msra.mxu0 0
      %586 = vmatprep.subr.bf16.mxu0 0
      %587 = vmatpush1.bf16.msra.mxu0 0
      %588 = vmatprep.subr.bf16.mxu0 0
      %589 = vmatpush1.bf16.msra.mxu0 0
      %590 = vmatprep.subr.bf16.mxu0 0
      %591 = vmatpush1.bf16.msra.mxu0 0
      %592 = vmatprep.subr.bf16.mxu0 0
      %593 = vmatpush1.bf16.msra.mxu0 0
      %594 = vmatprep.subr.bf16.mxu0 0
      %595 = vmatpush1.bf16.msra.mxu0 0
      %596 = vmatprep.subr.bf16.mxu0 0
      %597 = vmatpush1.bf16.msra.mxu0 0
      %598 = vmatprep.subr.bf16.mxu0 0
      %599 = vmatpush1.bf16.msra.mxu0 0
      %600 = vmatprep.mubr.bf16.mxu0 0
      %601 = vmatmul.mubr.bf16.gmra.mrb[0].mxu0 %v502
      %v602 = vpop.f32.mrb[0].mxu0
      %v603 = vadd.f32 0.0, %v602
      %v604 = vpop.f32.mrb[0].mxu0
      %v605 = vpop.f32.mrb[0].mxu0
      %v606 = vadd.f32 0.0, %v605
      %v607 = vpop.f32.mrb[0].mxu0
      %608 = vmatprep.mubr.bf16.mxu0 0
      %609 = vmatmul.mubr.bf16.gmra.mrb[0].mxu0 %v505
      %v610 = vpop.f32.mrb[0].mxu0
      %v611 = vadd.f32 0.0, %v610
      %v612 = vpop.f32.mrb[0].mxu0
      %v613 = vpop.f32.mrb[0].mxu0
      %v614 = vadd.f32 0.0, %v613
      %v615 = vpop.f32.mrb[0].mxu0
      %616 = vmatprep.mubr.bf16.mxu0 0
      %617 = vmatmul.mubr.bf16.gmra.mrb[0].mxu0 %v508
      %v618 = vpop.f32.mrb[0].mxu0
      %v619 = vadd.f32 0.0, %v618
      %v620 = vpop.f32.mrb[0].mxu0
      %v621 = vpop.f32.mrb[0].mxu0
      %v622 = vadd.f32 0.0, %v621
      %v623 = vpop.f32.mrb[0].mxu0
      %624 = vmatprep.mubr.bf16.mxu0 0
      %625 = vmatmul.mubr.bf16.gmra.mrb[0].mxu0 %v511
      %v626 = vpop.f32.mrb[0].mxu0
      %v627 = vadd.f32 0.0, %v626
      %v628 = vpop.f32.mrb[0].mxu0
      %v629 = vpop.f32.mrb[0].mxu0
      %v630 = vadd.f32 0.0, %v629
      %v631 = vpop.f32.mrb[0].mxu0
      %632 = vmatprep.mubr.bf16.mxu0 0
      %633 = vmatmul.mubr.bf16.gmra.mrb[0].mxu0 %v514
      %v634 = vpop.f32.mrb[0].mxu0
      %v635 = vadd.f32 0.0, %v634
      %v636 = vpop.f32.mrb[0].mxu0
      %v637 = vpop.f32.mrb[0].mxu0
      %v638 = vadd.f32 0.0, %v637
      %v639 = vpop.f32.mrb[0].mxu0
      %640 = vmatprep.mubr.bf16.mxu0 0
      %641 = vmatmul.mubr.bf16.gmra.mrb[0].mxu0 %v517
      %v642 = vpop.f32.mrb[0].mxu0
      %v643 = vadd.f32 0.0, %v642
      %v644 = vpop.f32.mrb[0].mxu0
      %v645 = vpop.f32.mrb[0].mxu0
      %v646 = vadd.f32 0.0, %v645
      %v647 = vpop.f32.mrb[0].mxu0
      %648 = vmatprep.mubr.bf16.mxu0 0
      %649 = vmatmul.mubr.bf16.gmra.mrb[0].mxu0 %v520
      %v650 = vpop.f32.mrb[0].mxu0
      %v651 = vadd.f32 0.0, %v650
      %v652 = vpop.f32.mrb[0].mxu0
      %v653 = vpop.f32.mrb[0].mxu0
      %v654 = vadd.f32 0.0, %v653
      %v655 = vpop.f32.mrb[0].mxu0
      %656 = vmatprep.mubr.bf16.mxu0 0
      %657 = vmatmul.mubr.bf16.gmra.mrb[0].mxu0 %v523
      %v658 = vpop.f32.mrb[0].mxu0
      %v659 = vadd.f32 0.0, %v658
      %v660 = vpop.f32.mrb[0].mxu0
      %v661 = vpop.f32.mrb[0].mxu0
      %v662 = vadd.f32 0.0, %v661
      %v663 = vpop.f32.mrb[0].mxu0
      %664 = vmatprep.mubr.bf16.mxu0 0
      %665 = vmatmul.mubr.bf16.gmra.mrb[0].mxu0 %v526
      %v666 = vpop.f32.mrb[0].mxu0
      %v667 = vadd.f32 0.0, %v666
      %v668 = vpop.f32.mrb[0].mxu0
      %v669 = vpop.f32.mrb[0].mxu0
      %v670 = vadd.f32 0.0, %v669
      %v671 = vpop.f32.mrb[0].mxu0
      %672 = vmatprep.mubr.bf16.mxu0 0
      %673 = vmatmul.mubr.bf16.gmra.mrb[0].mxu0 %v529
      %v674 = vpop.f32.mrb[0].mxu0
      %v675 = vadd.f32 0.0, %v674
      %v676 = vpop.f32.mrb[0].mxu0
      %v677 = vpop.f32.mrb[0].mxu0
      %v678 = vadd.f32 0.0, %v677
      %v679 = vpop.f32.mrb[0].mxu0
      %680 = vmatprep.mubr.bf16.mxu0 0
      %681 = vmatmul.mubr.bf16.gmra.mrb[0].mxu0 %v532
      %v682 = vpop.f32.mrb[0].mxu0
      %v683 = vadd.f32 0.0, %v682
      %v684 = vpop.f32.mrb[0].mxu0
      %v685 = vpop.f32.mrb[0].mxu0
      %v686 = vadd.f32 0.0, %v685
      %v687 = vpop.f32.mrb[0].mxu0
      %688 = vmatprep.mubr.bf16.mxu0 0
      %689 = vmatmul.mubr.bf16.gmra.mrb[0].mxu0 %v535
      %v690 = vpop.f32.mrb[0].mxu0
      %v691 = vadd.f32 0.0, %v690
      %v692 = vpop.f32.mrb[0].mxu0
      %v693 = vpop.f32.mrb[0].mxu0
      %v694 = vadd.f32 0.0, %v693
      %v695 = vpop.f32.mrb[0].mxu0
      %696 = vmatprep.mubr.bf16.mxu0 0
      %697 = vmatmul.mubr.bf16.gmra.mrb[0].mxu0 %v538
      %v698 = vpop.f32.mrb[0].mxu0
      %v699 = vadd.f32 0.0, %v698
      %v700 = vpop.f32.mrb[0].mxu0
      %v701 = vpop.f32.mrb[0].mxu0
      %v702 = vadd.f32 0.0, %v701
      %v703 = vpop.f32.mrb[0].mxu0
      %704 = vmatprep.mubr.bf16.mxu0 0
      %705 = vmatmul.mubr.bf16.gmra.mrb[0].mxu0 %v541
      %v706 = vpop.f32.mrb[0].mxu0
      %v707 = vadd.f32 0.0, %v706
      %v708 = vpop.f32.mrb[0].mxu0
      %v709 = vpop.f32.mrb[0].mxu0
      %v710 = vadd.f32 0.0, %v709
      %v711 = vpop.f32.mrb[0].mxu0
      %712 = vmatprep.mubr.bf16.mxu0 0
      %713 = vmatmul.mubr.bf16.gmra.mrb[0].mxu0 %v544
      %v714 = vpop.f32.mrb[0].mxu0
      %v715 = vadd.f32 0.0, %v714
      %v716 = vpop.f32.mrb[0].mxu0
      %v717 = vpop.f32.mrb[0].mxu0
      %v718 = vadd.f32 0.0, %v717
      %v719 = vpop.f32.mrb[0].mxu0
      %720 = vmatprep.mubr.bf16.mxu0 0
      %721 = vmatmul.mubr.bf16.gmra.mrb[0].mxu0 %v547
      %v722 = vpop.f32.mrb[0].mxu0
      %v723 = vadd.f32 0.0, %v722
      %v724 = vpop.f32.mrb[0].mxu0
      %v725 = vpop.f32.mrb[0].mxu0
      %v726 = vadd.f32 0.0, %v725
      %v727 = vpop.f32.mrb[0].mxu0
      %728 = vmatprep.mubr.bf16.mxu0 0
      %729 = vmatmul.mubr.bf16.gmra.mrb[0].mxu0 %v550
      %v730 = vpop.f32.mrb[0].mxu0
      %v731 = vadd.f32 0.0, %v730
      %v732 = vpop.f32.mrb[0].mxu0
      %v733 = vpop.f32.mrb[0].mxu0
      %v734 = vadd.f32 0.0, %v733
      %v735 = vpop.f32.mrb[0].mxu0
      %736 = vmatprep.mubr.bf16.mxu0 0
      %737 = vmatmul.mubr.bf16.gmra.mrb[0].mxu0 %v553
      %v738 = vpop.f32.mrb[0].mxu0
      %v739 = vadd.f32 0.0, %v738
      %v740 = vpop.f32.mrb[0].mxu0
      %v741 = vpop.f32.mrb[0].mxu0
      %v742 = vadd.f32 0.0, %v741
      %v743 = vpop.f32.mrb[0].mxu0
      %744 = vmatprep.mubr.bf16.mxu0 0
      %745 = vmatmul.mubr.bf16.gmra.mrb[0].mxu0 %v556
      %v746 = vpop.f32.mrb[0].mxu0
      %v747 = vadd.f32 0.0, %v746
      %v748 = vpop.f32.mrb[0].mxu0
      %v749 = vpop.f32.mrb[0].mxu0
      %v750 = vadd.f32 0.0, %v749
      %v751 = vpop.f32.mrb[0].mxu0
      %752 = vmatprep.mubr.bf16.mxu0 0
      %753 = vmatmul.mubr.bf16.gmra.mrb[0].mxu0 %v559
      %v754 = vpop.f32.mrb[0].mxu0
      %v755 = vadd.f32 0.0, %v754
      %v756 = vpop.f32.mrb[0].mxu0
      %v757 = vpop.f32.mrb[0].mxu0
      %v758 = vadd.f32 0.0, %v757
      %v759 = vpop.f32.mrb[0].mxu0
      %760 = vmatprep.mubr.bf16.mxu0 0
      %761 = vmatmul.mubr.bf16.gmra.mrb[0].mxu0 %v562
      %v762 = vpop.f32.mrb[0].mxu0
      %v763 = vadd.f32 0.0, %v762
      %v764 = vpop.f32.mrb[0].mxu0
      %v765 = vpop.f32.mrb[0].mxu0
      %v766 = vpop.f32.mrb[0].mxu0
      %767 = vdwg.mxu0
      %v769 = vunpack.c.l.b16 %v307
      %v770 = vpack.c.b16 %v396, %v769
      %vm771 = vsmask.f32 5376
      %v773 = vshrl.u32 %v770, 16
      %v775 = vrot.slane %v773, 2
      %v776 = vshll.u32 %v770, 16
      %v778 = vrot.slane %v776, 3
      %v779 = vor.u32 %v775, %v778
      %v781 = vshrl.u32 %v438, 16
      %v783 = vrot.slane %v781, 2
      %v784 = vshll.u32 %v438, 16
      %v786 = vrot.slane %v784, 3
      %v787 = vor.u32 %v783, %v786
      %v788 = vsel %vm771, %v779, %v787
      %v790 = vshrl.u32 %v439, 16
      %v792 = vrot.slane %v790, 2
      %v793 = vshll.u32 %v439, 16
      %v795 = vrot.slane %v793, 3
      %v796 = vor.u32 %v792, %v795
      %v797 = vsel %vm771, %v787, %v796
      %v799 = vshrl.u32 %v440, 16
      %v801 = vrot.slane %v799, 2
      %v802 = vshll.u32 %v440, 16
      %v804 = vrot.slane %v802, 3
      %v805 = vor.u32 %v801, %v804
      %v806 = vsel %vm771, %v796, %v805
      %v808 = vshrl.u32 %v441, 16
      %v810 = vrot.slane %v808, 2
      %v811 = vshll.u32 %v441, 16
      %v813 = vrot.slane %v811, 3
      %v814 = vor.u32 %v810, %v813
      %v815 = vsel %vm771, %v805, %v814
      %v817 = vshrl.u32 %v442, 16
      %v819 = vrot.slane %v817, 2
      %v820 = vshll.u32 %v442, 16
      %v822 = vrot.slane %v820, 3
      %v823 = vor.u32 %v819, %v822
      %v824 = vsel %vm771, %v814, %v823
      %v826 = vshrl.u32 %v443, 16
      %v828 = vrot.slane %v826, 2
      %v829 = vshll.u32 %v443, 16
      %v831 = vrot.slane %v829, 3
      %v832 = vor.u32 %v828, %v831
      %v833 = vsel %vm771, %v823, %v832
      %v835 = vshrl.u32 %v444, 16
      %v837 = vrot.slane %v835, 2
      %v838 = vshll.u32 %v444, 16
      %v840 = vrot.slane %v838, 3
      %v841 = vor.u32 %v837, %v840
      %v842 = vsel %vm771, %v832, %v841
      %v844 = vshrl.u32 %v445, 16
      %v846 = vrot.slane %v844, 2
      %v847 = vshll.u32 %v445, 16
      %v849 = vrot.slane %v847, 3
      %v850 = vor.u32 %v846, %v849
      %v851 = vsel %vm771, %v841, %v850
      %v853 = vshrl.u32 %v446, 16
      %v855 = vrot.slane %v853, 2
      %v856 = vshll.u32 %v446, 16
      %v858 = vrot.slane %v856, 3
      %v859 = vor.u32 %v855, %v858
      %v860 = vsel %vm771, %v850, %v859
      %v862 = vshrl.u32 %v447, 16
      %v864 = vrot.slane %v862, 2
      %v865 = vshll.u32 %v447, 16
      %v867 = vrot.slane %v865, 3
      %v868 = vor.u32 %v864, %v867
      %v869 = vsel %vm771, %v859, %v868
      %v871 = vshrl.u32 %v448, 16
      %v873 = vrot.slane %v871, 2
      %v874 = vshll.u32 %v448, 16
      %v876 = vrot.slane %v874, 3
      %v877 = vor.u32 %v873, %v876
      %v878 = vsel %vm771, %v868, %v877
      %v880 = vshrl.u32 %v449, 16
      %v882 = vrot.slane %v880, 2
      %v883 = vshll.u32 %v449, 16
      %v885 = vrot.slane %v883, 3
      %v886 = vor.u32 %v882, %v885
      %v887 = vsel %vm771, %v877, %v886
      %v889 = vshrl.u32 %v450, 16
      %v891 = vrot.slane %v889, 2
      %v892 = vshll.u32 %v450, 16
      %v894 = vrot.slane %v892, 3
      %v895 = vor.u32 %v891, %v894
      %v896 = vsel %vm771, %v886, %v895
      %v898 = vshrl.u32 %v451, 16
      %v900 = vrot.slane %v898, 2
      %v901 = vshll.u32 %v451, 16
      %v903 = vrot.slane %v901, 3
      %v904 = vor.u32 %v900, %v903
      %v905 = vsel %vm771, %v895, %v904
      %v907 = vshrl.u32 %v452, 16
      %v909 = vrot.slane %v907, 2
      %v910 = vshll.u32 %v452, 16
      %v912 = vrot.slane %v910, 3
      %v913 = vor.u32 %v909, %v912
      %v914 = vsel %vm771, %v904, %v913
      %v916 = vshrl.u32 %v453, 16
      %v918 = vrot.slane %v916, 2
      %v919 = vshll.u32 %v453, 16
      %v921 = vrot.slane %v919, 3
      %v922 = vor.u32 %v918, %v921
      %v923 = vsel %vm771, %v913, %v922
      %v925 = vshrl.u32 %v454, 16
      %v927 = vrot.slane %v925, 2
      %v928 = vshll.u32 %v454, 16
      %v930 = vrot.slane %v928, 3
      %v931 = vor.u32 %v927, %v930
      %v932 = vsel %vm771, %v922, %v931
      %v934 = vshrl.u32 %v455, 16
      %v936 = vrot.slane %v934, 2
      %v937 = vshll.u32 %v455, 16
      %v939 = vrot.slane %v937, 3
      %v940 = vor.u32 %v936, %v939
      %v941 = vsel %vm771, %v931, %v940
      %v943 = vshrl.u32 %v456, 16
      %v945 = vrot.slane %v943, 2
      %v946 = vshll.u32 %v456, 16
      %v948 = vrot.slane %v946, 3
      %v949 = vor.u32 %v945, %v948
      %v950 = vsel %vm771, %v940, %v949
      %v952 = vshrl.u32 %v457, 16
      %v954 = vrot.slane %v952, 2
      %v955 = vshll.u32 %v457, 16
      %v957 = vrot.slane %v955, 3
      %v958 = vor.u32 %v954, %v957
      %v959 = vsel %vm771, %v949, %v958
      %v961 = vsel %vm500, %v788, 0
      %v964 = vsel %vm500, %v797, 0
      %v967 = vsel %vm500, %v806, 0
      %v970 = vsel %vm500, %v815, 0
      %v973 = vsel %vm500, %v824, 0
      %v976 = vsel %vm500, %v833, 0
      %v979 = vsel %vm500, %v842, 0
      %v982 = vsel %vm500, %v851, 0
      %v985 = vsel %vm500, %v860, 0
      %v988 = vsel %vm500, %v869, 0
      %v991 = vsel %vm500, %v878, 0
      %v994 = vsel %vm500, %v887, 0
      %v997 = vsel %vm500, %v896, 0
      %v1000 = vsel %vm500, %v905, 0
      %v1003 = vsel %vm500, %v914, 0
      %v1006 = vsel %vm500, %v923, 0
      %v1009 = vsel %vm500, %v932, 0
      %v1012 = vsel %vm500, %v941, 0
      %v1015 = vsel %vm500, %v950, 0
      %v1018 = vsel %vm500, %v959, 0
      %v1021 = vsel %vm500, %v958, 0
      %v1024 = vsel %vm564, %v349, 0
      %1026 = vmatprep.subr.bf16.mxu0 0
      %1027 = vmatpush1.bf16.msra.mxu0 %v1024
      %1028 = vmatprep.subr.bf16.mxu0 0
      %1029 = vmatpush1.bf16.msra.mxu0 0
      %1030 = vmatprep.subr.bf16.mxu0 0
      %1031 = vmatpush1.bf16.msra.mxu0 0
      %1032 = vmatprep.subr.bf16.mxu0 0
      %1033 = vmatpush1.bf16.msra.mxu0 0
      %1034 = vmatprep.subr.bf16.mxu0 0
      %1035 = vmatpush1.bf16.msra.mxu0 0
      %1036 = vmatprep.subr.bf16.mxu0 0
      %1037 = vmatpush1.bf16.msra.mxu0 0
      %1038 = vmatprep.subr.bf16.mxu0 0
      %1039 = vmatpush1.bf16.msra.mxu0 0
      %1040 = vmatprep.subr.bf16.mxu0 0
      %1041 = vmatpush1.bf16.msra.mxu0 0
      %1042 = vmatprep.subr.bf16.mxu0 0
      %1043 = vmatpush1.bf16.msra.mxu0 0
      %1044 = vmatprep.subr.bf16.mxu0 0
      %1045 = vmatpush1.bf16.msra.mxu0 0
      %1046 = vmatprep.subr.bf16.mxu0 0
      %1047 = vmatpush1.bf16.msra.mxu0 0
      %1048 = vmatprep.subr.bf16.mxu0 0
      %1049 = vmatpush1.bf16.msra.mxu0 0
      %1050 = vmatprep.subr.bf16.mxu0 0
      %1051 = vmatpush1.bf16.msra.mxu0 0
      %1052 = vmatprep.subr.bf16.mxu0 0
      %1053 = vmatpush1.bf16.msra.mxu0 0
      %1054 = vmatprep.subr.bf16.mxu0 0
      %1055 = vmatpush1.bf16.msra.mxu0 0
      %1056 = vmatprep.subr.bf16.mxu0 0
      %1057 = vmatpush1.bf16.msra.mxu0 0
      %1058 = vmatprep.mubr.bf16.mxu0 0
      %1059 = vmatmul.mubr.bf16.gmra.mrb[0].mxu0 %v961
      %v1060 = vpop.f32.mrb[0].mxu0
      %v1061 = vadd.f32 %v603, %v1060
      %v1062 = vpop.f32.mrb[0].mxu0
      %v1063 = vpop.f32.mrb[0].mxu0
      %v1064 = vadd.f32 %v606, %v1063
      %v1065 = vpop.f32.mrb[0].mxu0
      %1066 = vmatprep.mubr.bf16.mxu0 0
      %1067 = vmatmul.mubr.bf16.gmra.mrb[0].mxu0 %v964
      %v1068 = vpop.f32.mrb[0].mxu0
      %v1069 = vadd.f32 %v611, %v1068
      %v1070 = vpop.f32.mrb[0].mxu0
      %v1071 = vpop.f32.mrb[0].mxu0
      %v1072 = vadd.f32 %v614, %v1071
      %v1073 = vpop.f32.mrb[0].mxu0
      %1074 = vmatprep.mubr.bf16.mxu0 0
      %1075 = vmatmul.mubr.bf16.gmra.mrb[0].mxu0 %v967
      %v1076 = vpop.f32.mrb[0].mxu0
      %v1077 = vadd.f32 %v619, %v1076
      %v1078 = vpop.f32.mrb[0].mxu0
      %v1079 = vpop.f32.mrb[0].mxu0
      %v1080 = vadd.f32 %v622, %v1079
      %v1081 = vpop.f32.mrb[0].mxu0
      %1082 = vmatprep.mubr.bf16.mxu0 0
      %1083 = vmatmul.mubr.bf16.gmra.mrb[0].mxu0 %v970
      %v1084 = vpop.f32.mrb[0].mxu0
      %v1085 = vadd.f32 %v627, %v1084
      %v1086 = vpop.f32.mrb[0].mxu0
      %v1087 = vpop.f32.mrb[0].mxu0
      %v1088 = vadd.f32 %v630, %v1087
      %v1089 = vpop.f32.mrb[0].mxu0
      %1090 = vmatprep.mubr.bf16.mxu0 0
      %1091 = vmatmul.mubr.bf16.gmra.mrb[0].mxu0 %v973
      %v1092 = vpop.f32.mrb[0].mxu0
      %v1093 = vadd.f32 %v635, %v1092
      %v1094 = vpop.f32.mrb[0].mxu0
      %v1095 = vpop.f32.mrb[0].mxu0
      %v1096 = vadd.f32 %v638, %v1095
      %v1097 = vpop.f32.mrb[0].mxu0
      %1098 = vmatprep.mubr.bf16.mxu0 0
      %1099 = vmatmul.mubr.bf16.gmra.mrb[0].mxu0 %v976
      %v1100 = vpop.f32.mrb[0].mxu0
      %v1101 = vadd.f32 %v643, %v1100
      %v1102 = vpop.f32.mrb[0].mxu0
      %v1103 = vpop.f32.mrb[0].mxu0
      %v1104 = vadd.f32 %v646, %v1103
      %v1105 = vpop.f32.mrb[0].mxu0
      %1106 = vmatprep.mubr.bf16.mxu0 0
      %1107 = vmatmul.mubr.bf16.gmra.mrb[0].mxu0 %v979
      %v1108 = vpop.f32.mrb[0].mxu0
      %v1109 = vadd.f32 %v651, %v1108
      %v1110 = vpop.f32.mrb[0].mxu0
      %v1111 = vpop.f32.mrb[0].mxu0
      %v1112 = vadd.f32 %v654, %v1111
      %v1113 = vpop.f32.mrb[0].mxu0
      %1114 = vmatprep.mubr.bf16.mxu0 0
      %1115 = vmatmul.mubr.bf16.gmra.mrb[0].mxu0 %v982
      %v1116 = vpop.f32.mrb[0].mxu0
      %v1117 = vadd.f32 %v659, %v1116
      %v1118 = vpop.f32.mrb[0].mxu0
      %v1119 = vpop.f32.mrb[0].mxu0
      %v1120 = vadd.f32 %v662, %v1119
      %v1121 = vpop.f32.mrb[0].mxu0
      %1122 = vmatprep.mubr.bf16.mxu0 0
      %1123 = vmatmul.mubr.bf16.gmra.mrb[0].mxu0 %v985
      %v1124 = vpop.f32.mrb[0].mxu0
      %v1125 = vadd.f32 %v667, %v1124
      %v1126 = vpop.f32.mrb[0].mxu0
      %v1127 = vpop.f32.mrb[0].mxu0
      %v1128 = vadd.f32 %v670, %v1127
      %v1129 = vpop.f32.mrb[0].mxu0
      %1130 = vmatprep.mubr.bf16.mxu0 0
      %1131 = vmatmul.mubr.bf16.gmra.mrb[0].mxu0 %v988
      %v1132 = vpop.f32.mrb[0].mxu0
      %v1133 = vadd.f32 %v675, %v1132
      %v1134 = vpop.f32.mrb[0].mxu0
      %v1135 = vpop.f32.mrb[0].mxu0
      %v1136 = vadd.f32 %v678, %v1135
      %v1137 = vpop.f32.mrb[0].mxu0
      %1138 = vmatprep.mubr.bf16.mxu0 0
      %1139 = vmatmul.mubr.bf16.gmra.mrb[0].mxu0 %v991
      %v1140 = vpop.f32.mrb[0].mxu0
      %v1141 = vadd.f32 %v683, %v1140
      %v1142 = vpop.f32.mrb[0].mxu0
      %v1143 = vpop.f32.mrb[0].mxu0
      %v1144 = vadd.f32 %v686, %v1143
      %v1145 = vpop.f32.mrb[0].mxu0
      %1146 = vmatprep.mubr.bf16.mxu0 0
      %1147 = vmatmul.mubr.bf16.gmra.mrb[0].mxu0 %v994
      %v1148 = vpop.f32.mrb[0].mxu0
      %v1149 = vadd.f32 %v691, %v1148
      %v1150 = vpop.f32.mrb[0].mxu0
      %v1151 = vpop.f32.mrb[0].mxu0
      %v1152 = vadd.f32 %v694, %v1151
      %v1153 = vpop.f32.mrb[0].mxu0
      %1154 = vmatprep.mubr.bf16.mxu0 0
      %1155 = vmatmul.mubr.bf16.gmra.mrb[0].mxu0 %v997
      %v1156 = vpop.f32.mrb[0].mxu0
      %v1157 = vadd.f32 %v699, %v1156
      %v1158 = vpop.f32.mrb[0].mxu0
      %v1159 = vpop.f32.mrb[0].mxu0
      %v1160 = vadd.f32 %v702, %v1159
      %v1161 = vpop.f32.mrb[0].mxu0
      %1162 = vmatprep.mubr.bf16.mxu0 0
      %1163 = vmatmul.mubr.bf16.gmra.mrb[0].mxu0 %v1000
      %v1164 = vpop.f32.mrb[0].mxu0
      %v1165 = vadd.f32 %v707, %v1164
      %v1166 = vpop.f32.mrb[0].mxu0
      %v1167 = vpop.f32.mrb[0].mxu0
      %v1168 = vadd.f32 %v710, %v1167
      %v1169 = vpop.f32.mrb[0].mxu0
      %1170 = vmatprep.mubr.bf16.mxu0 0
      %1171 = vmatmul.mubr.bf16.gmra.mrb[0].mxu0 %v1003
      %v1172 = vpop.f32.mrb[0].mxu0
      %v1173 = vadd.f32 %v715, %v1172
      %v1174 = vpop.f32.mrb[0].mxu0
      %v1175 = vpop.f32.mrb[0].mxu0
      %v1176 = vadd.f32 %v718, %v1175
      %v1177 = vpop.f32.mrb[0].mxu0
      %1178 = vmatprep.mubr.bf16.mxu0 0
      %1179 = vmatmul.mubr.bf16.gmra.mrb[0].mxu0 %v1006
      %v1180 = vpop.f32.mrb[0].mxu0
      %v1181 = vadd.f32 %v723, %v1180
      %v1182 = vpop.f32.mrb[0].mxu0
      %v1183 = vpop.f32.mrb[0].mxu0
      %v1184 = vadd.f32 %v726, %v1183
      %v1185 = vpop.f32.mrb[0].mxu0
      %1186 = vmatprep.mubr.bf16.mxu0 0
      %1187 = vmatmul.mubr.bf16.gmra.mrb[0].mxu0 %v1009
      %v1188 = vpop.f32.mrb[0].mxu0
      %v1189 = vadd.f32 %v731, %v1188
      %v1190 = vpop.f32.mrb[0].mxu0
      %v1191 = vpop.f32.mrb[0].mxu0
      %v1192 = vadd.f32 %v734, %v1191
      %v1193 = vpop.f32.mrb[0].mxu0
      %1194 = vmatprep.mubr.bf16.mxu0 0
      %1195 = vmatmul.mubr.bf16.gmra.mrb[0].mxu0 %v1012
      %v1196 = vpop.f32.mrb[0].mxu0
      %v1197 = vadd.f32 %v739, %v1196
      %v1198 = vpop.f32.mrb[0].mxu0
      %v1199 = vpop.f32.mrb[0].mxu0
      %v1200 = vadd.f32 %v742, %v1199
      %v1201 = vpop.f32.mrb[0].mxu0
      %1202 = vmatprep.mubr.bf16.mxu0 0
      %1203 = vmatmul.mubr.bf16.gmra.mrb[0].mxu0 %v1015
      %v1204 = vpop.f32.mrb[0].mxu0
      %v1205 = vadd.f32 %v747, %v1204
      %v1206 = vpop.f32.mrb[0].mxu0
      %v1207 = vpop.f32.mrb[0].mxu0
      %v1208 = vadd.f32 %v750, %v1207
      %v1209 = vpop.f32.mrb[0].mxu0
      %1210 = vmatprep.mubr.bf16.mxu0 0
      %1211 = vmatmul.mubr.bf16.gmra.mrb[0].mxu0 %v1018
      %v1212 = vpop.f32.mrb[0].mxu0
      %v1213 = vadd.f32 %v755, %v1212
      %v1214 = vpop.f32.mrb[0].mxu0
      %v1215 = vpop.f32.mrb[0].mxu0
      %v1216 = vadd.f32 %v758, %v1215
      %v1217 = vpop.f32.mrb[0].mxu0
      %1218 = vmatprep.mubr.bf16.mxu0 0
      %1219 = vmatmul.mubr.bf16.gmra.mrb[0].mxu0 %v1021
      %v1220 = vpop.f32.mrb[0].mxu0
      %v1221 = vadd.f32 %v763, %v1220
      %v1222 = vpop.f32.mrb[0].mxu0
      %v1223 = vpop.f32.mrb[0].mxu0
      %v1224 = vpop.f32.mrb[0].mxu0
      %1225 = vdwg.mxu0
      %v1226 = vld [vmem:[%s300 + $0xa4] sm:$0x3]
      %s1227 = scalar_lea.vmem %s1, 2
      %v1228 = vld [vmem:[%s1227] sm:$0x1]
      %v1230 = vunpack.c.l.b16 %v1226
      %v1231 = vpack.c.b16 %v1230, %v435
      %vm1232 = vsmask.f32 4352
      %v1234 = vshrl.u32 %v437, 16
      %v1236 = vrot.slane %v1234, 3
      %v1237 = vshll.u32 %v437, 16
      %v1239 = vrot.slane %v1237, 4
      %v1240 = vor.u32 %v1236, %v1239
      %v1241 = vrot.slane %v781, 3
      %v1242 = vrot.slane %v784, 4
      %v1243 = vor.u32 %v1241, %v1242
      %v1244 = vsel %vm1232, %v1240, %v1243
      %v1245 = vrot.slane %v790, 3
      %v1246 = vrot.slane %v793, 4
      %v1247 = vor.u32 %v1245, %v1246
      %v1248 = vsel %vm1232, %v1243, %v1247
      %v1249 = vrot.slane %v799, 3
      %v1250 = vrot.slane %v802, 4
      %v1251 = vor.u32 %v1249, %v1250
      %v1252 = vsel %vm1232, %v1247, %v1251
      %v1253 = vrot.slane %v808, 3
      %v1254 = vrot.slane %v811, 4
      %v1255 = vor.u32 %v1253, %v1254
      %v1256 = vsel %vm1232, %v1251, %v1255
      %v1257 = vrot.slane %v817, 3
      %v1258 = vrot.slane %v820, 4
      %v1259 = vor.u32 %v1257, %v1258
      %v1260 = vsel %vm1232, %v1255, %v1259
      %v1261 = vrot.slane %v826, 3
      %v1262 = vrot.slane %v829, 4
      %v1263 = vor.u32 %v1261, %v1262
      %v1264 = vsel %vm1232, %v1259, %v1263
      %v1265 = vrot.slane %v835, 3
      %v1266 = vrot.slane %v838, 4
      %v1267 = vor.u32 %v1265, %v1266
      %v1268 = vsel %vm1232, %v1263, %v1267
      %v1269 = vrot.slane %v844, 3
      %v1270 = vrot.slane %v847, 4
      %v1271 = vor.u32 %v1269, %v1270
      %v1272 = vsel %vm1232, %v1267, %v1271
      %v1273 = vrot.slane %v853, 3
      %v1274 = vrot.slane %v856, 4
      %v1275 = vor.u32 %v1273, %v1274
      %v1276 = vsel %vm1232, %v1271, %v1275
      %v1277 = vrot.slane %v862, 3
      %v1278 = vrot.slane %v865, 4
      %v1279 = vor.u32 %v1277, %v1278
      %v1280 = vsel %vm1232, %v1275, %v1279
      %v1281 = vrot.slane %v871, 3
      %v1282 = vrot.slane %v874, 4
      %v1283 = vor.u32 %v1281, %v1282
      %v1284 = vsel %vm1232, %v1279, %v1283
      %v1285 = vrot.slane %v880, 3
      %v1286 = vrot.slane %v883, 4
      %v1287 = vor.u32 %v1285, %v1286
      %v1288 = vsel %vm1232, %v1283, %v1287
      %v1289 = vrot.slane %v889, 3
      %v1290 = vrot.slane %v892, 4
      %v1291 = vor.u32 %v1289, %v1290
      %v1292 = vsel %vm1232, %v1287, %v1291
      %v1293 = vrot.slane %v898, 3
      %v1294 = vrot.slane %v901, 4
      %v1295 = vor.u32 %v1293, %v1294
      %v1296 = vsel %vm1232, %v1291, %v1295
      %v1297 = vrot.slane %v907, 3
      %v1298 = vrot.slane %v910, 4
      %v1299 = vor.u32 %v1297, %v1298
      %v1300 = vsel %vm1232, %v1295, %v1299
      %v1301 = vrot.slane %v916, 3
      %v1302 = vrot.slane %v919, 4
      %v1303 = vor.u32 %v1301, %v1302
      %v1304 = vsel %vm1232, %v1299, %v1303
      %v1305 = vrot.slane %v925, 3
      %v1306 = vrot.slane %v928, 4
      %v1307 = vor.u32 %v1305, %v1306
      %v1308 = vsel %vm1232, %v1303, %v1307
      %v1309 = vrot.slane %v934, 3
      %v1310 = vrot.slane %v937, 4
      %v1311 = vor.u32 %v1309, %v1310
      %v1312 = vsel %vm1232, %v1307, %v1311
      %v1313 = vrot.slane %v943, 3
      %v1314 = vrot.slane %v946, 4
      %v1315 = vor.u32 %v1313, %v1314
      %v1316 = vsel %vm1232, %v1311, %v1315
      %v1318 = vshrl.u32 %v1231, 16
      %v1320 = vrot.slane %v1318, 3
      %v1321 = vshll.u32 %v1231, 16
      %v1323 = vrot.slane %v1321, 4
      %v1324 = vor.u32 %v1320, %v1323
      %v1325 = vsel %vm1232, %v1315, %v1324
      %v1327 = vsel %vm500, %v1244, 0
      %v1330 = vsel %vm500, %v1248, 0
      %v1333 = vsel %vm500, %v1252, 0
      %v1336 = vsel %vm500, %v1256, 0
      %v1339 = vsel %vm500, %v1260, 0
      %v1342 = vsel %vm500, %v1264, 0
      %v1345 = vsel %vm500, %v1268, 0
      %v1348 = vsel %vm500, %v1272, 0
      %v1351 = vsel %vm500, %v1276, 0
      %v1354 = vsel %vm500, %v1280, 0
      %v1357 = vsel %vm500, %v1284, 0
      %v1360 = vsel %vm500, %v1288, 0
      %v1363 = vsel %vm500, %v1292, 0
      %v1366 = vsel %vm500, %v1296, 0
      %v1369 = vsel %vm500, %v1300, 0
      %v1372 = vsel %vm500, %v1304, 0
      %v1375 = vsel %vm500, %v1308, 0
      %v1378 = vsel %vm500, %v1312, 0
      %v1381 = vsel %vm500, %v1316, 0
      %v1384 = vsel %vm500, %v1325, 0
      %v1387 = vsel %vm500, %v1324, 0
      %v1390 = vsel %vm564, %v1228, 0
      %1392 = vmatprep.subr.bf16.mxu0 0
      %1393 = vmatpush1.bf16.msra.mxu0 %v1390
      %1394 = vmatprep.subr.bf16.mxu0 0
      %1395 = vmatpush1.bf16.msra.mxu0 0
      %1396 = vmatprep.subr.bf16.mxu0 0
      %1397 = vmatpush1.bf16.msra.mxu0 0
      %1398 = vmatprep.subr.bf16.mxu0 0
      %1399 = vmatpush1.bf16.msra.mxu0 0
      %1400 = vmatprep.subr.bf16.mxu0 0
      %1401 = vmatpush1.bf16.msra.mxu0 0
      %1402 = vmatprep.subr.bf16.mxu0 0
      %1403 = vmatpush1.bf16.msra.mxu0 0
      %1404 = vmatprep.subr.bf16.mxu0 0
      %1405 = vmatpush1.bf16.msra.mxu0 0
      %1406 = vmatprep.subr.bf16.mxu0 0
      %1407 = vmatpush1.bf16.msra.mxu0 0
      %1408 = vmatprep.subr.bf16.mxu0 0
      %1409 = vmatpush1.bf16.msra.mxu0 0
      %1410 = vmatprep.subr.bf16.mxu0 0
      %1411 = vmatpush1.bf16.msra.mxu0 0
      %1412 = vmatprep.subr.bf16.mxu0 0
      %1413 = vmatpush1.bf16.msra.mxu0 0
      %1414 = vmatprep.subr.bf16.mxu0 0
      %1415 = vmatpush1.bf16.msra.mxu0 0
      %1416 = vmatprep.subr.bf16.mxu0 0
      %1417 = vmatpush1.bf16.msra.mxu0 0
      %1418 = vmatprep.subr.bf16.mxu0 0
      %1419 = vmatpush1.bf16.msra.mxu0 0
      %1420 = vmatprep.subr.bf16.mxu0 0
      %1421 = vmatpush1.bf16.msra.mxu0 0
      %1422 = vmatprep.subr.bf16.mxu0 0
      %1423 = vmatpush1.bf16.msra.mxu0 0
      %1424 = vmatprep.mubr.bf16.mxu0 0
      %1425 = vmatmul.mubr.bf16.gmra.mrb[0].mxu0 %v1327
      %v1426 = vpop.f32.mrb[0].mxu0
      %v1427 = vadd.f32 0.0, %v1426
      %v1428 = vpop.f32.mrb[0].mxu0
      %v1429 = vpop.f32.mrb[0].mxu0
      %v1430 = vadd.f32 0.0, %v1429
      %v1431 = vpop.f32.mrb[0].mxu0
      %1432 = vmatprep.mubr.bf16.mxu0 0
      %1433 = vmatmul.mubr.bf16.gmra.mrb[0].mxu0 %v1330
      %v1434 = vpop.f32.mrb[0].mxu0
      %v1435 = vadd.f32 0.0, %v1434
      %v1436 = vpop.f32.mrb[0].mxu0
      %v1437 = vpop.f32.mrb[0].mxu0
      %v1438 = vadd.f32 0.0, %v1437
      %v1439 = vpop.f32.mrb[0].mxu0
      %1440 = vmatprep.mubr.bf16.mxu0 0
      %1441 = vmatmul.mubr.bf16.gmra.mrb[0].mxu0 %v1333
      %v1442 = vpop.f32.mrb[0].mxu0
      %v1443 = vadd.f32 0.0, %v1442
      %v1444 = vpop.f32.mrb[0].mxu0
      %v1445 = vpop.f32.mrb[0].mxu0
      %v1446 = vadd.f32 0.0, %v1445
      %v1447 = vpop.f32.mrb[0].mxu0
      %1448 = vmatprep.mubr.bf16.mxu0 0
      %1449 = vmatmul.mubr.bf16.gmra.mrb[0].mxu0 %v1336
      %v1450 = vpop.f32.mrb[0].mxu0
      %v1451 = vadd.f32 0.0, %v1450
      %v1452 = vpop.f32.mrb[0].mxu0
      %v1453 = vpop.f32.mrb[0].mxu0
      %v1454 = vadd.f32 0.0, %v1453
      %v1455 = vpop.f32.mrb[0].mxu0
      %1456 = vmatprep.mubr.bf16.mxu0 0
      %1457 = vmatmul.mubr.bf16.gmra.mrb[0].mxu0 %v1339
      %v1458 = vpop.f32.mrb[0].mxu0
      %v1459 = vadd.f32 0.0, %v1458
      %v1460 = vpop.f32.mrb[0].mxu0
      %v1461 = vpop.f32.mrb[0].mxu0
      %v1462 = vadd.f32 0.0, %v1461
      %v1463 = vpop.f32.mrb[0].mxu0
      %1464 = vmatprep.mubr.bf16.mxu0 0
      %1465 = vmatmul.mubr.bf16.gmra.mrb[0].mxu0 %v1342
      %v1466 = vpop.f32.mrb[0].mxu0
      %v1467 = vadd.f32 0.0, %v1466
      %v1468 = vpop.f32.mrb[0].mxu0
      %v1469 = vpop.f32.mrb[0].mxu0
      %v1470 = vadd.f32 0.0, %v1469
      %v1471 = vpop.f32.mrb[0].mxu0
      %1472 = vmatprep.mubr.bf16.mxu0 0
      %1473 = vmatmul.mubr.bf16.gmra.mrb[0].mxu0 %v1345
      %v1474 = vpop.f32.mrb[0].mxu0
      %v1475 = vadd.f32 0.0, %v1474
      %v1476 = vpop.f32.mrb[0].mxu0
      %v1477 = vpop.f32.mrb[0].mxu0
      %v1478 = vadd.f32 0.0, %v1477
      %v1479 = vpop.f32.mrb[0].mxu0
      %1480 = vmatprep.mubr.bf16.mxu0 0
      %1481 = vmatmul.mubr.bf16.gmra.mrb[0].mxu0 %v1348
      %v1482 = vpop.f32.mrb[0].mxu0
      %v1483 = vadd.f32 0.0, %v1482
      %v1484 = vpop.f32.mrb[0].mxu0
      %v1485 = vpop.f32.mrb[0].mxu0
      %v1486 = vadd.f32 0.0, %v1485
      %v1487 = vpop.f32.mrb[0].mxu0
      %1488 = vmatprep.mubr.bf16.mxu0 0
      %1489 = vmatmul.mubr.bf16.gmra.mrb[0].mxu0 %v1351
      %v1490 = vpop.f32.mrb[0].mxu0
      %v1491 = vadd.f32 0.0, %v1490
      %v1492 = vpop.f32.mrb[0].mxu0
      %v1493 = vpop.f32.mrb[0].mxu0
      %v1494 = vadd.f32 0.0, %v1493
      %v1495 = vpop.f32.mrb[0].mxu0
      %1496 = vmatprep.mubr.bf16.mxu0 0
      %1497 = vmatmul.mubr.bf16.gmra.mrb[0].mxu0 %v1354
      %v1498 = vpop.f32.mrb[0].mxu0
      %v1499 = vadd.f32 0.0, %v1498
      %v1500 = vpop.f32.mrb[0].mxu0
      %v1501 = vpop.f32.mrb[0].mxu0
      %v1502 = vadd.f32 0.0, %v1501
      %v1503 = vpop.f32.mrb[0].mxu0
      %1504 = vmatprep.mubr.bf16.mxu0 0
      %1505 = vmatmul.mubr.bf16.gmra.mrb[0].mxu0 %v1357
      %v1506 = vpop.f32.mrb[0].mxu0
      %v1507 = vadd.f32 0.0, %v1506
      %v1508 = vpop.f32.mrb[0].mxu0
      %v1509 = vpop.f32.mrb[0].mxu0
      %v1510 = vadd.f32 0.0, %v1509
      %v1511 = vpop.f32.mrb[0].mxu0
      %1512 = vmatprep.mubr.bf16.mxu0 0
      %1513 = vmatmul.mubr.bf16.gmra.mrb[0].mxu0 %v1360
      %v1514 = vpop.f32.mrb[0].mxu0
      %v1515 = vadd.f32 0.0, %v1514
      %v1516 = vpop.f32.mrb[0].mxu0
      %v1517 = vpop.f32.mrb[0].mxu0
      %v1518 = vadd.f32 0.0, %v1517
      %v1519 = vpop.f32.mrb[0].mxu0
      %1520 = vmatprep.mubr.bf16.mxu0 0
      %1521 = vmatmul.mubr.bf16.gmra.mrb[0].mxu0 %v1363
      %v1522 = vpop.f32.mrb[0].mxu0
      %v1523 = vadd.f32 0.0, %v1522
      %v1524 = vpop.f32.mrb[0].mxu0
      %v1525 = vpop.f32.mrb[0].mxu0
      %v1526 = vadd.f32 0.0, %v1525
      %v1527 = vpop.f32.mrb[0].mxu0
      %1528 = vmatprep.mubr.bf16.mxu0 0
      %1529 = vmatmul.mubr.bf16.gmra.mrb[0].mxu0 %v1366
      %v1530 = vpop.f32.mrb[0].mxu0
      %v1531 = vadd.f32 0.0, %v1530
      %v1532 = vpop.f32.mrb[0].mxu0
      %v1533 = vpop.f32.mrb[0].mxu0
      %v1534 = vadd.f32 0.0, %v1533
      %v1535 = vpop.f32.mrb[0].mxu0
      %1536 = vmatprep.mubr.bf16.mxu0 0
      %1537 = vmatmul.mubr.bf16.gmra.mrb[0].mxu0 %v1369
      %v1538 = vpop.f32.mrb[0].mxu0
      %v1539 = vadd.f32 0.0, %v1538
      %v1540 = vpop.f32.mrb[0].mxu0
      %v1541 = vpop.f32.mrb[0].mxu0
      %v1542 = vadd.f32 0.0, %v1541
      %v1543 = vpop.f32.mrb[0].mxu0
      %1544 = vmatprep.mubr.bf16.mxu0 0
      %1545 = vmatmul.mubr.bf16.gmra.mrb[0].mxu0 %v1372
      %v1546 = vpop.f32.mrb[0].mxu0
      %v1547 = vadd.f32 0.0, %v1546
      %v1548 = vpop.f32.mrb[0].mxu0
      %v1549 = vpop.f32.mrb[0].mxu0
      %v1550 = vadd.f32 0.0, %v1549
      %v1551 = vpop.f32.mrb[0].mxu0
      %1552 = vmatprep.mubr.bf16.mxu0 0
      %1553 = vmatmul.mubr.bf16.gmra.mrb[0].mxu0 %v1375
      %v1554 = vpop.f32.mrb[0].mxu0
      %v1555 = vadd.f32 0.0, %v1554
      %v1556 = vpop.f32.mrb[0].mxu0
      %v1557 = vpop.f32.mrb[0].mxu0
      %v1558 = vadd.f32 0.0, %v1557
      %v1559 = vpop.f32.mrb[0].mxu0
      %1560 = vmatprep.mubr.bf16.mxu0 0
      %1561 = vmatmul.mubr.bf16.gmra.mrb[0].mxu0 %v1378
      %v1562 = vpop.f32.mrb[0].mxu0
      %v1563 = vadd.f32 0.0, %v1562
      %v1564 = vpop.f32.mrb[0].mxu0
      %v1565 = vpop.f32.mrb[0].mxu0
      %v1566 = vadd.f32 0.0, %v1565
      %v1567 = vpop.f32.mrb[0].mxu0
      %1568 = vmatprep.mubr.bf16.mxu0 0
      %1569 = vmatmul.mubr.bf16.gmra.mrb[0].mxu0 %v1381
      %v1570 = vpop.f32.mrb[0].mxu0
      %v1571 = vadd.f32 0.0, %v1570
      %v1572 = vpop.f32.mrb[0].mxu0
      %v1573 = vpop.f32.mrb[0].mxu0
      %v1574 = vadd.f32 0.0, %v1573
      %v1575 = vpop.f32.mrb[0].mxu0
      %1576 = vmatprep.mubr.bf16.mxu0 0
      %1577 = vmatmul.mubr.bf16.gmra.mrb[0].mxu0 %v1384
      %v1578 = vpop.f32.mrb[0].mxu0
      %v1579 = vadd.f32 0.0, %v1578
      %v1580 = vpop.f32.mrb[0].mxu0
      %v1581 = vpop.f32.mrb[0].mxu0
      %v1582 = vadd.f32 0.0, %v1581
      %v1583 = vpop.f32.mrb[0].mxu0
      %1584 = vmatprep.mubr.bf16.mxu0 0
      %1585 = vmatmul.mubr.bf16.gmra.mrb[0].mxu0 %v1387
      %v1586 = vpop.f32.mrb[0].mxu0
      %v1587 = vadd.f32 0.0, %v1586
      %v1588 = vpop.f32.mrb[0].mxu0
      %v1589 = vpop.f32.mrb[0].mxu0
      %v1590 = vpop.f32.mrb[0].mxu0
      %1591 = vdwg.mxu0
      %v1592 = vadd.f32 %v1061, %v1427
      %v1593 = vadd.f32 %v1064, %v1430
      %v1594 = vadd.f32 %v1069, %v1435
      %v1595 = vadd.f32 %v1072, %v1438
      %v1596 = vadd.f32 %v1077, %v1443
      %v1597 = vadd.f32 %v1080, %v1446
      %v1598 = vadd.f32 %v1085, %v1451
      %v1599 = vadd.f32 %v1088, %v1454
      %v1600 = vadd.f32 %v1093, %v1459
      %v1601 = vadd.f32 %v1096, %v1462
      %v1602 = vadd.f32 %v1101, %v1467
      %v1603 = vadd.f32 %v1104, %v1470
      %v1604 = vadd.f32 %v1109, %v1475
      %v1605 = vadd.f32 %v1112, %v1478
      %v1606 = vadd.f32 %v1117, %v1483
      %v1607 = vadd.f32 %v1120, %v1486
      %v1608 = vadd.f32 %v1125, %v1491
      %v1609 = vadd.f32 %v1128, %v1494
      %v1610 = vadd.f32 %v1133, %v1499
      %v1611 = vadd.f32 %v1136, %v1502
      %v1612 = vadd.f32 %v1141, %v1507
      %v1613 = vadd.f32 %v1144, %v1510
      %v1614 = vadd.f32 %v1149, %v1515
      %v1615 = vadd.f32 %v1152, %v1518
      %v1616 = vadd.f32 %v1157, %v1523
      %v1617 = vadd.f32 %v1160, %v1526
      %v1618 = vadd.f32 %v1165, %v1531
      %v1619 = vadd.f32 %v1168, %v1534
      %v1620 = vadd.f32 %v1173, %v1539
      %v1621 = vadd.f32 %v1176, %v1542
      %v1622 = vadd.f32 %v1181, %v1547
      %v1623 = vadd.f32 %v1184, %v1550
      %v1624 = vadd.f32 %v1189, %v1555
      %v1625 = vadd.f32 %v1192, %v1558
      %v1626 = vadd.f32 %v1197, %v1563
      %v1627 = vadd.f32 %v1200, %v1566
      %v1628 = vadd.f32 %v1205, %v1571
      %v1629 = vadd.f32 %v1208, %v1574
      %v1630 = vadd.f32 %v1213, %v1579
      %v1631 = vadd.f32 %v1216, %v1582
      %v1632 = vadd.f32 %v1221, %v1587
      %v1633 = vld [vmem:[%s300 + $0x8] sm:$0x8]
      %v1634 = vld [vmem:[%s300 + $0xc] sm:$0xf]
      %v1635 = vld [vmem:[%s300 + $0x10] sm:$0xf]
      %v1636 = vld [vmem:[%s300 + $0x14] sm:$0xf]
      %v1637 = vld [vmem:[%s300 + $0x18] sm:$0xf]
      %v1638 = vld [vmem:[%s300 + $0x1c] sm:$0xf]
      %v1639 = vld [vmem:[%s300 + $0x20] sm:$0xf]
      %v1640 = vld [vmem:[%s300 + $0x24] sm:$0xf]
      %v1641 = vld [vmem:[%s300 + $0x28] sm:$0xf]
      %v1642 = vld [vmem:[%s300 + $0x2c] sm:$0xf]
      %v1643 = vld [vmem:[%s300 + $0x30] sm:$0xf]
      %v1644 = vld [vmem:[%s300 + $0x34] sm:$0xf]
      %v1645 = vld [vmem:[%s300 + $0x38] sm:$0xf]
      %v1646 = vld [vmem:[%s300 + $0x3c] sm:$0xf]
      %v1647 = vld [vmem:[%s300 + $0x40] sm:$0xf]
      %v1648 = vld [vmem:[%s300 + $0x44] sm:$0xf]
      %v1649 = vld [vmem:[%s300 + $0x48] sm:$0xf]
      %v1650 = vld [vmem:[%s300 + $0x4c] sm:$0xf]
      %v1651 = vld [vmem:[%s300 + $0x50] sm:$0xf]
      %v1652 = vld [vmem:[%s300 + $0x54] sm:$0xf]
      %v1653 = vld [vmem:[%s300 + $0x58] sm:$0xf]
      %v1654 = vld [vmem:[%s300 + $0x5c] sm:$0xf]
      %v1655 = vld [vmem:[%s300 + $0x60] sm:$0xf]
      %v1656 = vld [vmem:[%s300 + $0x64] sm:$0xf]
      %v1657 = vld [vmem:[%s300 + $0x68] sm:$0xf]
      %v1658 = vld [vmem:[%s300 + $0x6c] sm:$0xf]
      %v1659 = vld [vmem:[%s300 + $0x70] sm:$0xf]
      %v1660 = vld [vmem:[%s300 + $0x74] sm:$0xf]
      %v1661 = vld [vmem:[%s300 + $0x78] sm:$0xf]
      %v1662 = vld [vmem:[%s300 + $0x7c] sm:$0xf]
      %v1663 = vld [vmem:[%s300 + $0x80] sm:$0xf]
      %v1664 = vld [vmem:[%s300 + $0x84] sm:$0xf]
      %v1665 = vld [vmem:[%s300 + $0x88] sm:$0xf]
      %v1666 = vld [vmem:[%s300 + $0x8c] sm:$0xf]
      %v1667 = vld [vmem:[%s300 + $0x90] sm:$0xf]
      %v1668 = vld [vmem:[%s300 + $0x94] sm:$0xf]
      %v1669 = vld [vmem:[%s300 + $0x98] sm:$0xf]
      %v1670 = vld [vmem:[%s300 + $0x9c] sm:$0xf]
      %v1671 = vld [vmem:[%s300 + $0xa0] sm:$0xf]
      %v1672 = vld [vmem:[%s300 + $0xa4] sm:$0xf]
      %v1673 = vld [vmem:[%s300 + $0xa8] sm:$0xf]
      %v1674 = vld [vmem:[%s300 + $0xac] sm:$0x3]
      %s1675 = scalar_lea.vmem %s1, 3
      %v1676 = vld [vmem:[%s1675] sm:$0x1]
      %v1719 = vunpack.c.l.b16 %v1633
      %v1720 = vunpack.c.l.b16 %v1634
      %v1721 = vunpack.c.l.b16 %v1635
      %v1722 = vunpack.c.l.b16 %v1636
      %v1723 = vunpack.c.l.b16 %v1637
      %v1724 = vunpack.c.l.b16 %v1638
      %v1725 = vunpack.c.l.b16 %v1639
      %v1726 = vunpack.c.l.b16 %v1640
      %v1727 = vunpack.c.l.b16 %v1641
      %v1728 = vunpack.c.l.b16 %v1642
      %v1729 = vunpack.c.l.b16 %v1643
      %v1730 = vunpack.c.l.b16 %v1644
      %v1731 = vunpack.c.l.b16 %v1645
      %v1732 = vunpack.c.l.b16 %v1646
      %v1733 = vunpack.c.l.b16 %v1647
      %v1734 = vunpack.c.l.b16 %v1648
      %v1735 = vunpack.c.l.b16 %v1649
      %v1736 = vunpack.c.l.b16 %v1650
      %v1737 = vunpack.c.l.b16 %v1651
      %v1738 = vunpack.c.l.b16 %v1652
      %v1739 = vunpack.c.l.b16 %v1653
      %v1740 = vunpack.c.l.b16 %v1654
      %v1741 = vunpack.c.l.b16 %v1655
      %v1742 = vunpack.c.l.b16 %v1656
      %v1743 = vunpack.c.l.b16 %v1657
      %v1744 = vunpack.c.l.b16 %v1658
      %v1745 = vunpack.c.l.b16 %v1659
      %v1746 = vunpack.c.l.b16 %v1660
      %v1747 = vunpack.c.l.b16 %v1661
      %v1748 = vunpack.c.l.b16 %v1662
      %v1749 = vunpack.c.l.b16 %v1663
      %v1750 = vunpack.c.l.b16 %v1664
      %v1751 = vunpack.c.l.b16 %v1665
      %v1752 = vunpack.c.l.b16 %v1666
      %v1753 = vunpack.c.l.b16 %v1667
      %v1754 = vunpack.c.l.b16 %v1668
      %v1755 = vunpack.c.l.b16 %v1669
      %v1756 = vunpack.c.l.b16 %v1670
      %v1757 = vunpack.c.l.b16 %v1671
      %v1758 = vunpack.c.l.b16 %v1672
      %v1759 = vunpack.c.l.b16 %v1673
      %v1760 = vunpack.c.l.b16 %v1674
      %v1761 = vpack.c.b16 %v1720, %v1719
      %v1762 = vpack.c.b16 %v1722, %v1721
      %v1763 = vpack.c.b16 %v1724, %v1723
      %v1764 = vpack.c.b16 %v1726, %v1725
      %v1765 = vpack.c.b16 %v1728, %v1727
      %v1766 = vpack.c.b16 %v1730, %v1729
      %v1767 = vpack.c.b16 %v1732, %v1731
      %v1768 = vpack.c.b16 %v1734, %v1733
      %v1769 = vpack.c.b16 %v1736, %v1735
      %v1770 = vpack.c.b16 %v1738, %v1737
      %v1771 = vpack.c.b16 %v1740, %v1739
      %v1772 = vpack.c.b16 %v1742, %v1741
      %v1773 = vpack.c.b16 %v1744, %v1743
      %v1774 = vpack.c.b16 %v1746, %v1745
      %v1775 = vpack.c.b16 %v1748, %v1747
      %v1776 = vpack.c.b16 %v1750, %v1749
      %v1777 = vpack.c.b16 %v1752, %v1751
      %v1778 = vpack.c.b16 %v1754, %v1753
      %v1779 = vpack.c.b16 %v1756, %v1755
      %v1780 = vpack.c.b16 %v1758, %v1757
      %v1781 = vpack.c.b16 %v1760, %v1759
      %v1783 = vshrl.u32 %v1761, 16
      %v1785 = vrot.slane %v1783, 3
      %v1786 = vshll.u32 %v1761, 16
      %v1788 = vrot.slane %v1786, 4
      %v1789 = vor.u32 %v1785, %v1788
      %v1791 = vshrl.u32 %v1762, 16
      %v1793 = vrot.slane %v1791, 3
      %v1794 = vshll.u32 %v1762, 16
      %v1796 = vrot.slane %v1794, 4
      %v1797 = vor.u32 %v1793, %v1796
      %v1798 = vsel %vm1232, %v1789, %v1797
      %v1800 = vshrl.u32 %v1763, 16
      %v1802 = vrot.slane %v1800, 3
      %v1803 = vshll.u32 %v1763, 16
      %v1805 = vrot.slane %v1803, 4
      %v1806 = vor.u32 %v1802, %v1805
      %v1807 = vsel %vm1232, %v1797, %v1806
      %v1809 = vshrl.u32 %v1764, 16
      %v1811 = vrot.slane %v1809, 3
      %v1812 = vshll.u32 %v1764, 16
      %v1814 = vrot.slane %v1812, 4
      %v1815 = vor.u32 %v1811, %v1814
      %v1816 = vsel %vm1232, %v1806, %v1815
      %v1818 = vshrl.u32 %v1765, 16
      %v1820 = vrot.slane %v1818, 3
      %v1821 = vshll.u32 %v1765, 16
      %v1823 = vrot.slane %v1821, 4
      %v1824 = vor.u32 %v1820, %v1823
      %v1825 = vsel %vm1232, %v1815, %v1824
      %v1827 = vshrl.u32 %v1766, 16
      %v1829 = vrot.slane %v1827, 3
      %v1830 = vshll.u32 %v1766, 16
      %v1832 = vrot.slane %v1830, 4
      %v1833 = vor.u32 %v1829, %v1832
      %v1834 = vsel %vm1232, %v1824, %v1833
      %v1836 = vshrl.u32 %v1767, 16
      %v1838 = vrot.slane %v1836, 3
      %v1839 = vshll.u32 %v1767, 16
      %v1841 = vrot.slane %v1839, 4
      %v1842 = vor.u32 %v1838, %v1841
      %v1843 = vsel %vm1232, %v1833, %v1842
      %v1845 = vshrl.u32 %v1768, 16
      %v1847 = vrot.slane %v1845, 3
      %v1848 = vshll.u32 %v1768, 16
      %v1850 = vrot.slane %v1848, 4
      %v1851 = vor.u32 %v1847, %v1850
      %v1852 = vsel %vm1232, %v1842, %v1851
      %v1854 = vshrl.u32 %v1769, 16
      %v1856 = vrot.slane %v1854, 3
      %v1857 = vshll.u32 %v1769, 16
      %v1859 = vrot.slane %v1857, 4
      %v1860 = vor.u32 %v1856, %v1859
      %v1861 = vsel %vm1232, %v1851, %v1860
      %v1863 = vshrl.u32 %v1770, 16
      %v1865 = vrot.slane %v1863, 3
      %v1866 = vshll.u32 %v1770, 16
      %v1868 = vrot.slane %v1866, 4
      %v1869 = vor.u32 %v1865, %v1868
      %v1870 = vsel %vm1232, %v1860, %v1869
      %v1872 = vshrl.u32 %v1771, 16
      %v1874 = vrot.slane %v1872, 3
      %v1875 = vshll.u32 %v1771, 16
      %v1877 = vrot.slane %v1875, 4
      %v1878 = vor.u32 %v1874, %v1877
      %v1879 = vsel %vm1232, %v1869, %v1878
      %v1881 = vshrl.u32 %v1772, 16
      %v1883 = vrot.slane %v1881, 3
      %v1884 = vshll.u32 %v1772, 16
      %v1886 = vrot.slane %v1884, 4
      %v1887 = vor.u32 %v1883, %v1886
      %v1888 = vsel %vm1232, %v1878, %v1887
      %v1890 = vshrl.u32 %v1773, 16
      %v1892 = vrot.slane %v1890, 3
      %v1893 = vshll.u32 %v1773, 16
      %v1895 = vrot.slane %v1893, 4
      %v1896 = vor.u32 %v1892, %v1895
      %v1897 = vsel %vm1232, %v1887, %v1896
      %v1899 = vshrl.u32 %v1774, 16
      %v1901 = vrot.slane %v1899, 3
      %v1902 = vshll.u32 %v1774, 16
      %v1904 = vrot.slane %v1902, 4
      %v1905 = vor.u32 %v1901, %v1904
      %v1906 = vsel %vm1232, %v1896, %v1905
      %v1908 = vshrl.u32 %v1775, 16
      %v1910 = vrot.slane %v1908, 3
      %v1911 = vshll.u32 %v1775, 16
      %v1913 = vrot.slane %v1911, 4
      %v1914 = vor.u32 %v1910, %v1913
      %v1915 = vsel %vm1232, %v1905, %v1914
      %v1917 = vshrl.u32 %v1776, 16
      %v1919 = vrot.slane %v1917, 3
      %v1920 = vshll.u32 %v1776, 16
      %v1922 = vrot.slane %v1920, 4
      %v1923 = vor.u32 %v1919, %v1922
      %v1924 = vsel %vm1232, %v1914, %v1923
      %v1926 = vshrl.u32 %v1777, 16
      %v1928 = vrot.slane %v1926, 3
      %v1929 = vshll.u32 %v1777, 16
      %v1931 = vrot.slane %v1929, 4
      %v1932 = vor.u32 %v1928, %v1931
      %v1933 = vsel %vm1232, %v1923, %v1932
      %v1935 = vshrl.u32 %v1778, 16
      %v1937 = vrot.slane %v1935, 3
      %v1938 = vshll.u32 %v1778, 16
      %v1940 = vrot.slane %v1938, 4
      %v1941 = vor.u32 %v1937, %v1940
      %v1942 = vsel %vm1232, %v1932, %v1941
      %v1944 = vshrl.u32 %v1779, 16
      %v1946 = vrot.slane %v1944, 3
      %v1947 = vshll.u32 %v1779, 16
      %v1949 = vrot.slane %v1947, 4
      %v1950 = vor.u32 %v1946, %v1949
      %v1951 = vsel %vm1232, %v1941, %v1950
      %v1953 = vshrl.u32 %v1780, 16
      %v1955 = vrot.slane %v1953, 3
      %v1956 = vshll.u32 %v1780, 16
      %v1958 = vrot.slane %v1956, 4
      %v1959 = vor.u32 %v1955, %v1958
      %v1960 = vsel %vm1232, %v1950, %v1959
      %v1962 = vshrl.u32 %v1781, 16
      %v1964 = vrot.slane %v1962, 3
      %v1965 = vshll.u32 %v1781, 16
      %v1967 = vrot.slane %v1965, 4
      %v1968 = vor.u32 %v1964, %v1967
      %v1969 = vsel %vm1232, %v1959, %v1968
      %v1971 = vsel %vm500, %v1798, 0
      %v1974 = vsel %vm500, %v1807, 0
      %v1977 = vsel %vm500, %v1816, 0
      %v1980 = vsel %vm500, %v1825, 0
      %v1983 = vsel %vm500, %v1834, 0
      %v1986 = vsel %vm500, %v1843, 0
      %v1989 = vsel %vm500, %v1852, 0
      %v1992 = vsel %vm500, %v1861, 0
      %v1995 = vsel %vm500, %v1870, 0
      %v1998 = vsel %vm500, %v1879, 0
      %v2001 = vsel %vm500, %v1888, 0
      %v2004 = vsel %vm500, %v1897, 0
      %v2007 = vsel %vm500, %v1906, 0
      %v2010 = vsel %vm500, %v1915, 0
      %v2013 = vsel %vm500, %v1924, 0
      %v2016 = vsel %vm500, %v1933, 0
      %v2019 = vsel %vm500, %v1942, 0
      %v2022 = vsel %vm500, %v1951, 0
      %v2025 = vsel %vm500, %v1960, 0
      %v2028 = vsel %vm500, %v1969, 0
      %v2031 = vsel %vm500, %v1968, 0
      %v2034 = vsel %vm564, %v1676, 0
      %2036 = vmatprep.subr.bf16.mxu0 0
      %2037 = vmatpush1.bf16.msra.mxu0 %v2034
      %2038 = vmatprep.subr.bf16.mxu0 0
      %2039 = vmatpush1.bf16.msra.mxu0 0
      %2040 = vmatprep.subr.bf16.mxu0 0
      %2041 = vmatpush1.bf16.msra.mxu0 0
      %2042 = vmatprep.subr.bf16.mxu0 0
      %2043 = vmatpush1.bf16.msra.mxu0 0
      %2044 = vmatprep.subr.bf16.mxu0 0
      %2045 = vmatpush1.bf16.msra.mxu0 0
      %2046 = vmatprep.subr.bf16.mxu0 0
      %2047 = vmatpush1.bf16.msra.mxu0 0
      %2048 = vmatprep.subr.bf16.mxu0 0
      %2049 = vmatpush1.bf16.msra.mxu0 0
      %2050 = vmatprep.subr.bf16.mxu0 0
      %2051 = vmatpush1.bf16.msra.mxu0 0
      %2052 = vmatprep.subr.bf16.mxu0 0
      %2053 = vmatpush1.bf16.msra.mxu0 0
      %2054 = vmatprep.subr.bf16.mxu0 0
      %2055 = vmatpush1.bf16.msra.mxu0 0
      %2056 = vmatprep.subr.bf16.mxu0 0
      %2057 = vmatpush1.bf16.msra.mxu0 0
      %2058 = vmatprep.subr.bf16.mxu0 0
      %2059 = vmatpush1.bf16.msra.mxu0 0
      %2060 = vmatprep.subr.bf16.mxu0 0
      %2061 = vmatpush1.bf16.msra.mxu0 0
      %2062 = vmatprep.subr.bf16.mxu0 0
      %2063 = vmatpush1.bf16.msra.mxu0 0
      %2064 = vmatprep.subr.bf16.mxu0 0
      %2065 = vmatpush1.bf16.msra.mxu0 0
      %2066 = vmatprep.subr.bf16.mxu0 0
      %2067 = vmatpush1.bf16.msra.mxu0 0
      %2068 = vmatprep.mubr.bf16.mxu0 0
      %2069 = vmatmul.mubr.bf16.gmra.mrb[0].mxu0 %v1971
      %v2070 = vpop.f32.mrb[0].mxu0
      %v2071 = vadd.f32 0.0, %v2070
      %v2072 = vpop.f32.mrb[0].mxu0
      %v2073 = vpop.f32.mrb[0].mxu0
      %v2074 = vadd.f32 0.0, %v2073
      %v2075 = vpop.f32.mrb[0].mxu0
      %2076 = vmatprep.mubr.bf16.mxu0 0
      %2077 = vmatmul.mubr.bf16.gmra.mrb[0].mxu0 %v1974
      %v2078 = vpop.f32.mrb[0].mxu0
      %v2079 = vadd.f32 0.0, %v2078
      %v2080 = vpop.f32.mrb[0].mxu0
      %v2081 = vpop.f32.mrb[0].mxu0
      %v2082 = vadd.f32 0.0, %v2081
      %v2083 = vpop.f32.mrb[0].mxu0
      %2084 = vmatprep.mubr.bf16.mxu0 0
      %2085 = vmatmul.mubr.bf16.gmra.mrb[0].mxu0 %v1977
      %v2086 = vpop.f32.mrb[0].mxu0
      %v2087 = vadd.f32 0.0, %v2086
      %v2088 = vpop.f32.mrb[0].mxu0
      %v2089 = vpop.f32.mrb[0].mxu0
      %v2090 = vadd.f32 0.0, %v2089
      %v2091 = vpop.f32.mrb[0].mxu0
      %2092 = vmatprep.mubr.bf16.mxu0 0
      %2093 = vmatmul.mubr.bf16.gmra.mrb[0].mxu0 %v1980
      %v2094 = vpop.f32.mrb[0].mxu0
      %v2095 = vadd.f32 0.0, %v2094
      %v2096 = vpop.f32.mrb[0].mxu0
      %v2097 = vpop.f32.mrb[0].mxu0
      %v2098 = vadd.f32 0.0, %v2097
      %v2099 = vpop.f32.mrb[0].mxu0
      %2100 = vmatprep.mubr.bf16.mxu0 0
      %2101 = vmatmul.mubr.bf16.gmra.mrb[0].mxu0 %v1983
      %v2102 = vpop.f32.mrb[0].mxu0
      %v2103 = vadd.f32 0.0, %v2102
      %v2104 = vpop.f32.mrb[0].mxu0
      %v2105 = vpop.f32.mrb[0].mxu0
      %v2106 = vadd.f32 0.0, %v2105
      %v2107 = vpop.f32.mrb[0].mxu0
      %2108 = vmatprep.mubr.bf16.mxu0 0
      %2109 = vmatmul.mubr.bf16.gmra.mrb[0].mxu0 %v1986
      %v2110 = vpop.f32.mrb[0].mxu0
      %v2111 = vadd.f32 0.0, %v2110
      %v2112 = vpop.f32.mrb[0].mxu0
      %v2113 = vpop.f32.mrb[0].mxu0
      %v2114 = vadd.f32 0.0, %v2113
      %v2115 = vpop.f32.mrb[0].mxu0
      %2116 = vmatprep.mubr.bf16.mxu0 0
      %2117 = vmatmul.mubr.bf16.gmra.mrb[0].mxu0 %v1989
      %v2118 = vpop.f32.mrb[0].mxu0
      %v2119 = vadd.f32 0.0, %v2118
      %v2120 = vpop.f32.mrb[0].mxu0
      %v2121 = vpop.f32.mrb[0].mxu0
      %v2122 = vadd.f32 0.0, %v2121
      %v2123 = vpop.f32.mrb[0].mxu0
      %2124 = vmatprep.mubr.bf16.mxu0 0
      %2125 = vmatmul.mubr.bf16.gmra.mrb[0].mxu0 %v1992
      %v2126 = vpop.f32.mrb[0].mxu0
      %v2127 = vadd.f32 0.0, %v2126
      %v2128 = vpop.f32.mrb[0].mxu0
      %v2129 = vpop.f32.mrb[0].mxu0
      %v2130 = vadd.f32 0.0, %v2129
      %v2131 = vpop.f32.mrb[0].mxu0
      %2132 = vmatprep.mubr.bf16.mxu0 0
      %2133 = vmatmul.mubr.bf16.gmra.mrb[0].mxu0 %v1995
      %v2134 = vpop.f32.mrb[0].mxu0
      %v2135 = vadd.f32 0.0, %v2134
      %v2136 = vpop.f32.mrb[0].mxu0
      %v2137 = vpop.f32.mrb[0].mxu0
      %v2138 = vadd.f32 0.0, %v2137
      %v2139 = vpop.f32.mrb[0].mxu0
      %2140 = vmatprep.mubr.bf16.mxu0 0
      %2141 = vmatmul.mubr.bf16.gmra.mrb[0].mxu0 %v1998
      %v2142 = vpop.f32.mrb[0].mxu0
      %v2143 = vadd.f32 0.0, %v2142
      %v2144 = vpop.f32.mrb[0].mxu0
      %v2145 = vpop.f32.mrb[0].mxu0
      %v2146 = vadd.f32 0.0, %v2145
      %v2147 = vpop.f32.mrb[0].mxu0
      %2148 = vmatprep.mubr.bf16.mxu0 0
      %2149 = vmatmul.mubr.bf16.gmra.mrb[0].mxu0 %v2001
      %v2150 = vpop.f32.mrb[0].mxu0
      %v2151 = vadd.f32 0.0, %v2150
      %v2152 = vpop.f32.mrb[0].mxu0
      %v2153 = vpop.f32.mrb[0].mxu0
      %v2154 = vadd.f32 0.0, %v2153
      %v2155 = vpop.f32.mrb[0].mxu0
      %2156 = vmatprep.mubr.bf16.mxu0 0
      %2157 = vmatmul.mubr.bf16.gmra.mrb[0].mxu0 %v2004
      %v2158 = vpop.f32.mrb[0].mxu0
      %v2159 = vadd.f32 0.0, %v2158
      %v2160 = vpop.f32.mrb[0].mxu0
      %v2161 = vpop.f32.mrb[0].mxu0
      %v2162 = vadd.f32 0.0, %v2161
      %v2163 = vpop.f32.mrb[0].mxu0
      %2164 = vmatprep.mubr.bf16.mxu0 0
      %2165 = vmatmul.mubr.bf16.gmra.mrb[0].mxu0 %v2007
      %v2166 = vpop.f32.mrb[0].mxu0
      %v2167 = vadd.f32 0.0, %v2166
      %v2168 = vpop.f32.mrb[0].mxu0
      %v2169 = vpop.f32.mrb[0].mxu0
      %v2170 = vadd.f32 0.0, %v2169
      %v2171 = vpop.f32.mrb[0].mxu0
      %2172 = vmatprep.mubr.bf16.mxu0 0
      %2173 = vmatmul.mubr.bf16.gmra.mrb[0].mxu0 %v2010
      %v2174 = vpop.f32.mrb[0].mxu0
      %v2175 = vadd.f32 0.0, %v2174
      %v2176 = vpop.f32.mrb[0].mxu0
      %v2177 = vpop.f32.mrb[0].mxu0
      %v2178 = vadd.f32 0.0, %v2177
      %v2179 = vpop.f32.mrb[0].mxu0
      %2180 = vmatprep.mubr.bf16.mxu0 0
      %2181 = vmatmul.mubr.bf16.gmra.mrb[0].mxu0 %v2013
      %v2182 = vpop.f32.mrb[0].mxu0
      %v2183 = vadd.f32 0.0, %v2182
      %v2184 = vpop.f32.mrb[0].mxu0
      %v2185 = vpop.f32.mrb[0].mxu0
      %v2186 = vadd.f32 0.0, %v2185
      %v2187 = vpop.f32.mrb[0].mxu0
      %2188 = vmatprep.mubr.bf16.mxu0 0
      %2189 = vmatmul.mubr.bf16.gmra.mrb[0].mxu0 %v2016
      %v2190 = vpop.f32.mrb[0].mxu0
      %v2191 = vadd.f32 0.0, %v2190
      %v2192 = vpop.f32.mrb[0].mxu0
      %v2193 = vpop.f32.mrb[0].mxu0
      %v2194 = vadd.f32 0.0, %v2193
      %v2195 = vpop.f32.mrb[0].mxu0
      %2196 = vmatprep.mubr.bf16.mxu0 0
      %2197 = vmatmul.mubr.bf16.gmra.mrb[0].mxu0 %v2019
      %v2198 = vpop.f32.mrb[0].mxu0
      %v2199 = vadd.f32 0.0, %v2198
      %v2200 = vpop.f32.mrb[0].mxu0
      %v2201 = vpop.f32.mrb[0].mxu0
      %v2202 = vadd.f32 0.0, %v2201
      %v2203 = vpop.f32.mrb[0].mxu0
      %2204 = vmatprep.mubr.bf16.mxu0 0
      %2205 = vmatmul.mubr.bf16.gmra.mrb[0].mxu0 %v2022
      %v2206 = vpop.f32.mrb[0].mxu0
      %v2207 = vadd.f32 0.0, %v2206
      %v2208 = vpop.f32.mrb[0].mxu0
      %v2209 = vpop.f32.mrb[0].mxu0
      %v2210 = vadd.f32 0.0, %v2209
      %v2211 = vpop.f32.mrb[0].mxu0
      %2212 = vmatprep.mubr.bf16.mxu0 0
      %2213 = vmatmul.mubr.bf16.gmra.mrb[0].mxu0 %v2025
      %v2214 = vpop.f32.mrb[0].mxu0
      %v2215 = vadd.f32 0.0, %v2214
      %v2216 = vpop.f32.mrb[0].mxu0
      %v2217 = vpop.f32.mrb[0].mxu0
      %v2218 = vadd.f32 0.0, %v2217
      %v2219 = vpop.f32.mrb[0].mxu0
      %2220 = vmatprep.mubr.bf16.mxu0 0
      %2221 = vmatmul.mubr.bf16.gmra.mrb[0].mxu0 %v2028
      %v2222 = vpop.f32.mrb[0].mxu0
      %v2223 = vadd.f32 0.0, %v2222
      %v2224 = vpop.f32.mrb[0].mxu0
      %v2225 = vpop.f32.mrb[0].mxu0
      %v2226 = vadd.f32 0.0, %v2225
      %v2227 = vpop.f32.mrb[0].mxu0
      %2228 = vmatprep.mubr.bf16.mxu0 0
      %2229 = vmatmul.mubr.bf16.gmra.mrb[0].mxu0 %v2031
      %v2230 = vpop.f32.mrb[0].mxu0
      %v2231 = vadd.f32 0.0, %v2230
      %v2232 = vpop.f32.mrb[0].mxu0
      %v2233 = vpop.f32.mrb[0].mxu0
      %v2234 = vpop.f32.mrb[0].mxu0
      %2235 = vdwg.mxu0
      %v2236 = vadd.f32 %v1592, %v2071
      %v2237 = vadd.f32 %v1593, %v2074
      %v2238 = vadd.f32 %v1594, %v2079
      %v2239 = vadd.f32 %v1595, %v2082
      %v2240 = vadd.f32 %v1596, %v2087
      %v2241 = vadd.f32 %v1597, %v2090
      %v2242 = vadd.f32 %v1598, %v2095
      %v2243 = vadd.f32 %v1599, %v2098
      %v2244 = vadd.f32 %v1600, %v2103
      %v2245 = vadd.f32 %v1601, %v2106
      %v2246 = vadd.f32 %v1602, %v2111
      %v2247 = vadd.f32 %v1603, %v2114
      %v2248 = vadd.f32 %v1604, %v2119
      %v2249 = vadd.f32 %v1605, %v2122
      %v2250 = vadd.f32 %v1606, %v2127
      %v2251 = vadd.f32 %v1607, %v2130
      %v2252 = vadd.f32 %v1608, %v2135
      %v2253 = vadd.f32 %v1609, %v2138
      %v2254 = vadd.f32 %v1610, %v2143
      %v2255 = vadd.f32 %v1611, %v2146
      %v2256 = vadd.f32 %v1612, %v2151
      %v2257 = vadd.f32 %v1613, %v2154
      %v2258 = vadd.f32 %v1614, %v2159
      %v2259 = vadd.f32 %v1615, %v2162
      %v2260 = vadd.f32 %v1616, %v2167
      %v2261 = vadd.f32 %v1617, %v2170
      %v2262 = vadd.f32 %v1618, %v2175
      %v2263 = vadd.f32 %v1619, %v2178
      %v2264 = vadd.f32 %v1620, %v2183
      %v2265 = vadd.f32 %v1621, %v2186
      %v2266 = vadd.f32 %v1622, %v2191
      %v2267 = vadd.f32 %v1623, %v2194
      %v2268 = vadd.f32 %v1624, %v2199
      %v2269 = vadd.f32 %v1625, %v2202
      %v2270 = vadd.f32 %v1626, %v2207
      %v2271 = vadd.f32 %v1627, %v2210
      %v2272 = vadd.f32 %v1628, %v2215
      %v2273 = vadd.f32 %v1629, %v2218
      %v2274 = vadd.f32 %v1630, %v2223
      %v2275 = vadd.f32 %v1631, %v2226
      %v2276 = vadd.f32 %v1632, %v2231
      %s2277 = scalar_lea.vmem %s1, 4
      %v2278 = vld [vmem:[%s2277] sm:$0x1]
      %v2279 = vpack.c.b16 %v1721, %v1720
      %v2280 = vpack.c.b16 %v1723, %v1722
      %v2281 = vpack.c.b16 %v1725, %v1724
      %v2282 = vpack.c.b16 %v1727, %v1726
      %v2283 = vpack.c.b16 %v1729, %v1728
      %v2284 = vpack.c.b16 %v1731, %v1730
      %v2285 = vpack.c.b16 %v1733, %v1732
      %v2286 = vpack.c.b16 %v1735, %v1734
      %v2287 = vpack.c.b16 %v1737, %v1736
      %v2288 = vpack.c.b16 %v1739, %v1738
      %v2289 = vpack.c.b16 %v1741, %v1740
      %v2290 = vpack.c.b16 %v1743, %v1742
      %v2291 = vpack.c.b16 %v1745, %v1744
      %v2292 = vpack.c.b16 %v1747, %v1746
      %v2293 = vpack.c.b16 %v1749, %v1748
      %v2294 = vpack.c.b16 %v1751, %v1750
      %v2295 = vpack.c.b16 %v1753, %v1752
      %v2296 = vpack.c.b16 %v1755, %v1754
      %v2297 = vpack.c.b16 %v1757, %v1756
      %v2298 = vpack.c.b16 %v1759, %v1758
      %v2299 = vpack.c.b16 %v1760, %v1760
      %v2301 = vsel %vm500, %v2279, 0
      %v2304 = vsel %vm500, %v2280, 0
      %v2307 = vsel %vm500, %v2281, 0
      %v2310 = vsel %vm500, %v2282, 0
      %v2313 = vsel %vm500, %v2283, 0
      %v2316 = vsel %vm500, %v2284, 0
      %v2319 = vsel %vm500, %v2285, 0
      %v2322 = vsel %vm500, %v2286, 0
      %v2325 = vsel %vm500, %v2287, 0
      %v2328 = vsel %vm500, %v2288, 0
      %v2331 = vsel %vm500, %v2289, 0
      %v2334 = vsel %vm500, %v2290, 0
      %v2337 = vsel %vm500, %v2291, 0
      %v2340 = vsel %vm500, %v2292, 0
      %v2343 = vsel %vm500, %v2293, 0
      %v2346 = vsel %vm500, %v2294, 0
      %v2349 = vsel %vm500, %v2295, 0
      %v2352 = vsel %vm500, %v2296, 0
      %v2355 = vsel %vm500, %v2297, 0
      %v2358 = vsel %vm500, %v2298, 0
      %v2361 = vsel %vm500, %v2299, 0
      %v2364 = vsel %vm564, %v2278, 0
      %2366 = vmatprep.subr.bf16.mxu0 0
      %2367 = vmatpush1.bf16.msra.mxu0 %v2364
      %2368 = vmatprep.subr.bf16.mxu0 0
      %2369 = vmatpush1.bf16.msra.mxu0 0
      %2370 = vmatprep.subr.bf16.mxu0 0
      %2371 = vmatpush1.bf16.msra.mxu0 0
      %2372 = vmatprep.subr.bf16.mxu0 0
      %2373 = vmatpush1.bf16.msra.mxu0 0
      %2374 = vmatprep.subr.bf16.mxu0 0
      %2375 = vmatpush1.bf16.msra.mxu0 0
      %2376 = vmatprep.subr.bf16.mxu0 0
      %2377 = vmatpush1.bf16.msra.mxu0 0
      %2378 = vmatprep.subr.bf16.mxu0 0
      %2379 = vmatpush1.bf16.msra.mxu0 0
      %2380 = vmatprep.subr.bf16.mxu0 0
      %2381 = vmatpush1.bf16.msra.mxu0 0
      %2382 = vmatprep.subr.bf16.mxu0 0
      %2383 = vmatpush1.bf16.msra.mxu0 0
      %2384 = vmatprep.subr.bf16.mxu0 0
      %2385 = vmatpush1.bf16.msra.mxu0 0
      %2386 = vmatprep.subr.bf16.mxu0 0
      %2387 = vmatpush1.bf16.msra.mxu0 0
      %2388 = vmatprep.subr.bf16.mxu0 0
      %2389 = vmatpush1.bf16.msra.mxu0 0
      %2390 = vmatprep.subr.bf16.mxu0 0
      %2391 = vmatpush1.bf16.msra.mxu0 0
      %2392 = vmatprep.subr.bf16.mxu0 0
      %2393 = vmatpush1.bf16.msra.mxu0 0
      %2394 = vmatprep.subr.bf16.mxu0 0
      %2395 = vmatpush1.bf16.msra.mxu0 0
      %2396 = vmatprep.subr.bf16.mxu0 0
      %2397 = vmatpush1.bf16.msra.mxu0 0
      %2398 = vmatprep.mubr.bf16.mxu0 0
      %2399 = vmatmul.mubr.bf16.gmra.mrb[0].mxu0 %v2301
      %v2400 = vpop.f32.mrb[0].mxu0
      %v2401 = vadd.f32 0.0, %v2400
      %v2402 = vpop.f32.mrb[0].mxu0
      %v2403 = vpop.f32.mrb[0].mxu0
      %v2404 = vadd.f32 0.0, %v2403
      %v2405 = vpop.f32.mrb[0].mxu0
      %2406 = vmatprep.mubr.bf16.mxu0 0
      %2407 = vmatmul.mubr.bf16.gmra.mrb[0].mxu0 %v2304
      %v2408 = vpop.f32.mrb[0].mxu0
      %v2409 = vadd.f32 0.0, %v2408
      %v2410 = vpop.f32.mrb[0].mxu0
      %v2411 = vpop.f32.mrb[0].mxu0
      %v2412 = vadd.f32 0.0, %v2411
      %v2413 = vpop.f32.mrb[0].mxu0
      %2414 = vmatprep.mubr.bf16.mxu0 0
      %2415 = vmatmul.mubr.bf16.gmra.mrb[0].mxu0 %v2307
      %v2416 = vpop.f32.mrb[0].mxu0
      %v2417 = vadd.f32 0.0, %v2416
      %v2418 = vpop.f32.mrb[0].mxu0
      %v2419 = vpop.f32.mrb[0].mxu0
      %v2420 = vadd.f32 0.0, %v2419
      %v2421 = vpop.f32.mrb[0].mxu0
      %2422 = vmatprep.mubr.bf16.mxu0 0
      %2423 = vmatmul.mubr.bf16.gmra.mrb[0].mxu0 %v2310
      %v2424 = vpop.f32.mrb[0].mxu0
      %v2425 = vadd.f32 0.0, %v2424
      %v2426 = vpop.f32.mrb[0].mxu0
      %v2427 = vpop.f32.mrb[0].mxu0
      %v2428 = vadd.f32 0.0, %v2427
      %v2429 = vpop.f32.mrb[0].mxu0
      %2430 = vmatprep.mubr.bf16.mxu0 0
      %2431 = vmatmul.mubr.bf16.gmra.mrb[0].mxu0 %v2313
      %v2432 = vpop.f32.mrb[0].mxu0
      %v2433 = vadd.f32 0.0, %v2432
      %v2434 = vpop.f32.mrb[0].mxu0
      %v2435 = vpop.f32.mrb[0].mxu0
      %v2436 = vadd.f32 0.0, %v2435
      %v2437 = vpop.f32.mrb[0].mxu0
      %2438 = vmatprep.mubr.bf16.mxu0 0
      %2439 = vmatmul.mubr.bf16.gmra.mrb[0].mxu0 %v2316
      %v2440 = vpop.f32.mrb[0].mxu0
      %v2441 = vadd.f32 0.0, %v2440
      %v2442 = vpop.f32.mrb[0].mxu0
      %v2443 = vpop.f32.mrb[0].mxu0
      %v2444 = vadd.f32 0.0, %v2443
      %v2445 = vpop.f32.mrb[0].mxu0
      %2446 = vmatprep.mubr.bf16.mxu0 0
      %2447 = vmatmul.mubr.bf16.gmra.mrb[0].mxu0 %v2319
      %v2448 = vpop.f32.mrb[0].mxu0
      %v2449 = vadd.f32 0.0, %v2448
      %v2450 = vpop.f32.mrb[0].mxu0
      %v2451 = vpop.f32.mrb[0].mxu0
      %v2452 = vadd.f32 0.0, %v2451
      %v2453 = vpop.f32.mrb[0].mxu0
      %2454 = vmatprep.mubr.bf16.mxu0 0
      %2455 = vmatmul.mubr.bf16.gmra.mrb[0].mxu0 %v2322
      %v2456 = vpop.f32.mrb[0].mxu0
      %v2457 = vadd.f32 0.0, %v2456
      %v2458 = vpop.f32.mrb[0].mxu0
      %v2459 = vpop.f32.mrb[0].mxu0
      %v2460 = vadd.f32 0.0, %v2459
      %v2461 = vpop.f32.mrb[0].mxu0
      %2462 = vmatprep.mubr.bf16.mxu0 0
      %2463 = vmatmul.mubr.bf16.gmra.mrb[0].mxu0 %v2325
      %v2464 = vpop.f32.mrb[0].mxu0
      %v2465 = vadd.f32 0.0, %v2464
      %v2466 = vpop.f32.mrb[0].mxu0
      %v2467 = vpop.f32.mrb[0].mxu0
      %v2468 = vadd.f32 0.0, %v2467
      %v2469 = vpop.f32.mrb[0].mxu0
      %2470 = vmatprep.mubr.bf16.mxu0 0
      %2471 = vmatmul.mubr.bf16.gmra.mrb[0].mxu0 %v2328
      %v2472 = vpop.f32.mrb[0].mxu0
      %v2473 = vadd.f32 0.0, %v2472
      %v2474 = vpop.f32.mrb[0].mxu0
      %v2475 = vpop.f32.mrb[0].mxu0
      %v2476 = vadd.f32 0.0, %v2475
      %v2477 = vpop.f32.mrb[0].mxu0
      %2478 = vmatprep.mubr.bf16.mxu0 0
      %2479 = vmatmul.mubr.bf16.gmra.mrb[0].mxu0 %v2331
      %v2480 = vpop.f32.mrb[0].mxu0
      %v2481 = vadd.f32 0.0, %v2480
      %v2482 = vpop.f32.mrb[0].mxu0
      %v2483 = vpop.f32.mrb[0].mxu0
      %v2484 = vadd.f32 0.0, %v2483
      %v2485 = vpop.f32.mrb[0].mxu0
      %2486 = vmatprep.mubr.bf16.mxu0 0
      %2487 = vmatmul.mubr.bf16.gmra.mrb[0].mxu0 %v2334
      %v2488 = vpop.f32.mrb[0].mxu0
      %v2489 = vadd.f32 0.0, %v2488
      %v2490 = vpop.f32.mrb[0].mxu0
      %v2491 = vpop.f32.mrb[0].mxu0
      %v2492 = vadd.f32 0.0, %v2491
      %v2493 = vpop.f32.mrb[0].mxu0
      %2494 = vmatprep.mubr.bf16.mxu0 0
      %2495 = vmatmul.mubr.bf16.gmra.mrb[0].mxu0 %v2337
      %v2496 = vpop.f32.mrb[0].mxu0
      %v2497 = vadd.f32 0.0, %v2496
      %v2498 = vpop.f32.mrb[0].mxu0
      %v2499 = vpop.f32.mrb[0].mxu0
      %v2500 = vadd.f32 0.0, %v2499
      %v2501 = vpop.f32.mrb[0].mxu0
      %2502 = vmatprep.mubr.bf16.mxu0 0
      %2503 = vmatmul.mubr.bf16.gmra.mrb[0].mxu0 %v2340
      %v2504 = vpop.f32.mrb[0].mxu0
      %v2505 = vadd.f32 0.0, %v2504
      %v2506 = vpop.f32.mrb[0].mxu0
      %v2507 = vpop.f32.mrb[0].mxu0
      %v2508 = vadd.f32 0.0, %v2507
      %v2509 = vpop.f32.mrb[0].mxu0
      %2510 = vmatprep.mubr.bf16.mxu0 0
      %2511 = vmatmul.mubr.bf16.gmra.mrb[0].mxu0 %v2343
      %v2512 = vpop.f32.mrb[0].mxu0
      %v2513 = vadd.f32 0.0, %v2512
      %v2514 = vpop.f32.mrb[0].mxu0
      %v2515 = vpop.f32.mrb[0].mxu0
      %v2516 = vadd.f32 0.0, %v2515
      %v2517 = vpop.f32.mrb[0].mxu0
      %2518 = vmatprep.mubr.bf16.mxu0 0
      %2519 = vmatmul.mubr.bf16.gmra.mrb[0].mxu0 %v2346
      %v2520 = vpop.f32.mrb[0].mxu0
      %v2521 = vadd.f32 0.0, %v2520
      %v2522 = vpop.f32.mrb[0].mxu0
      %v2523 = vpop.f32.mrb[0].mxu0
      %v2524 = vadd.f32 0.0, %v2523
      %v2525 = vpop.f32.mrb[0].mxu0
      %2526 = vmatprep.mubr.bf16.mxu0 0
      %2527 = vmatmul.mubr.bf16.gmra.mrb[0].mxu0 %v2349
      %v2528 = vpop.f32.mrb[0].mxu0
      %v2529 = vadd.f32 0.0, %v2528
      %v2530 = vpop.f32.mrb[0].mxu0
      %v2531 = vpop.f32.mrb[0].mxu0
      %v2532 = vadd.f32 0.0, %v2531
      %v2533 = vpop.f32.mrb[0].mxu0
      %2534 = vmatprep.mubr.bf16.mxu0 0
      %2535 = vmatmul.mubr.bf16.gmra.mrb[0].mxu0 %v2352
      %v2536 = vpop.f32.mrb[0].mxu0
      %v2537 = vadd.f32 0.0, %v2536
      %v2538 = vpop.f32.mrb[0].mxu0
      %v2539 = vpop.f32.mrb[0].mxu0
      %v2540 = vadd.f32 0.0, %v2539
      %v2541 = vpop.f32.mrb[0].mxu0
      %2542 = vmatprep.mubr.bf16.mxu0 0
      %2543 = vmatmul.mubr.bf16.gmra.mrb[0].mxu0 %v2355
      %v2544 = vpop.f32.mrb[0].mxu0
      %v2545 = vadd.f32 0.0, %v2544
      %v2546 = vpop.f32.mrb[0].mxu0
      %v2547 = vpop.f32.mrb[0].mxu0
      %v2548 = vadd.f32 0.0, %v2547
      %v2549 = vpop.f32.mrb[0].mxu0
      %2550 = vmatprep.mubr.bf16.mxu0 0
      %2551 = vmatmul.mubr.bf16.gmra.mrb[0].mxu0 %v2358
      %v2552 = vpop.f32.mrb[0].mxu0
      %v2553 = vadd.f32 0.0, %v2552
      %v2554 = vpop.f32.mrb[0].mxu0
      %v2555 = vpop.f32.mrb[0].mxu0
      %v2556 = vadd.f32 0.0, %v2555
      %v2557 = vpop.f32.mrb[0].mxu0
      %2558 = vmatprep.mubr.bf16.mxu0 0
      %2559 = vmatmul.mubr.bf16.gmra.mrb[0].mxu0 %v2361
      %v2560 = vpop.f32.mrb[0].mxu0
      %v2561 = vadd.f32 0.0, %v2560
      %v2562 = vpop.f32.mrb[0].mxu0
      %v2563 = vpop.f32.mrb[0].mxu0
      %v2564 = vpop.f32.mrb[0].mxu0
      %2565 = vdwg.mxu0
      %v2566 = vadd.f32 %v2236, %v2401
      %v2567 = vadd.f32 %v2237, %v2404
      %v2568 = vadd.f32 %v2238, %v2409
      %v2569 = vadd.f32 %v2239, %v2412
      %v2570 = vadd.f32 %v2240, %v2417
      %v2571 = vadd.f32 %v2241, %v2420
      %v2572 = vadd.f32 %v2242, %v2425
      %v2573 = vadd.f32 %v2243, %v2428
      %v2574 = vadd.f32 %v2244, %v2433
      %v2575 = vadd.f32 %v2245, %v2436
      %v2576 = vadd.f32 %v2246, %v2441
      %v2577 = vadd.f32 %v2247, %v2444
      %v2578 = vadd.f32 %v2248, %v2449
      %v2579 = vadd.f32 %v2249, %v2452
      %v2580 = vadd.f32 %v2250, %v2457
      %v2581 = vadd.f32 %v2251, %v2460
      %v2582 = vadd.f32 %v2252, %v2465
      %v2583 = vadd.f32 %v2253, %v2468
      %v2584 = vadd.f32 %v2254, %v2473
      %v2585 = vadd.f32 %v2255, %v2476
      %v2586 = vadd.f32 %v2256, %v2481
      %v2587 = vadd.f32 %v2257, %v2484
      %v2588 = vadd.f32 %v2258, %v2489
      %v2589 = vadd.f32 %v2259, %v2492
      %v2590 = vadd.f32 %v2260, %v2497
      %v2591 = vadd.f32 %v2261, %v2500
      %v2592 = vadd.f32 %v2262, %v2505
      %v2593 = vadd.f32 %v2263, %v2508
      %v2594 = vadd.f32 %v2264, %v2513
      %v2595 = vadd.f32 %v2265, %v2516
      %v2596 = vadd.f32 %v2266, %v2521
      %v2597 = vadd.f32 %v2267, %v2524
      %v2598 = vadd.f32 %v2268, %v2529
      %v2599 = vadd.f32 %v2269, %v2532
      %v2600 = vadd.f32 %v2270, %v2537
      %v2601 = vadd.f32 %v2271, %v2540
      %v2602 = vadd.f32 %v2272, %v2545
      %v2603 = vadd.f32 %v2273, %v2548
      %v2604 = vadd.f32 %v2274, %v2553
      %v2605 = vadd.f32 %v2275, %v2556
      %v2606 = vadd.f32 %v2276, %v2561
      %v2607 = vld [vmem:[%s300 + $0xac] sm:$0x7]
      %s2608 = scalar_lea.vmem %s1, 5
      %v2609 = vld [vmem:[%s2608] sm:$0x1]
      %v2611 = vunpack.c.l.b16 %v2607
      %v2612 = vpack.c.b16 %v2611, %v2611
      %vm2613 = vsmask.f32 7424
      %v2614 = vshrl.u32 %v2279, 16
      %v2616 = vshll.u32 %v2279, 16
      %v2618 = vrot.slane %v2616, 1
      %v2619 = vor.u32 %v2614, %v2618
      %v2620 = vshll.u32 %v2280, 16
      %v2622 = vrot.slane %v2620, 1
      %v2623 = vsel %vm2613, %v2619, %v2622
      %v2624 = vshrl.u32 %v2280, 16
      %v2626 = vor.u32 %v2624, %v2622
      %v2627 = vshll.u32 %v2281, 16
      %v2629 = vrot.slane %v2627, 1
      %v2630 = vsel %vm2613, %v2626, %v2629
      %v2631 = vshrl.u32 %v2281, 16
      %v2633 = vor.u32 %v2631, %v2629
      %v2634 = vshll.u32 %v2282, 16
      %v2636 = vrot.slane %v2634, 1
      %v2637 = vsel %vm2613, %v2633, %v2636
      %v2638 = vshrl.u32 %v2282, 16
      %v2640 = vor.u32 %v2638, %v2636
      %v2641 = vshll.u32 %v2283, 16
      %v2643 = vrot.slane %v2641, 1
      %v2644 = vsel %vm2613, %v2640, %v2643
      %v2645 = vshrl.u32 %v2283, 16
      %v2647 = vor.u32 %v2645, %v2643
      %v2648 = vshll.u32 %v2284, 16
      %v2650 = vrot.slane %v2648, 1
      %v2651 = vsel %vm2613, %v2647, %v2650
      %v2652 = vshrl.u32 %v2284, 16
      %v2654 = vor.u32 %v2652, %v2650
      %v2655 = vshll.u32 %v2285, 16
      %v2657 = vrot.slane %v2655, 1
      %v2658 = vsel %vm2613, %v2654, %v2657
      %v2659 = vshrl.u32 %v2285, 16
      %v2661 = vor.u32 %v2659, %v2657
      %v2662 = vshll.u32 %v2286, 16
      %v2664 = vrot.slane %v2662, 1
      %v2665 = vsel %vm2613, %v2661, %v2664
      %v2666 = vshrl.u32 %v2286, 16
      %v2668 = vor.u32 %v2666, %v2664
      %v2669 = vshll.u32 %v2287, 16
      %v2671 = vrot.slane %v2669, 1
      %v2672 = vsel %vm2613, %v2668, %v2671
      %v2673 = vshrl.u32 %v2287, 16
      %v2675 = vor.u32 %v2673, %v2671
      %v2676 = vshll.u32 %v2288, 16
      %v2678 = vrot.slane %v2676, 1
      %v2679 = vsel %vm2613, %v2675, %v2678
      %v2680 = vshrl.u32 %v2288, 16
      %v2682 = vor.u32 %v2680, %v2678
      %v2683 = vshll.u32 %v2289, 16
      %v2685 = vrot.slane %v2683, 1
      %v2686 = vsel %vm2613, %v2682, %v2685
      %v2687 = vshrl.u32 %v2289, 16
      %v2689 = vor.u32 %v2687, %v2685
      %v2690 = vshll.u32 %v2290, 16
      %v2692 = vrot.slane %v2690, 1
      %v2693 = vsel %vm2613, %v2689, %v2692
      %v2694 = vshrl.u32 %v2290, 16
      %v2696 = vor.u32 %v2694, %v2692
      %v2697 = vshll.u32 %v2291, 16
      %v2699 = vrot.slane %v2697, 1
      %v2700 = vsel %vm2613, %v2696, %v2699
      %v2701 = vshrl.u32 %v2291, 16
      %v2703 = vor.u32 %v2701, %v2699
      %v2704 = vshll.u32 %v2292, 16
      %v2706 = vrot.slane %v2704, 1
      %v2707 = vsel %vm2613, %v2703, %v2706
      %v2708 = vshrl.u32 %v2292, 16
      %v2710 = vor.u32 %v2708, %v2706
      %v2711 = vshll.u32 %v2293, 16
      %v2713 = vrot.slane %v2711, 1
      %v2714 = vsel %vm2613, %v2710, %v2713
      %v2715 = vshrl.u32 %v2293, 16
      %v2717 = vor.u32 %v2715, %v2713
      %v2718 = vshll.u32 %v2294, 16
      %v2720 = vrot.slane %v2718, 1
      %v2721 = vsel %vm2613, %v2717, %v2720
      %v2722 = vshrl.u32 %v2294, 16
      %v2724 = vor.u32 %v2722, %v2720
      %v2725 = vshll.u32 %v2295, 16
      %v2727 = vrot.slane %v2725, 1
      %v2728 = vsel %vm2613, %v2724, %v2727
      %v2729 = vshrl.u32 %v2295, 16
      %v2731 = vor.u32 %v2729, %v2727
      %v2732 = vshll.u32 %v2296, 16
      %v2734 = vrot.slane %v2732, 1
      %v2735 = vsel %vm2613, %v2731, %v2734
      %v2736 = vshrl.u32 %v2296, 16
      %v2738 = vor.u32 %v2736, %v2734
      %v2739 = vshll.u32 %v2297, 16
      %v2741 = vrot.slane %v2739, 1
      %v2742 = vsel %vm2613, %v2738, %v2741
      %v2743 = vshrl.u32 %v2297, 16
      %v2745 = vor.u32 %v2743, %v2741
      %v2746 = vshll.u32 %v2298, 16
      %v2748 = vrot.slane %v2746, 1
      %v2749 = vsel %vm2613, %v2745, %v2748
      %v2750 = vshrl.u32 %v2298, 16
      %v2752 = vor.u32 %v2750, %v2748
      %v2754 = vshll.u32 %v2612, 16
      %v2756 = vrot.slane %v2754, 1
      %v2757 = vsel %vm2613, %v2752, %v2756
      %v2758 = vshrl.u32 %v2612, 16
      %v2760 = vor.u32 %v2758, %v2756
      %v2762 = vsel %vm500, %v2623, 0
      %v2765 = vsel %vm500, %v2630, 0
      %v2768 = vsel %vm500, %v2637, 0
      %v2771 = vsel %vm500, %v2644, 0
      %v2774 = vsel %vm500, %v2651, 0
      %v2777 = vsel %vm500, %v2658, 0
      %v2780 = vsel %vm500, %v2665, 0
      %v2783 = vsel %vm500, %v2672, 0
      %v2786 = vsel %vm500, %v2679, 0
      %v2789 = vsel %vm500, %v2686, 0
      %v2792 = vsel %vm500, %v2693, 0
      %v2795 = vsel %vm500, %v2700, 0
      %v2798 = vsel %vm500, %v2707, 0
      %v2801 = vsel %vm500, %v2714, 0
      %v2804 = vsel %vm500, %v2721, 0
      %v2807 = vsel %vm500, %v2728, 0
      %v2810 = vsel %vm500, %v2735, 0
      %v2813 = vsel %vm500, %v2742, 0
      %v2816 = vsel %vm500, %v2749, 0
      %v2819 = vsel %vm500, %v2757, 0
      %v2822 = vsel %vm500, %v2760, 0
      %v2825 = vsel %vm564, %v2609, 0
      %2827 = vmatprep.subr.bf16.mxu0 0
      %2828 = vmatpush1.bf16.msra.mxu0 %v2825
      %2829 = vmatprep.subr.bf16.mxu0 0
      %2830 = vmatpush1.bf16.msra.mxu0 0
      %2831 = vmatprep.subr.bf16.mxu0 0
      %2832 = vmatpush1.bf16.msra.mxu0 0
      %2833 = vmatprep.subr.bf16.mxu0 0
      %2834 = vmatpush1.bf16.msra.mxu0 0
      %2835 = vmatprep.subr.bf16.mxu0 0
      %2836 = vmatpush1.bf16.msra.mxu0 0
      %2837 = vmatprep.subr.bf16.mxu0 0
      %2838 = vmatpush1.bf16.msra.mxu0 0
      %2839 = vmatprep.subr.bf16.mxu0 0
      %2840 = vmatpush1.bf16.msra.mxu0 0
      %2841 = vmatprep.subr.bf16.mxu0 0
      %2842 = vmatpush1.bf16.msra.mxu0 0
      %2843 = vmatprep.subr.bf16.mxu0 0
      %2844 = vmatpush1.bf16.msra.mxu0 0
      %2845 = vmatprep.subr.bf16.mxu0 0
      %2846 = vmatpush1.bf16.msra.mxu0 0
      %2847 = vmatprep.subr.bf16.mxu0 0
      %2848 = vmatpush1.bf16.msra.mxu0 0
      %2849 = vmatprep.subr.bf16.mxu0 0
      %2850 = vmatpush1.bf16.msra.mxu0 0
      %2851 = vmatprep.subr.bf16.mxu0 0
      %2852 = vmatpush1.bf16.msra.mxu0 0
      %2853 = vmatprep.subr.bf16.mxu0 0
      %2854 = vmatpush1.bf16.msra.mxu0 0
      %2855 = vmatprep.subr.bf16.mxu0 0
      %2856 = vmatpush1.bf16.msra.mxu0 0
      %2857 = vmatprep.subr.bf16.mxu0 0
      %2858 = vmatpush1.bf16.msra.mxu0 0
      %2859 = vmatprep.mubr.bf16.mxu0 0
      %2860 = vmatmul.mubr.bf16.gmra.mrb[0].mxu0 %v2762
      %v2861 = vpop.f32.mrb[0].mxu0
      %v2862 = vadd.f32 0.0, %v2861
      %v2863 = vpop.f32.mrb[0].mxu0
      %v2864 = vpop.f32.mrb[0].mxu0
      %v2865 = vadd.f32 0.0, %v2864
      %v2866 = vpop.f32.mrb[0].mxu0
      %2867 = vmatprep.mubr.bf16.mxu0 0
      %2868 = vmatmul.mubr.bf16.gmra.mrb[0].mxu0 %v2765
      %v2869 = vpop.f32.mrb[0].mxu0
      %v2870 = vadd.f32 0.0, %v2869
      %v2871 = vpop.f32.mrb[0].mxu0
      %v2872 = vpop.f32.mrb[0].mxu0
      %v2873 = vadd.f32 0.0, %v2872
      %v2874 = vpop.f32.mrb[0].mxu0
      %2875 = vmatprep.mubr.bf16.mxu0 0
      %2876 = vmatmul.mubr.bf16.gmra.mrb[0].mxu0 %v2768
      %v2877 = vpop.f32.mrb[0].mxu0
      %v2878 = vadd.f32 0.0, %v2877
      %v2879 = vpop.f32.mrb[0].mxu0
      %v2880 = vpop.f32.mrb[0].mxu0
      %v2881 = vadd.f32 0.0, %v2880
      %v2882 = vpop.f32.mrb[0].mxu0
      %2883 = vmatprep.mubr.bf16.mxu0 0
      %2884 = vmatmul.mubr.bf16.gmra.mrb[0].mxu0 %v2771
      %v2885 = vpop.f32.mrb[0].mxu0
      %v2886 = vadd.f32 0.0, %v2885
      %v2887 = vpop.f32.mrb[0].mxu0
      %v2888 = vpop.f32.mrb[0].mxu0
      %v2889 = vadd.f32 0.0, %v2888
      %v2890 = vpop.f32.mrb[0].mxu0
      %2891 = vmatprep.mubr.bf16.mxu0 0
      %2892 = vmatmul.mubr.bf16.gmra.mrb[0].mxu0 %v2774
      %v2893 = vpop.f32.mrb[0].mxu0
      %v2894 = vadd.f32 0.0, %v2893
      %v2895 = vpop.f32.mrb[0].mxu0
      %v2896 = vpop.f32.mrb[0].mxu0
      %v2897 = vadd.f32 0.0, %v2896
      %v2898 = vpop.f32.mrb[0].mxu0
      %2899 = vmatprep.mubr.bf16.mxu0 0
      %2900 = vmatmul.mubr.bf16.gmra.mrb[0].mxu0 %v2777
      %v2901 = vpop.f32.mrb[0].mxu0
      %v2902 = vadd.f32 0.0, %v2901
      %v2903 = vpop.f32.mrb[0].mxu0
      %v2904 = vpop.f32.mrb[0].mxu0
      %v2905 = vadd.f32 0.0, %v2904
      %v2906 = vpop.f32.mrb[0].mxu0
      %2907 = vmatprep.mubr.bf16.mxu0 0
      %2908 = vmatmul.mubr.bf16.gmra.mrb[0].mxu0 %v2780
      %v2909 = vpop.f32.mrb[0].mxu0
      %v2910 = vadd.f32 0.0, %v2909
      %v2911 = vpop.f32.mrb[0].mxu0
      %v2912 = vpop.f32.mrb[0].mxu0
      %v2913 = vadd.f32 0.0, %v2912
      %v2914 = vpop.f32.mrb[0].mxu0
      %2915 = vmatprep.mubr.bf16.mxu0 0
      %2916 = vmatmul.mubr.bf16.gmra.mrb[0].mxu0 %v2783
      %v2917 = vpop.f32.mrb[0].mxu0
      %v2918 = vadd.f32 0.0, %v2917
      %v2919 = vpop.f32.mrb[0].mxu0
      %v2920 = vpop.f32.mrb[0].mxu0
      %v2921 = vadd.f32 0.0, %v2920
      %v2922 = vpop.f32.mrb[0].mxu0
      %2923 = vmatprep.mubr.bf16.mxu0 0
      %2924 = vmatmul.mubr.bf16.gmra.mrb[0].mxu0 %v2786
      %v2925 = vpop.f32.mrb[0].mxu0
      %v2926 = vadd.f32 0.0, %v2925
      %v2927 = vpop.f32.mrb[0].mxu0
      %v2928 = vpop.f32.mrb[0].mxu0
      %v2929 = vadd.f32 0.0, %v2928
      %v2930 = vpop.f32.mrb[0].mxu0
      %2931 = vmatprep.mubr.bf16.mxu0 0
      %2932 = vmatmul.mubr.bf16.gmra.mrb[0].mxu0 %v2789
      %v2933 = vpop.f32.mrb[0].mxu0
      %v2934 = vadd.f32 0.0, %v2933
      %v2935 = vpop.f32.mrb[0].mxu0
      %v2936 = vpop.f32.mrb[0].mxu0
      %v2937 = vadd.f32 0.0, %v2936
      %v2938 = vpop.f32.mrb[0].mxu0
      %2939 = vmatprep.mubr.bf16.mxu0 0
      %2940 = vmatmul.mubr.bf16.gmra.mrb[0].mxu0 %v2792
      %v2941 = vpop.f32.mrb[0].mxu0
      %v2942 = vadd.f32 0.0, %v2941
      %v2943 = vpop.f32.mrb[0].mxu0
      %v2944 = vpop.f32.mrb[0].mxu0
      %v2945 = vadd.f32 0.0, %v2944
      %v2946 = vpop.f32.mrb[0].mxu0
      %2947 = vmatprep.mubr.bf16.mxu0 0
      %2948 = vmatmul.mubr.bf16.gmra.mrb[0].mxu0 %v2795
      %v2949 = vpop.f32.mrb[0].mxu0
      %v2950 = vadd.f32 0.0, %v2949
      %v2951 = vpop.f32.mrb[0].mxu0
      %v2952 = vpop.f32.mrb[0].mxu0
      %v2953 = vadd.f32 0.0, %v2952
      %v2954 = vpop.f32.mrb[0].mxu0
      %2955 = vmatprep.mubr.bf16.mxu0 0
      %2956 = vmatmul.mubr.bf16.gmra.mrb[0].mxu0 %v2798
      %v2957 = vpop.f32.mrb[0].mxu0
      %v2958 = vadd.f32 0.0, %v2957
      %v2959 = vpop.f32.mrb[0].mxu0
      %v2960 = vpop.f32.mrb[0].mxu0
      %v2961 = vadd.f32 0.0, %v2960
      %v2962 = vpop.f32.mrb[0].mxu0
      %2963 = vmatprep.mubr.bf16.mxu0 0
      %2964 = vmatmul.mubr.bf16.gmra.mrb[0].mxu0 %v2801
      %v2965 = vpop.f32.mrb[0].mxu0
      %v2966 = vadd.f32 0.0, %v2965
      %v2967 = vpop.f32.mrb[0].mxu0
      %v2968 = vpop.f32.mrb[0].mxu0
      %v2969 = vadd.f32 0.0, %v2968
      %v2970 = vpop.f32.mrb[0].mxu0
      %2971 = vmatprep.mubr.bf16.mxu0 0
      %2972 = vmatmul.mubr.bf16.gmra.mrb[0].mxu0 %v2804
      %v2973 = vpop.f32.mrb[0].mxu0
      %v2974 = vadd.f32 0.0, %v2973
      %v2975 = vpop.f32.mrb[0].mxu0
      %v2976 = vpop.f32.mrb[0].mxu0
      %v2977 = vadd.f32 0.0, %v2976
      %v2978 = vpop.f32.mrb[0].mxu0
      %2979 = vmatprep.mubr.bf16.mxu0 0
      %2980 = vmatmul.mubr.bf16.gmra.mrb[0].mxu0 %v2807
      %v2981 = vpop.f32.mrb[0].mxu0
      %v2982 = vadd.f32 0.0, %v2981
      %v2983 = vpop.f32.mrb[0].mxu0
      %v2984 = vpop.f32.mrb[0].mxu0
      %v2985 = vadd.f32 0.0, %v2984
      %v2986 = vpop.f32.mrb[0].mxu0
      %2987 = vmatprep.mubr.bf16.mxu0 0
      %2988 = vmatmul.mubr.bf16.gmra.mrb[0].mxu0 %v2810
      %v2989 = vpop.f32.mrb[0].mxu0
      %v2990 = vadd.f32 0.0, %v2989
      %v2991 = vpop.f32.mrb[0].mxu0
      %v2992 = vpop.f32.mrb[0].mxu0
      %v2993 = vadd.f32 0.0, %v2992
      %v2994 = vpop.f32.mrb[0].mxu0
      %2995 = vmatprep.mubr.bf16.mxu0 0
      %2996 = vmatmul.mubr.bf16.gmra.mrb[0].mxu0 %v2813
      %v2997 = vpop.f32.mrb[0].mxu0
      %v2998 = vadd.f32 0.0, %v2997
      %v2999 = vpop.f32.mrb[0].mxu0
      %v3000 = vpop.f32.mrb[0].mxu0
      %v3001 = vadd.f32 0.0, %v3000
      %v3002 = vpop.f32.mrb[0].mxu0
      %3003 = vmatprep.mubr.bf16.mxu0 0
      %3004 = vmatmul.mubr.bf16.gmra.mrb[0].mxu0 %v2816
      %v3005 = vpop.f32.mrb[0].mxu0
      %v3006 = vadd.f32 0.0, %v3005
      %v3007 = vpop.f32.mrb[0].mxu0
      %v3008 = vpop.f32.mrb[0].mxu0
      %v3009 = vadd.f32 0.0, %v3008
      %v3010 = vpop.f32.mrb[0].mxu0
      %3011 = vmatprep.mubr.bf16.mxu0 0
      %3012 = vmatmul.mubr.bf16.gmra.mrb[0].mxu0 %v2819
      %v3013 = vpop.f32.mrb[0].mxu0
      %v3014 = vadd.f32 0.0, %v3013
      %v3015 = vpop.f32.mrb[0].mxu0
      %v3016 = vpop.f32.mrb[0].mxu0
      %v3017 = vadd.f32 0.0, %v3016
      %v3018 = vpop.f32.mrb[0].mxu0
      %3019 = vmatprep.mubr.bf16.mxu0 0
      %3020 = vmatmul.mubr.bf16.gmra.mrb[0].mxu0 %v2822
      %v3021 = vpop.f32.mrb[0].mxu0
      %v3022 = vadd.f32 0.0, %v3021
      %v3023 = vpop.f32.mrb[0].mxu0
      %v3024 = vpop.f32.mrb[0].mxu0
      %v3025 = vpop.f32.mrb[0].mxu0
      %3026 = vdwg.mxu0
      %v3027 = vadd.f32 %v2566, %v2862
      %v3028 = vadd.f32 %v2567, %v2865
      %v3029 = vadd.f32 %v2568, %v2870
      %v3030 = vadd.f32 %v2569, %v2873
      %v3031 = vadd.f32 %v2570, %v2878
      %v3032 = vadd.f32 %v2571, %v2881
      %v3033 = vadd.f32 %v2572, %v2886
      %v3034 = vadd.f32 %v2573, %v2889
      %v3035 = vadd.f32 %v2574, %v2894
      %v3036 = vadd.f32 %v2575, %v2897
      %v3037 = vadd.f32 %v2576, %v2902
      %v3038 = vadd.f32 %v2577, %v2905
      %v3039 = vadd.f32 %v2578, %v2910
      %v3040 = vadd.f32 %v2579, %v2913
      %v3041 = vadd.f32 %v2580, %v2918
      %v3042 = vadd.f32 %v2581, %v2921
      %v3043 = vadd.f32 %v2582, %v2926
      %v3044 = vadd.f32 %v2583, %v2929
      %v3045 = vadd.f32 %v2584, %v2934
      %v3046 = vadd.f32 %v2585, %v2937
      %v3047 = vadd.f32 %v2586, %v2942
      %v3048 = vadd.f32 %v2587, %v2945
      %v3049 = vadd.f32 %v2588, %v2950
      %v3050 = vadd.f32 %v2589, %v2953
      %v3051 = vadd.f32 %v2590, %v2958
      %v3052 = vadd.f32 %v2591, %v2961
      %v3053 = vadd.f32 %v2592, %v2966
      %v3054 = vadd.f32 %v2593, %v2969
      %v3055 = vadd.f32 %v2594, %v2974
      %v3056 = vadd.f32 %v2595, %v2977
      %v3057 = vadd.f32 %v2596, %v2982
      %v3058 = vadd.f32 %v2597, %v2985
      %v3059 = vadd.f32 %v2598, %v2990
      %v3060 = vadd.f32 %v2599, %v2993
      %v3061 = vadd.f32 %v2600, %v2998
      %v3062 = vadd.f32 %v2601, %v3001
      %v3063 = vadd.f32 %v2602, %v3006
      %v3064 = vadd.f32 %v2603, %v3009
      %v3065 = vadd.f32 %v2604, %v3014
      %v3066 = vadd.f32 %v2605, %v3017
      %v3067 = vadd.f32 %v2606, %v3022
      %v3068 = vld [vmem:[%s300 + $0x14] sm:$0xf]
      %v3069 = vld [vmem:[%s300 + $0x18] sm:$0xf]
      %v3070 = vld [vmem:[%s300 + $0x1c] sm:$0xf]
      %v3071 = vld [vmem:[%s300 + $0x20] sm:$0xf]
      %v3072 = vld [vmem:[%s300 + $0x24] sm:$0xf]
      %v3073 = vld [vmem:[%s300 + $0x28] sm:$0xf]
      %v3074 = vld [vmem:[%s300 + $0x2c] sm:$0xf]
      %v3075 = vld [vmem:[%s300 + $0x30] sm:$0xf]
      %v3076 = vld [vmem:[%s300 + $0x34] sm:$0xf]
      %v3077 = vld [vmem:[%s300 + $0x38] sm:$0xf]
      %v3078 = vld [vmem:[%s300 + $0x3c] sm:$0xf]
      %v3079 = vld [vmem:[%s300 + $0x40] sm:$0xf]
      %v3080 = vld [vmem:[%s300 + $0x44] sm:$0xf]
      %v3081 = vld [vmem:[%s300 + $0x48] sm:$0xf]
      %v3082 = vld [vmem:[%s300 + $0x4c] sm:$0xf]
      %v3083 = vld [vmem:[%s300 + $0x50] sm:$0xf]
      %v3084 = vld [vmem:[%s300 + $0x54] sm:$0xf]
      %v3085 = vld [vmem:[%s300 + $0x58] sm:$0xf]
      %v3086 = vld [vmem:[%s300 + $0x5c] sm:$0xf]
      %v3087 = vld [vmem:[%s300 + $0x60] sm:$0xf]
      %v3088 = vld [vmem:[%s300 + $0x64] sm:$0xf]
      %v3089 = vld [vmem:[%s300 + $0x68] sm:$0xf]
      %v3090 = vld [vmem:[%s300 + $0x6c] sm:$0xf]
      %v3091 = vld [vmem:[%s300 + $0x70] sm:$0xf]
      %v3092 = vld [vmem:[%s300 + $0x74] sm:$0xf]
      %v3093 = vld [vmem:[%s300 + $0x78] sm:$0xf]
      %v3094 = vld [vmem:[%s300 + $0x7c] sm:$0xf]
      %v3095 = vld [vmem:[%s300 + $0x80] sm:$0xf]
      %v3096 = vld [vmem:[%s300 + $0x84] sm:$0xf]
      %v3097 = vld [vmem:[%s300 + $0x88] sm:$0xf]
      %v3098 = vld [vmem:[%s300 + $0x8c] sm:$0xf]
      %v3099 = vld [vmem:[%s300 + $0x90] sm:$0xf]
      %v3100 = vld [vmem:[%s300 + $0x94] sm:$0xf]
      %v3101 = vld [vmem:[%s300 + $0x98] sm:$0xf]
      %v3102 = vld [vmem:[%s300 + $0x9c] sm:$0xf]
      %v3103 = vld [vmem:[%s300 + $0xa0] sm:$0xf]
      %v3104 = vld [vmem:[%s300 + $0xa4] sm:$0xf]
      %v3105 = vld [vmem:[%s300 + $0xa8] sm:$0xf]
      %v3106 = vld [vmem:[%s300 + $0xac] sm:$0xf]
      %v3107 = vld [vmem:[%s300 + $0xb0] sm:$0xf]
      %v3108 = vld [vmem:[%s300 + $0xb4] sm:$0x7]
      %s3109 = scalar_lea.vmem %s1, 6
      %v3110 = vld [vmem:[%s3109] sm:$0x1]
      %v3152 = vunpack.c.l.b16 %v3068
      %v3153 = vunpack.c.l.b16 %v3069
      %v3154 = vunpack.c.l.b16 %v3070
      %v3155 = vunpack.c.l.b16 %v3071
      %v3156 = vunpack.c.l.b16 %v3072
      %v3157 = vunpack.c.l.b16 %v3073
      %v3158 = vunpack.c.l.b16 %v3074
      %v3159 = vunpack.c.l.b16 %v3075
      %v3160 = vunpack.c.l.b16 %v3076
      %v3161 = vunpack.c.l.b16 %v3077
      %v3162 = vunpack.c.l.b16 %v3078
      %v3163 = vunpack.c.l.b16 %v3079
      %v3164 = vunpack.c.l.b16 %v3080
      %v3165 = vunpack.c.l.b16 %v3081
      %v3166 = vunpack.c.l.b16 %v3082
      %v3167 = vunpack.c.l.b16 %v3083
      %v3168 = vunpack.c.l.b16 %v3084
      %v3169 = vunpack.c.l.b16 %v3085
      %v3170 = vunpack.c.l.b16 %v3086
      %v3171 = vunpack.c.l.b16 %v3087
      %v3172 = vunpack.c.l.b16 %v3088
      %v3173 = vunpack.c.l.b16 %v3089
      %v3174 = vunpack.c.l.b16 %v3090
      %v3175 = vunpack.c.l.b16 %v3091
      %v3176 = vunpack.c.l.b16 %v3092
      %v3177 = vunpack.c.l.b16 %v3093
      %v3178 = vunpack.c.l.b16 %v3094
      %v3179 = vunpack.c.l.b16 %v3095
      %v3180 = vunpack.c.l.b16 %v3096
      %v3181 = vunpack.c.l.b16 %v3097
      %v3182 = vunpack.c.l.b16 %v3098
      %v3183 = vunpack.c.l.b16 %v3099
      %v3184 = vunpack.c.l.b16 %v3100
      %v3185 = vunpack.c.l.b16 %v3101
      %v3186 = vunpack.c.l.b16 %v3102
      %v3187 = vunpack.c.l.b16 %v3103
      %v3188 = vunpack.c.l.b16 %v3104
      %v3189 = vunpack.c.l.b16 %v3105
      %v3190 = vunpack.c.l.b16 %v3106
      %v3191 = vunpack.c.l.b16 %v3107
      %v3192 = vunpack.c.l.b16 %v3108
      %v3193 = vpack.c.b16 %v3153, %v3152
      %v3194 = vpack.c.b16 %v3155, %v3154
      %v3195 = vpack.c.b16 %v3157, %v3156
      %v3196 = vpack.c.b16 %v3159, %v3158
      %v3197 = vpack.c.b16 %v3161, %v3160
      %v3198 = vpack.c.b16 %v3163, %v3162
      %v3199 = vpack.c.b16 %v3165, %v3164
      %v3200 = vpack.c.b16 %v3167, %v3166
      %v3201 = vpack.c.b16 %v3169, %v3168
      %v3202 = vpack.c.b16 %v3171, %v3170
      %v3203 = vpack.c.b16 %v3173, %v3172
      %v3204 = vpack.c.b16 %v3175, %v3174
      %v3205 = vpack.c.b16 %v3177, %v3176
      %v3206 = vpack.c.b16 %v3179, %v3178
      %v3207 = vpack.c.b16 %v3181, %v3180
      %v3208 = vpack.c.b16 %v3183, %v3182
      %v3209 = vpack.c.b16 %v3185, %v3184
      %v3210 = vpack.c.b16 %v3187, %v3186
      %v3211 = vpack.c.b16 %v3189, %v3188
      %v3212 = vpack.c.b16 %v3191, %v3190
      %v3213 = vpack.c.b16 %v3192, %v3192
      %v3215 = vshrl.u32 %v3193, 16
      %v3217 = vshll.u32 %v3193, 16
      %v3219 = vrot.slane %v3217, 1
      %v3220 = vor.u32 %v3215, %v3219
      %v3222 = vshll.u32 %v3194, 16
      %v3224 = vrot.slane %v3222, 1
      %v3225 = vsel %vm2613, %v3220, %v3224
      %v3226 = vshrl.u32 %v3194, 16
      %v3228 = vor.u32 %v3226, %v3224
      %v3230 = vshll.u32 %v3195, 16
      %v3232 = vrot.slane %v3230, 1
      %v3233 = vsel %vm2613, %v3228, %v3232
      %v3234 = vshrl.u32 %v3195, 16
      %v3236 = vor.u32 %v3234, %v3232
      %v3238 = vshll.u32 %v3196, 16
      %v3240 = vrot.slane %v3238, 1
      %v3241 = vsel %vm2613, %v3236, %v3240
      %v3242 = vshrl.u32 %v3196, 16
      %v3244 = vor.u32 %v3242, %v3240
      %v3246 = vshll.u32 %v3197, 16
      %v3248 = vrot.slane %v3246, 1
      %v3249 = vsel %vm2613, %v3244, %v3248
      %v3250 = vshrl.u32 %v3197, 16
      %v3252 = vor.u32 %v3250, %v3248
      %v3254 = vshll.u32 %v3198, 16
      %v3256 = vrot.slane %v3254, 1
      %v3257 = vsel %vm2613, %v3252, %v3256
      %v3258 = vshrl.u32 %v3198, 16
      %v3260 = vor.u32 %v3258, %v3256
      %v3262 = vshll.u32 %v3199, 16
      %v3264 = vrot.slane %v3262, 1
      %v3265 = vsel %vm2613, %v3260, %v3264
      %v3266 = vshrl.u32 %v3199, 16
      %v3268 = vor.u32 %v3266, %v3264
      %v3270 = vshll.u32 %v3200, 16
      %v3272 = vrot.slane %v3270, 1
      %v3273 = vsel %vm2613, %v3268, %v3272
      %v3274 = vshrl.u32 %v3200, 16
      %v3276 = vor.u32 %v3274, %v3272
      %v3278 = vshll.u32 %v3201, 16
      %v3280 = vrot.slane %v3278, 1
      %v3281 = vsel %vm2613, %v3276, %v3280
      %v3282 = vshrl.u32 %v3201, 16
      %v3284 = vor.u32 %v3282, %v3280
      %v3286 = vshll.u32 %v3202, 16
      %v3288 = vrot.slane %v3286, 1
      %v3289 = vsel %vm2613, %v3284, %v3288
      %v3290 = vshrl.u32 %v3202, 16
      %v3292 = vor.u32 %v3290, %v3288
      %v3294 = vshll.u32 %v3203, 16
      %v3296 = vrot.slane %v3294, 1
      %v3297 = vsel %vm2613, %v3292, %v3296
      %v3298 = vshrl.u32 %v3203, 16
      %v3300 = vor.u32 %v3298, %v3296
      %v3302 = vshll.u32 %v3204, 16
      %v3304 = vrot.slane %v3302, 1
      %v3305 = vsel %vm2613, %v3300, %v3304
      %v3306 = vshrl.u32 %v3204, 16
      %v3308 = vor.u32 %v3306, %v3304
      %v3310 = vshll.u32 %v3205, 16
      %v3312 = vrot.slane %v3310, 1
      %v3313 = vsel %vm2613, %v3308, %v3312
      %v3314 = vshrl.u32 %v3205, 16
      %v3316 = vor.u32 %v3314, %v3312
      %v3318 = vshll.u32 %v3206, 16
      %v3320 = vrot.slane %v3318, 1
      %v3321 = vsel %vm2613, %v3316, %v3320
      %v3322 = vshrl.u32 %v3206, 16
      %v3324 = vor.u32 %v3322, %v3320
      %v3326 = vshll.u32 %v3207, 16
      %v3328 = vrot.slane %v3326, 1
      %v3329 = vsel %vm2613, %v3324, %v3328
      %v3330 = vshrl.u32 %v3207, 16
      %v3332 = vor.u32 %v3330, %v3328
      %v3334 = vshll.u32 %v3208, 16
      %v3336 = vrot.slane %v3334, 1
      %v3337 = vsel %vm2613, %v3332, %v3336
      %v3338 = vshrl.u32 %v3208, 16
      %v3340 = vor.u32 %v3338, %v3336
      %v3342 = vshll.u32 %v3209, 16
      %v3344 = vrot.slane %v3342, 1
      %v3345 = vsel %vm2613, %v3340, %v3344
      %v3346 = vshrl.u32 %v3209, 16
      %v3348 = vor.u32 %v3346, %v3344
      %v3350 = vshll.u32 %v3210, 16
      %v3352 = vrot.slane %v3350, 1
      %v3353 = vsel %vm2613, %v3348, %v3352
      %v3354 = vshrl.u32 %v3210, 16
      %v3356 = vor.u32 %v3354, %v3352
      %v3358 = vshll.u32 %v3211, 16
      %v3360 = vrot.slane %v3358, 1
      %v3361 = vsel %vm2613, %v3356, %v3360
      %v3362 = vshrl.u32 %v3211, 16
      %v3364 = vor.u32 %v3362, %v3360
      %v3366 = vshll.u32 %v3212, 16
      %v3368 = vrot.slane %v3366, 1
      %v3369 = vsel %vm2613, %v3364, %v3368
      %v3370 = vshrl.u32 %v3212, 16
      %v3372 = vor.u32 %v3370, %v3368
      %v3374 = vshll.u32 %v3213, 16
      %v3376 = vrot.slane %v3374, 1
      %v3377 = vsel %vm2613, %v3372, %v3376
      %v3378 = vshrl.u32 %v3213, 16
      %v3380 = vor.u32 %v3378, %v3376
      %v3382 = vsel %vm500, %v3225, 0
      %v3385 = vsel %vm500, %v3233, 0
      %v3388 = vsel %vm500, %v3241, 0
      %v3391 = vsel %vm500, %v3249, 0
      %v3394 = vsel %vm500, %v3257, 0
      %v3397 = vsel %vm500, %v3265, 0
      %v3400 = vsel %vm500, %v3273, 0
      %v3403 = vsel %vm500, %v3281, 0
      %v3406 = vsel %vm500, %v3289, 0
      %v3409 = vsel %vm500, %v3297, 0
      %v3412 = vsel %vm500, %v3305, 0
      %v3415 = vsel %vm500, %v3313, 0
      %v3418 = vsel %vm500, %v3321, 0
      %v3421 = vsel %vm500, %v3329, 0
      %v3424 = vsel %vm500, %v3337, 0
      %v3427 = vsel %vm500, %v3345, 0
      %v3430 = vsel %vm500, %v3353, 0
      %v3433 = vsel %vm500, %v3361, 0
      %v3436 = vsel %vm500, %v3369, 0
      %v3439 = vsel %vm500, %v3377, 0
      %v3442 = vsel %vm500, %v3380, 0
      %v3445 = vsel %vm564, %v3110, 0
      %3447 = vmatprep.subr.bf16.mxu0 0
      %3448 = vmatpush1.bf16.msra.mxu0 %v3445
      %3449 = vmatprep.subr.bf16.mxu0 0
      %3450 = vmatpush1.bf16.msra.mxu0 0
      %3451 = vmatprep.subr.bf16.mxu0 0
      %3452 = vmatpush1.bf16.msra.mxu0 0
      %3453 = vmatprep.subr.bf16.mxu0 0
      %3454 = vmatpush1.bf16.msra.mxu0 0
      %3455 = vmatprep.subr.bf16.mxu0 0
      %3456 = vmatpush1.bf16.msra.mxu0 0
      %3457 = vmatprep.subr.bf16.mxu0 0
      %3458 = vmatpush1.bf16.msra.mxu0 0
      %3459 = vmatprep.subr.bf16.mxu0 0
      %3460 = vmatpush1.bf16.msra.mxu0 0
      %3461 = vmatprep.subr.bf16.mxu0 0
      %3462 = vmatpush1.bf16.msra.mxu0 0
      %3463 = vmatprep.subr.bf16.mxu0 0
      %3464 = vmatpush1.bf16.msra.mxu0 0
      %3465 = vmatprep.subr.bf16.mxu0 0
      %3466 = vmatpush1.bf16.msra.mxu0 0
      %3467 = vmatprep.subr.bf16.mxu0 0
      %3468 = vmatpush1.bf16.msra.mxu0 0
      %3469 = vmatprep.subr.bf16.mxu0 0
      %3470 = vmatpush1.bf16.msra.mxu0 0
      %3471 = vmatprep.subr.bf16.mxu0 0
      %3472 = vmatpush1.bf16.msra.mxu0 0
      %3473 = vmatprep.subr.bf16.mxu0 0
      %3474 = vmatpush1.bf16.msra.mxu0 0
      %3475 = vmatprep.subr.bf16.mxu0 0
      %3476 = vmatpush1.bf16.msra.mxu0 0
      %3477 = vmatprep.subr.bf16.mxu0 0
      %3478 = vmatpush1.bf16.msra.mxu0 0
      %3479 = vmatprep.mubr.bf16.mxu0 0
      %3480 = vmatmul.mubr.bf16.gmra.mrb[0].mxu0 %v3382
      %v3481 = vpop.f32.mrb[0].mxu0
      %v3482 = vadd.f32 0.0, %v3481
      %v3483 = vpop.f32.mrb[0].mxu0
      %v3484 = vpop.f32.mrb[0].mxu0
      %v3485 = vadd.f32 0.0, %v3484
      %v3486 = vpop.f32.mrb[0].mxu0
      %3487 = vmatprep.mubr.bf16.mxu0 0
      %3488 = vmatmul.mubr.bf16.gmra.mrb[0].mxu0 %v3385
      %v3489 = vpop.f32.mrb[0].mxu0
      %v3490 = vadd.f32 0.0, %v3489
      %v3491 = vpop.f32.mrb[0].mxu0
      %v3492 = vpop.f32.mrb[0].mxu0
      %v3493 = vadd.f32 0.0, %v3492
      %v3494 = vpop.f32.mrb[0].mxu0
      %3495 = vmatprep.mubr.bf16.mxu0 0
      %3496 = vmatmul.mubr.bf16.gmra.mrb[0].mxu0 %v3388
      %v3497 = vpop.f32.mrb[0].mxu0
      %v3498 = vadd.f32 0.0, %v3497
      %v3499 = vpop.f32.mrb[0].mxu0
      %v3500 = vpop.f32.mrb[0].mxu0
      %v3501 = vadd.f32 0.0, %v3500
      %v3502 = vpop.f32.mrb[0].mxu0
      %3503 = vmatprep.mubr.bf16.mxu0 0
      %3504 = vmatmul.mubr.bf16.gmra.mrb[0].mxu0 %v3391
      %v3505 = vpop.f32.mrb[0].mxu0
      %v3506 = vadd.f32 0.0, %v3505
      %v3507 = vpop.f32.mrb[0].mxu0
      %v3508 = vpop.f32.mrb[0].mxu0
      %v3509 = vadd.f32 0.0, %v3508
      %v3510 = vpop.f32.mrb[0].mxu0
      %3511 = vmatprep.mubr.bf16.mxu0 0
      %3512 = vmatmul.mubr.bf16.gmra.mrb[0].mxu0 %v3394
      %v3513 = vpop.f32.mrb[0].mxu0
      %v3514 = vadd.f32 0.0, %v3513
      %v3515 = vpop.f32.mrb[0].mxu0
      %v3516 = vpop.f32.mrb[0].mxu0
      %v3517 = vadd.f32 0.0, %v3516
      %v3518 = vpop.f32.mrb[0].mxu0
      %3519 = vmatprep.mubr.bf16.mxu0 0
      %3520 = vmatmul.mubr.bf16.gmra.mrb[0].mxu0 %v3397
      %v3521 = vpop.f32.mrb[0].mxu0
      %v3522 = vadd.f32 0.0, %v3521
      %v3523 = vpop.f32.mrb[0].mxu0
      %v3524 = vpop.f32.mrb[0].mxu0
      %v3525 = vadd.f32 0.0, %v3524
      %v3526 = vpop.f32.mrb[0].mxu0
      %3527 = vmatprep.mubr.bf16.mxu0 0
      %3528 = vmatmul.mubr.bf16.gmra.mrb[0].mxu0 %v3400
      %v3529 = vpop.f32.mrb[0].mxu0
      %v3530 = vadd.f32 0.0, %v3529
      %v3531 = vpop.f32.mrb[0].mxu0
      %v3532 = vpop.f32.mrb[0].mxu0
      %v3533 = vadd.f32 0.0, %v3532
      %v3534 = vpop.f32.mrb[0].mxu0
      %3535 = vmatprep.mubr.bf16.mxu0 0
      %3536 = vmatmul.mubr.bf16.gmra.mrb[0].mxu0 %v3403
      %v3537 = vpop.f32.mrb[0].mxu0
      %v3538 = vadd.f32 0.0, %v3537
      %v3539 = vpop.f32.mrb[0].mxu0
      %v3540 = vpop.f32.mrb[0].mxu0
      %v3541 = vadd.f32 0.0, %v3540
      %v3542 = vpop.f32.mrb[0].mxu0
      %3543 = vmatprep.mubr.bf16.mxu0 0
      %3544 = vmatmul.mubr.bf16.gmra.mrb[0].mxu0 %v3406
      %v3545 = vpop.f32.mrb[0].mxu0
      %v3546 = vadd.f32 0.0, %v3545
      %v3547 = vpop.f32.mrb[0].mxu0
      %v3548 = vpop.f32.mrb[0].mxu0
      %v3549 = vadd.f32 0.0, %v3548
      %v3550 = vpop.f32.mrb[0].mxu0
      %3551 = vmatprep.mubr.bf16.mxu0 0
      %3552 = vmatmul.mubr.bf16.gmra.mrb[0].mxu0 %v3409
      %v3553 = vpop.f32.mrb[0].mxu0
      %v3554 = vadd.f32 0.0, %v3553
      %v3555 = vpop.f32.mrb[0].mxu0
      %v3556 = vpop.f32.mrb[0].mxu0
      %v3557 = vadd.f32 0.0, %v3556
      %v3558 = vpop.f32.mrb[0].mxu0
      %3559 = vmatprep.mubr.bf16.mxu0 0
      %3560 = vmatmul.mubr.bf16.gmra.mrb[0].mxu0 %v3412
      %v3561 = vpop.f32.mrb[0].mxu0
      %v3562 = vadd.f32 0.0, %v3561
      %v3563 = vpop.f32.mrb[0].mxu0
      %v3564 = vpop.f32.mrb[0].mxu0
      %v3565 = vadd.f32 0.0, %v3564
      %v3566 = vpop.f32.mrb[0].mxu0
      %3567 = vmatprep.mubr.bf16.mxu0 0
      %3568 = vmatmul.mubr.bf16.gmra.mrb[0].mxu0 %v3415
      %v3569 = vpop.f32.mrb[0].mxu0
      %v3570 = vadd.f32 0.0, %v3569
      %v3571 = vpop.f32.mrb[0].mxu0
      %v3572 = vpop.f32.mrb[0].mxu0
      %v3573 = vadd.f32 0.0, %v3572
      %v3574 = vpop.f32.mrb[0].mxu0
      %3575 = vmatprep.mubr.bf16.mxu0 0
      %3576 = vmatmul.mubr.bf16.gmra.mrb[0].mxu0 %v3418
      %v3577 = vpop.f32.mrb[0].mxu0
      %v3578 = vadd.f32 0.0, %v3577
      %v3579 = vpop.f32.mrb[0].mxu0
      %v3580 = vpop.f32.mrb[0].mxu0
      %v3581 = vadd.f32 0.0, %v3580
      %v3582 = vpop.f32.mrb[0].mxu0
      %3583 = vmatprep.mubr.bf16.mxu0 0
      %3584 = vmatmul.mubr.bf16.gmra.mrb[0].mxu0 %v3421
      %v3585 = vpop.f32.mrb[0].mxu0
      %v3586 = vadd.f32 0.0, %v3585
      %v3587 = vpop.f32.mrb[0].mxu0
      %v3588 = vpop.f32.mrb[0].mxu0
      %v3589 = vadd.f32 0.0, %v3588
      %v3590 = vpop.f32.mrb[0].mxu0
      %3591 = vmatprep.mubr.bf16.mxu0 0
      %3592 = vmatmul.mubr.bf16.gmra.mrb[0].mxu0 %v3424
      %v3593 = vpop.f32.mrb[0].mxu0
      %v3594 = vadd.f32 0.0, %v3593
      %v3595 = vpop.f32.mrb[0].mxu0
      %v3596 = vpop.f32.mrb[0].mxu0
      %v3597 = vadd.f32 0.0, %v3596
      %v3598 = vpop.f32.mrb[0].mxu0
      %3599 = vmatprep.mubr.bf16.mxu0 0
      %3600 = vmatmul.mubr.bf16.gmra.mrb[0].mxu0 %v3427
      %v3601 = vpop.f32.mrb[0].mxu0
      %v3602 = vadd.f32 0.0, %v3601
      %v3603 = vpop.f32.mrb[0].mxu0
      %v3604 = vpop.f32.mrb[0].mxu0
      %v3605 = vadd.f32 0.0, %v3604
      %v3606 = vpop.f32.mrb[0].mxu0
      %3607 = vmatprep.mubr.bf16.mxu0 0
      %3608 = vmatmul.mubr.bf16.gmra.mrb[0].mxu0 %v3430
      %v3609 = vpop.f32.mrb[0].mxu0
      %v3610 = vadd.f32 0.0, %v3609
      %v3611 = vpop.f32.mrb[0].mxu0
      %v3612 = vpop.f32.mrb[0].mxu0
      %v3613 = vadd.f32 0.0, %v3612
      %v3614 = vpop.f32.mrb[0].mxu0
      %3615 = vmatprep.mubr.bf16.mxu0 0
      %3616 = vmatmul.mubr.bf16.gmra.mrb[0].mxu0 %v3433
      %v3617 = vpop.f32.mrb[0].mxu0
      %v3618 = vadd.f32 0.0, %v3617
      %v3619 = vpop.f32.mrb[0].mxu0
      %v3620 = vpop.f32.mrb[0].mxu0
      %v3621 = vadd.f32 0.0, %v3620
      %v3622 = vpop.f32.mrb[0].mxu0
      %3623 = vmatprep.mubr.bf16.mxu0 0
      %3624 = vmatmul.mubr.bf16.gmra.mrb[0].mxu0 %v3436
      %v3625 = vpop.f32.mrb[0].mxu0
      %v3626 = vadd.f32 0.0, %v3625
      %v3627 = vpop.f32.mrb[0].mxu0
      %v3628 = vpop.f32.mrb[0].mxu0
      %v3629 = vadd.f32 0.0, %v3628
      %v3630 = vpop.f32.mrb[0].mxu0
      %3631 = vmatprep.mubr.bf16.mxu0 0
      %3632 = vmatmul.mubr.bf16.gmra.mrb[0].mxu0 %v3439
      %v3633 = vpop.f32.mrb[0].mxu0
      %v3634 = vadd.f32 0.0, %v3633
      %v3635 = vpop.f32.mrb[0].mxu0
      %v3636 = vpop.f32.mrb[0].mxu0
      %v3637 = vadd.f32 0.0, %v3636
      %v3638 = vpop.f32.mrb[0].mxu0
      %3639 = vmatprep.mubr.bf16.mxu0 0
      %3640 = vmatmul.mubr.bf16.gmra.mrb[0].mxu0 %v3442
      %v3641 = vpop.f32.mrb[0].mxu0
      %v3642 = vadd.f32 0.0, %v3641
      %v3643 = vpop.f32.mrb[0].mxu0
      %v3644 = vpop.f32.mrb[0].mxu0
      %v3645 = vpop.f32.mrb[0].mxu0
      %3646 = vdwg.mxu0
      %v3647 = vadd.f32 %v3027, %v3482
      %v3648 = vadd.f32 %v3028, %v3485
      %v3649 = vadd.f32 %v3029, %v3490
      %v3650 = vadd.f32 %v3030, %v3493
      %v3651 = vadd.f32 %v3031, %v3498
      %v3652 = vadd.f32 %v3032, %v3501
      %v3653 = vadd.f32 %v3033, %v3506
      %v3654 = vadd.f32 %v3034, %v3509
      %v3655 = vadd.f32 %v3035, %v3514
      %v3656 = vadd.f32 %v3036, %v3517
      %v3657 = vadd.f32 %v3037, %v3522
      %v3658 = vadd.f32 %v3038, %v3525
      %v3659 = vadd.f32 %v3039, %v3530
      %v3660 = vadd.f32 %v3040, %v3533
      %v3661 = vadd.f32 %v3041, %v3538
      %v3662 = vadd.f32 %v3042, %v3541
      %v3663 = vadd.f32 %v3043, %v3546
      %v3664 = vadd.f32 %v3044, %v3549
      %v3665 = vadd.f32 %v3045, %v3554
      %v3666 = vadd.f32 %v3046, %v3557
      %v3667 = vadd.f32 %v3047, %v3562
      %v3668 = vadd.f32 %v3048, %v3565
      %v3669 = vadd.f32 %v3049, %v3570
      %v3670 = vadd.f32 %v3050, %v3573
      %v3671 = vadd.f32 %v3051, %v3578
      %v3672 = vadd.f32 %v3052, %v3581
      %v3673 = vadd.f32 %v3053, %v3586
      %v3674 = vadd.f32 %v3054, %v3589
      %v3675 = vadd.f32 %v3055, %v3594
      %v3676 = vadd.f32 %v3056, %v3597
      %v3677 = vadd.f32 %v3057, %v3602
      %v3678 = vadd.f32 %v3058, %v3605
      %v3679 = vadd.f32 %v3059, %v3610
      %v3680 = vadd.f32 %v3060, %v3613
      %v3681 = vadd.f32 %v3061, %v3618
      %v3682 = vadd.f32 %v3062, %v3621
      %v3683 = vadd.f32 %v3063, %v3626
      %v3684 = vadd.f32 %v3064, %v3629
      %v3685 = vadd.f32 %v3065, %v3634
      %v3686 = vadd.f32 %v3066, %v3637
      %v3687 = vadd.f32 %v3067, %v3642
      %v3688 = vld [vmem:[%s300 + $0x14] sm:$0xe]
      %s3689 = scalar_lea.vmem %s1, 7
      %v3690 = vld [vmem:[%s3689] sm:$0x1]
      %v3692 = vunpack.c.l.b16 %v3688
      %v3693 = vpack.c.b16 %v3153, %v3692
      %vm3694 = vcmask 1046528
      %v3695 = vrot.slane %v3693, 1
      %v3696 = vrot.slane %v3194, 1
      %v3697 = vsel %vm3694, %v3695, %v3696
      %v3698 = vrot.slane %v3195, 1
      %v3699 = vsel %vm3694, %v3696, %v3698
      %v3700 = vrot.slane %v3196, 1
      %v3701 = vsel %vm3694, %v3698, %v3700
      %v3702 = vrot.slane %v3197, 1
      %v3703 = vsel %vm3694, %v3700, %v3702
      %v3704 = vrot.slane %v3198, 1
      %v3705 = vsel %vm3694, %v3702, %v3704
      %v3706 = vrot.slane %v3199, 1
      %v3707 = vsel %vm3694, %v3704, %v3706
      %v3708 = vrot.slane %v3200, 1
      %v3709 = vsel %vm3694, %v3706, %v3708
      %v3710 = vrot.slane %v3201, 1
      %v3711 = vsel %vm3694, %v3708, %v3710
      %v3712 = vrot.slane %v3202, 1
      %v3713 = vsel %vm3694, %v3710, %v3712
      %v3714 = vrot.slane %v3203, 1
      %v3715 = vsel %vm3694, %v3712, %v3714
      %v3716 = vrot.slane %v3204, 1
      %v3717 = vsel %vm3694, %v3714, %v3716
      %v3718 = vrot.slane %v3205, 1
      %v3719 = vsel %vm3694, %v3716, %v3718
      %v3720 = vrot.slane %v3206, 1
      %v3721 = vsel %vm3694, %v3718, %v3720
      %v3722 = vrot.slane %v3207, 1
      %v3723 = vsel %vm3694, %v3720, %v3722
      %v3724 = vrot.slane %v3208, 1
      %v3725 = vsel %vm3694, %v3722, %v3724
      %v3726 = vrot.slane %v3209, 1
      %v3727 = vsel %vm3694, %v3724, %v3726
      %v3728 = vrot.slane %v3210, 1
      %v3729 = vsel %vm3694, %v3726, %v3728
      %v3730 = vrot.slane %v3211, 1
      %v3731 = vsel %vm3694, %v3728, %v3730
      %v3732 = vrot.slane %v3212, 1
      %v3733 = vsel %vm3694, %v3730, %v3732
      %v3734 = vrot.slane %v3213, 1
      %v3735 = vsel %vm3694, %v3732, %v3734
      %v3737 = vsel %vm500, %v3697, 0
      %v3740 = vsel %vm500, %v3699, 0
      %v3743 = vsel %vm500, %v3701, 0
      %v3746 = vsel %vm500, %v3703, 0
      %v3749 = vsel %vm500, %v3705, 0
      %v3752 = vsel %vm500, %v3707, 0
      %v3755 = vsel %vm500, %v3709, 0
      %v3758 = vsel %vm500, %v3711, 0
      %v3761 = vsel %vm500, %v3713, 0
      %v3764 = vsel %vm500, %v3715, 0
      %v3767 = vsel %vm500, %v3717, 0
      %v3770 = vsel %vm500, %v3719, 0
      %v3773 = vsel %vm500, %v3721, 0
      %v3776 = vsel %vm500, %v3723, 0
      %v3779 = vsel %vm500, %v3725, 0
      %v3782 = vsel %vm500, %v3727, 0
      %v3785 = vsel %vm500, %v3729, 0
      %v3788 = vsel %vm500, %v3731, 0
      %v3791 = vsel %vm500, %v3733, 0
      %v3794 = vsel %vm500, %v3735, 0
      %v3797 = vsel %vm500, %v3734, 0
      %v3800 = vsel %vm564, %v3690, 0
      %3802 = vmatprep.subr.bf16.mxu0 0
      %3803 = vmatpush1.bf16.msra.mxu0 %v3800
      %3804 = vmatprep.subr.bf16.mxu0 0
      %3805 = vmatpush1.bf16.msra.mxu0 0
      %3806 = vmatprep.subr.bf16.mxu0 0
      %3807 = vmatpush1.bf16.msra.mxu0 0
      %3808 = vmatprep.subr.bf16.mxu0 0
      %3809 = vmatpush1.bf16.msra.mxu0 0
      %3810 = vmatprep.subr.bf16.mxu0 0
      %3811 = vmatpush1.bf16.msra.mxu0 0
      %3812 = vmatprep.subr.bf16.mxu0 0
      %3813 = vmatpush1.bf16.msra.mxu0 0
      %3814 = vmatprep.subr.bf16.mxu0 0
      %3815 = vmatpush1.bf16.msra.mxu0 0
      %3816 = vmatprep.subr.bf16.mxu0 0
      %3817 = vmatpush1.bf16.msra.mxu0 0
      %3818 = vmatprep.subr.bf16.mxu0 0
      %3819 = vmatpush1.bf16.msra.mxu0 0
      %3820 = vmatprep.subr.bf16.mxu0 0
      %3821 = vmatpush1.bf16.msra.mxu0 0
      %3822 = vmatprep.subr.bf16.mxu0 0
      %3823 = vmatpush1.bf16.msra.mxu0 0
      %3824 = vmatprep.subr.bf16.mxu0 0
      %3825 = vmatpush1.bf16.msra.mxu0 0
      %3826 = vmatprep.subr.bf16.mxu0 0
      %3827 = vmatpush1.bf16.msra.mxu0 0
      %3828 = vmatprep.subr.bf16.mxu0 0
      %3829 = vmatpush1.bf16.msra.mxu0 0
      %3830 = vmatprep.subr.bf16.mxu0 0
      %3831 = vmatpush1.bf16.msra.mxu0 0
      %3832 = vmatprep.subr.bf16.mxu0 0
      %3833 = vmatpush1.bf16.msra.mxu0 0
      %3834 = vmatprep.mubr.bf16.mxu0 0
      %3835 = vmatmul.mubr.bf16.gmra.mrb[0].mxu0 %v3737
      %v3836 = vpop.f32.mrb[0].mxu0
      %v3837 = vadd.f32 0.0, %v3836
      %v3838 = vpop.f32.mrb[0].mxu0
      %v3839 = vpop.f32.mrb[0].mxu0
      %v3840 = vadd.f32 0.0, %v3839
      %v3841 = vpop.f32.mrb[0].mxu0
      %3842 = vmatprep.mubr.bf16.mxu0 0
      %3843 = vmatmul.mubr.bf16.gmra.mrb[0].mxu0 %v3740
      %v3844 = vpop.f32.mrb[0].mxu0
      %v3845 = vadd.f32 0.0, %v3844
      %v3846 = vpop.f32.mrb[0].mxu0
      %v3847 = vpop.f32.mrb[0].mxu0
      %v3848 = vadd.f32 0.0, %v3847
      %v3849 = vpop.f32.mrb[0].mxu0
      %3850 = vmatprep.mubr.bf16.mxu0 0
      %3851 = vmatmul.mubr.bf16.gmra.mrb[0].mxu0 %v3743
      %v3852 = vpop.f32.mrb[0].mxu0
      %v3853 = vadd.f32 0.0, %v3852
      %v3854 = vpop.f32.mrb[0].mxu0
      %v3855 = vpop.f32.mrb[0].mxu0
      %v3856 = vadd.f32 0.0, %v3855
      %v3857 = vpop.f32.mrb[0].mxu0
      %3858 = vmatprep.mubr.bf16.mxu0 0
      %3859 = vmatmul.mubr.bf16.gmra.mrb[0].mxu0 %v3746
      %v3860 = vpop.f32.mrb[0].mxu0
      %v3861 = vadd.f32 0.0, %v3860
      %v3862 = vpop.f32.mrb[0].mxu0
      %v3863 = vpop.f32.mrb[0].mxu0
      %v3864 = vadd.f32 0.0, %v3863
      %v3865 = vpop.f32.mrb[0].mxu0
      %3866 = vmatprep.mubr.bf16.mxu0 0
      %3867 = vmatmul.mubr.bf16.gmra.mrb[0].mxu0 %v3749
      %v3868 = vpop.f32.mrb[0].mxu0
      %v3869 = vadd.f32 0.0, %v3868
      %v3870 = vpop.f32.mrb[0].mxu0
      %v3871 = vpop.f32.mrb[0].mxu0
      %v3872 = vadd.f32 0.0, %v3871
      %v3873 = vpop.f32.mrb[0].mxu0
      %3874 = vmatprep.mubr.bf16.mxu0 0
      %3875 = vmatmul.mubr.bf16.gmra.mrb[0].mxu0 %v3752
      %v3876 = vpop.f32.mrb[0].mxu0
      %v3877 = vadd.f32 0.0, %v3876
      %v3878 = vpop.f32.mrb[0].mxu0
      %v3879 = vpop.f32.mrb[0].mxu0
      %v3880 = vadd.f32 0.0, %v3879
      %v3881 = vpop.f32.mrb[0].mxu0
      %3882 = vmatprep.mubr.bf16.mxu0 0
      %3883 = vmatmul.mubr.bf16.gmra.mrb[0].mxu0 %v3755
      %v3884 = vpop.f32.mrb[0].mxu0
      %v3885 = vadd.f32 0.0, %v3884
      %v3886 = vpop.f32.mrb[0].mxu0
      %v3887 = vpop.f32.mrb[0].mxu0
      %v3888 = vadd.f32 0.0, %v3887
      %v3889 = vpop.f32.mrb[0].mxu0
      %3890 = vmatprep.mubr.bf16.mxu0 0
      %3891 = vmatmul.mubr.bf16.gmra.mrb[0].mxu0 %v3758
      %v3892 = vpop.f32.mrb[0].mxu0
      %v3893 = vadd.f32 0.0, %v3892
      %v3894 = vpop.f32.mrb[0].mxu0
      %v3895 = vpop.f32.mrb[0].mxu0
      %v3896 = vadd.f32 0.0, %v3895
      %v3897 = vpop.f32.mrb[0].mxu0
      %3898 = vmatprep.mubr.bf16.mxu0 0
      %3899 = vmatmul.mubr.bf16.gmra.mrb[0].mxu0 %v3761
      %v3900 = vpop.f32.mrb[0].mxu0
      %v3901 = vadd.f32 0.0, %v3900
      %v3902 = vpop.f32.mrb[0].mxu0
      %v3903 = vpop.f32.mrb[0].mxu0
      %v3904 = vadd.f32 0.0, %v3903
      %v3905 = vpop.f32.mrb[0].mxu0
      %3906 = vmatprep.mubr.bf16.mxu0 0
      %3907 = vmatmul.mubr.bf16.gmra.mrb[0].mxu0 %v3764
      %v3908 = vpop.f32.mrb[0].mxu0
      %v3909 = vadd.f32 0.0, %v3908
      %v3910 = vpop.f32.mrb[0].mxu0
      %v3911 = vpop.f32.mrb[0].mxu0
      %v3912 = vadd.f32 0.0, %v3911
      %v3913 = vpop.f32.mrb[0].mxu0
      %3914 = vmatprep.mubr.bf16.mxu0 0
      %3915 = vmatmul.mubr.bf16.gmra.mrb[0].mxu0 %v3767
      %v3916 = vpop.f32.mrb[0].mxu0
      %v3917 = vadd.f32 0.0, %v3916
      %v3918 = vpop.f32.mrb[0].mxu0
      %v3919 = vpop.f32.mrb[0].mxu0
      %v3920 = vadd.f32 0.0, %v3919
      %v3921 = vpop.f32.mrb[0].mxu0
      %3922 = vmatprep.mubr.bf16.mxu0 0
      %3923 = vmatmul.mubr.bf16.gmra.mrb[0].mxu0 %v3770
      %v3924 = vpop.f32.mrb[0].mxu0
      %v3925 = vadd.f32 0.0, %v3924
      %v3926 = vpop.f32.mrb[0].mxu0
      %v3927 = vpop.f32.mrb[0].mxu0
      %v3928 = vadd.f32 0.0, %v3927
      %v3929 = vpop.f32.mrb[0].mxu0
      %3930 = vmatprep.mubr.bf16.mxu0 0
      %3931 = vmatmul.mubr.bf16.gmra.mrb[0].mxu0 %v3773
      %v3932 = vpop.f32.mrb[0].mxu0
      %v3933 = vadd.f32 0.0, %v3932
      %v3934 = vpop.f32.mrb[0].mxu0
      %v3935 = vpop.f32.mrb[0].mxu0
      %v3936 = vadd.f32 0.0, %v3935
      %v3937 = vpop.f32.mrb[0].mxu0
      %3938 = vmatprep.mubr.bf16.mxu0 0
      %3939 = vmatmul.mubr.bf16.gmra.mrb[0].mxu0 %v3776
      %v3940 = vpop.f32.mrb[0].mxu0
      %v3941 = vadd.f32 0.0, %v3940
      %v3942 = vpop.f32.mrb[0].mxu0
      %v3943 = vpop.f32.mrb[0].mxu0
      %v3944 = vadd.f32 0.0, %v3943
      %v3945 = vpop.f32.mrb[0].mxu0
      %3946 = vmatprep.mubr.bf16.mxu0 0
      %3947 = vmatmul.mubr.bf16.gmra.mrb[0].mxu0 %v3779
      %v3948 = vpop.f32.mrb[0].mxu0
      %v3949 = vadd.f32 0.0, %v3948
      %v3950 = vpop.f32.mrb[0].mxu0
      %v3951 = vpop.f32.mrb[0].mxu0
      %v3952 = vadd.f32 0.0, %v3951
      %v3953 = vpop.f32.mrb[0].mxu0
      %3954 = vmatprep.mubr.bf16.mxu0 0
      %3955 = vmatmul.mubr.bf16.gmra.mrb[0].mxu0 %v3782
      %v3956 = vpop.f32.mrb[0].mxu0
      %v3957 = vadd.f32 0.0, %v3956
      %v3958 = vpop.f32.mrb[0].mxu0
      %v3959 = vpop.f32.mrb[0].mxu0
      %v3960 = vadd.f32 0.0, %v3959
      %v3961 = vpop.f32.mrb[0].mxu0
      %3962 = vmatprep.mubr.bf16.mxu0 0
      %3963 = vmatmul.mubr.bf16.gmra.mrb[0].mxu0 %v3785
      %v3964 = vpop.f32.mrb[0].mxu0
      %v3965 = vadd.f32 0.0, %v3964
      %v3966 = vpop.f32.mrb[0].mxu0
      %v3967 = vpop.f32.mrb[0].mxu0
      %v3968 = vadd.f32 0.0, %v3967
      %v3969 = vpop.f32.mrb[0].mxu0
      %3970 = vmatprep.mubr.bf16.mxu0 0
      %3971 = vmatmul.mubr.bf16.gmra.mrb[0].mxu0 %v3788
      %v3972 = vpop.f32.mrb[0].mxu0
      %v3973 = vadd.f32 0.0, %v3972
      %v3974 = vpop.f32.mrb[0].mxu0
      %v3975 = vpop.f32.mrb[0].mxu0
      %v3976 = vadd.f32 0.0, %v3975
      %v3977 = vpop.f32.mrb[0].mxu0
      %3978 = vmatprep.mubr.bf16.mxu0 0
      %3979 = vmatmul.mubr.bf16.gmra.mrb[0].mxu0 %v3791
      %v3980 = vpop.f32.mrb[0].mxu0
      %v3981 = vadd.f32 0.0, %v3980
      %v3982 = vpop.f32.mrb[0].mxu0
      %v3983 = vpop.f32.mrb[0].mxu0
      %v3984 = vadd.f32 0.0, %v3983
      %v3985 = vpop.f32.mrb[0].mxu0
      %3986 = vmatprep.mubr.bf16.mxu0 0
      %3987 = vmatmul.mubr.bf16.gmra.mrb[0].mxu0 %v3794
      %v3988 = vpop.f32.mrb[0].mxu0
      %v3989 = vadd.f32 0.0, %v3988
      %v3990 = vpop.f32.mrb[0].mxu0
      %v3991 = vpop.f32.mrb[0].mxu0
      %v3992 = vadd.f32 0.0, %v3991
      %v3993 = vpop.f32.mrb[0].mxu0
      %3994 = vmatprep.mubr.bf16.mxu0 0
      %3995 = vmatmul.mubr.bf16.gmra.mrb[0].mxu0 %v3797
      %v3996 = vpop.f32.mrb[0].mxu0
      %v3997 = vadd.f32 0.0, %v3996
      %v3998 = vpop.f32.mrb[0].mxu0
      %v3999 = vpop.f32.mrb[0].mxu0
      %v4000 = vpop.f32.mrb[0].mxu0
      %4001 = vdwg.mxu0
      %v4002 = vadd.f32 %v3647, %v3837
      %v4003 = vadd.f32 %v3648, %v3840
      %v4004 = vadd.f32 %v3649, %v3845
      %v4005 = vadd.f32 %v3650, %v3848
      %v4006 = vadd.f32 %v3651, %v3853
      %v4007 = vadd.f32 %v3652, %v3856
      %v4008 = vadd.f32 %v3653, %v3861
      %v4009 = vadd.f32 %v3654, %v3864
      %v4010 = vadd.f32 %v3655, %v3869
      %v4011 = vadd.f32 %v3656, %v3872
      %v4012 = vadd.f32 %v3657, %v3877
      %v4013 = vadd.f32 %v3658, %v3880
      %v4014 = vadd.f32 %v3659, %v3885
      %v4015 = vadd.f32 %v3660, %v3888
      %v4016 = vadd.f32 %v3661, %v3893
      %v4017 = vadd.f32 %v3662, %v3896
      %v4018 = vadd.f32 %v3663, %v3901
      %v4019 = vadd.f32 %v3664, %v3904
      %v4020 = vadd.f32 %v3665, %v3909
      %v4021 = vadd.f32 %v3666, %v3912
      %v4022 = vadd.f32 %v3667, %v3917
      %v4023 = vadd.f32 %v3668, %v3920
      %v4024 = vadd.f32 %v3669, %v3925
      %v4025 = vadd.f32 %v3670, %v3928
      %v4026 = vadd.f32 %v3671, %v3933
      %v4027 = vadd.f32 %v3672, %v3936
      %v4028 = vadd.f32 %v3673, %v3941
      %v4029 = vadd.f32 %v3674, %v3944
      %v4030 = vadd.f32 %v3675, %v3949
      %v4031 = vadd.f32 %v3676, %v3952
      %v4032 = vadd.f32 %v3677, %v3957
      %v4033 = vadd.f32 %v3678, %v3960
      %v4034 = vadd.f32 %v3679, %v3965
      %v4035 = vadd.f32 %v3680, %v3968
      %v4036 = vadd.f32 %v3681, %v3973
      %v4037 = vadd.f32 %v3682, %v3976
      %v4038 = vadd.f32 %v3683, %v3981
      %v4039 = vadd.f32 %v3684, %v3984
      %v4040 = vadd.f32 %v3685, %v3989
      %v4041 = vadd.f32 %v3686, %v3992
      %v4042 = vadd.f32 %v3687, %v3997
      %v4043 = vld [vmem:[%s300 + $0xb4] sm:$0xf]
      %s4044 = scalar_lea.vmem %s1, 8
      %v4045 = vld [vmem:[%s4044] sm:$0x1]
      %v4047 = vunpack.c.l.b16 %v4043
      %v4048 = vpack.c.b16 %v4047, %v4047
      %vm4049 = vsmask.f32 6400
      %v4051 = vshrl.u32 %v3693, 16
      %v4053 = vrot.slane %v4051, 1
      %v4054 = vshll.u32 %v3693, 16
      %v4056 = vrot.slane %v4054, 2
      %v4057 = vor.u32 %v4053, %v4056
      %v4058 = vrot.slane %v3226, 1
      %v4059 = vrot.slane %v3222, 2
      %v4060 = vor.u32 %v4058, %v4059
      %v4061 = vsel %vm4049, %v4057, %v4060
      %v4062 = vrot.slane %v3234, 1
      %v4063 = vrot.slane %v3230, 2
      %v4064 = vor.u32 %v4062, %v4063
      %v4065 = vsel %vm4049, %v4060, %v4064
      %v4066 = vrot.slane %v3242, 1
      %v4067 = vrot.slane %v3238, 2
      %v4068 = vor.u32 %v4066, %v4067
      %v4069 = vsel %vm4049, %v4064, %v4068
      %v4070 = vrot.slane %v3250, 1
      %v4071 = vrot.slane %v3246, 2
      %v4072 = vor.u32 %v4070, %v4071
      %v4073 = vsel %vm4049, %v4068, %v4072
      %v4074 = vrot.slane %v3258, 1
      %v4075 = vrot.slane %v3254, 2
      %v4076 = vor.u32 %v4074, %v4075
      %v4077 = vsel %vm4049, %v4072, %v4076
      %v4078 = vrot.slane %v3266, 1
      %v4079 = vrot.slane %v3262, 2
      %v4080 = vor.u32 %v4078, %v4079
      %v4081 = vsel %vm4049, %v4076, %v4080
      %v4082 = vrot.slane %v3274, 1
      %v4083 = vrot.slane %v3270, 2
      %v4084 = vor.u32 %v4082, %v4083
      %v4085 = vsel %vm4049, %v4080, %v4084
      %v4086 = vrot.slane %v3282, 1
      %v4087 = vrot.slane %v3278, 2
      %v4088 = vor.u32 %v4086, %v4087
      %v4089 = vsel %vm4049, %v4084, %v4088
      %v4090 = vrot.slane %v3290, 1
      %v4091 = vrot.slane %v3286, 2
      %v4092 = vor.u32 %v4090, %v4091
      %v4093 = vsel %vm4049, %v4088, %v4092
      %v4094 = vrot.slane %v3298, 1
      %v4095 = vrot.slane %v3294, 2
      %v4096 = vor.u32 %v4094, %v4095
      %v4097 = vsel %vm4049, %v4092, %v4096
      %v4098 = vrot.slane %v3306, 1
      %v4099 = vrot.slane %v3302, 2
      %v4100 = vor.u32 %v4098, %v4099
      %v4101 = vsel %vm4049, %v4096, %v4100
      %v4102 = vrot.slane %v3314, 1
      %v4103 = vrot.slane %v3310, 2
      %v4104 = vor.u32 %v4102, %v4103
      %v4105 = vsel %vm4049, %v4100, %v4104
      %v4106 = vrot.slane %v3322, 1
      %v4107 = vrot.slane %v3318, 2
      %v4108 = vor.u32 %v4106, %v4107
      %v4109 = vsel %vm4049, %v4104, %v4108
      %v4110 = vrot.slane %v3330, 1
      %v4111 = vrot.slane %v3326, 2
      %v4112 = vor.u32 %v4110, %v4111
      %v4113 = vsel %vm4049, %v4108, %v4112
      %v4114 = vrot.slane %v3338, 1
      %v4115 = vrot.slane %v3334, 2
      %v4116 = vor.u32 %v4114, %v4115
      %v4117 = vsel %vm4049, %v4112, %v4116
      %v4118 = vrot.slane %v3346, 1
      %v4119 = vrot.slane %v3342, 2
      %v4120 = vor.u32 %v4118, %v4119
      %v4121 = vsel %vm4049, %v4116, %v4120
      %v4122 = vrot.slane %v3354, 1
      %v4123 = vrot.slane %v3350, 2
      %v4124 = vor.u32 %v4122, %v4123
      %v4125 = vsel %vm4049, %v4120, %v4124
      %v4126 = vrot.slane %v3362, 1
      %v4127 = vrot.slane %v3358, 2
      %v4128 = vor.u32 %v4126, %v4127
      %v4129 = vsel %vm4049, %v4124, %v4128
      %v4130 = vrot.slane %v3370, 1
      %v4131 = vrot.slane %v3366, 2
      %v4132 = vor.u32 %v4130, %v4131
      %v4133 = vsel %vm4049, %v4128, %v4132
      %v4135 = vshrl.u32 %v4048, 16
      %v4137 = vrot.slane %v4135, 1
      %v4138 = vshll.u32 %v4048, 16
      %v4140 = vrot.slane %v4138, 2
      %v4141 = vor.u32 %v4137, %v4140
      %v4142 = vsel %vm4049, %v4132, %v4141
      %v4144 = vsel %vm500, %v4061, 0
      %v4147 = vsel %vm500, %v4065, 0
      %v4150 = vsel %vm500, %v4069, 0
      %v4153 = vsel %vm500, %v4073, 0
      %v4156 = vsel %vm500, %v4077, 0
      %v4159 = vsel %vm500, %v4081, 0
      %v4162 = vsel %vm500, %v4085, 0
      %v4165 = vsel %vm500, %v4089, 0
      %v4168 = vsel %vm500, %v4093, 0
      %v4171 = vsel %vm500, %v4097, 0
      %v4174 = vsel %vm500, %v4101, 0
      %v4177 = vsel %vm500, %v4105, 0
      %v4180 = vsel %vm500, %v4109, 0
      %v4183 = vsel %vm500, %v4113, 0
      %v4186 = vsel %vm500, %v4117, 0
      %v4189 = vsel %vm500, %v4121, 0
      %v4192 = vsel %vm500, %v4125, 0
      %v4195 = vsel %vm500, %v4129, 0
      %v4198 = vsel %vm500, %v4133, 0
      %v4201 = vsel %vm500, %v4142, 0
      %v4204 = vsel %vm500, %v4141, 0
      %v4207 = vsel %vm564, %v4045, 0
      %4209 = vmatprep.subr.bf16.mxu0 0
      %4210 = vmatpush1.bf16.msra.mxu0 %v4207
      %4211 = vmatprep.subr.bf16.mxu0 0
      %4212 = vmatpush1.bf16.msra.mxu0 0
      %4213 = vmatprep.subr.bf16.mxu0 0
      %4214 = vmatpush1.bf16.msra.mxu0 0
      %4215 = vmatprep.subr.bf16.mxu0 0
      %4216 = vmatpush1.bf16.msra.mxu0 0
      %4217 = vmatprep.subr.bf16.mxu0 0
      %4218 = vmatpush1.bf16.msra.mxu0 0
      %4219 = vmatprep.subr.bf16.mxu0 0
      %4220 = vmatpush1.bf16.msra.mxu0 0
      %4221 = vmatprep.subr.bf16.mxu0 0
      %4222 = vmatpush1.bf16.msra.mxu0 0
      %4223 = vmatprep.subr.bf16.mxu0 0
      %4224 = vmatpush1.bf16.msra.mxu0 0
      %4225 = vmatprep.subr.bf16.mxu0 0
      %4226 = vmatpush1.bf16.msra.mxu0 0
      %4227 = vmatprep.subr.bf16.mxu0 0
      %4228 = vmatpush1.bf16.msra.mxu0 0
      %4229 = vmatprep.subr.bf16.mxu0 0
      %4230 = vmatpush1.bf16.msra.mxu0 0
      %4231 = vmatprep.subr.bf16.mxu0 0
      %4232 = vmatpush1.bf16.msra.mxu0 0
      %4233 = vmatprep.subr.bf16.mxu0 0
      %4234 = vmatpush1.bf16.msra.mxu0 0
      %4235 = vmatprep.subr.bf16.mxu0 0
      %4236 = vmatpush1.bf16.msra.mxu0 0
      %4237 = vmatprep.subr.bf16.mxu0 0
      %4238 = vmatpush1.bf16.msra.mxu0 0
      %4239 = vmatprep.subr.bf16.mxu0 0
      %4240 = vmatpush1.bf16.msra.mxu0 0
      %4241 = vmatprep.mubr.bf16.mxu0 0
      %4242 = vmatmul.mubr.bf16.gmra.mrb[0].mxu0 %v4144
      %v4243 = vpop.f32.mrb[0].mxu0
      %v4244 = vadd.f32 0.0, %v4243
      %v4245 = vpop.f32.mrb[0].mxu0
      %v4246 = vpop.f32.mrb[0].mxu0
      %v4247 = vadd.f32 0.0, %v4246
      %v4248 = vpop.f32.mrb[0].mxu0
      %4249 = vmatprep.mubr.bf16.mxu0 0
      %4250 = vmatmul.mubr.bf16.gmra.mrb[0].mxu0 %v4147
      %v4251 = vpop.f32.mrb[0].mxu0
      %v4252 = vadd.f32 0.0, %v4251
      %v4253 = vpop.f32.mrb[0].mxu0
      %v4254 = vpop.f32.mrb[0].mxu0
      %v4255 = vadd.f32 0.0, %v4254
      %v4256 = vpop.f32.mrb[0].mxu0
      %4257 = vmatprep.mubr.bf16.mxu0 0
      %4258 = vmatmul.mubr.bf16.gmra.mrb[0].mxu0 %v4150
      %v4259 = vpop.f32.mrb[0].mxu0
      %v4260 = vadd.f32 0.0, %v4259
      %v4261 = vpop.f32.mrb[0].mxu0
      %v4262 = vpop.f32.mrb[0].mxu0
      %v4263 = vadd.f32 0.0, %v4262
      %v4264 = vpop.f32.mrb[0].mxu0
      %4265 = vmatprep.mubr.bf16.mxu0 0
      %4266 = vmatmul.mubr.bf16.gmra.mrb[0].mxu0 %v4153
      %v4267 = vpop.f32.mrb[0].mxu0
      %v4268 = vadd.f32 0.0, %v4267
      %v4269 = vpop.f32.mrb[0].mxu0
      %v4270 = vpop.f32.mrb[0].mxu0
      %v4271 = vadd.f32 0.0, %v4270
      %v4272 = vpop.f32.mrb[0].mxu0
      %4273 = vmatprep.mubr.bf16.mxu0 0
      %4274 = vmatmul.mubr.bf16.gmra.mrb[0].mxu0 %v4156
      %v4275 = vpop.f32.mrb[0].mxu0
      %v4276 = vadd.f32 0.0, %v4275
      %v4277 = vpop.f32.mrb[0].mxu0
      %v4278 = vpop.f32.mrb[0].mxu0
      %v4279 = vadd.f32 0.0, %v4278
      %v4280 = vpop.f32.mrb[0].mxu0
      %4281 = vmatprep.mubr.bf16.mxu0 0
      %4282 = vmatmul.mubr.bf16.gmra.mrb[0].mxu0 %v4159
      %v4283 = vpop.f32.mrb[0].mxu0
      %v4284 = vadd.f32 0.0, %v4283
      %v4285 = vpop.f32.mrb[0].mxu0
      %v4286 = vpop.f32.mrb[0].mxu0
      %v4287 = vadd.f32 0.0, %v4286
      %v4288 = vpop.f32.mrb[0].mxu0
      %4289 = vmatprep.mubr.bf16.mxu0 0
      %4290 = vmatmul.mubr.bf16.gmra.mrb[0].mxu0 %v4162
      %v4291 = vpop.f32.mrb[0].mxu0
      %v4292 = vadd.f32 0.0, %v4291
      %v4293 = vpop.f32.mrb[0].mxu0
      %v4294 = vpop.f32.mrb[0].mxu0
      %v4295 = vadd.f32 0.0, %v4294
      %v4296 = vpop.f32.mrb[0].mxu0
      %4297 = vmatprep.mubr.bf16.mxu0 0
      %4298 = vmatmul.mubr.bf16.gmra.mrb[0].mxu0 %v4165
      %v4299 = vpop.f32.mrb[0].mxu0
      %v4300 = vadd.f32 0.0, %v4299
      %v4301 = vpop.f32.mrb[0].mxu0
      %v4302 = vpop.f32.mrb[0].mxu0
      %v4303 = vadd.f32 0.0, %v4302
      %v4304 = vpop.f32.mrb[0].mxu0
      %4305 = vmatprep.mubr.bf16.mxu0 0
      %4306 = vmatmul.mubr.bf16.gmra.mrb[0].mxu0 %v4168
      %v4307 = vpop.f32.mrb[0].mxu0
      %v4308 = vadd.f32 0.0, %v4307
      %v4309 = vpop.f32.mrb[0].mxu0
      %v4310 = vpop.f32.mrb[0].mxu0
      %v4311 = vadd.f32 0.0, %v4310
      %v4312 = vpop.f32.mrb[0].mxu0
      %4313 = vmatprep.mubr.bf16.mxu0 0
      %4314 = vmatmul.mubr.bf16.gmra.mrb[0].mxu0 %v4171
      %v4315 = vpop.f32.mrb[0].mxu0
      %v4316 = vadd.f32 0.0, %v4315
      %v4317 = vpop.f32.mrb[0].mxu0
      %v4318 = vpop.f32.mrb[0].mxu0
      %v4319 = vadd.f32 0.0, %v4318
      %v4320 = vpop.f32.mrb[0].mxu0
      %4321 = vmatprep.mubr.bf16.mxu0 0
      %4322 = vmatmul.mubr.bf16.gmra.mrb[0].mxu0 %v4174
      %v4323 = vpop.f32.mrb[0].mxu0
      %v4324 = vadd.f32 0.0, %v4323
      %v4325 = vpop.f32.mrb[0].mxu0
      %v4326 = vpop.f32.mrb[0].mxu0
      %v4327 = vadd.f32 0.0, %v4326
      %v4328 = vpop.f32.mrb[0].mxu0
      %4329 = vmatprep.mubr.bf16.mxu0 0
      %4330 = vmatmul.mubr.bf16.gmra.mrb[0].mxu0 %v4177
      %v4331 = vpop.f32.mrb[0].mxu0
      %v4332 = vadd.f32 0.0, %v4331
      %v4333 = vpop.f32.mrb[0].mxu0
      %v4334 = vpop.f32.mrb[0].mxu0
      %v4335 = vadd.f32 0.0, %v4334
      %v4336 = vpop.f32.mrb[0].mxu0
      %4337 = vmatprep.mubr.bf16.mxu0 0
      %4338 = vmatmul.mubr.bf16.gmra.mrb[0].mxu0 %v4180
      %v4339 = vpop.f32.mrb[0].mxu0
      %v4340 = vadd.f32 0.0, %v4339
      %v4341 = vpop.f32.mrb[0].mxu0
      %v4342 = vpop.f32.mrb[0].mxu0
      %v4343 = vadd.f32 0.0, %v4342
      %v4344 = vpop.f32.mrb[0].mxu0
      %4345 = vmatprep.mubr.bf16.mxu0 0
      %4346 = vmatmul.mubr.bf16.gmra.mrb[0].mxu0 %v4183
      %v4347 = vpop.f32.mrb[0].mxu0
      %v4348 = vadd.f32 0.0, %v4347
      %v4349 = vpop.f32.mrb[0].mxu0
      %v4350 = vpop.f32.mrb[0].mxu0
      %v4351 = vadd.f32 0.0, %v4350
      %v4352 = vpop.f32.mrb[0].mxu0
      %4353 = vmatprep.mubr.bf16.mxu0 0
      %4354 = vmatmul.mubr.bf16.gmra.mrb[0].mxu0 %v4186
      %v4355 = vpop.f32.mrb[0].mxu0
      %v4356 = vadd.f32 0.0, %v4355
      %v4357 = vpop.f32.mrb[0].mxu0
      %v4358 = vpop.f32.mrb[0].mxu0
      %v4359 = vadd.f32 0.0, %v4358
      %v4360 = vpop.f32.mrb[0].mxu0
      %4361 = vmatprep.mubr.bf16.mxu0 0
      %4362 = vmatmul.mubr.bf16.gmra.mrb[0].mxu0 %v4189
      %v4363 = vpop.f32.mrb[0].mxu0
      %v4364 = vadd.f32 0.0, %v4363
      %v4365 = vpop.f32.mrb[0].mxu0
      %v4366 = vpop.f32.mrb[0].mxu0
      %v4367 = vadd.f32 0.0, %v4366
      %v4368 = vpop.f32.mrb[0].mxu0
      %4369 = vmatprep.mubr.bf16.mxu0 0
      %4370 = vmatmul.mubr.bf16.gmra.mrb[0].mxu0 %v4192
      %v4371 = vpop.f32.mrb[0].mxu0
      %v4372 = vadd.f32 0.0, %v4371
      %v4373 = vpop.f32.mrb[0].mxu0
      %v4374 = vpop.f32.mrb[0].mxu0
      %v4375 = vadd.f32 0.0, %v4374
      %v4376 = vpop.f32.mrb[0].mxu0
      %4377 = vmatprep.mubr.bf16.mxu0 0
      %4378 = vmatmul.mubr.bf16.gmra.mrb[0].mxu0 %v4195
      %v4379 = vpop.f32.mrb[0].mxu0
      %v4380 = vadd.f32 0.0, %v4379
      %v4381 = vpop.f32.mrb[0].mxu0
      %v4382 = vpop.f32.mrb[0].mxu0
      %v4383 = vadd.f32 0.0, %v4382
      %v4384 = vpop.f32.mrb[0].mxu0
      %4385 = vmatprep.mubr.bf16.mxu0 0
      %4386 = vmatmul.mubr.bf16.gmra.mrb[0].mxu0 %v4198
      %v4387 = vpop.f32.mrb[0].mxu0
      %v4388 = vadd.f32 0.0, %v4387
      %v4389 = vpop.f32.mrb[0].mxu0
      %v4390 = vpop.f32.mrb[0].mxu0
      %v4391 = vadd.f32 0.0, %v4390
      %v4392 = vpop.f32.mrb[0].mxu0
      %4393 = vmatprep.mubr.bf16.mxu0 0
      %4394 = vmatmul.mubr.bf16.gmra.mrb[0].mxu0 %v4201
      %v4395 = vpop.f32.mrb[0].mxu0
      %v4396 = vadd.f32 0.0, %v4395
      %v4397 = vpop.f32.mrb[0].mxu0
      %v4398 = vpop.f32.mrb[0].mxu0
      %v4399 = vadd.f32 0.0, %v4398
      %v4400 = vpop.f32.mrb[0].mxu0
      %4401 = vmatprep.mubr.bf16.mxu0 0
      %4402 = vmatmul.mubr.bf16.gmra.mrb[0].mxu0 %v4204
      %v4403 = vpop.f32.mrb[0].mxu0
      %v4404 = vadd.f32 0.0, %v4403
      %v4405 = vpop.f32.mrb[0].mxu0
      %v4406 = vpop.f32.mrb[0].mxu0
      %v4407 = vpop.f32.mrb[0].mxu0
      %4408 = vdwg.mxu0
      %v4409 = vadd.f32 %v4002, %v4244
      %v4410 = vadd.f32 %v4003, %v4247
      %v4411 = vadd.f32 %v4004, %v4252
      %v4412 = vadd.f32 %v4005, %v4255
      %v4413 = vadd.f32 %v4006, %v4260
      %v4414 = vadd.f32 %v4007, %v4263
      %v4415 = vadd.f32 %v4008, %v4268
      %v4416 = vadd.f32 %v4009, %v4271
      %v4417 = vadd.f32 %v4010, %v4276
      %v4418 = vadd.f32 %v4011, %v4279
      %v4419 = vadd.f32 %v4012, %v4284
      %v4420 = vadd.f32 %v4013, %v4287
      %v4421 = vadd.f32 %v4014, %v4292
      %v4422 = vadd.f32 %v4015, %v4295
      %v4423 = vadd.f32 %v4016, %v4300
      %v4424 = vadd.f32 %v4017, %v4303
      %v4425 = vadd.f32 %v4018, %v4308
      %v4426 = vadd.f32 %v4019, %v4311
      %v4427 = vadd.f32 %v4020, %v4316
      %v4428 = vadd.f32 %v4021, %v4319
      %v4429 = vadd.f32 %v4022, %v4324
      %v4430 = vadd.f32 %v4023, %v4327
      %v4431 = vadd.f32 %v4024, %v4332
      %v4432 = vadd.f32 %v4025, %v4335
      %v4433 = vadd.f32 %v4026, %v4340
      %v4434 = vadd.f32 %v4027, %v4343
      %v4435 = vadd.f32 %v4028, %v4348
      %v4436 = vadd.f32 %v4029, %v4351
      %v4437 = vadd.f32 %v4030, %v4356
      %v4438 = vadd.f32 %v4031, %v4359
      %v4439 = vadd.f32 %v4032, %v4364
      %v4440 = vadd.f32 %v4033, %v4367
      %v4441 = vadd.f32 %v4034, %v4372
      %v4442 = vadd.f32 %v4035, %v4375
      %v4443 = vadd.f32 %v4036, %v4380
      %v4444 = vadd.f32 %v4037, %v4383
      %v4445 = vadd.f32 %v4038, %v4388
      %v4446 = vadd.f32 %v4039, %v4391
      %v4447 = vadd.f32 %v4040, %v4396
      %v4448 = vadd.f32 %v4041, %v4399
      %v4449 = vadd.f32 %v4042, %v4404
      %v4450 = vlaneseq
      %v4451 = vshrl.u32 %v4450, 7
      %v4452 = vadd.s32 %v4451, 8
      %v4453 = vadd.s32 %v4451, 16
      %v4454 = vadd.s32 %v4451, 24
      %v4455 = vadd.s32 %v4451, 32
      %v4456 = vadd.s32 %v4451, 40
      %v4457 = vadd.s32 %v4451, 48
      %v4458 = vadd.s32 %v4451, 56
      %v4459 = vadd.s32 %v4451, 64
      %v4460 = vadd.s32 %v4451, 72
      %v4461 = vadd.s32 %v4451, 80
      %v4462 = vadd.s32 %v4451, 88
      %v4463 = vadd.s32 %v4451, 96
      %v4464 = vadd.s32 %v4451, 104
      %v4465 = vadd.s32 %v4451, 112
      %v4466 = vadd.s32 %v4451, 120
      %v4467 = vadd.s32 %v4451, 128
      %v4468 = vadd.s32 %v4451, 136
      %v4469 = vadd.s32 %v4451, 144
      %v4470 = vadd.s32 %v4451, 152
      %v4471 = vadd.s32 %v4451, 160
      %v4472 = vadd.s32 %v4451, 168
      %v4473 = vadd.s32 %v4451, 176
      %v4474 = vadd.s32 %v4451, 184
      %v4475 = vadd.s32 %v4451, 192
      %v4476 = vadd.s32 %v4451, 200
      %v4477 = vadd.s32 %v4451, 208
      %v4478 = vadd.s32 %v4451, 216
      %v4479 = vadd.s32 %v4451, 224
      %v4480 = vadd.s32 %v4451, 232
      %v4481 = vadd.s32 %v4451, 240
      %v4482 = vadd.s32 %v4451, 248
      %v4483 = vadd.s32 %v4451, 256
      %v4484 = vadd.s32 %v4451, 264
      %v4485 = vadd.s32 %v4451, 272
      %v4486 = vadd.s32 %v4451, 280
      %v4487 = vadd.s32 %v4451, 288
      %v4488 = vadd.s32 %v4451, 296
      %v4489 = vadd.s32 %v4451, 304
      %v4490 = vadd.s32 %v4451, 312
      %v4491 = vadd.s32 %v4451, 320
      %v4492 = vcvt.s32.f32 %v4451
      %v4493 = vcvt.s32.f32 %v4452
      %v4494 = vcvt.s32.f32 %v4453
      %v4495 = vcvt.s32.f32 %v4454
      %v4496 = vcvt.s32.f32 %v4455
      %v4497 = vcvt.s32.f32 %v4456
      %v4498 = vcvt.s32.f32 %v4457
      %v4499 = vcvt.s32.f32 %v4458
      %v4500 = vcvt.s32.f32 %v4459
      %v4501 = vcvt.s32.f32 %v4460
      %v4502 = vcvt.s32.f32 %v4461
      %v4503 = vcvt.s32.f32 %v4462
      %v4504 = vcvt.s32.f32 %v4463
      %v4505 = vcvt.s32.f32 %v4464
      %v4506 = vcvt.s32.f32 %v4465
      %v4507 = vcvt.s32.f32 %v4466
      %v4508 = vcvt.s32.f32 %v4467
      %v4509 = vcvt.s32.f32 %v4468
      %v4510 = vcvt.s32.f32 %v4469
      %v4511 = vcvt.s32.f32 %v4470
      %v4512 = vcvt.s32.f32 %v4471
      %v4513 = vcvt.s32.f32 %v4472
      %v4514 = vcvt.s32.f32 %v4473
      %v4515 = vcvt.s32.f32 %v4474
      %v4516 = vcvt.s32.f32 %v4475
      %v4517 = vcvt.s32.f32 %v4476
      %v4518 = vcvt.s32.f32 %v4477
      %v4519 = vcvt.s32.f32 %v4478
      %v4520 = vcvt.s32.f32 %v4479
      %v4521 = vcvt.s32.f32 %v4480
      %v4522 = vcvt.s32.f32 %v4481
      %v4523 = vcvt.s32.f32 %v4482
      %v4524 = vcvt.s32.f32 %v4483
      %v4525 = vcvt.s32.f32 %v4484
      %v4526 = vcvt.s32.f32 %v4485
      %v4527 = vcvt.s32.f32 %v4486
      %v4528 = vcvt.s32.f32 %v4487
      %v4529 = vcvt.s32.f32 %v4488
      %v4530 = vcvt.s32.f32 %v4489
      %v4531 = vcvt.s32.f32 %v4490
      %v4532 = vcvt.s32.f32 %v4491
      %v4533 = vadd.f32 %v4492, 0.5
      %v4534 = vadd.f32 %v4493, 0.5
      %v4535 = vadd.f32 %v4494, 0.5
      %v4536 = vadd.f32 %v4495, 0.5
      %v4537 = vadd.f32 %v4496, 0.5
      %v4538 = vadd.f32 %v4497, 0.5
      %v4539 = vadd.f32 %v4498, 0.5
      %v4540 = vadd.f32 %v4499, 0.5
      %v4541 = vadd.f32 %v4500, 0.5
      %v4542 = vadd.f32 %v4501, 0.5
      %v4543 = vadd.f32 %v4502, 0.5
      %v4544 = vadd.f32 %v4503, 0.5
      %v4545 = vadd.f32 %v4504, 0.5
      %v4546 = vadd.f32 %v4505, 0.5
      %v4547 = vadd.f32 %v4506, 0.5
      %v4548 = vadd.f32 %v4507, 0.5
      %v4549 = vadd.f32 %v4508, 0.5
      %v4550 = vadd.f32 %v4509, 0.5
      %v4551 = vadd.f32 %v4510, 0.5
      %v4552 = vadd.f32 %v4511, 0.5
      %v4553 = vadd.f32 %v4512, 0.5
      %v4554 = vadd.f32 %v4513, 0.5
      %v4555 = vadd.f32 %v4514, 0.5
      %v4556 = vadd.f32 %v4515, 0.5
      %v4557 = vadd.f32 %v4516, 0.5
      %v4558 = vadd.f32 %v4517, 0.5
      %v4559 = vadd.f32 %v4518, 0.5
      %v4560 = vadd.f32 %v4519, 0.5
      %v4561 = vadd.f32 %v4520, 0.5
      %v4562 = vadd.f32 %v4521, 0.5
      %v4563 = vadd.f32 %v4522, 0.5
      %v4564 = vadd.f32 %v4523, 0.5
      %v4565 = vadd.f32 %v4524, 0.5
      %v4566 = vadd.f32 %v4525, 0.5
      %v4567 = vadd.f32 %v4526, 0.5
      %v4568 = vadd.f32 %v4527, 0.5
      %v4569 = vadd.f32 %v4528, 0.5
      %v4570 = vadd.f32 %v4529, 0.5
      %v4571 = vadd.f32 %v4530, 0.5
      %v4572 = vadd.f32 %v4531, 0.5
      %v4573 = vadd.f32 %v4532, 0.5
      %v4574 = vmul.f32 %v4533, 0.055555556
      %v4575 = vmul.f32 %v4534, 0.055555556
      %v4576 = vmul.f32 %v4535, 0.055555556
      %v4577 = vmul.f32 %v4536, 0.055555556
      %v4578 = vmul.f32 %v4537, 0.055555556
      %v4579 = vmul.f32 %v4538, 0.055555556
      %v4580 = vmul.f32 %v4539, 0.055555556
      %v4581 = vmul.f32 %v4540, 0.055555556
      %v4582 = vmul.f32 %v4541, 0.055555556
      %v4583 = vmul.f32 %v4542, 0.055555556
      %v4584 = vmul.f32 %v4543, 0.055555556
      %v4585 = vmul.f32 %v4544, 0.055555556
      %v4586 = vmul.f32 %v4545, 0.055555556
      %v4587 = vmul.f32 %v4546, 0.055555556
      %v4588 = vmul.f32 %v4547, 0.055555556
      %v4589 = vmul.f32 %v4548, 0.055555556
      %v4590 = vmul.f32 %v4549, 0.055555556
      %v4591 = vmul.f32 %v4550, 0.055555556
      %v4592 = vmul.f32 %v4551, 0.055555556
      %v4593 = vmul.f32 %v4552, 0.055555556
      %v4594 = vmul.f32 %v4553, 0.055555556
      %v4595 = vmul.f32 %v4554, 0.055555556
      %v4596 = vmul.f32 %v4555, 0.055555556
      %v4597 = vmul.f32 %v4556, 0.055555556
      %v4598 = vmul.f32 %v4557, 0.055555556
      %v4599 = vmul.f32 %v4558, 0.055555556
      %v4600 = vmul.f32 %v4559, 0.055555556
      %v4601 = vmul.f32 %v4560, 0.055555556
      %v4602 = vmul.f32 %v4561, 0.055555556
      %v4603 = vmul.f32 %v4562, 0.055555556
      %v4604 = vmul.f32 %v4563, 0.055555556
      %v4605 = vmul.f32 %v4564, 0.055555556
      %v4606 = vmul.f32 %v4565, 0.055555556
      %v4607 = vmul.f32 %v4566, 0.055555556
      %v4608 = vmul.f32 %v4567, 0.055555556
      %v4609 = vmul.f32 %v4568, 0.055555556
      %v4610 = vmul.f32 %v4569, 0.055555556
      %v4611 = vmul.f32 %v4570, 0.055555556
      %v4612 = vmul.f32 %v4571, 0.055555556
      %v4613 = vmul.f32 %v4572, 0.055555556
      %v4614 = vmul.f32 %v4573, 0.055555556
      %v4615 = vfloor.f32 %v4574
      %v4616 = vfloor.f32 %v4575
      %v4617 = vfloor.f32 %v4576
      %v4618 = vfloor.f32 %v4577
      %v4619 = vfloor.f32 %v4578
      %v4620 = vfloor.f32 %v4579
      %v4621 = vfloor.f32 %v4580
      %v4622 = vfloor.f32 %v4581
      %v4623 = vfloor.f32 %v4582
      %v4624 = vfloor.f32 %v4583
      %v4625 = vfloor.f32 %v4584
      %v4626 = vfloor.f32 %v4585
      %v4627 = vfloor.f32 %v4586
      %v4628 = vfloor.f32 %v4587
      %v4629 = vfloor.f32 %v4588
      %v4630 = vfloor.f32 %v4589
      %v4631 = vfloor.f32 %v4590
      %v4632 = vfloor.f32 %v4591
      %v4633 = vfloor.f32 %v4592
      %v4634 = vfloor.f32 %v4593
      %v4635 = vfloor.f32 %v4594
      %v4636 = vfloor.f32 %v4595
      %v4637 = vfloor.f32 %v4596
      %v4638 = vfloor.f32 %v4597
      %v4639 = vfloor.f32 %v4598
      %v4640 = vfloor.f32 %v4599
      %v4641 = vfloor.f32 %v4600
      %v4642 = vfloor.f32 %v4601
      %v4643 = vfloor.f32 %v4602
      %v4644 = vfloor.f32 %v4603
      %v4645 = vfloor.f32 %v4604
      %v4646 = vfloor.f32 %v4605
      %v4647 = vfloor.f32 %v4606
      %v4648 = vfloor.f32 %v4607
      %v4649 = vfloor.f32 %v4608
      %v4650 = vfloor.f32 %v4609
      %v4651 = vfloor.f32 %v4610
      %v4652 = vfloor.f32 %v4611
      %v4653 = vfloor.f32 %v4612
      %v4654 = vfloor.f32 %v4613
      %v4655 = vfloor.f32 %v4614
      %v4656 = vmul.f32 %v4615, 18.0
      %v4657 = vmul.f32 %v4616, 18.0
      %v4658 = vmul.f32 %v4617, 18.0
      %v4659 = vmul.f32 %v4618, 18.0
      %v4660 = vmul.f32 %v4619, 18.0
      %v4661 = vmul.f32 %v4620, 18.0
      %v4662 = vmul.f32 %v4621, 18.0
      %v4663 = vmul.f32 %v4622, 18.0
      %v4664 = vmul.f32 %v4623, 18.0
      %v4665 = vmul.f32 %v4624, 18.0
      %v4666 = vmul.f32 %v4625, 18.0
      %v4667 = vmul.f32 %v4626, 18.0
      %v4668 = vmul.f32 %v4627, 18.0
      %v4669 = vmul.f32 %v4628, 18.0
      %v4670 = vmul.f32 %v4629, 18.0
      %v4671 = vmul.f32 %v4630, 18.0
      %v4672 = vmul.f32 %v4631, 18.0
      %v4673 = vmul.f32 %v4632, 18.0
      %v4674 = vmul.f32 %v4633, 18.0
      %v4675 = vmul.f32 %v4634, 18.0
      %v4676 = vmul.f32 %v4635, 18.0
      %v4677 = vmul.f32 %v4636, 18.0
      %v4678 = vmul.f32 %v4637, 18.0
      %v4679 = vmul.f32 %v4638, 18.0
      %v4680 = vmul.f32 %v4639, 18.0
      %v4681 = vmul.f32 %v4640, 18.0
      %v4682 = vmul.f32 %v4641, 18.0
      %v4683 = vmul.f32 %v4642, 18.0
      %v4684 = vmul.f32 %v4643, 18.0
      %v4685 = vmul.f32 %v4644, 18.0
      %v4686 = vmul.f32 %v4645, 18.0
      %v4687 = vmul.f32 %v4646, 18.0
      %v4688 = vmul.f32 %v4647, 18.0
      %v4689 = vmul.f32 %v4648, 18.0
      %v4690 = vmul.f32 %v4649, 18.0
      %v4691 = vmul.f32 %v4650, 18.0
      %v4692 = vmul.f32 %v4651, 18.0
      %v4693 = vmul.f32 %v4652, 18.0
      %v4694 = vmul.f32 %v4653, 18.0
      %v4695 = vmul.f32 %v4654, 18.0
      %v4696 = vmul.f32 %v4655, 18.0
      %v4697 = vsub.f32 %v4492, %v4656
      %v4698 = vsub.f32 %v4493, %v4657
      %v4699 = vsub.f32 %v4494, %v4658
      %v4700 = vsub.f32 %v4495, %v4659
      %v4701 = vsub.f32 %v4496, %v4660
      %v4702 = vsub.f32 %v4497, %v4661
      %v4703 = vsub.f32 %v4498, %v4662
      %v4704 = vsub.f32 %v4499, %v4663
      %v4705 = vsub.f32 %v4500, %v4664
      %v4706 = vsub.f32 %v4501, %v4665
      %v4707 = vsub.f32 %v4502, %v4666
      %v4708 = vsub.f32 %v4503, %v4667
      %v4709 = vsub.f32 %v4504, %v4668
      %v4710 = vsub.f32 %v4505, %v4669
      %v4711 = vsub.f32 %v4506, %v4670
      %v4712 = vsub.f32 %v4507, %v4671
      %v4713 = vsub.f32 %v4508, %v4672
      %v4714 = vsub.f32 %v4509, %v4673
      %v4715 = vsub.f32 %v4510, %v4674
      %v4716 = vsub.f32 %v4511, %v4675
      %v4717 = vsub.f32 %v4512, %v4676
      %v4718 = vsub.f32 %v4513, %v4677
      %v4719 = vsub.f32 %v4514, %v4678
      %v4720 = vsub.f32 %v4515, %v4679
      %v4721 = vsub.f32 %v4516, %v4680
      %v4722 = vsub.f32 %v4517, %v4681
      %v4723 = vsub.f32 %v4518, %v4682
      %v4724 = vsub.f32 %v4519, %v4683
      %v4725 = vsub.f32 %v4520, %v4684
      %v4726 = vsub.f32 %v4521, %v4685
      %v4727 = vsub.f32 %v4522, %v4686
      %v4728 = vsub.f32 %v4523, %v4687
      %v4729 = vsub.f32 %v4524, %v4688
      %v4730 = vsub.f32 %v4525, %v4689
      %v4731 = vsub.f32 %v4526, %v4690
      %v4732 = vsub.f32 %v4527, %v4691
      %v4733 = vsub.f32 %v4528, %v4692
      %v4734 = vsub.f32 %v4529, %v4693
      %v4735 = vsub.f32 %v4530, %v4694
      %v4736 = vsub.f32 %v4531, %v4695
      %v4737 = vsub.f32 %v4532, %v4696
      %vm4738 = vcmp.ge.f32.partialorder %v4615, 1.0
      %vm4739 = vcmp.ge.f32.partialorder %v4616, 1.0
      %vm4740 = vcmp.ge.f32.partialorder %v4617, 1.0
      %vm4741 = vcmp.ge.f32.partialorder %v4618, 1.0
      %vm4742 = vcmp.ge.f32.partialorder %v4619, 1.0
      %vm4743 = vcmp.ge.f32.partialorder %v4620, 1.0
      %vm4744 = vcmp.ge.f32.partialorder %v4621, 1.0
      %vm4745 = vcmp.ge.f32.partialorder %v4622, 1.0
      %vm4746 = vcmp.ge.f32.partialorder %v4623, 1.0
      %vm4747 = vcmp.ge.f32.partialorder %v4624, 1.0
      %vm4748 = vcmp.ge.f32.partialorder %v4625, 1.0
      %vm4749 = vcmp.ge.f32.partialorder %v4626, 1.0
      %vm4750 = vcmp.ge.f32.partialorder %v4627, 1.0
      %vm4751 = vcmp.ge.f32.partialorder %v4628, 1.0
      %vm4752 = vcmp.ge.f32.partialorder %v4629, 1.0
      %vm4753 = vcmp.ge.f32.partialorder %v4630, 1.0
      %vm4754 = vcmp.ge.f32.partialorder %v4631, 1.0
      %vm4755 = vcmp.ge.f32.partialorder %v4632, 1.0
      %vm4756 = vcmp.ge.f32.partialorder %v4633, 1.0
      %vm4757 = vcmp.ge.f32.partialorder %v4634, 1.0
      %vm4758 = vcmp.ge.f32.partialorder %v4635, 1.0
      %vm4759 = vcmp.ge.f32.partialorder %v4636, 1.0
      %vm4760 = vcmp.ge.f32.partialorder %v4637, 1.0
      %vm4761 = vcmp.ge.f32.partialorder %v4638, 1.0
      %vm4762 = vcmp.ge.f32.partialorder %v4639, 1.0
      %vm4763 = vcmp.ge.f32.partialorder %v4640, 1.0
      %vm4764 = vcmp.ge.f32.partialorder %v4641, 1.0
      %vm4765 = vcmp.ge.f32.partialorder %v4642, 1.0
      %vm4766 = vcmp.ge.f32.partialorder %v4643, 1.0
      %vm4767 = vcmp.ge.f32.partialorder %v4644, 1.0
      %vm4768 = vcmp.ge.f32.partialorder %v4645, 1.0
      %vm4769 = vcmp.ge.f32.partialorder %v4646, 1.0
      %vm4770 = vcmp.ge.f32.partialorder %v4647, 1.0
      %vm4771 = vcmp.ge.f32.partialorder %v4648, 1.0
      %vm4772 = vcmp.ge.f32.partialorder %v4649, 1.0
      %vm4773 = vcmp.ge.f32.partialorder %v4650, 1.0
      %vm4774 = vcmp.ge.f32.partialorder %v4651, 1.0
      %vm4775 = vcmp.ge.f32.partialorder %v4652, 1.0
      %vm4776 = vcmp.ge.f32.partialorder %v4653, 1.0
      %vm4777 = vcmp.ge.f32.partialorder %v4654, 1.0
      %vm4778 = vcmp.ge.f32.partialorder %v4655, 1.0
      %vm4779 = vcmp.le.f32.partialorder %v4615, 16.0
      %vm4780 = vcmp.le.f32.partialorder %v4616, 16.0
      %vm4781 = vcmp.le.f32.partialorder %v4617, 16.0
      %vm4782 = vcmp.le.f32.partialorder %v4618, 16.0
      %vm4783 = vcmp.le.f32.partialorder %v4619, 16.0
      %vm4784 = vcmp.le.f32.partialorder %v4620, 16.0
      %vm4785 = vcmp.le.f32.partialorder %v4621, 16.0
      %vm4786 = vcmp.le.f32.partialorder %v4622, 16.0
      %vm4787 = vcmp.le.f32.partialorder %v4623, 16.0
      %vm4788 = vcmp.le.f32.partialorder %v4624, 16.0
      %vm4789 = vcmp.le.f32.partialorder %v4625, 16.0
      %vm4790 = vcmp.le.f32.partialorder %v4626, 16.0
      %vm4791 = vcmp.le.f32.partialorder %v4627, 16.0
      %vm4792 = vcmp.le.f32.partialorder %v4628, 16.0
      %vm4793 = vcmp.le.f32.partialorder %v4629, 16.0
      %vm4794 = vcmp.le.f32.partialorder %v4630, 16.0
      %vm4795 = vcmp.le.f32.partialorder %v4631, 16.0
      %vm4796 = vcmp.le.f32.partialorder %v4632, 16.0
      %vm4797 = vcmp.le.f32.partialorder %v4633, 16.0
      %vm4798 = vcmp.le.f32.partialorder %v4634, 16.0
      %vm4799 = vcmp.le.f32.partialorder %v4635, 16.0
      %vm4800 = vcmp.le.f32.partialorder %v4636, 16.0
      %vm4801 = vcmp.le.f32.partialorder %v4637, 16.0
      %vm4802 = vcmp.le.f32.partialorder %v4638, 16.0
      %vm4803 = vcmp.le.f32.partialorder %v4639, 16.0
      %vm4804 = vcmp.le.f32.partialorder %v4640, 16.0
      %vm4805 = vcmp.le.f32.partialorder %v4641, 16.0
      %vm4806 = vcmp.le.f32.partialorder %v4642, 16.0
      %vm4807 = vcmp.le.f32.partialorder %v4643, 16.0
      %vm4808 = vcmp.le.f32.partialorder %v4644, 16.0
      %vm4809 = vcmp.le.f32.partialorder %v4645, 16.0
      %vm4810 = vcmp.le.f32.partialorder %v4646, 16.0
      %vm4811 = vcmp.le.f32.partialorder %v4647, 16.0
      %vm4812 = vcmp.le.f32.partialorder %v4648, 16.0
      %vm4813 = vcmp.le.f32.partialorder %v4649, 16.0
      %vm4814 = vcmp.le.f32.partialorder %v4650, 16.0
      %vm4815 = vcmp.le.f32.partialorder %v4651, 16.0
      %vm4816 = vcmp.le.f32.partialorder %v4652, 16.0
      %vm4817 = vcmp.le.f32.partialorder %v4653, 16.0
      %vm4818 = vcmp.le.f32.partialorder %v4654, 16.0
      %vm4819 = vcmp.le.f32.partialorder %v4655, 16.0
      %vm4820 = vmand %vm4738, %vm4779
      %vm4821 = vmand %vm4739, %vm4780
      %vm4822 = vmand %vm4740, %vm4781
      %vm4823 = vmand %vm4741, %vm4782
      %vm4824 = vmand %vm4742, %vm4783
      %vm4825 = vmand %vm4743, %vm4784
      %vm4826 = vmand %vm4744, %vm4785
      %vm4827 = vmand %vm4745, %vm4786
      %vm4828 = vmand %vm4746, %vm4787
      %vm4829 = vmand %vm4747, %vm4788
      %vm4830 = vmand %vm4748, %vm4789
      %vm4831 = vmand %vm4749, %vm4790
      %vm4832 = vmand %vm4750, %vm4791
      %vm4833 = vmand %vm4751, %vm4792
      %vm4834 = vmand %vm4752, %vm4793
      %vm4835 = vmand %vm4753, %vm4794
      %vm4836 = vmand %vm4754, %vm4795
      %vm4837 = vmand %vm4755, %vm4796
      %vm4838 = vmand %vm4756, %vm4797
      %vm4839 = vmand %vm4757, %vm4798
      %vm4840 = vmand %vm4758, %vm4799
      %vm4841 = vmand %vm4759, %vm4800
      %vm4842 = vmand %vm4760, %vm4801
      %vm4843 = vmand %vm4761, %vm4802
      %vm4844 = vmand %vm4762, %vm4803
      %vm4845 = vmand %vm4763, %vm4804
      %vm4846 = vmand %vm4764, %vm4805
      %vm4847 = vmand %vm4765, %vm4806
      %vm4848 = vmand %vm4766, %vm4807
      %vm4849 = vmand %vm4767, %vm4808
      %vm4850 = vmand %vm4768, %vm4809
      %vm4851 = vmand %vm4769, %vm4810
      %vm4852 = vmand %vm4770, %vm4811
      %vm4853 = vmand %vm4771, %vm4812
      %vm4854 = vmand %vm4772, %vm4813
      %vm4855 = vmand %vm4773, %vm4814
      %vm4856 = vmand %vm4774, %vm4815
      %vm4857 = vmand %vm4775, %vm4816
      %vm4858 = vmand %vm4776, %vm4817
      %vm4859 = vmand %vm4777, %vm4818
      %vm4860 = vmand %vm4778, %vm4819
      %vm4861 = vcmp.ge.f32.partialorder %v4697, 1.0
      %vm4862 = vcmp.ge.f32.partialorder %v4698, 1.0
      %vm4863 = vcmp.ge.f32.partialorder %v4699, 1.0
      %vm4864 = vcmp.ge.f32.partialorder %v4700, 1.0
      %vm4865 = vcmp.ge.f32.partialorder %v4701, 1.0
      %vm4866 = vcmp.ge.f32.partialorder %v4702, 1.0
      %vm4867 = vcmp.ge.f32.partialorder %v4703, 1.0
      %vm4868 = vcmp.ge.f32.partialorder %v4704, 1.0
      %vm4869 = vcmp.ge.f32.partialorder %v4705, 1.0
      %vm4870 = vcmp.ge.f32.partialorder %v4706, 1.0
      %vm4871 = vcmp.ge.f32.partialorder %v4707, 1.0
      %vm4872 = vcmp.ge.f32.partialorder %v4708, 1.0
      %vm4873 = vcmp.ge.f32.partialorder %v4709, 1.0
      %vm4874 = vcmp.ge.f32.partialorder %v4710, 1.0
      %vm4875 = vcmp.ge.f32.partialorder %v4711, 1.0
      %vm4876 = vcmp.ge.f32.partialorder %v4712, 1.0
      %vm4877 = vcmp.ge.f32.partialorder %v4713, 1.0
      %vm4878 = vcmp.ge.f32.partialorder %v4714, 1.0
      %vm4879 = vcmp.ge.f32.partialorder %v4715, 1.0
      %vm4880 = vcmp.ge.f32.partialorder %v4716, 1.0
      %vm4881 = vcmp.ge.f32.partialorder %v4717, 1.0
      %vm4882 = vcmp.ge.f32.partialorder %v4718, 1.0
      %vm4883 = vcmp.ge.f32.partialorder %v4719, 1.0
      %vm4884 = vcmp.ge.f32.partialorder %v4720, 1.0
      %vm4885 = vcmp.ge.f32.partialorder %v4721, 1.0
      %vm4886 = vcmp.ge.f32.partialorder %v4722, 1.0
      %vm4887 = vcmp.ge.f32.partialorder %v4723, 1.0
      %vm4888 = vcmp.ge.f32.partialorder %v4724, 1.0
      %vm4889 = vcmp.ge.f32.partialorder %v4725, 1.0
      %vm4890 = vcmp.ge.f32.partialorder %v4726, 1.0
      %vm4891 = vcmp.ge.f32.partialorder %v4727, 1.0
      %vm4892 = vcmp.ge.f32.partialorder %v4728, 1.0
      %vm4893 = vcmp.ge.f32.partialorder %v4729, 1.0
      %vm4894 = vcmp.ge.f32.partialorder %v4730, 1.0
      %vm4895 = vcmp.ge.f32.partialorder %v4731, 1.0
      %vm4896 = vcmp.ge.f32.partialorder %v4732, 1.0
      %vm4897 = vcmp.ge.f32.partialorder %v4733, 1.0
      %vm4898 = vcmp.ge.f32.partialorder %v4734, 1.0
      %vm4899 = vcmp.ge.f32.partialorder %v4735, 1.0
      %vm4900 = vcmp.ge.f32.partialorder %v4736, 1.0
      %vm4901 = vcmp.ge.f32.partialorder %v4737, 1.0
      %vm4902 = vmand %vm4820, %vm4861
      %vm4903 = vmand %vm4821, %vm4862
      %vm4904 = vmand %vm4822, %vm4863
      %vm4905 = vmand %vm4823, %vm4864
      %vm4906 = vmand %vm4824, %vm4865
      %vm4907 = vmand %vm4825, %vm4866
      %vm4908 = vmand %vm4826, %vm4867
      %vm4909 = vmand %vm4827, %vm4868
      %vm4910 = vmand %vm4828, %vm4869
      %vm4911 = vmand %vm4829, %vm4870
      %vm4912 = vmand %vm4830, %vm4871
      %vm4913 = vmand %vm4831, %vm4872
      %vm4914 = vmand %vm4832, %vm4873
      %vm4915 = vmand %vm4833, %vm4874
      %vm4916 = vmand %vm4834, %vm4875
      %vm4917 = vmand %vm4835, %vm4876
      %vm4918 = vmand %vm4836, %vm4877
      %vm4919 = vmand %vm4837, %vm4878
      %vm4920 = vmand %vm4838, %vm4879
      %vm4921 = vmand %vm4839, %vm4880
      %vm4922 = vmand %vm4840, %vm4881
      %vm4923 = vmand %vm4841, %vm4882
      %vm4924 = vmand %vm4842, %vm4883
      %vm4925 = vmand %vm4843, %vm4884
      %vm4926 = vmand %vm4844, %vm4885
      %vm4927 = vmand %vm4845, %vm4886
      %vm4928 = vmand %vm4846, %vm4887
      %vm4929 = vmand %vm4847, %vm4888
      %vm4930 = vmand %vm4848, %vm4889
      %vm4931 = vmand %vm4849, %vm4890
      %vm4932 = vmand %vm4850, %vm4891
      %vm4933 = vmand %vm4851, %vm4892
      %vm4934 = vmand %vm4852, %vm4893
      %vm4935 = vmand %vm4853, %vm4894
      %vm4936 = vmand %vm4854, %vm4895
      %vm4937 = vmand %vm4855, %vm4896
      %vm4938 = vmand %vm4856, %vm4897
      %vm4939 = vmand %vm4857, %vm4898
      %vm4940 = vmand %vm4858, %vm4899
      %vm4941 = vmand %vm4859, %vm4900
      %vm4942 = vmand %vm4860, %vm4901
      %vm4943 = vcmp.le.f32.partialorder %v4697, 16.0
      %vm4944 = vcmp.le.f32.partialorder %v4698, 16.0
      %vm4945 = vcmp.le.f32.partialorder %v4699, 16.0
      %vm4946 = vcmp.le.f32.partialorder %v4700, 16.0
      %vm4947 = vcmp.le.f32.partialorder %v4701, 16.0
      %vm4948 = vcmp.le.f32.partialorder %v4702, 16.0
      %vm4949 = vcmp.le.f32.partialorder %v4703, 16.0
      %vm4950 = vcmp.le.f32.partialorder %v4704, 16.0
      %vm4951 = vcmp.le.f32.partialorder %v4705, 16.0
      %vm4952 = vcmp.le.f32.partialorder %v4706, 16.0
      %vm4953 = vcmp.le.f32.partialorder %v4707, 16.0
      %vm4954 = vcmp.le.f32.partialorder %v4708, 16.0
      %vm4955 = vcmp.le.f32.partialorder %v4709, 16.0
      %vm4956 = vcmp.le.f32.partialorder %v4710, 16.0
      %vm4957 = vcmp.le.f32.partialorder %v4711, 16.0
      %vm4958 = vcmp.le.f32.partialorder %v4712, 16.0
      %vm4959 = vcmp.le.f32.partialorder %v4713, 16.0
      %vm4960 = vcmp.le.f32.partialorder %v4714, 16.0
      %vm4961 = vcmp.le.f32.partialorder %v4715, 16.0
      %vm4962 = vcmp.le.f32.partialorder %v4716, 16.0
      %vm4963 = vcmp.le.f32.partialorder %v4717, 16.0
      %vm4964 = vcmp.le.f32.partialorder %v4718, 16.0
      %vm4965 = vcmp.le.f32.partialorder %v4719, 16.0
      %vm4966 = vcmp.le.f32.partialorder %v4720, 16.0
      %vm4967 = vcmp.le.f32.partialorder %v4721, 16.0
      %vm4968 = vcmp.le.f32.partialorder %v4722, 16.0
      %vm4969 = vcmp.le.f32.partialorder %v4723, 16.0
      %vm4970 = vcmp.le.f32.partialorder %v4724, 16.0
      %vm4971 = vcmp.le.f32.partialorder %v4725, 16.0
      %vm4972 = vcmp.le.f32.partialorder %v4726, 16.0
      %vm4973 = vcmp.le.f32.partialorder %v4727, 16.0
      %vm4974 = vcmp.le.f32.partialorder %v4728, 16.0
      %vm4975 = vcmp.le.f32.partialorder %v4729, 16.0
      %vm4976 = vcmp.le.f32.partialorder %v4730, 16.0
      %vm4977 = vcmp.le.f32.partialorder %v4731, 16.0
      %vm4978 = vcmp.le.f32.partialorder %v4732, 16.0
      %vm4979 = vcmp.le.f32.partialorder %v4733, 16.0
      %vm4980 = vcmp.le.f32.partialorder %v4734, 16.0
      %vm4981 = vcmp.le.f32.partialorder %v4735, 16.0
      %vm4982 = vcmp.le.f32.partialorder %v4736, 16.0
      %vm4983 = vcmp.le.f32.partialorder %v4737, 16.0
      %vm4984 = vmand %vm4902, %vm4943
      %vm4985 = vmand %vm4903, %vm4944
      %vm4986 = vmand %vm4904, %vm4945
      %vm4987 = vmand %vm4905, %vm4946
      %vm4988 = vmand %vm4906, %vm4947
      %vm4989 = vmand %vm4907, %vm4948
      %vm4990 = vmand %vm4908, %vm4949
      %vm4991 = vmand %vm4909, %vm4950
      %vm4992 = vmand %vm4910, %vm4951
      %vm4993 = vmand %vm4911, %vm4952
      %vm4994 = vmand %vm4912, %vm4953
      %vm4995 = vmand %vm4913, %vm4954
      %vm4996 = vmand %vm4914, %vm4955
      %vm4997 = vmand %vm4915, %vm4956
      %vm4998 = vmand %vm4916, %vm4957
      %vm4999 = vmand %vm4917, %vm4958
      %vm5000 = vmand %vm4918, %vm4959
      %vm5001 = vmand %vm4919, %vm4960
      %vm5002 = vmand %vm4920, %vm4961
      %vm5003 = vmand %vm4921, %vm4962
      %vm5004 = vmand %vm4922, %vm4963
      %vm5005 = vmand %vm4923, %vm4964
      %vm5006 = vmand %vm4924, %vm4965
      %vm5007 = vmand %vm4925, %vm4966
      %vm5008 = vmand %vm4926, %vm4967
      %vm5009 = vmand %vm4927, %vm4968
      %vm5010 = vmand %vm4928, %vm4969
      %vm5011 = vmand %vm4929, %vm4970
      %vm5012 = vmand %vm4930, %vm4971
      %vm5013 = vmand %vm4931, %vm4972
      %vm5014 = vmand %vm4932, %vm4973
      %vm5015 = vmand %vm4933, %vm4974
      %vm5016 = vmand %vm4934, %vm4975
      %vm5017 = vmand %vm4935, %vm4976
      %vm5018 = vmand %vm4936, %vm4977
      %vm5019 = vmand %vm4937, %vm4978
      %vm5020 = vmand %vm4938, %vm4979
      %vm5021 = vmand %vm4939, %vm4980
      %vm5022 = vmand %vm4940, %vm4981
      %vm5023 = vmand %vm4941, %vm4982
      %vm5024 = vmand %vm4942, %vm4983
      %v5025 = vld [vmem:[%s2] sm:$0x1]
      %v5027 = vlaneseq
      %v5028 = vshrl.u32 %v5027, 7
      %v5029 = vsub.s32 0, %v5028
      %v5030 = vrot.slane %v5025, %v5029
      %v5032 = vadd.f32 %v4409, %v5030
      %v5033 = vadd.f32 %v4410, %v5030
      %v5034 = vadd.f32 %v4411, %v5030
      %v5035 = vadd.f32 %v4412, %v5030
      %v5036 = vadd.f32 %v4413, %v5030
      %v5037 = vadd.f32 %v4414, %v5030
      %v5038 = vadd.f32 %v4415, %v5030
      %v5039 = vadd.f32 %v4416, %v5030
      %v5040 = vadd.f32 %v4417, %v5030
      %v5041 = vadd.f32 %v4418, %v5030
      %v5042 = vadd.f32 %v4419, %v5030
      %v5043 = vadd.f32 %v4420, %v5030
      %v5044 = vadd.f32 %v4421, %v5030
      %v5045 = vadd.f32 %v4422, %v5030
      %v5046 = vadd.f32 %v4423, %v5030
      %v5047 = vadd.f32 %v4424, %v5030
      %v5048 = vadd.f32 %v4425, %v5030
      %v5049 = vadd.f32 %v4426, %v5030
      %v5050 = vadd.f32 %v4427, %v5030
      %v5051 = vadd.f32 %v4428, %v5030
      %v5052 = vadd.f32 %v4429, %v5030
      %v5053 = vadd.f32 %v4430, %v5030
      %v5054 = vadd.f32 %v4431, %v5030
      %v5055 = vadd.f32 %v4432, %v5030
      %v5056 = vadd.f32 %v4433, %v5030
      %v5057 = vadd.f32 %v4434, %v5030
      %v5058 = vadd.f32 %v4435, %v5030
      %v5059 = vadd.f32 %v4436, %v5030
      %v5060 = vadd.f32 %v4437, %v5030
      %v5061 = vadd.f32 %v4438, %v5030
      %v5062 = vadd.f32 %v4439, %v5030
      %v5063 = vadd.f32 %v4440, %v5030
      %v5064 = vadd.f32 %v4441, %v5030
      %v5065 = vadd.f32 %v4442, %v5030
      %v5066 = vadd.f32 %v4443, %v5030
      %v5067 = vadd.f32 %v4444, %v5030
      %v5068 = vadd.f32 %v4445, %v5030
      %v5069 = vadd.f32 %v4446, %v5030
      %v5070 = vadd.f32 %v4447, %v5030
      %v5071 = vadd.f32 %v4448, %v5030
      %v5072 = vadd.f32 %v4449, %v5030
      %v5073 = vmin.f32 %v5032, 30.0
      %v5074 = vmin.f32 %v5033, 30.0
      %v5075 = vmin.f32 %v5034, 30.0
      %v5076 = vmin.f32 %v5035, 30.0
      %v5077 = vmin.f32 %v5036, 30.0
      %v5078 = vmin.f32 %v5037, 30.0
      %v5079 = vmin.f32 %v5038, 30.0
      %v5080 = vmin.f32 %v5039, 30.0
      %v5081 = vmin.f32 %v5040, 30.0
      %v5082 = vmin.f32 %v5041, 30.0
      %v5083 = vmin.f32 %v5042, 30.0
      %v5084 = vmin.f32 %v5043, 30.0
      %v5085 = vmin.f32 %v5044, 30.0
      %v5086 = vmin.f32 %v5045, 30.0
      %v5087 = vmin.f32 %v5046, 30.0
      %v5088 = vmin.f32 %v5047, 30.0
      %v5089 = vmin.f32 %v5048, 30.0
      %v5090 = vmin.f32 %v5049, 30.0
      %v5091 = vmin.f32 %v5050, 30.0
      %v5092 = vmin.f32 %v5051, 30.0
      %v5093 = vmin.f32 %v5052, 30.0
      %v5094 = vmin.f32 %v5053, 30.0
      %v5095 = vmin.f32 %v5054, 30.0
      %v5096 = vmin.f32 %v5055, 30.0
      %v5097 = vmin.f32 %v5056, 30.0
      %v5098 = vmin.f32 %v5057, 30.0
      %v5099 = vmin.f32 %v5058, 30.0
      %v5100 = vmin.f32 %v5059, 30.0
      %v5101 = vmin.f32 %v5060, 30.0
      %v5102 = vmin.f32 %v5061, 30.0
      %v5103 = vmin.f32 %v5062, 30.0
      %v5104 = vmin.f32 %v5063, 30.0
      %v5105 = vmin.f32 %v5064, 30.0
      %v5106 = vmin.f32 %v5065, 30.0
      %v5107 = vmin.f32 %v5066, 30.0
      %v5108 = vmin.f32 %v5067, 30.0
      %v5109 = vmin.f32 %v5068, 30.0
      %v5110 = vmin.f32 %v5069, 30.0
      %v5111 = vmin.f32 %v5070, 30.0
      %v5112 = vmin.f32 %v5071, 30.0
      %v5113 = vmin.f32 %v5072, 30.0
      %v5114 = vmul.f32 %v5073, 1.442695
      %v5115 = vpow.pop %v5114
      %v5116 = vmul.f32 %v5074, 1.442695
      %v5117 = vpow.pop %v5116
      %v5118 = vmul.f32 %v5075, 1.442695
      %v5119 = vpow.pop %v5118
      %v5120 = vmul.f32 %v5076, 1.442695
      %v5121 = vpow.pop %v5120
      %v5122 = vmul.f32 %v5077, 1.442695
      %v5123 = vpow.pop %v5122
      %v5124 = vmul.f32 %v5078, 1.442695
      %v5125 = vpow.pop %v5124
      %v5126 = vmul.f32 %v5079, 1.442695
      %v5127 = vpow.pop %v5126
      %v5128 = vmul.f32 %v5080, 1.442695
      %v5129 = vpow.pop %v5128
      %v5130 = vmul.f32 %v5081, 1.442695
      %v5131 = vpow.pop %v5130
      %v5132 = vmul.f32 %v5082, 1.442695
      %v5133 = vpow.pop %v5132
      %v5134 = vmul.f32 %v5083, 1.442695
      %v5135 = vpow.pop %v5134
      %v5136 = vmul.f32 %v5084, 1.442695
      %v5137 = vpow.pop %v5136
      %v5138 = vmul.f32 %v5085, 1.442695
      %v5139 = vpow.pop %v5138
      %v5140 = vmul.f32 %v5086, 1.442695
      %v5141 = vpow.pop %v5140
      %v5142 = vmul.f32 %v5087, 1.442695
      %v5143 = vpow.pop %v5142
      %v5144 = vmul.f32 %v5088, 1.442695
      %v5145 = vpow.pop %v5144
      %v5146 = vmul.f32 %v5089, 1.442695
      %v5147 = vpow.pop %v5146
      %v5148 = vmul.f32 %v5090, 1.442695
      %v5149 = vpow.pop %v5148
      %v5150 = vmul.f32 %v5091, 1.442695
      %v5151 = vpow.pop %v5150
      %v5152 = vmul.f32 %v5092, 1.442695
      %v5153 = vpow.pop %v5152
      %v5154 = vmul.f32 %v5093, 1.442695
      %v5155 = vpow.pop %v5154
      %v5156 = vmul.f32 %v5094, 1.442695
      %v5157 = vpow.pop %v5156
      %v5158 = vmul.f32 %v5095, 1.442695
      %v5159 = vpow.pop %v5158
      %v5160 = vmul.f32 %v5096, 1.442695
      %v5161 = vpow.pop %v5160
      %v5162 = vmul.f32 %v5097, 1.442695
      %v5163 = vpow.pop %v5162
      %v5164 = vmul.f32 %v5098, 1.442695
      %v5165 = vpow.pop %v5164
      %v5166 = vmul.f32 %v5099, 1.442695
      %v5167 = vpow.pop %v5166
      %v5168 = vmul.f32 %v5100, 1.442695
      %v5169 = vpow.pop %v5168
      %v5170 = vmul.f32 %v5101, 1.442695
      %v5171 = vpow.pop %v5170
      %v5172 = vmul.f32 %v5102, 1.442695
      %v5173 = vpow.pop %v5172
      %v5174 = vmul.f32 %v5103, 1.442695
      %v5175 = vpow.pop %v5174
      %v5176 = vmul.f32 %v5104, 1.442695
      %v5177 = vpow.pop %v5176
      %v5178 = vmul.f32 %v5105, 1.442695
      %v5179 = vpow.pop %v5178
      %v5180 = vmul.f32 %v5106, 1.442695
      %v5181 = vpow.pop %v5180
      %v5182 = vmul.f32 %v5107, 1.442695
      %v5183 = vpow.pop %v5182
      %v5184 = vmul.f32 %v5108, 1.442695
      %v5185 = vpow.pop %v5184
      %v5186 = vmul.f32 %v5109, 1.442695
      %v5187 = vpow.pop %v5186
      %v5188 = vmul.f32 %v5110, 1.442695
      %v5189 = vpow.pop %v5188
      %v5190 = vmul.f32 %v5111, 1.442695
      %v5191 = vpow.pop %v5190
      %v5192 = vmul.f32 %v5112, 1.442695
      %v5193 = vpow.pop %v5192
      %v5194 = vmul.f32 %v5113, 1.442695
      %v5195 = vpow.pop %v5194
      %v5196 = vadd.f32 %v5115, 1.0
      %v5197 = vadd.f32 %v5117, 1.0
      %v5198 = vadd.f32 %v5119, 1.0
      %v5199 = vadd.f32 %v5121, 1.0
      %v5200 = vadd.f32 %v5123, 1.0
      %v5201 = vadd.f32 %v5125, 1.0
      %v5202 = vadd.f32 %v5127, 1.0
      %v5203 = vadd.f32 %v5129, 1.0
      %v5204 = vadd.f32 %v5131, 1.0
      %v5205 = vadd.f32 %v5133, 1.0
      %v5206 = vadd.f32 %v5135, 1.0
      %v5207 = vadd.f32 %v5137, 1.0
      %v5208 = vadd.f32 %v5139, 1.0
      %v5209 = vadd.f32 %v5141, 1.0
      %v5210 = vadd.f32 %v5143, 1.0
      %v5211 = vadd.f32 %v5145, 1.0
      %v5212 = vadd.f32 %v5147, 1.0
      %v5213 = vadd.f32 %v5149, 1.0
      %v5214 = vadd.f32 %v5151, 1.0
      %v5215 = vadd.f32 %v5153, 1.0
      %v5216 = vadd.f32 %v5155, 1.0
      %v5217 = vadd.f32 %v5157, 1.0
      %v5218 = vadd.f32 %v5159, 1.0
      %v5219 = vadd.f32 %v5161, 1.0
      %v5220 = vadd.f32 %v5163, 1.0
      %v5221 = vadd.f32 %v5165, 1.0
      %v5222 = vadd.f32 %v5167, 1.0
      %v5223 = vadd.f32 %v5169, 1.0
      %v5224 = vadd.f32 %v5171, 1.0
      %v5225 = vadd.f32 %v5173, 1.0
      %v5226 = vadd.f32 %v5175, 1.0
      %v5227 = vadd.f32 %v5177, 1.0
      %v5228 = vadd.f32 %v5179, 1.0
      %v5229 = vadd.f32 %v5181, 1.0
      %v5230 = vadd.f32 %v5183, 1.0
      %v5231 = vadd.f32 %v5185, 1.0
      %v5232 = vadd.f32 %v5187, 1.0
      %v5233 = vadd.f32 %v5189, 1.0
      %v5234 = vadd.f32 %v5191, 1.0
      %v5235 = vadd.f32 %v5193, 1.0
      %v5236 = vadd.f32 %v5195, 1.0
      %v5237 = vmul.f32 %v5196, %v5196
      %v5238 = vmul.f32 %v5197, %v5197
      %v5239 = vmul.f32 %v5198, %v5198
      %v5240 = vmul.f32 %v5199, %v5199
      %v5241 = vmul.f32 %v5200, %v5200
      %v5242 = vmul.f32 %v5201, %v5201
      %v5243 = vmul.f32 %v5202, %v5202
      %v5244 = vmul.f32 %v5203, %v5203
      %v5245 = vmul.f32 %v5204, %v5204
      %v5246 = vmul.f32 %v5205, %v5205
      %v5247 = vmul.f32 %v5206, %v5206
      %v5248 = vmul.f32 %v5207, %v5207
      %v5249 = vmul.f32 %v5208, %v5208
      %v5250 = vmul.f32 %v5209, %v5209
      %v5251 = vmul.f32 %v5210, %v5210
      %v5252 = vmul.f32 %v5211, %v5211
      %v5253 = vmul.f32 %v5212, %v5212
      %v5254 = vmul.f32 %v5213, %v5213
      %v5255 = vmul.f32 %v5214, %v5214
      %v5256 = vmul.f32 %v5215, %v5215
      %v5257 = vmul.f32 %v5216, %v5216
      %v5258 = vmul.f32 %v5217, %v5217
      %v5259 = vmul.f32 %v5218, %v5218
      %v5260 = vmul.f32 %v5219, %v5219
      %v5261 = vmul.f32 %v5220, %v5220
      %v5262 = vmul.f32 %v5221, %v5221
      %v5263 = vmul.f32 %v5222, %v5222
      %v5264 = vmul.f32 %v5223, %v5223
      %v5265 = vmul.f32 %v5224, %v5224
      %v5266 = vmul.f32 %v5225, %v5225
      %v5267 = vmul.f32 %v5226, %v5226
      %v5268 = vmul.f32 %v5227, %v5227
      %v5269 = vmul.f32 %v5228, %v5228
      %v5270 = vmul.f32 %v5229, %v5229
      %v5271 = vmul.f32 %v5230, %v5230
      %v5272 = vmul.f32 %v5231, %v5231
      %v5273 = vmul.f32 %v5232, %v5232
      %v5274 = vmul.f32 %v5233, %v5233
      %v5275 = vmul.f32 %v5234, %v5234
      %v5276 = vmul.f32 %v5235, %v5235
      %v5277 = vmul.f32 %v5236, %v5236
      %v5278 = vsub.f32 %v5237, 1.0
      %v5279 = vsub.f32 %v5238, 1.0
      %v5280 = vsub.f32 %v5239, 1.0
      %v5281 = vsub.f32 %v5240, 1.0
      %v5282 = vsub.f32 %v5241, 1.0
      %v5283 = vsub.f32 %v5242, 1.0
      %v5284 = vsub.f32 %v5243, 1.0
      %v5285 = vsub.f32 %v5244, 1.0
      %v5286 = vsub.f32 %v5245, 1.0
      %v5287 = vsub.f32 %v5246, 1.0
      %v5288 = vsub.f32 %v5247, 1.0
      %v5289 = vsub.f32 %v5248, 1.0
      %v5290 = vsub.f32 %v5249, 1.0
      %v5291 = vsub.f32 %v5250, 1.0
      %v5292 = vsub.f32 %v5251, 1.0
      %v5293 = vsub.f32 %v5252, 1.0
      %v5294 = vsub.f32 %v5253, 1.0
      %v5295 = vsub.f32 %v5254, 1.0
      %v5296 = vsub.f32 %v5255, 1.0
      %v5297 = vsub.f32 %v5256, 1.0
      %v5298 = vsub.f32 %v5257, 1.0
      %v5299 = vsub.f32 %v5258, 1.0
      %v5300 = vsub.f32 %v5259, 1.0
      %v5301 = vsub.f32 %v5260, 1.0
      %v5302 = vsub.f32 %v5261, 1.0
      %v5303 = vsub.f32 %v5262, 1.0
      %v5304 = vsub.f32 %v5263, 1.0
      %v5305 = vsub.f32 %v5264, 1.0
      %v5306 = vsub.f32 %v5265, 1.0
      %v5307 = vsub.f32 %v5266, 1.0
      %v5308 = vsub.f32 %v5267, 1.0
      %v5309 = vsub.f32 %v5268, 1.0
      %v5310 = vsub.f32 %v5269, 1.0
      %v5311 = vsub.f32 %v5270, 1.0
      %v5312 = vsub.f32 %v5271, 1.0
      %v5313 = vsub.f32 %v5272, 1.0
      %v5314 = vsub.f32 %v5273, 1.0
      %v5315 = vsub.f32 %v5274, 1.0
      %v5316 = vsub.f32 %v5275, 1.0
      %v5317 = vsub.f32 %v5276, 1.0
      %v5318 = vsub.f32 %v5277, 1.0
      %v5319 = vmul.f32 %v5032, %v5278
      %v5320 = vmul.f32 %v5033, %v5279
      %v5321 = vmul.f32 %v5034, %v5280
      %v5322 = vmul.f32 %v5035, %v5281
      %v5323 = vmul.f32 %v5036, %v5282
      %v5324 = vmul.f32 %v5037, %v5283
      %v5325 = vmul.f32 %v5038, %v5284
      %v5326 = vmul.f32 %v5039, %v5285
      %v5327 = vmul.f32 %v5040, %v5286
      %v5328 = vmul.f32 %v5041, %v5287
      %v5329 = vmul.f32 %v5042, %v5288
      %v5330 = vmul.f32 %v5043, %v5289
      %v5331 = vmul.f32 %v5044, %v5290
      %v5332 = vmul.f32 %v5045, %v5291
      %v5333 = vmul.f32 %v5046, %v5292
      %v5334 = vmul.f32 %v5047, %v5293
      %v5335 = vmul.f32 %v5048, %v5294
      %v5336 = vmul.f32 %v5049, %v5295
      %v5337 = vmul.f32 %v5050, %v5296
      %v5338 = vmul.f32 %v5051, %v5297
      %v5339 = vmul.f32 %v5052, %v5298
      %v5340 = vmul.f32 %v5053, %v5299
      %v5341 = vmul.f32 %v5054, %v5300
      %v5342 = vmul.f32 %v5055, %v5301
      %v5343 = vmul.f32 %v5056, %v5302
      %v5344 = vmul.f32 %v5057, %v5303
      %v5345 = vmul.f32 %v5058, %v5304
      %v5346 = vmul.f32 %v5059, %v5305
      %v5347 = vmul.f32 %v5060, %v5306
      %v5348 = vmul.f32 %v5061, %v5307
      %v5349 = vmul.f32 %v5062, %v5308
      %v5350 = vmul.f32 %v5063, %v5309
      %v5351 = vmul.f32 %v5064, %v5310
      %v5352 = vmul.f32 %v5065, %v5311
      %v5353 = vmul.f32 %v5066, %v5312
      %v5354 = vmul.f32 %v5067, %v5313
      %v5355 = vmul.f32 %v5068, %v5314
      %v5356 = vmul.f32 %v5069, %v5315
      %v5357 = vmul.f32 %v5070, %v5316
      %v5358 = vmul.f32 %v5071, %v5317
      %v5359 = vmul.f32 %v5072, %v5318
      %v5360 = vadd.f32 %v5237, 1.0
      %v5361 = vadd.f32 %v5238, 1.0
      %v5362 = vadd.f32 %v5239, 1.0
      %v5363 = vadd.f32 %v5240, 1.0
      %v5364 = vadd.f32 %v5241, 1.0
      %v5365 = vadd.f32 %v5242, 1.0
      %v5366 = vadd.f32 %v5243, 1.0
      %v5367 = vadd.f32 %v5244, 1.0
      %v5368 = vadd.f32 %v5245, 1.0
      %v5369 = vadd.f32 %v5246, 1.0
      %v5370 = vadd.f32 %v5247, 1.0
      %v5371 = vadd.f32 %v5248, 1.0
      %v5372 = vadd.f32 %v5249, 1.0
      %v5373 = vadd.f32 %v5250, 1.0
      %v5374 = vadd.f32 %v5251, 1.0
      %v5375 = vadd.f32 %v5252, 1.0
      %v5376 = vadd.f32 %v5253, 1.0
      %v5377 = vadd.f32 %v5254, 1.0
      %v5378 = vadd.f32 %v5255, 1.0
      %v5379 = vadd.f32 %v5256, 1.0
      %v5380 = vadd.f32 %v5257, 1.0
      %v5381 = vadd.f32 %v5258, 1.0
      %v5382 = vadd.f32 %v5259, 1.0
      %v5383 = vadd.f32 %v5260, 1.0
      %v5384 = vadd.f32 %v5261, 1.0
      %v5385 = vadd.f32 %v5262, 1.0
      %v5386 = vadd.f32 %v5263, 1.0
      %v5387 = vadd.f32 %v5264, 1.0
      %v5388 = vadd.f32 %v5265, 1.0
      %v5389 = vadd.f32 %v5266, 1.0
      %v5390 = vadd.f32 %v5267, 1.0
      %v5391 = vadd.f32 %v5268, 1.0
      %v5392 = vadd.f32 %v5269, 1.0
      %v5393 = vadd.f32 %v5270, 1.0
      %v5394 = vadd.f32 %v5271, 1.0
      %v5395 = vadd.f32 %v5272, 1.0
      %v5396 = vadd.f32 %v5273, 1.0
      %v5397 = vadd.f32 %v5274, 1.0
      %v5398 = vadd.f32 %v5275, 1.0
      %v5399 = vadd.f32 %v5276, 1.0
      %v5400 = vadd.f32 %v5277, 1.0
      %v5401 = vrcp.pop %v5360
      %v5402 = vrcp.pop %v5361
      %v5403 = vrcp.pop %v5362
      %v5404 = vrcp.pop %v5363
      %v5405 = vrcp.pop %v5364
      %v5406 = vrcp.pop %v5365
      %v5407 = vrcp.pop %v5366
      %v5408 = vrcp.pop %v5367
      %v5409 = vrcp.pop %v5368
      %v5410 = vrcp.pop %v5369
      %v5411 = vrcp.pop %v5370
      %v5412 = vrcp.pop %v5371
      %v5413 = vrcp.pop %v5372
      %v5414 = vrcp.pop %v5373
      %v5415 = vrcp.pop %v5374
      %v5416 = vrcp.pop %v5375
      %v5417 = vrcp.pop %v5376
      %v5418 = vrcp.pop %v5377
      %v5419 = vrcp.pop %v5378
      %v5420 = vrcp.pop %v5379
      %v5421 = vrcp.pop %v5380
      %v5422 = vrcp.pop %v5381
      %v5423 = vrcp.pop %v5382
      %v5424 = vrcp.pop %v5383
      %v5425 = vrcp.pop %v5384
      %v5426 = vrcp.pop %v5385
      %v5427 = vrcp.pop %v5386
      %v5428 = vrcp.pop %v5387
      %v5429 = vrcp.pop %v5388
      %v5430 = vrcp.pop %v5389
      %v5431 = vrcp.pop %v5390
      %v5432 = vrcp.pop %v5391
      %v5433 = vrcp.pop %v5392
      %v5434 = vrcp.pop %v5393
      %v5435 = vrcp.pop %v5394
      %v5436 = vrcp.pop %v5395
      %v5437 = vrcp.pop %v5396
      %v5438 = vrcp.pop %v5397
      %v5439 = vrcp.pop %v5398
      %v5440 = vrcp.pop %v5399
      %v5441 = vrcp.pop %v5400
      %v5442 = vmul.f32 %v5319, %v5401
      %v5443 = vmul.f32 %v5320, %v5402
      %v5444 = vmul.f32 %v5321, %v5403
      %v5445 = vmul.f32 %v5322, %v5404
      %v5446 = vmul.f32 %v5323, %v5405
      %v5447 = vmul.f32 %v5324, %v5406
      %v5448 = vmul.f32 %v5325, %v5407
      %v5449 = vmul.f32 %v5326, %v5408
      %v5450 = vmul.f32 %v5327, %v5409
      %v5451 = vmul.f32 %v5328, %v5410
      %v5452 = vmul.f32 %v5329, %v5411
      %v5453 = vmul.f32 %v5330, %v5412
      %v5454 = vmul.f32 %v5331, %v5413
      %v5455 = vmul.f32 %v5332, %v5414
      %v5456 = vmul.f32 %v5333, %v5415
      %v5457 = vmul.f32 %v5334, %v5416
      %v5458 = vmul.f32 %v5335, %v5417
      %v5459 = vmul.f32 %v5336, %v5418
      %v5460 = vmul.f32 %v5337, %v5419
      %v5461 = vmul.f32 %v5338, %v5420
      %v5462 = vmul.f32 %v5339, %v5421
      %v5463 = vmul.f32 %v5340, %v5422
      %v5464 = vmul.f32 %v5341, %v5423
      %v5465 = vmul.f32 %v5342, %v5424
      %v5466 = vmul.f32 %v5343, %v5425
      %v5467 = vmul.f32 %v5344, %v5426
      %v5468 = vmul.f32 %v5345, %v5427
      %v5469 = vmul.f32 %v5346, %v5428
      %v5470 = vmul.f32 %v5347, %v5429
      %v5471 = vmul.f32 %v5348, %v5430
      %v5472 = vmul.f32 %v5349, %v5431
      %v5473 = vmul.f32 %v5350, %v5432
      %v5474 = vmul.f32 %v5351, %v5433
      %v5475 = vmul.f32 %v5352, %v5434
      %v5476 = vmul.f32 %v5353, %v5435
      %v5477 = vmul.f32 %v5354, %v5436
      %v5478 = vmul.f32 %v5355, %v5437
      %v5479 = vmul.f32 %v5356, %v5438
      %v5480 = vmul.f32 %v5357, %v5439
      %v5481 = vmul.f32 %v5358, %v5440
      %v5482 = vmul.f32 %v5359, %v5441
      %v5483 = vsel %vm4984, 1, 0
      %v5484 = vsel %vm4985, 1, 0
      %v5485 = vsel %vm4986, 1, 0
      %v5486 = vsel %vm4987, 1, 0
      %v5487 = vsel %vm4988, 1, 0
      %v5488 = vsel %vm4989, 1, 0
      %v5489 = vsel %vm4990, 1, 0
      %v5490 = vsel %vm4991, 1, 0
      %v5491 = vsel %vm4992, 1, 0
      %v5492 = vsel %vm4993, 1, 0
      %v5493 = vsel %vm4994, 1, 0
      %v5494 = vsel %vm4995, 1, 0
      %v5495 = vsel %vm4996, 1, 0
      %v5496 = vsel %vm4997, 1, 0
      %v5497 = vsel %vm4998, 1, 0
      %v5498 = vsel %vm4999, 1, 0
      %v5499 = vsel %vm5000, 1, 0
      %v5500 = vsel %vm5001, 1, 0
      %v5501 = vsel %vm5002, 1, 0
      %v5502 = vsel %vm5003, 1, 0
      %v5503 = vsel %vm5004, 1, 0
      %v5504 = vsel %vm5005, 1, 0
      %v5505 = vsel %vm5006, 1, 0
      %v5506 = vsel %vm5007, 1, 0
      %v5507 = vsel %vm5008, 1, 0
      %v5508 = vsel %vm5009, 1, 0
      %v5509 = vsel %vm5010, 1, 0
      %v5510 = vsel %vm5011, 1, 0
      %v5511 = vsel %vm5012, 1, 0
      %v5512 = vsel %vm5013, 1, 0
      %v5513 = vsel %vm5014, 1, 0
      %v5514 = vsel %vm5015, 1, 0
      %v5515 = vsel %vm5016, 1, 0
      %v5516 = vsel %vm5017, 1, 0
      %v5517 = vsel %vm5018, 1, 0
      %v5518 = vsel %vm5019, 1, 0
      %v5519 = vsel %vm5020, 1, 0
      %v5520 = vsel %vm5021, 1, 0
      %v5521 = vsel %vm5022, 1, 0
      %v5522 = vsel %vm5023, 1, 0
      %v5523 = vsel %vm5024, 1, 0
      %vm5524 = vcmp.eq.s32.totalorder %v5483, 1
      %vm5525 = vcmp.eq.s32.totalorder %v5484, 1
      %vm5526 = vcmp.eq.s32.totalorder %v5485, 1
      %vm5527 = vcmp.eq.s32.totalorder %v5486, 1
      %vm5528 = vcmp.eq.s32.totalorder %v5487, 1
      %vm5529 = vcmp.eq.s32.totalorder %v5488, 1
      %vm5530 = vcmp.eq.s32.totalorder %v5489, 1
      %vm5531 = vcmp.eq.s32.totalorder %v5490, 1
      %vm5532 = vcmp.eq.s32.totalorder %v5491, 1
      %vm5533 = vcmp.eq.s32.totalorder %v5492, 1
      %vm5534 = vcmp.eq.s32.totalorder %v5493, 1
      %vm5535 = vcmp.eq.s32.totalorder %v5494, 1
      %vm5536 = vcmp.eq.s32.totalorder %v5495, 1
      %vm5537 = vcmp.eq.s32.totalorder %v5496, 1
      %vm5538 = vcmp.eq.s32.totalorder %v5497, 1
      %vm5539 = vcmp.eq.s32.totalorder %v5498, 1
      %vm5540 = vcmp.eq.s32.totalorder %v5499, 1
      %vm5541 = vcmp.eq.s32.totalorder %v5500, 1
      %vm5542 = vcmp.eq.s32.totalorder %v5501, 1
      %vm5543 = vcmp.eq.s32.totalorder %v5502, 1
      %vm5544 = vcmp.eq.s32.totalorder %v5503, 1
      %vm5545 = vcmp.eq.s32.totalorder %v5504, 1
      %vm5546 = vcmp.eq.s32.totalorder %v5505, 1
      %vm5547 = vcmp.eq.s32.totalorder %v5506, 1
      %vm5548 = vcmp.eq.s32.totalorder %v5507, 1
      %vm5549 = vcmp.eq.s32.totalorder %v5508, 1
      %vm5550 = vcmp.eq.s32.totalorder %v5509, 1
      %vm5551 = vcmp.eq.s32.totalorder %v5510, 1
      %vm5552 = vcmp.eq.s32.totalorder %v5511, 1
      %vm5553 = vcmp.eq.s32.totalorder %v5512, 1
      %vm5554 = vcmp.eq.s32.totalorder %v5513, 1
      %vm5555 = vcmp.eq.s32.totalorder %v5514, 1
      %vm5556 = vcmp.eq.s32.totalorder %v5515, 1
      %vm5557 = vcmp.eq.s32.totalorder %v5516, 1
      %vm5558 = vcmp.eq.s32.totalorder %v5517, 1
      %vm5559 = vcmp.eq.s32.totalorder %v5518, 1
      %vm5560 = vcmp.eq.s32.totalorder %v5519, 1
      %vm5561 = vcmp.eq.s32.totalorder %v5520, 1
      %vm5562 = vcmp.eq.s32.totalorder %v5521, 1
      %vm5563 = vcmp.eq.s32.totalorder %v5522, 1
      %vm5564 = vcmp.eq.s32.totalorder %v5523, 1
      %v5565 = vsel %vm5524, %v5442, 0.0
      %v5566 = vsel %vm5525, %v5443, 0.0
      %v5567 = vsel %vm5526, %v5444, 0.0
      %v5568 = vsel %vm5527, %v5445, 0.0
      %v5569 = vsel %vm5528, %v5446, 0.0
      %v5570 = vsel %vm5529, %v5447, 0.0
      %v5571 = vsel %vm5530, %v5448, 0.0
      %v5572 = vsel %vm5531, %v5449, 0.0
      %v5573 = vsel %vm5532, %v5450, 0.0
      %v5574 = vsel %vm5533, %v5451, 0.0
      %v5575 = vsel %vm5534, %v5452, 0.0
      %v5576 = vsel %vm5535, %v5453, 0.0
      %v5577 = vsel %vm5536, %v5454, 0.0
      %v5578 = vsel %vm5537, %v5455, 0.0
      %v5579 = vsel %vm5538, %v5456, 0.0
      %v5580 = vsel %vm5539, %v5457, 0.0
      %v5581 = vsel %vm5540, %v5458, 0.0
      %v5582 = vsel %vm5541, %v5459, 0.0
      %v5583 = vsel %vm5542, %v5460, 0.0
      %v5584 = vsel %vm5543, %v5461, 0.0
      %v5585 = vsel %vm5544, %v5462, 0.0
      %v5586 = vsel %vm5545, %v5463, 0.0
      %v5587 = vsel %vm5546, %v5464, 0.0
      %v5588 = vsel %vm5547, %v5465, 0.0
      %v5589 = vsel %vm5548, %v5466, 0.0
      %v5590 = vsel %vm5549, %v5467, 0.0
      %v5591 = vsel %vm5550, %v5468, 0.0
      %v5592 = vsel %vm5551, %v5469, 0.0
      %v5593 = vsel %vm5552, %v5470, 0.0
      %v5594 = vsel %vm5553, %v5471, 0.0
      %v5595 = vsel %vm5554, %v5472, 0.0
      %v5596 = vsel %vm5555, %v5473, 0.0
      %v5597 = vsel %vm5556, %v5474, 0.0
      %v5598 = vsel %vm5557, %v5475, 0.0
      %v5599 = vsel %vm5558, %v5476, 0.0
      %v5600 = vsel %vm5559, %v5477, 0.0
      %v5601 = vsel %vm5560, %v5478, 0.0
      %v5602 = vsel %vm5561, %v5479, 0.0
      %v5603 = vsel %vm5562, %v5480, 0.0
      %v5604 = vsel %vm5563, %v5481, 0.0
      %v5605 = vsel %vm5564, %v5482, 0.0
      %vm5606 = vcmask 27648
      %5607 = vst.msk [vmem:[#allocation2] sm:$0xf] %vm5606, 0
      %5608 = vst.msk [vmem:[#allocation2 + $0x4] sm:$0xf] %vm5606, 0
      %5609 = vst.msk [vmem:[#allocation2 + $0x8] sm:$0xf] %vm5606, 0
      %vm5610 = vcmask 27650
      %5611 = vst.msk [vmem:[#allocation2 + $0xac] sm:$0xc] %vm5610, 0
      %5612 = vst.msk [vmem:[#allocation2 + $0xb0] sm:$0xf] %vm5606, 0
      %5613 = vst.msk [vmem:[#allocation2 + $0xb4] sm:$0xf] %vm5606, 0
      %vm5614 = vcmask 25600
      %5615 = vst.msk [vmem:[#allocation2 + $0xb8] sm:$0x3] %vm5614, 0
      %v5616 = vpack.c.bf16 %v5566, %v5565
      %v5617 = vpack.c.bf16 %v5568, %v5567
      %v5618 = vpack.c.bf16 %v5570, %v5569
      %v5619 = vpack.c.bf16 %v5572, %v5571
      %v5620 = vpack.c.bf16 %v5574, %v5573
      %v5621 = vpack.c.bf16 %v5576, %v5575
      %v5622 = vpack.c.bf16 %v5578, %v5577
      %v5623 = vpack.c.bf16 %v5580, %v5579
      %v5624 = vpack.c.bf16 %v5582, %v5581
      %v5625 = vpack.c.bf16 %v5584, %v5583
      %v5626 = vpack.c.bf16 %v5586, %v5585
      %v5627 = vpack.c.bf16 %v5588, %v5587
      %v5628 = vpack.c.bf16 %v5590, %v5589
      %v5629 = vpack.c.bf16 %v5592, %v5591
      %v5630 = vpack.c.bf16 %v5594, %v5593
      %v5631 = vpack.c.bf16 %v5596, %v5595
      %v5632 = vpack.c.bf16 %v5598, %v5597
      %v5633 = vpack.c.bf16 %v5600, %v5599
      %v5634 = vpack.c.bf16 %v5602, %v5601
      %v5635 = vpack.c.bf16 %v5604, %v5603
      %v5636 = vpack.c.bf16 %v5605, %v5605
      %v5658 = vunpack.c.l.b16 %v5616
      %v5659 = vunpack.c.h.b16 %v5616
      %v5660 = vunpack.c.l.b16 %v5617
      %v5661 = vunpack.c.h.b16 %v5617
      %v5662 = vunpack.c.l.b16 %v5618
      %v5663 = vunpack.c.h.b16 %v5618
      %v5664 = vunpack.c.l.b16 %v5619
      %v5665 = vunpack.c.h.b16 %v5619
      %v5666 = vunpack.c.l.b16 %v5620
      %v5667 = vunpack.c.h.b16 %v5620
      %v5668 = vunpack.c.l.b16 %v5621
      %v5669 = vunpack.c.h.b16 %v5621
      %v5670 = vunpack.c.l.b16 %v5622
      %v5671 = vunpack.c.h.b16 %v5622
      %v5672 = vunpack.c.l.b16 %v5623
      %v5673 = vunpack.c.h.b16 %v5623
      %v5674 = vunpack.c.l.b16 %v5624
      %v5675 = vunpack.c.h.b16 %v5624
      %v5676 = vunpack.c.l.b16 %v5625
      %v5677 = vunpack.c.h.b16 %v5625
      %v5678 = vunpack.c.l.b16 %v5626
      %v5679 = vunpack.c.h.b16 %v5626
      %v5680 = vunpack.c.l.b16 %v5627
      %v5681 = vunpack.c.h.b16 %v5627
      %v5682 = vunpack.c.l.b16 %v5628
      %v5683 = vunpack.c.h.b16 %v5628
      %v5684 = vunpack.c.l.b16 %v5629
      %v5685 = vunpack.c.h.b16 %v5629
      %v5686 = vunpack.c.l.b16 %v5630
      %v5687 = vunpack.c.h.b16 %v5630
      %v5688 = vunpack.c.l.b16 %v5631
      %v5689 = vunpack.c.h.b16 %v5631
      %v5690 = vunpack.c.l.b16 %v5632
      %v5691 = vunpack.c.h.b16 %v5632
      %v5692 = vunpack.c.l.b16 %v5633
      %v5693 = vunpack.c.h.b16 %v5633
      %v5694 = vunpack.c.l.b16 %v5634
      %v5695 = vunpack.c.h.b16 %v5634
      %v5696 = vunpack.c.l.b16 %v5635
      %v5697 = vunpack.c.h.b16 %v5635
      %v5698 = vunpack.c.l.b16 %v5636
      %v5699 = vpack.c.b16 %v5658, %v5658
      %v5700 = vpack.c.b16 %v5659, %v5659
      %v5701 = vpack.c.b16 %v5660, %v5660
      %v5702 = vpack.c.b16 %v5661, %v5661
      %v5703 = vpack.c.b16 %v5662, %v5662
      %v5704 = vpack.c.b16 %v5663, %v5663
      %v5705 = vpack.c.b16 %v5664, %v5664
      %v5706 = vpack.c.b16 %v5665, %v5665
      %v5707 = vpack.c.b16 %v5666, %v5666
      %v5708 = vpack.c.b16 %v5667, %v5667
      %v5709 = vpack.c.b16 %v5668, %v5668
      %v5710 = vpack.c.b16 %v5669, %v5669
      %v5711 = vpack.c.b16 %v5670, %v5670
      %v5712 = vpack.c.b16 %v5671, %v5671
      %v5713 = vpack.c.b16 %v5672, %v5672
      %v5714 = vpack.c.b16 %v5673, %v5673
      %v5715 = vpack.c.b16 %v5674, %v5674
      %v5716 = vpack.c.b16 %v5675, %v5675
      %v5717 = vpack.c.b16 %v5676, %v5676
      %v5718 = vpack.c.b16 %v5677, %v5677
      %v5719 = vpack.c.b16 %v5678, %v5678
      %v5720 = vpack.c.b16 %v5679, %v5679
      %v5721 = vpack.c.b16 %v5680, %v5680
      %v5722 = vpack.c.b16 %v5681, %v5681
      %v5723 = vpack.c.b16 %v5682, %v5682
      %v5724 = vpack.c.b16 %v5683, %v5683
      %v5725 = vpack.c.b16 %v5684, %v5684
      %v5726 = vpack.c.b16 %v5685, %v5685
      %v5727 = vpack.c.b16 %v5686, %v5686
      %v5728 = vpack.c.b16 %v5687, %v5687
      %v5729 = vpack.c.b16 %v5688, %v5688
      %v5730 = vpack.c.b16 %v5689, %v5689
      %v5731 = vpack.c.b16 %v5690, %v5690
      %v5732 = vpack.c.b16 %v5691, %v5691
      %v5733 = vpack.c.b16 %v5692, %v5692
      %v5734 = vpack.c.b16 %v5693, %v5693
      %v5735 = vpack.c.b16 %v5694, %v5694
      %v5736 = vpack.c.b16 %v5695, %v5695
      %v5737 = vpack.c.b16 %v5696, %v5696
      %v5738 = vpack.c.b16 %v5697, %v5697
      %v5739 = vpack.c.b16 %v5698, %v5698
      %5781 = vst.msk [vmem:[#allocation2 + $0xc] sm:$0xf] %vm5606, %v5699
      %5782 = vst.msk [vmem:[#allocation2 + $0x10] sm:$0xf] %vm5606, %v5700
      %5783 = vst.msk [vmem:[#allocation2 + $0x14] sm:$0xf] %vm5606, %v5701
      %5784 = vst.msk [vmem:[#allocation2 + $0x18] sm:$0xf] %vm5606, %v5702
      %5785 = vst.msk [vmem:[#allocation2 + $0x1c] sm:$0xf] %vm5606, %v5703
      %5786 = vst.msk [vmem:[#allocation2 + $0x20] sm:$0xf] %vm5606, %v5704
      %5787 = vst.msk [vmem:[#allocation2 + $0x24] sm:$0xf] %vm5606, %v5705
      %5788 = vst.msk [vmem:[#allocation2 + $0x28] sm:$0xf] %vm5606, %v5706
      %5789 = vst.msk [vmem:[#allocation2 + $0x2c] sm:$0xf] %vm5606, %v5707
      %5790 = vst.msk [vmem:[#allocation2 + $0x30] sm:$0xf] %vm5606, %v5708
      %5791 = vst.msk [vmem:[#allocation2 + $0x34] sm:$0xf] %vm5606, %v5709
      %5792 = vst.msk [vmem:[#allocation2 + $0x38] sm:$0xf] %vm5606, %v5710
      %5793 = vst.msk [vmem:[#allocation2 + $0x3c] sm:$0xf] %vm5606, %v5711
      %5794 = vst.msk [vmem:[#allocation2 + $0x40] sm:$0xf] %vm5606, %v5712
      %5795 = vst.msk [vmem:[#allocation2 + $0x44] sm:$0xf] %vm5606, %v5713
      %5796 = vst.msk [vmem:[#allocation2 + $0x48] sm:$0xf] %vm5606, %v5714
      %5797 = vst.msk [vmem:[#allocation2 + $0x4c] sm:$0xf] %vm5606, %v5715
      %5798 = vst.msk [vmem:[#allocation2 + $0x50] sm:$0xf] %vm5606, %v5716
      %5799 = vst.msk [vmem:[#allocation2 + $0x54] sm:$0xf] %vm5606, %v5717
      %5800 = vst.msk [vmem:[#allocation2 + $0x58] sm:$0xf] %vm5606, %v5718
      %5801 = vst.msk [vmem:[#allocation2 + $0x5c] sm:$0xf] %vm5606, %v5719
      %5802 = vst.msk [vmem:[#allocation2 + $0x60] sm:$0xf] %vm5606, %v5720
      %5803 = vst.msk [vmem:[#allocation2 + $0x64] sm:$0xf] %vm5606, %v5721
      %5804 = vst.msk [vmem:[#allocation2 + $0x68] sm:$0xf] %vm5606, %v5722
      %5805 = vst.msk [vmem:[#allocation2 + $0x6c] sm:$0xf] %vm5606, %v5723
      %5806 = vst.msk [vmem:[#allocation2 + $0x70] sm:$0xf] %vm5606, %v5724
      %5807 = vst.msk [vmem:[#allocation2 + $0x74] sm:$0xf] %vm5606, %v5725
      %5808 = vst.msk [vmem:[#allocation2 + $0x78] sm:$0xf] %vm5606, %v5726
      %5809 = vst.msk [vmem:[#allocation2 + $0x7c] sm:$0xf] %vm5606, %v5727
      %5810 = vst.msk [vmem:[#allocation2 + $0x80] sm:$0xf] %vm5606, %v5728
      %5811 = vst.msk [vmem:[#allocation2 + $0x84] sm:$0xf] %vm5606, %v5729
      %5812 = vst.msk [vmem:[#allocation2 + $0x88] sm:$0xf] %vm5606, %v5730
      %5813 = vst.msk [vmem:[#allocation2 + $0x8c] sm:$0xf] %vm5606, %v5731
      %5814 = vst.msk [vmem:[#allocation2 + $0x90] sm:$0xf] %vm5606, %v5732
      %5815 = vst.msk [vmem:[#allocation2 + $0x94] sm:$0xf] %vm5606, %v5733
      %5816 = vst.msk [vmem:[#allocation2 + $0x98] sm:$0xf] %vm5606, %v5734
      %5817 = vst.msk [vmem:[#allocation2 + $0x9c] sm:$0xf] %vm5606, %v5735
      %5818 = vst.msk [vmem:[#allocation2 + $0xa0] sm:$0xf] %vm5606, %v5736
      %5819 = vst.msk [vmem:[#allocation2 + $0xa4] sm:$0xf] %vm5606, %v5737
      %5820 = vst.msk [vmem:[#allocation2 + $0xa8] sm:$0xf] %vm5606, %v5738
      %5821 = vst.msk [vmem:[#allocation2 + $0xac] sm:$0x3] %vm5614, %v5739
      %v5822 = vld [vmem:[#allocation2 + $0x8] sm:$0x8]
      %v5823 = vld [vmem:[#allocation2 + $0xc] sm:$0xf]
      %v5824 = vld [vmem:[#allocation2 + $0x10] sm:$0xf]
      %v5825 = vld [vmem:[#allocation2 + $0x14] sm:$0xf]
      %v5826 = vld [vmem:[#allocation2 + $0x18] sm:$0xf]
      %v5827 = vld [vmem:[#allocation2 + $0x1c] sm:$0xf]
      %v5828 = vld [vmem:[#allocation2 + $0x20] sm:$0xf]
      %v5829 = vld [vmem:[#allocation2 + $0x24] sm:$0xf]
      %v5830 = vld [vmem:[#allocation2 + $0x28] sm:$0xf]
      %v5831 = vld [vmem:[#allocation2 + $0x2c] sm:$0xf]
      %v5832 = vld [vmem:[#allocation2 + $0x30] sm:$0xf]
      %v5833 = vld [vmem:[#allocation2 + $0x34] sm:$0xf]
      %v5834 = vld [vmem:[#allocation2 + $0x38] sm:$0xf]
      %v5835 = vld [vmem:[#allocation2 + $0x3c] sm:$0xf]
      %v5836 = vld [vmem:[#allocation2 + $0x40] sm:$0xf]
      %v5837 = vld [vmem:[#allocation2 + $0x44] sm:$0xf]
      %v5838 = vld [vmem:[#allocation2 + $0x48] sm:$0xf]
      %v5839 = vld [vmem:[#allocation2 + $0x4c] sm:$0xf]
      %v5840 = vld [vmem:[#allocation2 + $0x50] sm:$0xf]
      %v5841 = vld [vmem:[#allocation2 + $0x54] sm:$0xf]
      %v5842 = vld [vmem:[#allocation2 + $0x58] sm:$0xf]
      %v5843 = vld [vmem:[#allocation2 + $0x5c] sm:$0xf]
      %v5844 = vld [vmem:[#allocation2 + $0x60] sm:$0xf]
      %v5845 = vld [vmem:[#allocation2 + $0x64] sm:$0xf]
      %v5846 = vld [vmem:[#allocation2 + $0x68] sm:$0xf]
      %v5847 = vld [vmem:[#allocation2 + $0x6c] sm:$0xf]
      %v5848 = vld [vmem:[#allocation2 + $0x70] sm:$0xf]
      %v5849 = vld [vmem:[#allocation2 + $0x74] sm:$0xf]
      %v5850 = vld [vmem:[#allocation2 + $0x78] sm:$0xf]
      %v5851 = vld [vmem:[#allocation2 + $0x7c] sm:$0xf]
      %v5852 = vld [vmem:[#allocation2 + $0x80] sm:$0xf]
      %v5853 = vld [vmem:[#allocation2 + $0x84] sm:$0xf]
      %v5854 = vld [vmem:[#allocation2 + $0x88] sm:$0xf]
      %v5855 = vld [vmem:[#allocation2 + $0x8c] sm:$0xf]
      %v5856 = vld [vmem:[#allocation2 + $0x90] sm:$0xf]
      %v5857 = vld [vmem:[#allocation2 + $0x94] sm:$0xf]
      %v5858 = vld [vmem:[#allocation2 + $0x98] sm:$0xf]
      %v5859 = vld [vmem:[%s3] sm:$0x3]
      %s5860 = scalar_lea.vmem %s3, 2
      %v5861 = vld [vmem:[%s5860] sm:$0x3]
      %v5898 = vunpack.c.l.b16 %v5823
      %v5899 = vunpack.c.l.b16 %v5824
      %v5900 = vunpack.c.l.b16 %v5825
      %v5901 = vunpack.c.l.b16 %v5826
      %v5902 = vunpack.c.l.b16 %v5827
      %v5903 = vunpack.c.l.b16 %v5828
      %v5904 = vunpack.c.l.b16 %v5829
      %v5905 = vunpack.c.l.b16 %v5830
      %v5906 = vunpack.c.l.b16 %v5831
      %v5907 = vunpack.c.l.b16 %v5832
      %v5908 = vunpack.c.l.b16 %v5833
      %v5909 = vunpack.c.l.b16 %v5834
      %v5910 = vunpack.c.l.b16 %v5835
      %v5911 = vunpack.c.l.b16 %v5836
      %v5912 = vunpack.c.l.b16 %v5837
      %v5913 = vunpack.c.l.b16 %v5838
      %v5914 = vunpack.c.l.b16 %v5839
      %v5915 = vunpack.c.l.b16 %v5840
      %v5916 = vunpack.c.l.b16 %v5841
      %v5917 = vunpack.c.l.b16 %v5842
      %v5918 = vunpack.c.l.b16 %v5843
      %v5919 = vunpack.c.l.b16 %v5844
      %v5920 = vunpack.c.l.b16 %v5845
      %v5921 = vunpack.c.l.b16 %v5846
      %v5922 = vunpack.c.l.b16 %v5847
      %v5923 = vunpack.c.l.b16 %v5848
      %v5924 = vunpack.c.l.b16 %v5849
      %v5925 = vunpack.c.l.b16 %v5850
      %v5926 = vunpack.c.l.b16 %v5851
      %v5927 = vunpack.c.l.b16 %v5852
      %v5928 = vunpack.c.l.b16 %v5853
      %v5929 = vunpack.c.l.b16 %v5854
      %v5930 = vunpack.c.l.b16 %v5855
      %v5931 = vunpack.c.l.b16 %v5856
      %v5932 = vunpack.c.l.b16 %v5857
      %v5933 = vunpack.c.l.b16 %v5858
      %v5934 = vpack.c.b16 %v5899, %v5898
      %v5935 = vpack.c.b16 %v5901, %v5900
      %v5936 = vpack.c.b16 %v5903, %v5902
      %v5937 = vpack.c.b16 %v5905, %v5904
      %v5938 = vpack.c.b16 %v5907, %v5906
      %v5939 = vpack.c.b16 %v5909, %v5908
      %v5940 = vpack.c.b16 %v5911, %v5910
      %v5941 = vpack.c.b16 %v5913, %v5912
      %v5942 = vpack.c.b16 %v5915, %v5914
      %v5943 = vpack.c.b16 %v5917, %v5916
      %v5944 = vpack.c.b16 %v5919, %v5918
      %v5945 = vpack.c.b16 %v5921, %v5920
      %v5946 = vpack.c.b16 %v5923, %v5922
      %v5947 = vpack.c.b16 %v5925, %v5924
      %v5948 = vpack.c.b16 %v5927, %v5926
      %v5949 = vpack.c.b16 %v5929, %v5928
      %v5950 = vpack.c.b16 %v5931, %v5930
      %v5951 = vpack.c.b16 %v5933, %v5932
      %vm5952 = vcmask 31744
      %v5954 = vsel %vm5952, %v5934, 0
      %v5957 = vsel %vm5952, %v5935, 0
      %v5960 = vsel %vm5952, %v5936, 0
      %v5963 = vsel %vm5952, %v5937, 0
      %v5966 = vsel %vm5952, %v5938, 0
      %v5969 = vsel %vm5952, %v5939, 0
      %v5972 = vsel %vm5952, %v5940, 0
      %v5975 = vsel %vm5952, %v5941, 0
      %v5978 = vsel %vm5952, %v5942, 0
      %v5981 = vsel %vm5952, %v5943, 0
      %v5984 = vsel %vm5952, %v5944, 0
      %v5987 = vsel %vm5952, %v5945, 0
      %v5990 = vsel %vm5952, %v5946, 0
      %v5993 = vsel %vm5952, %v5947, 0
      %v5996 = vsel %vm5952, %v5948, 0
      %v5999 = vsel %vm5952, %v5949, 0
      %v6002 = vsel %vm5952, %v5950, 0
      %v6005 = vsel %vm5952, %v5951, 0
      %vm6007 = vcmask 1041408
      %v6009 = vsel %vm6007, %v5861, 0
      %6011 = vmatprep.subr.bf16.mxu0 0
      %6012 = vmatpush1.bf16.msra.mxu0 %v6009
      %6013 = vmatprep.subr.bf16.mxu0 0
      %6014 = vmatpush1.bf16.msra.mxu0 0
      %6015 = vmatprep.subr.bf16.mxu0 0
      %6016 = vmatpush1.bf16.msra.mxu0 0
      %6017 = vmatprep.subr.bf16.mxu0 0
      %6018 = vmatpush1.bf16.msra.mxu0 0
      %6019 = vmatprep.subr.bf16.mxu0 0
      %6020 = vmatpush1.bf16.msra.mxu0 0
      %6021 = vmatprep.subr.bf16.mxu0 0
      %6022 = vmatpush1.bf16.msra.mxu0 0
      %6023 = vmatprep.subr.bf16.mxu0 0
      %6024 = vmatpush1.bf16.msra.mxu0 0
      %6025 = vmatprep.subr.bf16.mxu0 0
      %6026 = vmatpush1.bf16.msra.mxu0 0
      %6027 = vmatprep.subr.bf16.mxu0 0
      %6028 = vmatpush1.bf16.msra.mxu0 0
      %6029 = vmatprep.subr.bf16.mxu0 0
      %6030 = vmatpush1.bf16.msra.mxu0 0
      %6031 = vmatprep.subr.bf16.mxu0 0
      %6032 = vmatpush1.bf16.msra.mxu0 0
      %6033 = vmatprep.subr.bf16.mxu0 0
      %6034 = vmatpush1.bf16.msra.mxu0 0
      %6035 = vmatprep.subr.bf16.mxu0 0
      %6036 = vmatpush1.bf16.msra.mxu0 0
      %6037 = vmatprep.subr.bf16.mxu0 0
      %6038 = vmatpush1.bf16.msra.mxu0 0
      %6039 = vmatprep.subr.bf16.mxu0 0
      %6040 = vmatpush1.bf16.msra.mxu0 0
      %6041 = vmatprep.subr.bf16.mxu0 0
      %6042 = vmatpush1.bf16.msra.mxu0 0
      %6043 = vmatprep.mubr.bf16.mxu0 0
      %6044 = vmatmul.mubr.bf16.gmra.mrb[0].mxu0 %v5954
      %v6045 = vpop.f32.mrb[0].mxu0
      %v6046 = vadd.f32 0.0, %v6045
      %v6047 = vpop.f32.mrb[0].mxu0
      %v6048 = vpop.f32.mrb[0].mxu0
      %v6049 = vadd.f32 0.0, %v6048
      %v6050 = vpop.f32.mrb[0].mxu0
      %6051 = vmatprep.mubr.bf16.mxu0 0
      %6052 = vmatmul.mubr.bf16.gmra.mrb[0].mxu0 %v5957
      %v6053 = vpop.f32.mrb[0].mxu0
      %v6054 = vadd.f32 0.0, %v6053
      %v6055 = vpop.f32.mrb[0].mxu0
      %v6056 = vpop.f32.mrb[0].mxu0
      %v6057 = vadd.f32 0.0, %v6056
      %v6058 = vpop.f32.mrb[0].mxu0
      %6059 = vmatprep.mubr.bf16.mxu0 0
      %6060 = vmatmul.mubr.bf16.gmra.mrb[0].mxu0 %v5960
      %v6061 = vpop.f32.mrb[0].mxu0
      %v6062 = vadd.f32 0.0, %v6061
      %v6063 = vpop.f32.mrb[0].mxu0
      %v6064 = vpop.f32.mrb[0].mxu0
      %v6065 = vadd.f32 0.0, %v6064
      %v6066 = vpop.f32.mrb[0].mxu0
      %6067 = vmatprep.mubr.bf16.mxu0 0
      %6068 = vmatmul.mubr.bf16.gmra.mrb[0].mxu0 %v5963
      %v6069 = vpop.f32.mrb[0].mxu0
      %v6070 = vadd.f32 0.0, %v6069
      %v6071 = vpop.f32.mrb[0].mxu0
      %v6072 = vpop.f32.mrb[0].mxu0
      %v6073 = vadd.f32 0.0, %v6072
      %v6074 = vpop.f32.mrb[0].mxu0
      %6075 = vmatprep.mubr.bf16.mxu0 0
      %6076 = vmatmul.mubr.bf16.gmra.mrb[0].mxu0 %v5966
      %v6077 = vpop.f32.mrb[0].mxu0
      %v6078 = vadd.f32 0.0, %v6077
      %v6079 = vpop.f32.mrb[0].mxu0
      %v6080 = vpop.f32.mrb[0].mxu0
      %v6081 = vadd.f32 0.0, %v6080
      %v6082 = vpop.f32.mrb[0].mxu0
      %6083 = vmatprep.mubr.bf16.mxu0 0
      %6084 = vmatmul.mubr.bf16.gmra.mrb[0].mxu0 %v5969
      %v6085 = vpop.f32.mrb[0].mxu0
      %v6086 = vadd.f32 0.0, %v6085
      %v6087 = vpop.f32.mrb[0].mxu0
      %v6088 = vpop.f32.mrb[0].mxu0
      %v6089 = vadd.f32 0.0, %v6088
      %v6090 = vpop.f32.mrb[0].mxu0
      %6091 = vmatprep.mubr.bf16.mxu0 0
      %6092 = vmatmul.mubr.bf16.gmra.mrb[0].mxu0 %v5972
      %v6093 = vpop.f32.mrb[0].mxu0
      %v6094 = vadd.f32 0.0, %v6093
      %v6095 = vpop.f32.mrb[0].mxu0
      %v6096 = vpop.f32.mrb[0].mxu0
      %v6097 = vadd.f32 0.0, %v6096
      %v6098 = vpop.f32.mrb[0].mxu0
      %6099 = vmatprep.mubr.bf16.mxu0 0
      %6100 = vmatmul.mubr.bf16.gmra.mrb[0].mxu0 %v5975
      %v6101 = vpop.f32.mrb[0].mxu0
      %v6102 = vadd.f32 0.0, %v6101
      %v6103 = vpop.f32.mrb[0].mxu0
      %v6104 = vpop.f32.mrb[0].mxu0
      %v6105 = vadd.f32 0.0, %v6104
      %v6106 = vpop.f32.mrb[0].mxu0
      %6107 = vmatprep.mubr.bf16.mxu0 0
      %6108 = vmatmul.mubr.bf16.gmra.mrb[0].mxu0 %v5978
      %v6109 = vpop.f32.mrb[0].mxu0
      %v6110 = vadd.f32 0.0, %v6109
      %v6111 = vpop.f32.mrb[0].mxu0
      %v6112 = vpop.f32.mrb[0].mxu0
      %v6113 = vadd.f32 0.0, %v6112
      %v6114 = vpop.f32.mrb[0].mxu0
      %6115 = vmatprep.mubr.bf16.mxu0 0
      %6116 = vmatmul.mubr.bf16.gmra.mrb[0].mxu0 %v5981
      %v6117 = vpop.f32.mrb[0].mxu0
      %v6118 = vadd.f32 0.0, %v6117
      %v6119 = vpop.f32.mrb[0].mxu0
      %v6120 = vpop.f32.mrb[0].mxu0
      %v6121 = vadd.f32 0.0, %v6120
      %v6122 = vpop.f32.mrb[0].mxu0
      %6123 = vmatprep.mubr.bf16.mxu0 0
      %6124 = vmatmul.mubr.bf16.gmra.mrb[0].mxu0 %v5984
      %v6125 = vpop.f32.mrb[0].mxu0
      %v6126 = vadd.f32 0.0, %v6125
      %v6127 = vpop.f32.mrb[0].mxu0
      %v6128 = vpop.f32.mrb[0].mxu0
      %v6129 = vadd.f32 0.0, %v6128
      %v6130 = vpop.f32.mrb[0].mxu0
      %6131 = vmatprep.mubr.bf16.mxu0 0
      %6132 = vmatmul.mubr.bf16.gmra.mrb[0].mxu0 %v5987
      %v6133 = vpop.f32.mrb[0].mxu0
      %v6134 = vadd.f32 0.0, %v6133
      %v6135 = vpop.f32.mrb[0].mxu0
      %v6136 = vpop.f32.mrb[0].mxu0
      %v6137 = vadd.f32 0.0, %v6136
      %v6138 = vpop.f32.mrb[0].mxu0
      %6139 = vmatprep.mubr.bf16.mxu0 0
      %6140 = vmatmul.mubr.bf16.gmra.mrb[0].mxu0 %v5990
      %v6141 = vpop.f32.mrb[0].mxu0
      %v6142 = vadd.f32 0.0, %v6141
      %v6143 = vpop.f32.mrb[0].mxu0
      %v6144 = vpop.f32.mrb[0].mxu0
      %v6145 = vadd.f32 0.0, %v6144
      %v6146 = vpop.f32.mrb[0].mxu0
      %6147 = vmatprep.mubr.bf16.mxu0 0
      %6148 = vmatmul.mubr.bf16.gmra.mrb[0].mxu0 %v5993
      %v6149 = vpop.f32.mrb[0].mxu0
      %v6150 = vadd.f32 0.0, %v6149
      %v6151 = vpop.f32.mrb[0].mxu0
      %v6152 = vpop.f32.mrb[0].mxu0
      %v6153 = vadd.f32 0.0, %v6152
      %v6154 = vpop.f32.mrb[0].mxu0
      %6155 = vmatprep.mubr.bf16.mxu0 0
      %6156 = vmatmul.mubr.bf16.gmra.mrb[0].mxu0 %v5996
      %v6157 = vpop.f32.mrb[0].mxu0
      %v6158 = vadd.f32 0.0, %v6157
      %v6159 = vpop.f32.mrb[0].mxu0
      %v6160 = vpop.f32.mrb[0].mxu0
      %v6161 = vadd.f32 0.0, %v6160
      %v6162 = vpop.f32.mrb[0].mxu0
      %6163 = vmatprep.mubr.bf16.mxu0 0
      %6164 = vmatmul.mubr.bf16.gmra.mrb[0].mxu0 %v5999
      %v6165 = vpop.f32.mrb[0].mxu0
      %v6166 = vadd.f32 0.0, %v6165
      %v6167 = vpop.f32.mrb[0].mxu0
      %v6168 = vpop.f32.mrb[0].mxu0
      %v6169 = vadd.f32 0.0, %v6168
      %v6170 = vpop.f32.mrb[0].mxu0
      %6171 = vmatprep.mubr.bf16.mxu0 0
      %6172 = vmatmul.mubr.bf16.gmra.mrb[0].mxu0 %v6002
      %v6173 = vpop.f32.mrb[0].mxu0
      %v6174 = vadd.f32 0.0, %v6173
      %v6175 = vpop.f32.mrb[0].mxu0
      %v6176 = vpop.f32.mrb[0].mxu0
      %v6177 = vadd.f32 0.0, %v6176
      %v6178 = vpop.f32.mrb[0].mxu0
      %6179 = vmatprep.mubr.bf16.mxu0 0
      %6180 = vmatmul.mubr.bf16.gmra.mrb[0].mxu0 %v6005
      %v6181 = vpop.f32.mrb[0].mxu0
      %v6182 = vadd.f32 0.0, %v6181
      %v6183 = vpop.f32.mrb[0].mxu0
      %v6184 = vpop.f32.mrb[0].mxu0
      %v6185 = vadd.f32 0.0, %v6184
      %v6186 = vpop.f32.mrb[0].mxu0
      %6187 = vdwg.mxu0
      %v6189 = vunpack.c.l.b16 %v5822
      %v6190 = vpack.c.b16 %v5898, %v6189
      %v6191 = vpack.c.b16 %v5900, %v5899
      %v6192 = vpack.c.b16 %v5902, %v5901
      %v6193 = vpack.c.b16 %v5904, %v5903
      %v6194 = vpack.c.b16 %v5906, %v5905
      %v6195 = vpack.c.b16 %v5908, %v5907
      %v6196 = vpack.c.b16 %v5910, %v5909
      %v6197 = vpack.c.b16 %v5912, %v5911
      %v6198 = vpack.c.b16 %v5914, %v5913
      %v6199 = vpack.c.b16 %v5916, %v5915
      %v6200 = vpack.c.b16 %v5918, %v5917
      %v6201 = vpack.c.b16 %v5920, %v5919
      %v6202 = vpack.c.b16 %v5922, %v5921
      %v6203 = vpack.c.b16 %v5924, %v5923
      %v6204 = vpack.c.b16 %v5926, %v5925
      %v6205 = vpack.c.b16 %v5928, %v5927
      %v6206 = vpack.c.b16 %v5930, %v5929
      %v6207 = vpack.c.b16 %v5932, %v5931
      %v6208 = vpack.c.b16 %v5933, %v5933
      %v6210 = vshrl.u32 %v6190, 16
      %v6212 = vrot.slane %v6210, 3
      %v6213 = vshll.u32 %v6190, 16
      %v6215 = vrot.slane %v6213, 4
      %v6216 = vor.u32 %v6212, %v6215
      %v6218 = vshrl.u32 %v6191, 16
      %v6220 = vrot.slane %v6218, 3
      %v6221 = vshll.u32 %v6191, 16
      %v6223 = vrot.slane %v6221, 4
      %v6224 = vor.u32 %v6220, %v6223
      %v6225 = vsel %vm1232, %v6216, %v6224
      %v6227 = vshrl.u32 %v6192, 16
      %v6229 = vrot.slane %v6227, 3
      %v6230 = vshll.u32 %v6192, 16
      %v6232 = vrot.slane %v6230, 4
      %v6233 = vor.u32 %v6229, %v6232
      %v6234 = vsel %vm1232, %v6224, %v6233
      %v6236 = vshrl.u32 %v6193, 16
      %v6238 = vrot.slane %v6236, 3
      %v6239 = vshll.u32 %v6193, 16
      %v6241 = vrot.slane %v6239, 4
      %v6242 = vor.u32 %v6238, %v6241
      %v6243 = vsel %vm1232, %v6233, %v6242
      %v6245 = vshrl.u32 %v6194, 16
      %v6247 = vrot.slane %v6245, 3
      %v6248 = vshll.u32 %v6194, 16
      %v6250 = vrot.slane %v6248, 4
      %v6251 = vor.u32 %v6247, %v6250
      %v6252 = vsel %vm1232, %v6242, %v6251
      %v6254 = vshrl.u32 %v6195, 16
      %v6256 = vrot.slane %v6254, 3
      %v6257 = vshll.u32 %v6195, 16
      %v6259 = vrot.slane %v6257, 4
      %v6260 = vor.u32 %v6256, %v6259
      %v6261 = vsel %vm1232, %v6251, %v6260
      %v6263 = vshrl.u32 %v6196, 16
      %v6265 = vrot.slane %v6263, 3
      %v6266 = vshll.u32 %v6196, 16
      %v6268 = vrot.slane %v6266, 4
      %v6269 = vor.u32 %v6265, %v6268
      %v6270 = vsel %vm1232, %v6260, %v6269
      %v6272 = vshrl.u32 %v6197, 16
      %v6274 = vrot.slane %v6272, 3
      %v6275 = vshll.u32 %v6197, 16
      %v6277 = vrot.slane %v6275, 4
      %v6278 = vor.u32 %v6274, %v6277
      %v6279 = vsel %vm1232, %v6269, %v6278
      %v6281 = vshrl.u32 %v6198, 16
      %v6283 = vrot.slane %v6281, 3
      %v6284 = vshll.u32 %v6198, 16
      %v6286 = vrot.slane %v6284, 4
      %v6287 = vor.u32 %v6283, %v6286
      %v6288 = vsel %vm1232, %v6278, %v6287
      %v6290 = vshrl.u32 %v6199, 16
      %v6292 = vrot.slane %v6290, 3
      %v6293 = vshll.u32 %v6199, 16
      %v6295 = vrot.slane %v6293, 4
      %v6296 = vor.u32 %v6292, %v6295
      %v6297 = vsel %vm1232, %v6287, %v6296
      %v6299 = vshrl.u32 %v6200, 16
      %v6301 = vrot.slane %v6299, 3
      %v6302 = vshll.u32 %v6200, 16
      %v6304 = vrot.slane %v6302, 4
      %v6305 = vor.u32 %v6301, %v6304
      %v6306 = vsel %vm1232, %v6296, %v6305
      %v6308 = vshrl.u32 %v6201, 16
      %v6310 = vrot.slane %v6308, 3
      %v6311 = vshll.u32 %v6201, 16
      %v6313 = vrot.slane %v6311, 4
      %v6314 = vor.u32 %v6310, %v6313
      %v6315 = vsel %vm1232, %v6305, %v6314
      %v6317 = vshrl.u32 %v6202, 16
      %v6319 = vrot.slane %v6317, 3
      %v6320 = vshll.u32 %v6202, 16
      %v6322 = vrot.slane %v6320, 4
      %v6323 = vor.u32 %v6319, %v6322
      %v6324 = vsel %vm1232, %v6314, %v6323
      %v6326 = vshrl.u32 %v6203, 16
      %v6328 = vrot.slane %v6326, 3
      %v6329 = vshll.u32 %v6203, 16
      %v6331 = vrot.slane %v6329, 4
      %v6332 = vor.u32 %v6328, %v6331
      %v6333 = vsel %vm1232, %v6323, %v6332
      %v6335 = vshrl.u32 %v6204, 16
      %v6337 = vrot.slane %v6335, 3
      %v6338 = vshll.u32 %v6204, 16
      %v6340 = vrot.slane %v6338, 4
      %v6341 = vor.u32 %v6337, %v6340
      %v6342 = vsel %vm1232, %v6332, %v6341
      %v6344 = vshrl.u32 %v6205, 16
      %v6346 = vrot.slane %v6344, 3
      %v6347 = vshll.u32 %v6205, 16
      %v6349 = vrot.slane %v6347, 4
      %v6350 = vor.u32 %v6346, %v6349
      %v6351 = vsel %vm1232, %v6341, %v6350
      %v6353 = vshrl.u32 %v6206, 16
      %v6355 = vrot.slane %v6353, 3
      %v6356 = vshll.u32 %v6206, 16
      %v6358 = vrot.slane %v6356, 4
      %v6359 = vor.u32 %v6355, %v6358
      %v6360 = vsel %vm1232, %v6350, %v6359
      %v6362 = vshrl.u32 %v6207, 16
      %v6364 = vrot.slane %v6362, 3
      %v6365 = vshll.u32 %v6207, 16
      %v6367 = vrot.slane %v6365, 4
      %v6368 = vor.u32 %v6364, %v6367
      %v6369 = vsel %vm1232, %v6359, %v6368
      %v6371 = vshrl.u32 %v6208, 16
      %v6373 = vrot.slane %v6371, 3
      %v6374 = vshll.u32 %v6208, 16
      %v6376 = vrot.slane %v6374, 4
      %v6377 = vor.u32 %v6373, %v6376
      %v6378 = vsel %vm1232, %v6368, %v6377
      %v6380 = vsel %vm5952, %v6225, 0
      %v6383 = vsel %vm5952, %v6234, 0
      %v6386 = vsel %vm5952, %v6243, 0
      %v6389 = vsel %vm5952, %v6252, 0
      %v6392 = vsel %vm5952, %v6261, 0
      %v6395 = vsel %vm5952, %v6270, 0
      %v6398 = vsel %vm5952, %v6279, 0
      %v6401 = vsel %vm5952, %v6288, 0
      %v6404 = vsel %vm5952, %v6297, 0
      %v6407 = vsel %vm5952, %v6306, 0
      %v6410 = vsel %vm5952, %v6315, 0
      %v6413 = vsel %vm5952, %v6324, 0
      %v6416 = vsel %vm5952, %v6333, 0
      %v6419 = vsel %vm5952, %v6342, 0
      %v6422 = vsel %vm5952, %v6351, 0
      %v6425 = vsel %vm5952, %v6360, 0
      %v6428 = vsel %vm5952, %v6369, 0
      %v6431 = vsel %vm5952, %v6378, 0
      %v6434 = vsel %vm6007, %v5859, 0
      %6436 = vmatprep.subr.bf16.mxu0 0
      %6437 = vmatpush1.bf16.msra.mxu0 %v6434
      %6438 = vmatprep.subr.bf16.mxu0 0
      %6439 = vmatpush1.bf16.msra.mxu0 0
      %6440 = vmatprep.subr.bf16.mxu0 0
      %6441 = vmatpush1.bf16.msra.mxu0 0
      %6442 = vmatprep.subr.bf16.mxu0 0
      %6443 = vmatpush1.bf16.msra.mxu0 0
      %6444 = vmatprep.subr.bf16.mxu0 0
      %6445 = vmatpush1.bf16.msra.mxu0 0
      %6446 = vmatprep.subr.bf16.mxu0 0
      %6447 = vmatpush1.bf16.msra.mxu0 0
      %6448 = vmatprep.subr.bf16.mxu0 0
      %6449 = vmatpush1.bf16.msra.mxu0 0
      %6450 = vmatprep.subr.bf16.mxu0 0
      %6451 = vmatpush1.bf16.msra.mxu0 0
      %6452 = vmatprep.subr.bf16.mxu0 0
      %6453 = vmatpush1.bf16.msra.mxu0 0
      %6454 = vmatprep.subr.bf16.mxu0 0
      %6455 = vmatpush1.bf16.msra.mxu0 0
      %6456 = vmatprep.subr.bf16.mxu0 0
      %6457 = vmatpush1.bf16.msra.mxu0 0
      %6458 = vmatprep.subr.bf16.mxu0 0
      %6459 = vmatpush1.bf16.msra.mxu0 0
      %6460 = vmatprep.subr.bf16.mxu0 0
      %6461 = vmatpush1.bf16.msra.mxu0 0
      %6462 = vmatprep.subr.bf16.mxu0 0
      %6463 = vmatpush1.bf16.msra.mxu0 0
      %6464 = vmatprep.subr.bf16.mxu0 0
      %6465 = vmatpush1.bf16.msra.mxu0 0
      %6466 = vmatprep.subr.bf16.mxu0 0
      %6467 = vmatpush1.bf16.msra.mxu0 0
      %6468 = vmatprep.mubr.bf16.mxu0 0
      %6469 = vmatmul.mubr.bf16.gmra.mrb[0].mxu0 %v6380
      %v6470 = vpop.f32.mrb[0].mxu0
      %v6471 = vadd.f32 %v6046, %v6470
      %v6472 = vpop.f32.mrb[0].mxu0
      %v6473 = vpop.f32.mrb[0].mxu0
      %v6474 = vadd.f32 %v6049, %v6473
      %v6475 = vpop.f32.mrb[0].mxu0
      %6476 = vmatprep.mubr.bf16.mxu0 0
      %6477 = vmatmul.mubr.bf16.gmra.mrb[0].mxu0 %v6383
      %v6478 = vpop.f32.mrb[0].mxu0
      %v6479 = vadd.f32 %v6054, %v6478
      %v6480 = vpop.f32.mrb[0].mxu0
      %v6481 = vpop.f32.mrb[0].mxu0
      %v6482 = vadd.f32 %v6057, %v6481
      %v6483 = vpop.f32.mrb[0].mxu0
      %6484 = vmatprep.mubr.bf16.mxu0 0
      %6485 = vmatmul.mubr.bf16.gmra.mrb[0].mxu0 %v6386
      %v6486 = vpop.f32.mrb[0].mxu0
      %v6487 = vadd.f32 %v6062, %v6486
      %v6488 = vpop.f32.mrb[0].mxu0
      %v6489 = vpop.f32.mrb[0].mxu0
      %v6490 = vadd.f32 %v6065, %v6489
      %v6491 = vpop.f32.mrb[0].mxu0
      %6492 = vmatprep.mubr.bf16.mxu0 0
      %6493 = vmatmul.mubr.bf16.gmra.mrb[0].mxu0 %v6389
      %v6494 = vpop.f32.mrb[0].mxu0
      %v6495 = vadd.f32 %v6070, %v6494
      %v6496 = vpop.f32.mrb[0].mxu0
      %v6497 = vpop.f32.mrb[0].mxu0
      %v6498 = vadd.f32 %v6073, %v6497
      %v6499 = vpop.f32.mrb[0].mxu0
      %6500 = vmatprep.mubr.bf16.mxu0 0
      %6501 = vmatmul.mubr.bf16.gmra.mrb[0].mxu0 %v6392
      %v6502 = vpop.f32.mrb[0].mxu0
      %v6503 = vadd.f32 %v6078, %v6502
      %v6504 = vpop.f32.mrb[0].mxu0
      %v6505 = vpop.f32.mrb[0].mxu0
      %v6506 = vadd.f32 %v6081, %v6505
      %v6507 = vpop.f32.mrb[0].mxu0
      %6508 = vmatprep.mubr.bf16.mxu0 0
      %6509 = vmatmul.mubr.bf16.gmra.mrb[0].mxu0 %v6395
      %v6510 = vpop.f32.mrb[0].mxu0
      %v6511 = vadd.f32 %v6086, %v6510
      %v6512 = vpop.f32.mrb[0].mxu0
      %v6513 = vpop.f32.mrb[0].mxu0
      %v6514 = vadd.f32 %v6089, %v6513
      %v6515 = vpop.f32.mrb[0].mxu0
      %6516 = vmatprep.mubr.bf16.mxu0 0
      %6517 = vmatmul.mubr.bf16.gmra.mrb[0].mxu0 %v6398
      %v6518 = vpop.f32.mrb[0].mxu0
      %v6519 = vadd.f32 %v6094, %v6518
      %v6520 = vpop.f32.mrb[0].mxu0
      %v6521 = vpop.f32.mrb[0].mxu0
      %v6522 = vadd.f32 %v6097, %v6521
      %v6523 = vpop.f32.mrb[0].mxu0
      %6524 = vmatprep.mubr.bf16.mxu0 0
      %6525 = vmatmul.mubr.bf16.gmra.mrb[0].mxu0 %v6401
      %v6526 = vpop.f32.mrb[0].mxu0
      %v6527 = vadd.f32 %v6102, %v6526
      %v6528 = vpop.f32.mrb[0].mxu0
      %v6529 = vpop.f32.mrb[0].mxu0
      %v6530 = vadd.f32 %v6105, %v6529
      %v6531 = vpop.f32.mrb[0].mxu0
      %6532 = vmatprep.mubr.bf16.mxu0 0
      %6533 = vmatmul.mubr.bf16.gmra.mrb[0].mxu0 %v6404
      %v6534 = vpop.f32.mrb[0].mxu0
      %v6535 = vadd.f32 %v6110, %v6534
      %v6536 = vpop.f32.mrb[0].mxu0
      %v6537 = vpop.f32.mrb[0].mxu0
      %v6538 = vadd.f32 %v6113, %v6537
      %v6539 = vpop.f32.mrb[0].mxu0
      %6540 = vmatprep.mubr.bf16.mxu0 0
      %6541 = vmatmul.mubr.bf16.gmra.mrb[0].mxu0 %v6407
      %v6542 = vpop.f32.mrb[0].mxu0
      %v6543 = vadd.f32 %v6118, %v6542
      %v6544 = vpop.f32.mrb[0].mxu0
      %v6545 = vpop.f32.mrb[0].mxu0
      %v6546 = vadd.f32 %v6121, %v6545
      %v6547 = vpop.f32.mrb[0].mxu0
      %6548 = vmatprep.mubr.bf16.mxu0 0
      %6549 = vmatmul.mubr.bf16.gmra.mrb[0].mxu0 %v6410
      %v6550 = vpop.f32.mrb[0].mxu0
      %v6551 = vadd.f32 %v6126, %v6550
      %v6552 = vpop.f32.mrb[0].mxu0
      %v6553 = vpop.f32.mrb[0].mxu0
      %v6554 = vadd.f32 %v6129, %v6553
      %v6555 = vpop.f32.mrb[0].mxu0
      %6556 = vmatprep.mubr.bf16.mxu0 0
      %6557 = vmatmul.mubr.bf16.gmra.mrb[0].mxu0 %v6413
      %v6558 = vpop.f32.mrb[0].mxu0
      %v6559 = vadd.f32 %v6134, %v6558
      %v6560 = vpop.f32.mrb[0].mxu0
      %v6561 = vpop.f32.mrb[0].mxu0
      %v6562 = vadd.f32 %v6137, %v6561
      %v6563 = vpop.f32.mrb[0].mxu0
      %6564 = vmatprep.mubr.bf16.mxu0 0
      %6565 = vmatmul.mubr.bf16.gmra.mrb[0].mxu0 %v6416
      %v6566 = vpop.f32.mrb[0].mxu0
      %v6567 = vadd.f32 %v6142, %v6566
      %v6568 = vpop.f32.mrb[0].mxu0
      %v6569 = vpop.f32.mrb[0].mxu0
      %v6570 = vadd.f32 %v6145, %v6569
      %v6571 = vpop.f32.mrb[0].mxu0
      %6572 = vmatprep.mubr.bf16.mxu0 0
      %6573 = vmatmul.mubr.bf16.gmra.mrb[0].mxu0 %v6419
      %v6574 = vpop.f32.mrb[0].mxu0
      %v6575 = vadd.f32 %v6150, %v6574
      %v6576 = vpop.f32.mrb[0].mxu0
      %v6577 = vpop.f32.mrb[0].mxu0
      %v6578 = vadd.f32 %v6153, %v6577
      %v6579 = vpop.f32.mrb[0].mxu0
      %6580 = vmatprep.mubr.bf16.mxu0 0
      %6581 = vmatmul.mubr.bf16.gmra.mrb[0].mxu0 %v6422
      %v6582 = vpop.f32.mrb[0].mxu0
      %v6583 = vadd.f32 %v6158, %v6582
      %v6584 = vpop.f32.mrb[0].mxu0
      %v6585 = vpop.f32.mrb[0].mxu0
      %v6586 = vadd.f32 %v6161, %v6585
      %v6587 = vpop.f32.mrb[0].mxu0
      %6588 = vmatprep.mubr.bf16.mxu0 0
      %6589 = vmatmul.mubr.bf16.gmra.mrb[0].mxu0 %v6425
      %v6590 = vpop.f32.mrb[0].mxu0
      %v6591 = vadd.f32 %v6166, %v6590
      %v6592 = vpop.f32.mrb[0].mxu0
      %v6593 = vpop.f32.mrb[0].mxu0
      %v6594 = vadd.f32 %v6169, %v6593
      %v6595 = vpop.f32.mrb[0].mxu0
      %6596 = vmatprep.mubr.bf16.mxu0 0
      %6597 = vmatmul.mubr.bf16.gmra.mrb[0].mxu0 %v6428
      %v6598 = vpop.f32.mrb[0].mxu0
      %v6599 = vadd.f32 %v6174, %v6598
      %v6600 = vpop.f32.mrb[0].mxu0
      %v6601 = vpop.f32.mrb[0].mxu0
      %v6602 = vadd.f32 %v6177, %v6601
      %v6603 = vpop.f32.mrb[0].mxu0
      %6604 = vmatprep.mubr.bf16.mxu0 0
      %6605 = vmatmul.mubr.bf16.gmra.mrb[0].mxu0 %v6431
      %v6606 = vpop.f32.mrb[0].mxu0
      %v6607 = vadd.f32 %v6182, %v6606
      %v6608 = vpop.f32.mrb[0].mxu0
      %v6609 = vpop.f32.mrb[0].mxu0
      %v6610 = vadd.f32 %v6185, %v6609
      %v6611 = vpop.f32.mrb[0].mxu0
      %6612 = vdwg.mxu0
      %v6613 = vld [vmem:[#allocation2 + $0xc] sm:$0xf]
      %v6614 = vld [vmem:[#allocation2 + $0x10] sm:$0xf]
      %v6615 = vld [vmem:[#allocation2 + $0x14] sm:$0xf]
      %v6616 = vld [vmem:[#allocation2 + $0x18] sm:$0xf]
      %v6617 = vld [vmem:[#allocation2 + $0x1c] sm:$0xf]
      %v6618 = vld [vmem:[#allocation2 + $0x20] sm:$0xf]
      %v6619 = vld [vmem:[#allocation2 + $0x24] sm:$0xf]
      %v6620 = vld [vmem:[#allocation2 + $0x28] sm:$0xf]
      %v6621 = vld [vmem:[#allocation2 + $0x2c] sm:$0xf]
      %v6622 = vld [vmem:[#allocation2 + $0x30] sm:$0xf]
      %v6623 = vld [vmem:[#allocation2 + $0x34] sm:$0xf]
      %v6624 = vld [vmem:[#allocation2 + $0x38] sm:$0xf]
      %v6625 = vld [vmem:[#allocation2 + $0x3c] sm:$0xf]
      %v6626 = vld [vmem:[#allocation2 + $0x40] sm:$0xf]
      %v6627 = vld [vmem:[#allocation2 + $0x44] sm:$0xf]
      %v6628 = vld [vmem:[#allocation2 + $0x48] sm:$0xf]
      %v6629 = vld [vmem:[#allocation2 + $0x4c] sm:$0xf]
      %v6630 = vld [vmem:[#allocation2 + $0x50] sm:$0xf]
      %v6631 = vld [vmem:[#allocation2 + $0x54] sm:$0xf]
      %v6632 = vld [vmem:[#allocation2 + $0x58] sm:$0xf]
      %v6633 = vld [vmem:[#allocation2 + $0x5c] sm:$0xf]
      %v6634 = vld [vmem:[#allocation2 + $0x60] sm:$0xf]
      %v6635 = vld [vmem:[#allocation2 + $0x64] sm:$0xf]
      %v6636 = vld [vmem:[#allocation2 + $0x68] sm:$0xf]
      %v6637 = vld [vmem:[#allocation2 + $0x6c] sm:$0xf]
      %v6638 = vld [vmem:[#allocation2 + $0x70] sm:$0xf]
      %v6639 = vld [vmem:[#allocation2 + $0x74] sm:$0xf]
      %v6640 = vld [vmem:[#allocation2 + $0x78] sm:$0xf]
      %v6641 = vld [vmem:[#allocation2 + $0x7c] sm:$0xf]
      %v6642 = vld [vmem:[#allocation2 + $0x80] sm:$0xf]
      %v6643 = vld [vmem:[#allocation2 + $0x84] sm:$0xf]
      %v6644 = vld [vmem:[#allocation2 + $0x88] sm:$0xf]
      %v6645 = vld [vmem:[#allocation2 + $0x8c] sm:$0xf]
      %v6646 = vld [vmem:[#allocation2 + $0x90] sm:$0xf]
      %v6647 = vld [vmem:[#allocation2 + $0x94] sm:$0xf]
      %v6648 = vld [vmem:[#allocation2 + $0x98] sm:$0xf]
      %v6649 = vld [vmem:[#allocation2 + $0x9c] sm:$0x1]
      %s6650 = scalar_lea.vmem %s3, 4
      %v6651 = vld [vmem:[%s6650] sm:$0x3]
      %v6689 = vunpack.c.l.b16 %v6613
      %v6690 = vunpack.c.l.b16 %v6614
      %v6691 = vunpack.c.l.b16 %v6615
      %v6692 = vunpack.c.l.b16 %v6616
      %v6693 = vunpack.c.l.b16 %v6617
      %v6694 = vunpack.c.l.b16 %v6618
      %v6695 = vunpack.c.l.b16 %v6619
      %v6696 = vunpack.c.l.b16 %v6620
      %v6697 = vunpack.c.l.b16 %v6621
      %v6698 = vunpack.c.l.b16 %v6622
      %v6699 = vunpack.c.l.b16 %v6623
      %v6700 = vunpack.c.l.b16 %v6624
      %v6701 = vunpack.c.l.b16 %v6625
      %v6702 = vunpack.c.l.b16 %v6626
      %v6703 = vunpack.c.l.b16 %v6627
      %v6704 = vunpack.c.l.b16 %v6628
      %v6705 = vunpack.c.l.b16 %v6629
      %v6706 = vunpack.c.l.b16 %v6630
      %v6707 = vunpack.c.l.b16 %v6631
      %v6708 = vunpack.c.l.b16 %v6632
      %v6709 = vunpack.c.l.b16 %v6633
      %v6710 = vunpack.c.l.b16 %v6634
      %v6711 = vunpack.c.l.b16 %v6635
      %v6712 = vunpack.c.l.b16 %v6636
      %v6713 = vunpack.c.l.b16 %v6637
      %v6714 = vunpack.c.l.b16 %v6638
      %v6715 = vunpack.c.l.b16 %v6639
      %v6716 = vunpack.c.l.b16 %v6640
      %v6717 = vunpack.c.l.b16 %v6641
      %v6718 = vunpack.c.l.b16 %v6642
      %v6719 = vunpack.c.l.b16 %v6643
      %v6720 = vunpack.c.l.b16 %v6644
      %v6721 = vunpack.c.l.b16 %v6645
      %v6722 = vunpack.c.l.b16 %v6646
      %v6723 = vunpack.c.l.b16 %v6647
      %v6724 = vunpack.c.l.b16 %v6648
      %v6725 = vunpack.c.l.b16 %v6649
      %v6726 = vpack.c.b16 %v6690, %v6689
      %v6727 = vpack.c.b16 %v6692, %v6691
      %v6728 = vpack.c.b16 %v6694, %v6693
      %v6729 = vpack.c.b16 %v6696, %v6695
      %v6730 = vpack.c.b16 %v6698, %v6697
      %v6731 = vpack.c.b16 %v6700, %v6699
      %v6732 = vpack.c.b16 %v6702, %v6701
      %v6733 = vpack.c.b16 %v6704, %v6703
      %v6734 = vpack.c.b16 %v6706, %v6705
      %v6735 = vpack.c.b16 %v6708, %v6707
      %v6736 = vpack.c.b16 %v6710, %v6709
      %v6737 = vpack.c.b16 %v6712, %v6711
      %v6738 = vpack.c.b16 %v6714, %v6713
      %v6739 = vpack.c.b16 %v6716, %v6715
      %v6740 = vpack.c.b16 %v6718, %v6717
      %v6741 = vpack.c.b16 %v6720, %v6719
      %v6742 = vpack.c.b16 %v6722, %v6721
      %v6743 = vpack.c.b16 %v6724, %v6723
      %v6744 = vpack.c.b16 %v6725, %v6725
      %v6746 = vshrl.u32 %v6726, 16
      %v6748 = vshll.u32 %v6726, 16
      %v6750 = vrot.slane %v6748, 1
      %v6751 = vor.u32 %v6746, %v6750
      %v6753 = vshll.u32 %v6727, 16
      %v6755 = vrot.slane %v6753, 1
      %v6756 = vsel %vm2613, %v6751, %v6755
      %v6757 = vshrl.u32 %v6727, 16
      %v6759 = vor.u32 %v6757, %v6755
      %v6761 = vshll.u32 %v6728, 16
      %v6763 = vrot.slane %v6761, 1
      %v6764 = vsel %vm2613, %v6759, %v6763
      %v6765 = vshrl.u32 %v6728, 16
      %v6767 = vor.u32 %v6765, %v6763
      %v6769 = vshll.u32 %v6729, 16
      %v6771 = vrot.slane %v6769, 1
      %v6772 = vsel %vm2613, %v6767, %v6771
      %v6773 = vshrl.u32 %v6729, 16
      %v6775 = vor.u32 %v6773, %v6771
      %v6777 = vshll.u32 %v6730, 16
      %v6779 = vrot.slane %v6777, 1
      %v6780 = vsel %vm2613, %v6775, %v6779
      %v6781 = vshrl.u32 %v6730, 16
      %v6783 = vor.u32 %v6781, %v6779
      %v6785 = vshll.u32 %v6731, 16
      %v6787 = vrot.slane %v6785, 1
      %v6788 = vsel %vm2613, %v6783, %v6787
      %v6789 = vshrl.u32 %v6731, 16
      %v6791 = vor.u32 %v6789, %v6787
      %v6793 = vshll.u32 %v6732, 16
      %v6795 = vrot.slane %v6793, 1
      %v6796 = vsel %vm2613, %v6791, %v6795
      %v6797 = vshrl.u32 %v6732, 16
      %v6799 = vor.u32 %v6797, %v6795
      %v6801 = vshll.u32 %v6733, 16
      %v6803 = vrot.slane %v6801, 1
      %v6804 = vsel %vm2613, %v6799, %v6803
      %v6805 = vshrl.u32 %v6733, 16
      %v6807 = vor.u32 %v6805, %v6803
      %v6809 = vshll.u32 %v6734, 16
      %v6811 = vrot.slane %v6809, 1
      %v6812 = vsel %vm2613, %v6807, %v6811
      %v6813 = vshrl.u32 %v6734, 16
      %v6815 = vor.u32 %v6813, %v6811
      %v6817 = vshll.u32 %v6735, 16
      %v6819 = vrot.slane %v6817, 1
      %v6820 = vsel %vm2613, %v6815, %v6819
      %v6821 = vshrl.u32 %v6735, 16
      %v6823 = vor.u32 %v6821, %v6819
      %v6825 = vshll.u32 %v6736, 16
      %v6827 = vrot.slane %v6825, 1
      %v6828 = vsel %vm2613, %v6823, %v6827
      %v6829 = vshrl.u32 %v6736, 16
      %v6831 = vor.u32 %v6829, %v6827
      %v6833 = vshll.u32 %v6737, 16
      %v6835 = vrot.slane %v6833, 1
      %v6836 = vsel %vm2613, %v6831, %v6835
      %v6837 = vshrl.u32 %v6737, 16
      %v6839 = vor.u32 %v6837, %v6835
      %v6841 = vshll.u32 %v6738, 16
      %v6843 = vrot.slane %v6841, 1
      %v6844 = vsel %vm2613, %v6839, %v6843
      %v6845 = vshrl.u32 %v6738, 16
      %v6847 = vor.u32 %v6845, %v6843
      %v6849 = vshll.u32 %v6739, 16
      %v6851 = vrot.slane %v6849, 1
      %v6852 = vsel %vm2613, %v6847, %v6851
      %v6853 = vshrl.u32 %v6739, 16
      %v6855 = vor.u32 %v6853, %v6851
      %v6857 = vshll.u32 %v6740, 16
      %v6859 = vrot.slane %v6857, 1
      %v6860 = vsel %vm2613, %v6855, %v6859
      %v6861 = vshrl.u32 %v6740, 16
      %v6863 = vor.u32 %v6861, %v6859
      %v6865 = vshll.u32 %v6741, 16
      %v6867 = vrot.slane %v6865, 1
      %v6868 = vsel %vm2613, %v6863, %v6867
      %v6869 = vshrl.u32 %v6741, 16
      %v6871 = vor.u32 %v6869, %v6867
      %v6873 = vshll.u32 %v6742, 16
      %v6875 = vrot.slane %v6873, 1
      %v6876 = vsel %vm2613, %v6871, %v6875
      %v6877 = vshrl.u32 %v6742, 16
      %v6879 = vor.u32 %v6877, %v6875
      %v6881 = vshll.u32 %v6743, 16
      %v6883 = vrot.slane %v6881, 1
      %v6884 = vsel %vm2613, %v6879, %v6883
      %v6885 = vshrl.u32 %v6743, 16
      %v6887 = vor.u32 %v6885, %v6883
      %v6889 = vshll.u32 %v6744, 16
      %v6891 = vrot.slane %v6889, 1
      %v6892 = vsel %vm2613, %v6887, %v6891
      %v6894 = vsel %vm5952, %v6756, 0
      %v6897 = vsel %vm5952, %v6764, 0
      %v6900 = vsel %vm5952, %v6772, 0
      %v6903 = vsel %vm5952, %v6780, 0
      %v6906 = vsel %vm5952, %v6788, 0
      %v6909 = vsel %vm5952, %v6796, 0
      %v6912 = vsel %vm5952, %v6804, 0
      %v6915 = vsel %vm5952, %v6812, 0
      %v6918 = vsel %vm5952, %v6820, 0
      %v6921 = vsel %vm5952, %v6828, 0
      %v6924 = vsel %vm5952, %v6836, 0
      %v6927 = vsel %vm5952, %v6844, 0
      %v6930 = vsel %vm5952, %v6852, 0
      %v6933 = vsel %vm5952, %v6860, 0
      %v6936 = vsel %vm5952, %v6868, 0
      %v6939 = vsel %vm5952, %v6876, 0
      %v6942 = vsel %vm5952, %v6884, 0
      %v6945 = vsel %vm5952, %v6892, 0
      %v6948 = vsel %vm6007, %v6651, 0
      %6950 = vmatprep.subr.bf16.mxu0 0
      %6951 = vmatpush1.bf16.msra.mxu0 %v6948
      %6952 = vmatprep.subr.bf16.mxu0 0
      %6953 = vmatpush1.bf16.msra.mxu0 0
      %6954 = vmatprep.subr.bf16.mxu0 0
      %6955 = vmatpush1.bf16.msra.mxu0 0
      %6956 = vmatprep.subr.bf16.mxu0 0
      %6957 = vmatpush1.bf16.msra.mxu0 0
      %6958 = vmatprep.subr.bf16.mxu0 0
      %6959 = vmatpush1.bf16.msra.mxu0 0
      %6960 = vmatprep.subr.bf16.mxu0 0
      %6961 = vmatpush1.bf16.msra.mxu0 0
      %6962 = vmatprep.subr.bf16.mxu0 0
      %6963 = vmatpush1.bf16.msra.mxu0 0
      %6964 = vmatprep.subr.bf16.mxu0 0
      %6965 = vmatpush1.bf16.msra.mxu0 0
      %6966 = vmatprep.subr.bf16.mxu0 0
      %6967 = vmatpush1.bf16.msra.mxu0 0
      %6968 = vmatprep.subr.bf16.mxu0 0
      %6969 = vmatpush1.bf16.msra.mxu0 0
      %6970 = vmatprep.subr.bf16.mxu0 0
      %6971 = vmatpush1.bf16.msra.mxu0 0
      %6972 = vmatprep.subr.bf16.mxu0 0
      %6973 = vmatpush1.bf16.msra.mxu0 0
      %6974 = vmatprep.subr.bf16.mxu0 0
      %6975 = vmatpush1.bf16.msra.mxu0 0
      %6976 = vmatprep.subr.bf16.mxu0 0
      %6977 = vmatpush1.bf16.msra.mxu0 0
      %6978 = vmatprep.subr.bf16.mxu0 0
      %6979 = vmatpush1.bf16.msra.mxu0 0
      %6980 = vmatprep.subr.bf16.mxu0 0
      %6981 = vmatpush1.bf16.msra.mxu0 0
      %6982 = vmatprep.mubr.bf16.mxu0 0
      %6983 = vmatmul.mubr.bf16.gmra.mrb[0].mxu0 %v6894
      %v6984 = vpop.f32.mrb[0].mxu0
      %v6985 = vadd.f32 0.0, %v6984
      %v6986 = vpop.f32.mrb[0].mxu0
      %v6987 = vpop.f32.mrb[0].mxu0
      %v6988 = vadd.f32 0.0, %v6987
      %v6989 = vpop.f32.mrb[0].mxu0
      %6990 = vmatprep.mubr.bf16.mxu0 0
      %6991 = vmatmul.mubr.bf16.gmra.mrb[0].mxu0 %v6897
      %v6992 = vpop.f32.mrb[0].mxu0
      %v6993 = vadd.f32 0.0, %v6992
      %v6994 = vpop.f32.mrb[0].mxu0
      %v6995 = vpop.f32.mrb[0].mxu0
      %v6996 = vadd.f32 0.0, %v6995
      %v6997 = vpop.f32.mrb[0].mxu0
      %6998 = vmatprep.mubr.bf16.mxu0 0
      %6999 = vmatmul.mubr.bf16.gmra.mrb[0].mxu0 %v6900
      %v7000 = vpop.f32.mrb[0].mxu0
      %v7001 = vadd.f32 0.0, %v7000
      %v7002 = vpop.f32.mrb[0].mxu0
      %v7003 = vpop.f32.mrb[0].mxu0
      %v7004 = vadd.f32 0.0, %v7003
      %v7005 = vpop.f32.mrb[0].mxu0
      %7006 = vmatprep.mubr.bf16.mxu0 0
      %7007 = vmatmul.mubr.bf16.gmra.mrb[0].mxu0 %v6903
      %v7008 = vpop.f32.mrb[0].mxu0
      %v7009 = vadd.f32 0.0, %v7008
      %v7010 = vpop.f32.mrb[0].mxu0
      %v7011 = vpop.f32.mrb[0].mxu0
      %v7012 = vadd.f32 0.0, %v7011
      %v7013 = vpop.f32.mrb[0].mxu0
      %7014 = vmatprep.mubr.bf16.mxu0 0
      %7015 = vmatmul.mubr.bf16.gmra.mrb[0].mxu0 %v6906
      %v7016 = vpop.f32.mrb[0].mxu0
      %v7017 = vadd.f32 0.0, %v7016
      %v7018 = vpop.f32.mrb[0].mxu0
      %v7019 = vpop.f32.mrb[0].mxu0
      %v7020 = vadd.f32 0.0, %v7019
      %v7021 = vpop.f32.mrb[0].mxu0
      %7022 = vmatprep.mubr.bf16.mxu0 0
      %7023 = vmatmul.mubr.bf16.gmra.mrb[0].mxu0 %v6909
      %v7024 = vpop.f32.mrb[0].mxu0
      %v7025 = vadd.f32 0.0, %v7024
      %v7026 = vpop.f32.mrb[0].mxu0
      %v7027 = vpop.f32.mrb[0].mxu0
      %v7028 = vadd.f32 0.0, %v7027
      %v7029 = vpop.f32.mrb[0].mxu0
      %7030 = vmatprep.mubr.bf16.mxu0 0
      %7031 = vmatmul.mubr.bf16.gmra.mrb[0].mxu0 %v6912
      %v7032 = vpop.f32.mrb[0].mxu0
      %v7033 = vadd.f32 0.0, %v7032
      %v7034 = vpop.f32.mrb[0].mxu0
      %v7035 = vpop.f32.mrb[0].mxu0
      %v7036 = vadd.f32 0.0, %v7035
      %v7037 = vpop.f32.mrb[0].mxu0
      %7038 = vmatprep.mubr.bf16.mxu0 0
      %7039 = vmatmul.mubr.bf16.gmra.mrb[0].mxu0 %v6915
      %v7040 = vpop.f32.mrb[0].mxu0
      %v7041 = vadd.f32 0.0, %v7040
      %v7042 = vpop.f32.mrb[0].mxu0
      %v7043 = vpop.f32.mrb[0].mxu0
      %v7044 = vadd.f32 0.0, %v7043
      %v7045 = vpop.f32.mrb[0].mxu0
      %7046 = vmatprep.mubr.bf16.mxu0 0
      %7047 = vmatmul.mubr.bf16.gmra.mrb[0].mxu0 %v6918
      %v7048 = vpop.f32.mrb[0].mxu0
      %v7049 = vadd.f32 0.0, %v7048
      %v7050 = vpop.f32.mrb[0].mxu0
      %v7051 = vpop.f32.mrb[0].mxu0
      %v7052 = vadd.f32 0.0, %v7051
      %v7053 = vpop.f32.mrb[0].mxu0
      %7054 = vmatprep.mubr.bf16.mxu0 0
      %7055 = vmatmul.mubr.bf16.gmra.mrb[0].mxu0 %v6921
      %v7056 = vpop.f32.mrb[0].mxu0
      %v7057 = vadd.f32 0.0, %v7056
      %v7058 = vpop.f32.mrb[0].mxu0
      %v7059 = vpop.f32.mrb[0].mxu0
      %v7060 = vadd.f32 0.0, %v7059
      %v7061 = vpop.f32.mrb[0].mxu0
      %7062 = vmatprep.mubr.bf16.mxu0 0
      %7063 = vmatmul.mubr.bf16.gmra.mrb[0].mxu0 %v6924
      %v7064 = vpop.f32.mrb[0].mxu0
      %v7065 = vadd.f32 0.0, %v7064
      %v7066 = vpop.f32.mrb[0].mxu0
      %v7067 = vpop.f32.mrb[0].mxu0
      %v7068 = vadd.f32 0.0, %v7067
      %v7069 = vpop.f32.mrb[0].mxu0
      %7070 = vmatprep.mubr.bf16.mxu0 0
      %7071 = vmatmul.mubr.bf16.gmra.mrb[0].mxu0 %v6927
      %v7072 = vpop.f32.mrb[0].mxu0
      %v7073 = vadd.f32 0.0, %v7072
      %v7074 = vpop.f32.mrb[0].mxu0
      %v7075 = vpop.f32.mrb[0].mxu0
      %v7076 = vadd.f32 0.0, %v7075
      %v7077 = vpop.f32.mrb[0].mxu0
      %7078 = vmatprep.mubr.bf16.mxu0 0
      %7079 = vmatmul.mubr.bf16.gmra.mrb[0].mxu0 %v6930
      %v7080 = vpop.f32.mrb[0].mxu0
      %v7081 = vadd.f32 0.0, %v7080
      %v7082 = vpop.f32.mrb[0].mxu0
      %v7083 = vpop.f32.mrb[0].mxu0
      %v7084 = vadd.f32 0.0, %v7083
      %v7085 = vpop.f32.mrb[0].mxu0
      %7086 = vmatprep.mubr.bf16.mxu0 0
      %7087 = vmatmul.mubr.bf16.gmra.mrb[0].mxu0 %v6933
      %v7088 = vpop.f32.mrb[0].mxu0
      %v7089 = vadd.f32 0.0, %v7088
      %v7090 = vpop.f32.mrb[0].mxu0
      %v7091 = vpop.f32.mrb[0].mxu0
      %v7092 = vadd.f32 0.0, %v7091
      %v7093 = vpop.f32.mrb[0].mxu0
      %7094 = vmatprep.mubr.bf16.mxu0 0
      %7095 = vmatmul.mubr.bf16.gmra.mrb[0].mxu0 %v6936
      %v7096 = vpop.f32.mrb[0].mxu0
      %v7097 = vadd.f32 0.0, %v7096
      %v7098 = vpop.f32.mrb[0].mxu0
      %v7099 = vpop.f32.mrb[0].mxu0
      %v7100 = vadd.f32 0.0, %v7099
      %v7101 = vpop.f32.mrb[0].mxu0
      %7102 = vmatprep.mubr.bf16.mxu0 0
      %7103 = vmatmul.mubr.bf16.gmra.mrb[0].mxu0 %v6939
      %v7104 = vpop.f32.mrb[0].mxu0
      %v7105 = vadd.f32 0.0, %v7104
      %v7106 = vpop.f32.mrb[0].mxu0
      %v7107 = vpop.f32.mrb[0].mxu0
      %v7108 = vadd.f32 0.0, %v7107
      %v7109 = vpop.f32.mrb[0].mxu0
      %7110 = vmatprep.mubr.bf16.mxu0 0
      %7111 = vmatmul.mubr.bf16.gmra.mrb[0].mxu0 %v6942
      %v7112 = vpop.f32.mrb[0].mxu0
      %v7113 = vadd.f32 0.0, %v7112
      %v7114 = vpop.f32.mrb[0].mxu0
      %v7115 = vpop.f32.mrb[0].mxu0
      %v7116 = vadd.f32 0.0, %v7115
      %v7117 = vpop.f32.mrb[0].mxu0
      %7118 = vmatprep.mubr.bf16.mxu0 0
      %7119 = vmatmul.mubr.bf16.gmra.mrb[0].mxu0 %v6945
      %v7120 = vpop.f32.mrb[0].mxu0
      %v7121 = vadd.f32 0.0, %v7120
      %v7122 = vpop.f32.mrb[0].mxu0
      %v7123 = vpop.f32.mrb[0].mxu0
      %v7124 = vadd.f32 0.0, %v7123
      %v7125 = vpop.f32.mrb[0].mxu0
      %7126 = vdwg.mxu0
      %v7127 = vadd.f32 %v6471, %v6985
      %v7128 = vadd.f32 %v6474, %v6988
      %v7129 = vadd.f32 %v6479, %v6993
      %v7130 = vadd.f32 %v6482, %v6996
      %v7131 = vadd.f32 %v6487, %v7001
      %v7132 = vadd.f32 %v6490, %v7004
      %v7133 = vadd.f32 %v6495, %v7009
      %v7134 = vadd.f32 %v6498, %v7012
      %v7135 = vadd.f32 %v6503, %v7017
      %v7136 = vadd.f32 %v6506, %v7020
      %v7137 = vadd.f32 %v6511, %v7025
      %v7138 = vadd.f32 %v6514, %v7028
      %v7139 = vadd.f32 %v6519, %v7033
      %v7140 = vadd.f32 %v6522, %v7036
      %v7141 = vadd.f32 %v6527, %v7041
      %v7142 = vadd.f32 %v6530, %v7044
      %v7143 = vadd.f32 %v6535, %v7049
      %v7144 = vadd.f32 %v6538, %v7052
      %v7145 = vadd.f32 %v6543, %v7057
      %v7146 = vadd.f32 %v6546, %v7060
      %v7147 = vadd.f32 %v6551, %v7065
      %v7148 = vadd.f32 %v6554, %v7068
      %v7149 = vadd.f32 %v6559, %v7073
      %v7150 = vadd.f32 %v6562, %v7076
      %v7151 = vadd.f32 %v6567, %v7081
      %v7152 = vadd.f32 %v6570, %v7084
      %v7153 = vadd.f32 %v6575, %v7089
      %v7154 = vadd.f32 %v6578, %v7092
      %v7155 = vadd.f32 %v6583, %v7097
      %v7156 = vadd.f32 %v6586, %v7100
      %v7157 = vadd.f32 %v6591, %v7105
      %v7158 = vadd.f32 %v6594, %v7108
      %v7159 = vadd.f32 %v6599, %v7113
      %v7160 = vadd.f32 %v6602, %v7116
      %v7161 = vadd.f32 %v6607, %v7121
      %v7162 = vadd.f32 %v6610, %v7124
      %v7163 = vld [vmem:[#allocation2 + $0x14] sm:$0xf]
      %v7164 = vld [vmem:[#allocation2 + $0x18] sm:$0xf]
      %v7165 = vld [vmem:[#allocation2 + $0x1c] sm:$0xf]
      %v7166 = vld [vmem:[#allocation2 + $0x20] sm:$0xf]
      %v7167 = vld [vmem:[#allocation2 + $0x24] sm:$0xf]
      %v7168 = vld [vmem:[#allocation2 + $0x28] sm:$0xf]
      %v7169 = vld [vmem:[#allocation2 + $0x2c] sm:$0xf]
      %v7170 = vld [vmem:[#allocation2 + $0x30] sm:$0xf]
      %v7171 = vld [vmem:[#allocation2 + $0x34] sm:$0xf]
      %v7172 = vld [vmem:[#allocation2 + $0x38] sm:$0xf]
      %v7173 = vld [vmem:[#allocation2 + $0x3c] sm:$0xf]
      %v7174 = vld [vmem:[#allocation2 + $0x40] sm:$0xf]
      %v7175 = vld [vmem:[#allocation2 + $0x44] sm:$0xf]
      %v7176 = vld [vmem:[#allocation2 + $0x48] sm:$0xf]
      %v7177 = vld [vmem:[#allocation2 + $0x4c] sm:$0xf]
      %v7178 = vld [vmem:[#allocation2 + $0x50] sm:$0xf]
      %v7179 = vld [vmem:[#allocation2 + $0x54] sm:$0xf]
      %v7180 = vld [vmem:[#allocation2 + $0x58] sm:$0xf]
      %v7181 = vld [vmem:[#allocation2 + $0x5c] sm:$0xf]
      %v7182 = vld [vmem:[#allocation2 + $0x60] sm:$0xf]
      %v7183 = vld [vmem:[#allocation2 + $0x64] sm:$0xf]
      %v7184 = vld [vmem:[#allocation2 + $0x68] sm:$0xf]
      %v7185 = vld [vmem:[#allocation2 + $0x6c] sm:$0xf]
      %v7186 = vld [vmem:[#allocation2 + $0x70] sm:$0xf]
      %v7187 = vld [vmem:[#allocation2 + $0x74] sm:$0xf]
      %v7188 = vld [vmem:[#allocation2 + $0x78] sm:$0xf]
      %v7189 = vld [vmem:[#allocation2 + $0x7c] sm:$0xf]
      %v7190 = vld [vmem:[#allocation2 + $0x80] sm:$0xf]
      %v7191 = vld [vmem:[#allocation2 + $0x84] sm:$0xf]
      %v7192 = vld [vmem:[#allocation2 + $0x88] sm:$0xf]
      %v7193 = vld [vmem:[#allocation2 + $0x8c] sm:$0xf]
      %v7194 = vld [vmem:[#allocation2 + $0x90] sm:$0xf]
      %v7195 = vld [vmem:[#allocation2 + $0x94] sm:$0xf]
      %v7196 = vld [vmem:[#allocation2 + $0x98] sm:$0xf]
      %v7197 = vld [vmem:[#allocation2 + $0x9c] sm:$0xf]
      %v7198 = vld [vmem:[#allocation2 + $0xa0] sm:$0xf]
      %v7199 = vld [vmem:[#allocation2 + $0xa4] sm:$0x1]
      %s7200 = scalar_lea.vmem %s3, 6
      %v7201 = vld [vmem:[%s7200] sm:$0x3]
      %v7239 = vunpack.c.l.b16 %v7163
      %v7240 = vunpack.c.l.b16 %v7164
      %v7241 = vunpack.c.l.b16 %v7165
      %v7242 = vunpack.c.l.b16 %v7166
      %v7243 = vunpack.c.l.b16 %v7167
      %v7244 = vunpack.c.l.b16 %v7168
      %v7245 = vunpack.c.l.b16 %v7169
      %v7246 = vunpack.c.l.b16 %v7170
      %v7247 = vunpack.c.l.b16 %v7171
      %v7248 = vunpack.c.l.b16 %v7172
      %v7249 = vunpack.c.l.b16 %v7173
      %v7250 = vunpack.c.l.b16 %v7174
      %v7251 = vunpack.c.l.b16 %v7175
      %v7252 = vunpack.c.l.b16 %v7176
      %v7253 = vunpack.c.l.b16 %v7177
      %v7254 = vunpack.c.l.b16 %v7178
      %v7255 = vunpack.c.l.b16 %v7179
      %v7256 = vunpack.c.l.b16 %v7180
      %v7257 = vunpack.c.l.b16 %v7181
      %v7258 = vunpack.c.l.b16 %v7182
      %v7259 = vunpack.c.l.b16 %v7183
      %v7260 = vunpack.c.l.b16 %v7184
      %v7261 = vunpack.c.l.b16 %v7185
      %v7262 = vunpack.c.l.b16 %v7186
      %v7263 = vunpack.c.l.b16 %v7187
      %v7264 = vunpack.c.l.b16 %v7188
      %v7265 = vunpack.c.l.b16 %v7189
      %v7266 = vunpack.c.l.b16 %v7190
      %v7267 = vunpack.c.l.b16 %v7191
      %v7268 = vunpack.c.l.b16 %v7192
      %v7269 = vunpack.c.l.b16 %v7193
      %v7270 = vunpack.c.l.b16 %v7194
      %v7271 = vunpack.c.l.b16 %v7195
      %v7272 = vunpack.c.l.b16 %v7196
      %v7273 = vunpack.c.l.b16 %v7197
      %v7274 = vunpack.c.l.b16 %v7198
      %v7275 = vunpack.c.l.b16 %v7199
      %v7276 = vpack.c.b16 %v7240, %v7239
      %v7277 = vpack.c.b16 %v7242, %v7241
      %v7278 = vpack.c.b16 %v7244, %v7243
      %v7279 = vpack.c.b16 %v7246, %v7245
      %v7280 = vpack.c.b16 %v7248, %v7247
      %v7281 = vpack.c.b16 %v7250, %v7249
      %v7282 = vpack.c.b16 %v7252, %v7251
      %v7283 = vpack.c.b16 %v7254, %v7253
      %v7284 = vpack.c.b16 %v7256, %v7255
      %v7285 = vpack.c.b16 %v7258, %v7257
      %v7286 = vpack.c.b16 %v7260, %v7259
      %v7287 = vpack.c.b16 %v7262, %v7261
      %v7288 = vpack.c.b16 %v7264, %v7263
      %v7289 = vpack.c.b16 %v7266, %v7265
      %v7290 = vpack.c.b16 %v7268, %v7267
      %v7291 = vpack.c.b16 %v7270, %v7269
      %v7292 = vpack.c.b16 %v7272, %v7271
      %v7293 = vpack.c.b16 %v7274, %v7273
      %v7294 = vpack.c.b16 %v7275, %v7275
      %v7296 = vshrl.u32 %v7276, 16
      %v7298 = vshll.u32 %v7276, 16
      %v7300 = vrot.slane %v7298, 1
      %v7301 = vor.u32 %v7296, %v7300
      %v7303 = vshll.u32 %v7277, 16
      %v7305 = vrot.slane %v7303, 1
      %v7306 = vsel %vm2613, %v7301, %v7305
      %v7307 = vshrl.u32 %v7277, 16
      %v7309 = vor.u32 %v7307, %v7305
      %v7311 = vshll.u32 %v7278, 16
      %v7313 = vrot.slane %v7311, 1
      %v7314 = vsel %vm2613, %v7309, %v7313
      %v7315 = vshrl.u32 %v7278, 16
      %v7317 = vor.u32 %v7315, %v7313
      %v7319 = vshll.u32 %v7279, 16
      %v7321 = vrot.slane %v7319, 1
      %v7322 = vsel %vm2613, %v7317, %v7321
      %v7323 = vshrl.u32 %v7279, 16
      %v7325 = vor.u32 %v7323, %v7321
      %v7327 = vshll.u32 %v7280, 16
      %v7329 = vrot.slane %v7327, 1
      %v7330 = vsel %vm2613, %v7325, %v7329
      %v7331 = vshrl.u32 %v7280, 16
      %v7333 = vor.u32 %v7331, %v7329
      %v7335 = vshll.u32 %v7281, 16
      %v7337 = vrot.slane %v7335, 1
      %v7338 = vsel %vm2613, %v7333, %v7337
      %v7339 = vshrl.u32 %v7281, 16
      %v7341 = vor.u32 %v7339, %v7337
      %v7343 = vshll.u32 %v7282, 16
      %v7345 = vrot.slane %v7343, 1
      %v7346 = vsel %vm2613, %v7341, %v7345
      %v7347 = vshrl.u32 %v7282, 16
      %v7349 = vor.u32 %v7347, %v7345
      %v7351 = vshll.u32 %v7283, 16
      %v7353 = vrot.slane %v7351, 1
      %v7354 = vsel %vm2613, %v7349, %v7353
      %v7355 = vshrl.u32 %v7283, 16
      %v7357 = vor.u32 %v7355, %v7353
      %v7359 = vshll.u32 %v7284, 16
      %v7361 = vrot.slane %v7359, 1
      %v7362 = vsel %vm2613, %v7357, %v7361
      %v7363 = vshrl.u32 %v7284, 16
      %v7365 = vor.u32 %v7363, %v7361
      %v7367 = vshll.u32 %v7285, 16
      %v7369 = vrot.slane %v7367, 1
      %v7370 = vsel %vm2613, %v7365, %v7369
      %v7371 = vshrl.u32 %v7285, 16
      %v7373 = vor.u32 %v7371, %v7369
      %v7375 = vshll.u32 %v7286, 16
      %v7377 = vrot.slane %v7375, 1
      %v7378 = vsel %vm2613, %v7373, %v7377
      %v7379 = vshrl.u32 %v7286, 16
      %v7381 = vor.u32 %v7379, %v7377
      %v7383 = vshll.u32 %v7287, 16
      %v7385 = vrot.slane %v7383, 1
      %v7386 = vsel %vm2613, %v7381, %v7385
      %v7387 = vshrl.u32 %v7287, 16
      %v7389 = vor.u32 %v7387, %v7385
      %v7391 = vshll.u32 %v7288, 16
      %v7393 = vrot.slane %v7391, 1
      %v7394 = vsel %vm2613, %v7389, %v7393
      %v7395 = vshrl.u32 %v7288, 16
      %v7397 = vor.u32 %v7395, %v7393
      %v7399 = vshll.u32 %v7289, 16
      %v7401 = vrot.slane %v7399, 1
      %v7402 = vsel %vm2613, %v7397, %v7401
      %v7403 = vshrl.u32 %v7289, 16
      %v7405 = vor.u32 %v7403, %v7401
      %v7407 = vshll.u32 %v7290, 16
      %v7409 = vrot.slane %v7407, 1
      %v7410 = vsel %vm2613, %v7405, %v7409
      %v7411 = vshrl.u32 %v7290, 16
      %v7413 = vor.u32 %v7411, %v7409
      %v7415 = vshll.u32 %v7291, 16
      %v7417 = vrot.slane %v7415, 1
      %v7418 = vsel %vm2613, %v7413, %v7417
      %v7419 = vshrl.u32 %v7291, 16
      %v7421 = vor.u32 %v7419, %v7417
      %v7423 = vshll.u32 %v7292, 16
      %v7425 = vrot.slane %v7423, 1
      %v7426 = vsel %vm2613, %v7421, %v7425
      %v7427 = vshrl.u32 %v7292, 16
      %v7429 = vor.u32 %v7427, %v7425
      %v7431 = vshll.u32 %v7293, 16
      %v7433 = vrot.slane %v7431, 1
      %v7434 = vsel %vm2613, %v7429, %v7433
      %v7435 = vshrl.u32 %v7293, 16
      %v7437 = vor.u32 %v7435, %v7433
      %v7439 = vshll.u32 %v7294, 16
      %v7441 = vrot.slane %v7439, 1
      %v7442 = vsel %vm2613, %v7437, %v7441
      %v7444 = vsel %vm5952, %v7306, 0
      %v7447 = vsel %vm5952, %v7314, 0
      %v7450 = vsel %vm5952, %v7322, 0
      %v7453 = vsel %vm5952, %v7330, 0
      %v7456 = vsel %vm5952, %v7338, 0
      %v7459 = vsel %vm5952, %v7346, 0
      %v7462 = vsel %vm5952, %v7354, 0
      %v7465 = vsel %vm5952, %v7362, 0
      %v7468 = vsel %vm5952, %v7370, 0
      %v7471 = vsel %vm5952, %v7378, 0
      %v7474 = vsel %vm5952, %v7386, 0
      %v7477 = vsel %vm5952, %v7394, 0
      %v7480 = vsel %vm5952, %v7402, 0
      %v7483 = vsel %vm5952, %v7410, 0
      %v7486 = vsel %vm5952, %v7418, 0
      %v7489 = vsel %vm5952, %v7426, 0
      %v7492 = vsel %vm5952, %v7434, 0
      %v7495 = vsel %vm5952, %v7442, 0
      %v7498 = vsel %vm6007, %v7201, 0
      %7500 = vmatprep.subr.bf16.mxu0 0
      %7501 = vmatpush1.bf16.msra.mxu0 %v7498
      %7502 = vmatprep.subr.bf16.mxu0 0
      %7503 = vmatpush1.bf16.msra.mxu0 0
      %7504 = vmatprep.subr.bf16.mxu0 0
      %7505 = vmatpush1.bf16.msra.mxu0 0
      %7506 = vmatprep.subr.bf16.mxu0 0
      %7507 = vmatpush1.bf16.msra.mxu0 0
      %7508 = vmatprep.subr.bf16.mxu0 0
      %7509 = vmatpush1.bf16.msra.mxu0 0
      %7510 = vmatprep.subr.bf16.mxu0 0
      %7511 = vmatpush1.bf16.msra.mxu0 0
      %7512 = vmatprep.subr.bf16.mxu0 0
      %7513 = vmatpush1.bf16.msra.mxu0 0
      %7514 = vmatprep.subr.bf16.mxu0 0
      %7515 = vmatpush1.bf16.msra.mxu0 0
      %7516 = vmatprep.subr.bf16.mxu0 0
      %7517 = vmatpush1.bf16.msra.mxu0 0
      %7518 = vmatprep.subr.bf16.mxu0 0
      %7519 = vmatpush1.bf16.msra.mxu0 0
      %7520 = vmatprep.subr.bf16.mxu0 0
      %7521 = vmatpush1.bf16.msra.mxu0 0
      %7522 = vmatprep.subr.bf16.mxu0 0
      %7523 = vmatpush1.bf16.msra.mxu0 0
      %7524 = vmatprep.subr.bf16.mxu0 0
      %7525 = vmatpush1.bf16.msra.mxu0 0
      %7526 = vmatprep.subr.bf16.mxu0 0
      %7527 = vmatpush1.bf16.msra.mxu0 0
      %7528 = vmatprep.subr.bf16.mxu0 0
      %7529 = vmatpush1.bf16.msra.mxu0 0
      %7530 = vmatprep.subr.bf16.mxu0 0
      %7531 = vmatpush1.bf16.msra.mxu0 0
      %7532 = vmatprep.mubr.bf16.mxu0 0
      %7533 = vmatmul.mubr.bf16.gmra.mrb[0].mxu0 %v7444
      %v7534 = vpop.f32.mrb[0].mxu0
      %v7535 = vadd.f32 0.0, %v7534
      %v7536 = vpop.f32.mrb[0].mxu0
      %v7537 = vpop.f32.mrb[0].mxu0
      %v7538 = vadd.f32 0.0, %v7537
      %v7539 = vpop.f32.mrb[0].mxu0
      %7540 = vmatprep.mubr.bf16.mxu0 0
      %7541 = vmatmul.mubr.bf16.gmra.mrb[0].mxu0 %v7447
      %v7542 = vpop.f32.mrb[0].mxu0
      %v7543 = vadd.f32 0.0, %v7542
      %v7544 = vpop.f32.mrb[0].mxu0
      %v7545 = vpop.f32.mrb[0].mxu0
      %v7546 = vadd.f32 0.0, %v7545
      %v7547 = vpop.f32.mrb[0].mxu0
      %7548 = vmatprep.mubr.bf16.mxu0 0
      %7549 = vmatmul.mubr.bf16.gmra.mrb[0].mxu0 %v7450
      %v7550 = vpop.f32.mrb[0].mxu0
      %v7551 = vadd.f32 0.0, %v7550
      %v7552 = vpop.f32.mrb[0].mxu0
      %v7553 = vpop.f32.mrb[0].mxu0
      %v7554 = vadd.f32 0.0, %v7553
      %v7555 = vpop.f32.mrb[0].mxu0
      %7556 = vmatprep.mubr.bf16.mxu0 0
      %7557 = vmatmul.mubr.bf16.gmra.mrb[0].mxu0 %v7453
      %v7558 = vpop.f32.mrb[0].mxu0
      %v7559 = vadd.f32 0.0, %v7558
      %v7560 = vpop.f32.mrb[0].mxu0
      %v7561 = vpop.f32.mrb[0].mxu0
      %v7562 = vadd.f32 0.0, %v7561
      %v7563 = vpop.f32.mrb[0].mxu0
      %7564 = vmatprep.mubr.bf16.mxu0 0
      %7565 = vmatmul.mubr.bf16.gmra.mrb[0].mxu0 %v7456
      %v7566 = vpop.f32.mrb[0].mxu0
      %v7567 = vadd.f32 0.0, %v7566
      %v7568 = vpop.f32.mrb[0].mxu0
      %v7569 = vpop.f32.mrb[0].mxu0
      %v7570 = vadd.f32 0.0, %v7569
      %v7571 = vpop.f32.mrb[0].mxu0
      %7572 = vmatprep.mubr.bf16.mxu0 0
      %7573 = vmatmul.mubr.bf16.gmra.mrb[0].mxu0 %v7459
      %v7574 = vpop.f32.mrb[0].mxu0
      %v7575 = vadd.f32 0.0, %v7574
      %v7576 = vpop.f32.mrb[0].mxu0
      %v7577 = vpop.f32.mrb[0].mxu0
      %v7578 = vadd.f32 0.0, %v7577
      %v7579 = vpop.f32.mrb[0].mxu0
      %7580 = vmatprep.mubr.bf16.mxu0 0
      %7581 = vmatmul.mubr.bf16.gmra.mrb[0].mxu0 %v7462
      %v7582 = vpop.f32.mrb[0].mxu0
      %v7583 = vadd.f32 0.0, %v7582
      %v7584 = vpop.f32.mrb[0].mxu0
      %v7585 = vpop.f32.mrb[0].mxu0
      %v7586 = vadd.f32 0.0, %v7585
      %v7587 = vpop.f32.mrb[0].mxu0
      %7588 = vmatprep.mubr.bf16.mxu0 0
      %7589 = vmatmul.mubr.bf16.gmra.mrb[0].mxu0 %v7465
      %v7590 = vpop.f32.mrb[0].mxu0
      %v7591 = vadd.f32 0.0, %v7590
      %v7592 = vpop.f32.mrb[0].mxu0
      %v7593 = vpop.f32.mrb[0].mxu0
      %v7594 = vadd.f32 0.0, %v7593
      %v7595 = vpop.f32.mrb[0].mxu0
      %7596 = vmatprep.mubr.bf16.mxu0 0
      %7597 = vmatmul.mubr.bf16.gmra.mrb[0].mxu0 %v7468
      %v7598 = vpop.f32.mrb[0].mxu0
      %v7599 = vadd.f32 0.0, %v7598
      %v7600 = vpop.f32.mrb[0].mxu0
      %v7601 = vpop.f32.mrb[0].mxu0
      %v7602 = vadd.f32 0.0, %v7601
      %v7603 = vpop.f32.mrb[0].mxu0
      %7604 = vmatprep.mubr.bf16.mxu0 0
      %7605 = vmatmul.mubr.bf16.gmra.mrb[0].mxu0 %v7471
      %v7606 = vpop.f32.mrb[0].mxu0
      %v7607 = vadd.f32 0.0, %v7606
      %v7608 = vpop.f32.mrb[0].mxu0
      %v7609 = vpop.f32.mrb[0].mxu0
      %v7610 = vadd.f32 0.0, %v7609
      %v7611 = vpop.f32.mrb[0].mxu0
      %7612 = vmatprep.mubr.bf16.mxu0 0
      %7613 = vmatmul.mubr.bf16.gmra.mrb[0].mxu0 %v7474
      %v7614 = vpop.f32.mrb[0].mxu0
      %v7615 = vadd.f32 0.0, %v7614
      %v7616 = vpop.f32.mrb[0].mxu0
      %v7617 = vpop.f32.mrb[0].mxu0
      %v7618 = vadd.f32 0.0, %v7617
      %v7619 = vpop.f32.mrb[0].mxu0
      %7620 = vmatprep.mubr.bf16.mxu0 0
      %7621 = vmatmul.mubr.bf16.gmra.mrb[0].mxu0 %v7477
      %v7622 = vpop.f32.mrb[0].mxu0
      %v7623 = vadd.f32 0.0, %v7622
      %v7624 = vpop.f32.mrb[0].mxu0
      %v7625 = vpop.f32.mrb[0].mxu0
      %v7626 = vadd.f32 0.0, %v7625
      %v7627 = vpop.f32.mrb[0].mxu0
      %7628 = vmatprep.mubr.bf16.mxu0 0
      %7629 = vmatmul.mubr.bf16.gmra.mrb[0].mxu0 %v7480
      %v7630 = vpop.f32.mrb[0].mxu0
      %v7631 = vadd.f32 0.0, %v7630
      %v7632 = vpop.f32.mrb[0].mxu0
      %v7633 = vpop.f32.mrb[0].mxu0
      %v7634 = vadd.f32 0.0, %v7633
      %v7635 = vpop.f32.mrb[0].mxu0
      %7636 = vmatprep.mubr.bf16.mxu0 0
      %7637 = vmatmul.mubr.bf16.gmra.mrb[0].mxu0 %v7483
      %v7638 = vpop.f32.mrb[0].mxu0
      %v7639 = vadd.f32 0.0, %v7638
      %v7640 = vpop.f32.mrb[0].mxu0
      %v7641 = vpop.f32.mrb[0].mxu0
      %v7642 = vadd.f32 0.0, %v7641
      %v7643 = vpop.f32.mrb[0].mxu0
      %7644 = vmatprep.mubr.bf16.mxu0 0
      %7645 = vmatmul.mubr.bf16.gmra.mrb[0].mxu0 %v7486
      %v7646 = vpop.f32.mrb[0].mxu0
      %v7647 = vadd.f32 0.0, %v7646
      %v7648 = vpop.f32.mrb[0].mxu0
      %v7649 = vpop.f32.mrb[0].mxu0
      %v7650 = vadd.f32 0.0, %v7649
      %v7651 = vpop.f32.mrb[0].mxu0
      %7652 = vmatprep.mubr.bf16.mxu0 0
      %7653 = vmatmul.mubr.bf16.gmra.mrb[0].mxu0 %v7489
      %v7654 = vpop.f32.mrb[0].mxu0
      %v7655 = vadd.f32 0.0, %v7654
      %v7656 = vpop.f32.mrb[0].mxu0
      %v7657 = vpop.f32.mrb[0].mxu0
      %v7658 = vadd.f32 0.0, %v7657
      %v7659 = vpop.f32.mrb[0].mxu0
      %7660 = vmatprep.mubr.bf16.mxu0 0
      %7661 = vmatmul.mubr.bf16.gmra.mrb[0].mxu0 %v7492
      %v7662 = vpop.f32.mrb[0].mxu0
      %v7663 = vadd.f32 0.0, %v7662
      %v7664 = vpop.f32.mrb[0].mxu0
      %v7665 = vpop.f32.mrb[0].mxu0
      %v7666 = vadd.f32 0.0, %v7665
      %v7667 = vpop.f32.mrb[0].mxu0
      %7668 = vmatprep.mubr.bf16.mxu0 0
      %7669 = vmatmul.mubr.bf16.gmra.mrb[0].mxu0 %v7495
      %v7670 = vpop.f32.mrb[0].mxu0
      %v7671 = vadd.f32 0.0, %v7670
      %v7672 = vpop.f32.mrb[0].mxu0
      %v7673 = vpop.f32.mrb[0].mxu0
      %v7674 = vadd.f32 0.0, %v7673
      %v7675 = vpop.f32.mrb[0].mxu0
      %7676 = vdwg.mxu0
      %v7677 = vadd.f32 %v7127, %v7535
      %v7678 = vadd.f32 %v7128, %v7538
      %v7679 = vadd.f32 %v7129, %v7543
      %v7680 = vadd.f32 %v7130, %v7546
      %v7681 = vadd.f32 %v7131, %v7551
      %v7682 = vadd.f32 %v7132, %v7554
      %v7683 = vadd.f32 %v7133, %v7559
      %v7684 = vadd.f32 %v7134, %v7562
      %v7685 = vadd.f32 %v7135, %v7567
      %v7686 = vadd.f32 %v7136, %v7570
      %v7687 = vadd.f32 %v7137, %v7575
      %v7688 = vadd.f32 %v7138, %v7578
      %v7689 = vadd.f32 %v7139, %v7583
      %v7690 = vadd.f32 %v7140, %v7586
      %v7691 = vadd.f32 %v7141, %v7591
      %v7692 = vadd.f32 %v7142, %v7594
      %v7693 = vadd.f32 %v7143, %v7599
      %v7694 = vadd.f32 %v7144, %v7602
      %v7695 = vadd.f32 %v7145, %v7607
      %v7696 = vadd.f32 %v7146, %v7610
      %v7697 = vadd.f32 %v7147, %v7615
      %v7698 = vadd.f32 %v7148, %v7618
      %v7699 = vadd.f32 %v7149, %v7623
      %v7700 = vadd.f32 %v7150, %v7626
      %v7701 = vadd.f32 %v7151, %v7631
      %v7702 = vadd.f32 %v7152, %v7634
      %v7703 = vadd.f32 %v7153, %v7639
      %v7704 = vadd.f32 %v7154, %v7642
      %v7705 = vadd.f32 %v7155, %v7647
      %v7706 = vadd.f32 %v7156, %v7650
      %v7707 = vadd.f32 %v7157, %v7655
      %v7708 = vadd.f32 %v7158, %v7658
      %v7709 = vadd.f32 %v7159, %v7663
      %v7710 = vadd.f32 %v7160, %v7666
      %v7711 = vadd.f32 %v7161, %v7671
      %v7712 = vadd.f32 %v7162, %v7674
      %v7713 = vld [vmem:[#allocation2 + $0x14] sm:$0xe]
      %s7714 = scalar_lea.vmem %s3, 8
      %v7715 = vld [vmem:[%s7714] sm:$0x3]
      %v7717 = vunpack.c.l.b16 %v7713
      %v7718 = vpack.c.b16 %v7240, %v7717
      %v7719 = vrot.slane %v7718, 1
      %v7720 = vrot.slane %v7277, 1
      %v7721 = vsel %vm3694, %v7719, %v7720
      %v7722 = vrot.slane %v7278, 1
      %v7723 = vsel %vm3694, %v7720, %v7722
      %v7724 = vrot.slane %v7279, 1
      %v7725 = vsel %vm3694, %v7722, %v7724
      %v7726 = vrot.slane %v7280, 1
      %v7727 = vsel %vm3694, %v7724, %v7726
      %v7728 = vrot.slane %v7281, 1
      %v7729 = vsel %vm3694, %v7726, %v7728
      %v7730 = vrot.slane %v7282, 1
      %v7731 = vsel %vm3694, %v7728, %v7730
      %v7732 = vrot.slane %v7283, 1
      %v7733 = vsel %vm3694, %v7730, %v7732
      %v7734 = vrot.slane %v7284, 1
      %v7735 = vsel %vm3694, %v7732, %v7734
      %v7736 = vrot.slane %v7285, 1
      %v7737 = vsel %vm3694, %v7734, %v7736
      %v7738 = vrot.slane %v7286, 1
      %v7739 = vsel %vm3694, %v7736, %v7738
      %v7740 = vrot.slane %v7287, 1
      %v7741 = vsel %vm3694, %v7738, %v7740
      %v7742 = vrot.slane %v7288, 1
      %v7743 = vsel %vm3694, %v7740, %v7742
      %v7744 = vrot.slane %v7289, 1
      %v7745 = vsel %vm3694, %v7742, %v7744
      %v7746 = vrot.slane %v7290, 1
      %v7747 = vsel %vm3694, %v7744, %v7746
      %v7748 = vrot.slane %v7291, 1
      %v7749 = vsel %vm3694, %v7746, %v7748
      %v7750 = vrot.slane %v7292, 1
      %v7751 = vsel %vm3694, %v7748, %v7750
      %v7752 = vrot.slane %v7293, 1
      %v7753 = vsel %vm3694, %v7750, %v7752
      %v7754 = vrot.slane %v7294, 1
      %v7755 = vsel %vm3694, %v7752, %v7754
      %v7757 = vsel %vm5952, %v7721, 0
      %v7760 = vsel %vm5952, %v7723, 0
      %v7763 = vsel %vm5952, %v7725, 0
      %v7766 = vsel %vm5952, %v7727, 0
      %v7769 = vsel %vm5952, %v7729, 0
      %v7772 = vsel %vm5952, %v7731, 0
      %v7775 = vsel %vm5952, %v7733, 0
      %v7778 = vsel %vm5952, %v7735, 0
      %v7781 = vsel %vm5952, %v7737, 0
      %v7784 = vsel %vm5952, %v7739, 0
      %v7787 = vsel %vm5952, %v7741, 0
      %v7790 = vsel %vm5952, %v7743, 0
      %v7793 = vsel %vm5952, %v7745, 0
      %v7796 = vsel %vm5952, %v7747, 0
      %v7799 = vsel %vm5952, %v7749, 0
      %v7802 = vsel %vm5952, %v7751, 0
      %v7805 = vsel %vm5952, %v7753, 0
      %v7808 = vsel %vm5952, %v7755, 0
      %v7811 = vsel %vm6007, %v7715, 0
      %7813 = vmatprep.subr.bf16.mxu0 0
      %7814 = vmatpush1.bf16.msra.mxu0 %v7811
      %7815 = vmatprep.subr.bf16.mxu0 0
      %7816 = vmatpush1.bf16.msra.mxu0 0
      %7817 = vmatprep.subr.bf16.mxu0 0
      %7818 = vmatpush1.bf16.msra.mxu0 0
      %7819 = vmatprep.subr.bf16.mxu0 0
      %7820 = vmatpush1.bf16.msra.mxu0 0
      %7821 = vmatprep.subr.bf16.mxu0 0
      %7822 = vmatpush1.bf16.msra.mxu0 0
      %7823 = vmatprep.subr.bf16.mxu0 0
      %7824 = vmatpush1.bf16.msra.mxu0 0
      %7825 = vmatprep.subr.bf16.mxu0 0
      %7826 = vmatpush1.bf16.msra.mxu0 0
      %7827 = vmatprep.subr.bf16.mxu0 0
      %7828 = vmatpush1.bf16.msra.mxu0 0
      %7829 = vmatprep.subr.bf16.mxu0 0
      %7830 = vmatpush1.bf16.msra.mxu0 0
      %7831 = vmatprep.subr.bf16.mxu0 0
      %7832 = vmatpush1.bf16.msra.mxu0 0
      %7833 = vmatprep.subr.bf16.mxu0 0
      %7834 = vmatpush1.bf16.msra.mxu0 0
      %7835 = vmatprep.subr.bf16.mxu0 0
      %7836 = vmatpush1.bf16.msra.mxu0 0
      %7837 = vmatprep.subr.bf16.mxu0 0
      %7838 = vmatpush1.bf16.msra.mxu0 0
      %7839 = vmatprep.subr.bf16.mxu0 0
      %7840 = vmatpush1.bf16.msra.mxu0 0
      %7841 = vmatprep.subr.bf16.mxu0 0
      %7842 = vmatpush1.bf16.msra.mxu0 0
      %7843 = vmatprep.subr.bf16.mxu0 0
      %7844 = vmatpush1.bf16.msra.mxu0 0
      %7845 = vmatprep.mubr.bf16.mxu0 0
      %7846 = vmatmul.mubr.bf16.gmra.mrb[0].mxu0 %v7757
      %v7847 = vpop.f32.mrb[0].mxu0
      %v7848 = vadd.f32 0.0, %v7847
      %v7849 = vpop.f32.mrb[0].mxu0
      %v7850 = vpop.f32.mrb[0].mxu0
      %v7851 = vadd.f32 0.0, %v7850
      %v7852 = vpop.f32.mrb[0].mxu0
      %7853 = vmatprep.mubr.bf16.mxu0 0
      %7854 = vmatmul.mubr.bf16.gmra.mrb[0].mxu0 %v7760
      %v7855 = vpop.f32.mrb[0].mxu0
      %v7856 = vadd.f32 0.0, %v7855
      %v7857 = vpop.f32.mrb[0].mxu0
      %v7858 = vpop.f32.mrb[0].mxu0
      %v7859 = vadd.f32 0.0, %v7858
      %v7860 = vpop.f32.mrb[0].mxu0
      %7861 = vmatprep.mubr.bf16.mxu0 0
      %7862 = vmatmul.mubr.bf16.gmra.mrb[0].mxu0 %v7763
      %v7863 = vpop.f32.mrb[0].mxu0
      %v7864 = vadd.f32 0.0, %v7863
      %v7865 = vpop.f32.mrb[0].mxu0
      %v7866 = vpop.f32.mrb[0].mxu0
      %v7867 = vadd.f32 0.0, %v7866
      %v7868 = vpop.f32.mrb[0].mxu0
      %7869 = vmatprep.mubr.bf16.mxu0 0
      %7870 = vmatmul.mubr.bf16.gmra.mrb[0].mxu0 %v7766
      %v7871 = vpop.f32.mrb[0].mxu0
      %v7872 = vadd.f32 0.0, %v7871
      %v7873 = vpop.f32.mrb[0].mxu0
      %v7874 = vpop.f32.mrb[0].mxu0
      %v7875 = vadd.f32 0.0, %v7874
      %v7876 = vpop.f32.mrb[0].mxu0
      %7877 = vmatprep.mubr.bf16.mxu0 0
      %7878 = vmatmul.mubr.bf16.gmra.mrb[0].mxu0 %v7769
      %v7879 = vpop.f32.mrb[0].mxu0
      %v7880 = vadd.f32 0.0, %v7879
      %v7881 = vpop.f32.mrb[0].mxu0
      %v7882 = vpop.f32.mrb[0].mxu0
      %v7883 = vadd.f32 0.0, %v7882
      %v7884 = vpop.f32.mrb[0].mxu0
      %7885 = vmatprep.mubr.bf16.mxu0 0
      %7886 = vmatmul.mubr.bf16.gmra.mrb[0].mxu0 %v7772
      %v7887 = vpop.f32.mrb[0].mxu0
      %v7888 = vadd.f32 0.0, %v7887
      %v7889 = vpop.f32.mrb[0].mxu0
      %v7890 = vpop.f32.mrb[0].mxu0
      %v7891 = vadd.f32 0.0, %v7890
      %v7892 = vpop.f32.mrb[0].mxu0
      %7893 = vmatprep.mubr.bf16.mxu0 0
      %7894 = vmatmul.mubr.bf16.gmra.mrb[0].mxu0 %v7775
      %v7895 = vpop.f32.mrb[0].mxu0
      %v7896 = vadd.f32 0.0, %v7895
      %v7897 = vpop.f32.mrb[0].mxu0
      %v7898 = vpop.f32.mrb[0].mxu0
      %v7899 = vadd.f32 0.0, %v7898
      %v7900 = vpop.f32.mrb[0].mxu0
      %7901 = vmatprep.mubr.bf16.mxu0 0
      %7902 = vmatmul.mubr.bf16.gmra.mrb[0].mxu0 %v7778
      %v7903 = vpop.f32.mrb[0].mxu0
      %v7904 = vadd.f32 0.0, %v7903
      %v7905 = vpop.f32.mrb[0].mxu0
      %v7906 = vpop.f32.mrb[0].mxu0
      %v7907 = vadd.f32 0.0, %v7906
      %v7908 = vpop.f32.mrb[0].mxu0
      %7909 = vmatprep.mubr.bf16.mxu0 0
      %7910 = vmatmul.mubr.bf16.gmra.mrb[0].mxu0 %v7781
      %v7911 = vpop.f32.mrb[0].mxu0
      %v7912 = vadd.f32 0.0, %v7911
      %v7913 = vpop.f32.mrb[0].mxu0
      %v7914 = vpop.f32.mrb[0].mxu0
      %v7915 = vadd.f32 0.0, %v7914
      %v7916 = vpop.f32.mrb[0].mxu0
      %7917 = vmatprep.mubr.bf16.mxu0 0
      %7918 = vmatmul.mubr.bf16.gmra.mrb[0].mxu0 %v7784
      %v7919 = vpop.f32.mrb[0].mxu0
      %v7920 = vadd.f32 0.0, %v7919
      %v7921 = vpop.f32.mrb[0].mxu0
      %v7922 = vpop.f32.mrb[0].mxu0
      %v7923 = vadd.f32 0.0, %v7922
      %v7924 = vpop.f32.mrb[0].mxu0
      %7925 = vmatprep.mubr.bf16.mxu0 0
      %7926 = vmatmul.mubr.bf16.gmra.mrb[0].mxu0 %v7787
      %v7927 = vpop.f32.mrb[0].mxu0
      %v7928 = vadd.f32 0.0, %v7927
      %v7929 = vpop.f32.mrb[0].mxu0
      %v7930 = vpop.f32.mrb[0].mxu0
      %v7931 = vadd.f32 0.0, %v7930
      %v7932 = vpop.f32.mrb[0].mxu0
      %7933 = vmatprep.mubr.bf16.mxu0 0
      %7934 = vmatmul.mubr.bf16.gmra.mrb[0].mxu0 %v7790
      %v7935 = vpop.f32.mrb[0].mxu0
      %v7936 = vadd.f32 0.0, %v7935
      %v7937 = vpop.f32.mrb[0].mxu0
      %v7938 = vpop.f32.mrb[0].mxu0
      %v7939 = vadd.f32 0.0, %v7938
      %v7940 = vpop.f32.mrb[0].mxu0
      %7941 = vmatprep.mubr.bf16.mxu0 0
      %7942 = vmatmul.mubr.bf16.gmra.mrb[0].mxu0 %v7793
      %v7943 = vpop.f32.mrb[0].mxu0
      %v7944 = vadd.f32 0.0, %v7943
      %v7945 = vpop.f32.mrb[0].mxu0
      %v7946 = vpop.f32.mrb[0].mxu0
      %v7947 = vadd.f32 0.0, %v7946
      %v7948 = vpop.f32.mrb[0].mxu0
      %7949 = vmatprep.mubr.bf16.mxu0 0
      %7950 = vmatmul.mubr.bf16.gmra.mrb[0].mxu0 %v7796
      %v7951 = vpop.f32.mrb[0].mxu0
      %v7952 = vadd.f32 0.0, %v7951
      %v7953 = vpop.f32.mrb[0].mxu0
      %v7954 = vpop.f32.mrb[0].mxu0
      %v7955 = vadd.f32 0.0, %v7954
      %v7956 = vpop.f32.mrb[0].mxu0
      %7957 = vmatprep.mubr.bf16.mxu0 0
      %7958 = vmatmul.mubr.bf16.gmra.mrb[0].mxu0 %v7799
      %v7959 = vpop.f32.mrb[0].mxu0
      %v7960 = vadd.f32 0.0, %v7959
      %v7961 = vpop.f32.mrb[0].mxu0
      %v7962 = vpop.f32.mrb[0].mxu0
      %v7963 = vadd.f32 0.0, %v7962
      %v7964 = vpop.f32.mrb[0].mxu0
      %7965 = vmatprep.mubr.bf16.mxu0 0
      %7966 = vmatmul.mubr.bf16.gmra.mrb[0].mxu0 %v7802
      %v7967 = vpop.f32.mrb[0].mxu0
      %v7968 = vadd.f32 0.0, %v7967
      %v7969 = vpop.f32.mrb[0].mxu0
      %v7970 = vpop.f32.mrb[0].mxu0
      %v7971 = vadd.f32 0.0, %v7970
      %v7972 = vpop.f32.mrb[0].mxu0
      %7973 = vmatprep.mubr.bf16.mxu0 0
      %7974 = vmatmul.mubr.bf16.gmra.mrb[0].mxu0 %v7805
      %v7975 = vpop.f32.mrb[0].mxu0
      %v7976 = vadd.f32 0.0, %v7975
      %v7977 = vpop.f32.mrb[0].mxu0
      %v7978 = vpop.f32.mrb[0].mxu0
      %v7979 = vadd.f32 0.0, %v7978
      %v7980 = vpop.f32.mrb[0].mxu0
      %7981 = vmatprep.mubr.bf16.mxu0 0
      %7982 = vmatmul.mubr.bf16.gmra.mrb[0].mxu0 %v7808
      %v7983 = vpop.f32.mrb[0].mxu0
      %v7984 = vadd.f32 0.0, %v7983
      %v7985 = vpop.f32.mrb[0].mxu0
      %v7986 = vpop.f32.mrb[0].mxu0
      %v7987 = vadd.f32 0.0, %v7986
      %v7988 = vpop.f32.mrb[0].mxu0
      %7989 = vdwg.mxu0
      %v7990 = vadd.f32 %v7677, %v7848
      %v7991 = vadd.f32 %v7678, %v7851
      %v7992 = vadd.f32 %v7679, %v7856
      %v7993 = vadd.f32 %v7680, %v7859
      %v7994 = vadd.f32 %v7681, %v7864
      %v7995 = vadd.f32 %v7682, %v7867
      %v7996 = vadd.f32 %v7683, %v7872
      %v7997 = vadd.f32 %v7684, %v7875
      %v7998 = vadd.f32 %v7685, %v7880
      %v7999 = vadd.f32 %v7686, %v7883
      %v8000 = vadd.f32 %v7687, %v7888
      %v8001 = vadd.f32 %v7688, %v7891
      %v8002 = vadd.f32 %v7689, %v7896
      %v8003 = vadd.f32 %v7690, %v7899
      %v8004 = vadd.f32 %v7691, %v7904
      %v8005 = vadd.f32 %v7692, %v7907
      %v8006 = vadd.f32 %v7693, %v7912
      %v8007 = vadd.f32 %v7694, %v7915
      %v8008 = vadd.f32 %v7695, %v7920
      %v8009 = vadd.f32 %v7696, %v7923
      %v8010 = vadd.f32 %v7697, %v7928
      %v8011 = vadd.f32 %v7698, %v7931
      %v8012 = vadd.f32 %v7699, %v7936
      %v8013 = vadd.f32 %v7700, %v7939
      %v8014 = vadd.f32 %v7701, %v7944
      %v8015 = vadd.f32 %v7702, %v7947
      %v8016 = vadd.f32 %v7703, %v7952
      %v8017 = vadd.f32 %v7704, %v7955
      %v8018 = vadd.f32 %v7705, %v7960
      %v8019 = vadd.f32 %v7706, %v7963
      %v8020 = vadd.f32 %v7707, %v7968
      %v8021 = vadd.f32 %v7708, %v7971
      %v8022 = vadd.f32 %v7709, %v7976
      %v8023 = vadd.f32 %v7710, %v7979
      %v8024 = vadd.f32 %v7711, %v7984
      %v8025 = vadd.f32 %v7712, %v7987
      %v8026 = vld [vmem:[#allocation2 + $0xa4] sm:$0x3]
      %s8027 = scalar_lea.vmem %s3, 10
      %v8028 = vld [vmem:[%s8027] sm:$0x3]
      %v8030 = vunpack.c.l.b16 %v8026
      %v8031 = vpack.c.b16 %v8030, %v8030
      %v8033 = vshrl.u32 %v7718, 16
      %v8035 = vrot.slane %v8033, 1
      %v8036 = vshll.u32 %v7718, 16
      %v8038 = vrot.slane %v8036, 2
      %v8039 = vor.u32 %v8035, %v8038
      %v8040 = vrot.slane %v7307, 1
      %v8041 = vrot.slane %v7303, 2
      %v8042 = vor.u32 %v8040, %v8041
      %v8043 = vsel %vm4049, %v8039, %v8042
      %v8044 = vrot.slane %v7315, 1
      %v8045 = vrot.slane %v7311, 2
      %v8046 = vor.u32 %v8044, %v8045
      %v8047 = vsel %vm4049, %v8042, %v8046
      %v8048 = vrot.slane %v7323, 1
      %v8049 = vrot.slane %v7319, 2
      %v8050 = vor.u32 %v8048, %v8049
      %v8051 = vsel %vm4049, %v8046, %v8050
      %v8052 = vrot.slane %v7331, 1
      %v8053 = vrot.slane %v7327, 2
      %v8054 = vor.u32 %v8052, %v8053
      %v8055 = vsel %vm4049, %v8050, %v8054
      %v8056 = vrot.slane %v7339, 1
      %v8057 = vrot.slane %v7335, 2
      %v8058 = vor.u32 %v8056, %v8057
      %v8059 = vsel %vm4049, %v8054, %v8058
      %v8060 = vrot.slane %v7347, 1
      %v8061 = vrot.slane %v7343, 2
      %v8062 = vor.u32 %v8060, %v8061
      %v8063 = vsel %vm4049, %v8058, %v8062
      %v8064 = vrot.slane %v7355, 1
      %v8065 = vrot.slane %v7351, 2
      %v8066 = vor.u32 %v8064, %v8065
      %v8067 = vsel %vm4049, %v8062, %v8066
      %v8068 = vrot.slane %v7363, 1
      %v8069 = vrot.slane %v7359, 2
      %v8070 = vor.u32 %v8068, %v8069
      %v8071 = vsel %vm4049, %v8066, %v8070
      %v8072 = vrot.slane %v7371, 1
      %v8073 = vrot.slane %v7367, 2
      %v8074 = vor.u32 %v8072, %v8073
      %v8075 = vsel %vm4049, %v8070, %v8074
      %v8076 = vrot.slane %v7379, 1
      %v8077 = vrot.slane %v7375, 2
      %v8078 = vor.u32 %v8076, %v8077
      %v8079 = vsel %vm4049, %v8074, %v8078
      %v8080 = vrot.slane %v7387, 1
      %v8081 = vrot.slane %v7383, 2
      %v8082 = vor.u32 %v8080, %v8081
      %v8083 = vsel %vm4049, %v8078, %v8082
      %v8084 = vrot.slane %v7395, 1
      %v8085 = vrot.slane %v7391, 2
      %v8086 = vor.u32 %v8084, %v8085
      %v8087 = vsel %vm4049, %v8082, %v8086
      %v8088 = vrot.slane %v7403, 1
      %v8089 = vrot.slane %v7399, 2
      %v8090 = vor.u32 %v8088, %v8089
      %v8091 = vsel %vm4049, %v8086, %v8090
      %v8092 = vrot.slane %v7411, 1
      %v8093 = vrot.slane %v7407, 2
      %v8094 = vor.u32 %v8092, %v8093
      %v8095 = vsel %vm4049, %v8090, %v8094
      %v8096 = vrot.slane %v7419, 1
      %v8097 = vrot.slane %v7415, 2
      %v8098 = vor.u32 %v8096, %v8097
      %v8099 = vsel %vm4049, %v8094, %v8098
      %v8100 = vrot.slane %v7427, 1
      %v8101 = vrot.slane %v7423, 2
      %v8102 = vor.u32 %v8100, %v8101
      %v8103 = vsel %vm4049, %v8098, %v8102
      %v8104 = vrot.slane %v7435, 1
      %v8105 = vrot.slane %v7431, 2
      %v8106 = vor.u32 %v8104, %v8105
      %v8107 = vsel %vm4049, %v8102, %v8106
      %v8109 = vshrl.u32 %v8031, 16
      %v8111 = vrot.slane %v8109, 1
      %v8112 = vshll.u32 %v8031, 16
      %v8114 = vrot.slane %v8112, 2
      %v8115 = vor.u32 %v8111, %v8114
      %v8116 = vsel %vm4049, %v8106, %v8115
      %v8118 = vsel %vm5952, %v8043, 0
      %v8121 = vsel %vm5952, %v8047, 0
      %v8124 = vsel %vm5952, %v8051, 0
      %v8127 = vsel %vm5952, %v8055, 0
      %v8130 = vsel %vm5952, %v8059, 0
      %v8133 = vsel %vm5952, %v8063, 0
      %v8136 = vsel %vm5952, %v8067, 0
      %v8139 = vsel %vm5952, %v8071, 0
      %v8142 = vsel %vm5952, %v8075, 0
      %v8145 = vsel %vm5952, %v8079, 0
      %v8148 = vsel %vm5952, %v8083, 0
      %v8151 = vsel %vm5952, %v8087, 0
      %v8154 = vsel %vm5952, %v8091, 0
      %v8157 = vsel %vm5952, %v8095, 0
      %v8160 = vsel %vm5952, %v8099, 0
      %v8163 = vsel %vm5952, %v8103, 0
      %v8166 = vsel %vm5952, %v8107, 0
      %v8169 = vsel %vm5952, %v8116, 0
      %v8172 = vsel %vm6007, %v8028, 0
      %8174 = vmatprep.subr.bf16.mxu0 0
      %8175 = vmatpush1.bf16.msra.mxu0 %v8172
      %8176 = vmatprep.subr.bf16.mxu0 0
      %8177 = vmatpush1.bf16.msra.mxu0 0
      %8178 = vmatprep.subr.bf16.mxu0 0
      %8179 = vmatpush1.bf16.msra.mxu0 0
      %8180 = vmatprep.subr.bf16.mxu0 0
      %8181 = vmatpush1.bf16.msra.mxu0 0
      %8182 = vmatprep.subr.bf16.mxu0 0
      %8183 = vmatpush1.bf16.msra.mxu0 0
      %8184 = vmatprep.subr.bf16.mxu0 0
      %8185 = vmatpush1.bf16.msra.mxu0 0
      %8186 = vmatprep.subr.bf16.mxu0 0
      %8187 = vmatpush1.bf16.msra.mxu0 0
      %8188 = vmatprep.subr.bf16.mxu0 0
      %8189 = vmatpush1.bf16.msra.mxu0 0
      %8190 = vmatprep.subr.bf16.mxu0 0
      %8191 = vmatpush1.bf16.msra.mxu0 0
      %8192 = vmatprep.subr.bf16.mxu0 0
      %8193 = vmatpush1.bf16.msra.mxu0 0
      %8194 = vmatprep.subr.bf16.mxu0 0
      %8195 = vmatpush1.bf16.msra.mxu0 0
      %8196 = vmatprep.subr.bf16.mxu0 0
      %8197 = vmatpush1.bf16.msra.mxu0 0
      %8198 = vmatprep.subr.bf16.mxu0 0
      %8199 = vmatpush1.bf16.msra.mxu0 0
      %8200 = vmatprep.subr.bf16.mxu0 0
      %8201 = vmatpush1.bf16.msra.mxu0 0
      %8202 = vmatprep.subr.bf16.mxu0 0
      %8203 = vmatpush1.bf16.msra.mxu0 0
      %8204 = vmatprep.subr.bf16.mxu0 0
      %8205 = vmatpush1.bf16.msra.mxu0 0
      %8206 = vmatprep.mubr.bf16.mxu0 0
      %8207 = vmatmul.mubr.bf16.gmra.mrb[0].mxu0 %v8118
      %v8208 = vpop.f32.mrb[0].mxu0
      %v8209 = vadd.f32 0.0, %v8208
      %v8210 = vpop.f32.mrb[0].mxu0
      %v8211 = vpop.f32.mrb[0].mxu0
      %v8212 = vadd.f32 0.0, %v8211
      %v8213 = vpop.f32.mrb[0].mxu0
      %8214 = vmatprep.mubr.bf16.mxu0 0
      %8215 = vmatmul.mubr.bf16.gmra.mrb[0].mxu0 %v8121
      %v8216 = vpop.f32.mrb[0].mxu0
      %v8217 = vadd.f32 0.0, %v8216
      %v8218 = vpop.f32.mrb[0].mxu0
      %v8219 = vpop.f32.mrb[0].mxu0
      %v8220 = vadd.f32 0.0, %v8219
      %v8221 = vpop.f32.mrb[0].mxu0
      %8222 = vmatprep.mubr.bf16.mxu0 0
      %8223 = vmatmul.mubr.bf16.gmra.mrb[0].mxu0 %v8124
      %v8224 = vpop.f32.mrb[0].mxu0
      %v8225 = vadd.f32 0.0, %v8224
      %v8226 = vpop.f32.mrb[0].mxu0
      %v8227 = vpop.f32.mrb[0].mxu0
      %v8228 = vadd.f32 0.0, %v8227
      %v8229 = vpop.f32.mrb[0].mxu0
      %8230 = vmatprep.mubr.bf16.mxu0 0
      %8231 = vmatmul.mubr.bf16.gmra.mrb[0].mxu0 %v8127
      %v8232 = vpop.f32.mrb[0].mxu0
      %v8233 = vadd.f32 0.0, %v8232
      %v8234 = vpop.f32.mrb[0].mxu0
      %v8235 = vpop.f32.mrb[0].mxu0
      %v8236 = vadd.f32 0.0, %v8235
      %v8237 = vpop.f32.mrb[0].mxu0
      %8238 = vmatprep.mubr.bf16.mxu0 0
      %8239 = vmatmul.mubr.bf16.gmra.mrb[0].mxu0 %v8130
      %v8240 = vpop.f32.mrb[0].mxu0
      %v8241 = vadd.f32 0.0, %v8240
      %v8242 = vpop.f32.mrb[0].mxu0
      %v8243 = vpop.f32.mrb[0].mxu0
      %v8244 = vadd.f32 0.0, %v8243
      %v8245 = vpop.f32.mrb[0].mxu0
      %8246 = vmatprep.mubr.bf16.mxu0 0
      %8247 = vmatmul.mubr.bf16.gmra.mrb[0].mxu0 %v8133
      %v8248 = vpop.f32.mrb[0].mxu0
      %v8249 = vadd.f32 0.0, %v8248
      %v8250 = vpop.f32.mrb[0].mxu0
      %v8251 = vpop.f32.mrb[0].mxu0
      %v8252 = vadd.f32 0.0, %v8251
      %v8253 = vpop.f32.mrb[0].mxu0
      %8254 = vmatprep.mubr.bf16.mxu0 0
      %8255 = vmatmul.mubr.bf16.gmra.mrb[0].mxu0 %v8136
      %v8256 = vpop.f32.mrb[0].mxu0
      %v8257 = vadd.f32 0.0, %v8256
      %v8258 = vpop.f32.mrb[0].mxu0
      %v8259 = vpop.f32.mrb[0].mxu0
      %v8260 = vadd.f32 0.0, %v8259
      %v8261 = vpop.f32.mrb[0].mxu0
      %8262 = vmatprep.mubr.bf16.mxu0 0
      %8263 = vmatmul.mubr.bf16.gmra.mrb[0].mxu0 %v8139
      %v8264 = vpop.f32.mrb[0].mxu0
      %v8265 = vadd.f32 0.0, %v8264
      %v8266 = vpop.f32.mrb[0].mxu0
      %v8267 = vpop.f32.mrb[0].mxu0
      %v8268 = vadd.f32 0.0, %v8267
      %v8269 = vpop.f32.mrb[0].mxu0
      %8270 = vmatprep.mubr.bf16.mxu0 0
      %8271 = vmatmul.mubr.bf16.gmra.mrb[0].mxu0 %v8142
      %v8272 = vpop.f32.mrb[0].mxu0
      %v8273 = vadd.f32 0.0, %v8272
      %v8274 = vpop.f32.mrb[0].mxu0
      %v8275 = vpop.f32.mrb[0].mxu0
      %v8276 = vadd.f32 0.0, %v8275
      %v8277 = vpop.f32.mrb[0].mxu0
      %8278 = vmatprep.mubr.bf16.mxu0 0
      %8279 = vmatmul.mubr.bf16.gmra.mrb[0].mxu0 %v8145
      %v8280 = vpop.f32.mrb[0].mxu0
      %v8281 = vadd.f32 0.0, %v8280
      %v8282 = vpop.f32.mrb[0].mxu0
      %v8283 = vpop.f32.mrb[0].mxu0
      %v8284 = vadd.f32 0.0, %v8283
      %v8285 = vpop.f32.mrb[0].mxu0
      %8286 = vmatprep.mubr.bf16.mxu0 0
      %8287 = vmatmul.mubr.bf16.gmra.mrb[0].mxu0 %v8148
      %v8288 = vpop.f32.mrb[0].mxu0
      %v8289 = vadd.f32 0.0, %v8288
      %v8290 = vpop.f32.mrb[0].mxu0
      %v8291 = vpop.f32.mrb[0].mxu0
      %v8292 = vadd.f32 0.0, %v8291
      %v8293 = vpop.f32.mrb[0].mxu0
      %8294 = vmatprep.mubr.bf16.mxu0 0
      %8295 = vmatmul.mubr.bf16.gmra.mrb[0].mxu0 %v8151
      %v8296 = vpop.f32.mrb[0].mxu0
      %v8297 = vadd.f32 0.0, %v8296
      %v8298 = vpop.f32.mrb[0].mxu0
      %v8299 = vpop.f32.mrb[0].mxu0
      %v8300 = vadd.f32 0.0, %v8299
      %v8301 = vpop.f32.mrb[0].mxu0
      %8302 = vmatprep.mubr.bf16.mxu0 0
      %8303 = vmatmul.mubr.bf16.gmra.mrb[0].mxu0 %v8154
      %v8304 = vpop.f32.mrb[0].mxu0
      %v8305 = vadd.f32 0.0, %v8304
      %v8306 = vpop.f32.mrb[0].mxu0
      %v8307 = vpop.f32.mrb[0].mxu0
      %v8308 = vadd.f32 0.0, %v8307
      %v8309 = vpop.f32.mrb[0].mxu0
      %8310 = vmatprep.mubr.bf16.mxu0 0
      %8311 = vmatmul.mubr.bf16.gmra.mrb[0].mxu0 %v8157
      %v8312 = vpop.f32.mrb[0].mxu0
      %v8313 = vadd.f32 0.0, %v8312
      %v8314 = vpop.f32.mrb[0].mxu0
      %v8315 = vpop.f32.mrb[0].mxu0
      %v8316 = vadd.f32 0.0, %v8315
      %v8317 = vpop.f32.mrb[0].mxu0
      %8318 = vmatprep.mubr.bf16.mxu0 0
      %8319 = vmatmul.mubr.bf16.gmra.mrb[0].mxu0 %v8160
      %v8320 = vpop.f32.mrb[0].mxu0
      %v8321 = vadd.f32 0.0, %v8320
      %v8322 = vpop.f32.mrb[0].mxu0
      %v8323 = vpop.f32.mrb[0].mxu0
      %v8324 = vadd.f32 0.0, %v8323
      %v8325 = vpop.f32.mrb[0].mxu0
      %8326 = vmatprep.mubr.bf16.mxu0 0
      %8327 = vmatmul.mubr.bf16.gmra.mrb[0].mxu0 %v8163
      %v8328 = vpop.f32.mrb[0].mxu0
      %v8329 = vadd.f32 0.0, %v8328
      %v8330 = vpop.f32.mrb[0].mxu0
      %v8331 = vpop.f32.mrb[0].mxu0
      %v8332 = vadd.f32 0.0, %v8331
      %v8333 = vpop.f32.mrb[0].mxu0
      %8334 = vmatprep.mubr.bf16.mxu0 0
      %8335 = vmatmul.mubr.bf16.gmra.mrb[0].mxu0 %v8166
      %v8336 = vpop.f32.mrb[0].mxu0
      %v8337 = vadd.f32 0.0, %v8336
      %v8338 = vpop.f32.mrb[0].mxu0
      %v8339 = vpop.f32.mrb[0].mxu0
      %v8340 = vadd.f32 0.0, %v8339
      %v8341 = vpop.f32.mrb[0].mxu0
      %8342 = vmatprep.mubr.bf16.mxu0 0
      %8343 = vmatmul.mubr.bf16.gmra.mrb[0].mxu0 %v8169
      %v8344 = vpop.f32.mrb[0].mxu0
      %v8345 = vadd.f32 0.0, %v8344
      %v8346 = vpop.f32.mrb[0].mxu0
      %v8347 = vpop.f32.mrb[0].mxu0
      %v8348 = vadd.f32 0.0, %v8347
      %v8349 = vpop.f32.mrb[0].mxu0
      %8350 = vdwg.mxu0
      %v8351 = vadd.f32 %v7990, %v8209
      %v8352 = vadd.f32 %v7991, %v8212
      %v8353 = vadd.f32 %v7992, %v8217
      %v8354 = vadd.f32 %v7993, %v8220
      %v8355 = vadd.f32 %v7994, %v8225
      %v8356 = vadd.f32 %v7995, %v8228
      %v8357 = vadd.f32 %v7996, %v8233
      %v8358 = vadd.f32 %v7997, %v8236
      %v8359 = vadd.f32 %v7998, %v8241
      %v8360 = vadd.f32 %v7999, %v8244
      %v8361 = vadd.f32 %v8000, %v8249
      %v8362 = vadd.f32 %v8001, %v8252
      %v8363 = vadd.f32 %v8002, %v8257
      %v8364 = vadd.f32 %v8003, %v8260
      %v8365 = vadd.f32 %v8004, %v8265
      %v8366 = vadd.f32 %v8005, %v8268
      %v8367 = vadd.f32 %v8006, %v8273
      %v8368 = vadd.f32 %v8007, %v8276
      %v8369 = vadd.f32 %v8008, %v8281
      %v8370 = vadd.f32 %v8009, %v8284
      %v8371 = vadd.f32 %v8010, %v8289
      %v8372 = vadd.f32 %v8011, %v8292
      %v8373 = vadd.f32 %v8012, %v8297
      %v8374 = vadd.f32 %v8013, %v8300
      %v8375 = vadd.f32 %v8014, %v8305
      %v8376 = vadd.f32 %v8015, %v8308
      %v8377 = vadd.f32 %v8016, %v8313
      %v8378 = vadd.f32 %v8017, %v8316
      %v8379 = vadd.f32 %v8018, %v8321
      %v8380 = vadd.f32 %v8019, %v8324
      %v8381 = vadd.f32 %v8020, %v8329
      %v8382 = vadd.f32 %v8021, %v8332
      %v8383 = vadd.f32 %v8022, %v8337
      %v8384 = vadd.f32 %v8023, %v8340
      %v8385 = vadd.f32 %v8024, %v8345
      %v8386 = vadd.f32 %v8025, %v8348
      %v8387 = vld [vmem:[#allocation2 + $0x1c] sm:$0xe]
      %v8388 = vld [vmem:[#allocation2 + $0x20] sm:$0xf]
      %v8389 = vld [vmem:[#allocation2 + $0x24] sm:$0xf]
      %v8390 = vld [vmem:[#allocation2 + $0x28] sm:$0xf]
      %v8391 = vld [vmem:[#allocation2 + $0x2c] sm:$0xf]
      %v8392 = vld [vmem:[#allocation2 + $0x30] sm:$0xf]
      %v8393 = vld [vmem:[#allocation2 + $0x34] sm:$0xf]
      %v8394 = vld [vmem:[#allocation2 + $0x38] sm:$0xf]
      %v8395 = vld [vmem:[#allocation2 + $0x3c] sm:$0xf]
      %v8396 = vld [vmem:[#allocation2 + $0x40] sm:$0xf]
      %v8397 = vld [vmem:[#allocation2 + $0x44] sm:$0xf]
      %v8398 = vld [vmem:[#allocation2 + $0x48] sm:$0xf]
      %v8399 = vld [vmem:[#allocation2 + $0x4c] sm:$0xf]
      %v8400 = vld [vmem:[#allocation2 + $0x50] sm:$0xf]
      %v8401 = vld [vmem:[#allocation2 + $0x54] sm:$0xf]
      %v8402 = vld [vmem:[#allocation2 + $0x58] sm:$0xf]
      %v8403 = vld [vmem:[#allocation2 + $0x5c] sm:$0xf]
      %v8404 = vld [vmem:[#allocation2 + $0x60] sm:$0xf]
      %v8405 = vld [vmem:[#allocation2 + $0x64] sm:$0xf]
      %v8406 = vld [vmem:[#allocation2 + $0x68] sm:$0xf]
      %v8407 = vld [vmem:[#allocation2 + $0x6c] sm:$0xf]
      %v8408 = vld [vmem:[#allocation2 + $0x70] sm:$0xf]
      %v8409 = vld [vmem:[#allocation2 + $0x74] sm:$0xf]
      %v8410 = vld [vmem:[#allocation2 + $0x78] sm:$0xf]
      %v8411 = vld [vmem:[#allocation2 + $0x7c] sm:$0xf]
      %v8412 = vld [vmem:[#allocation2 + $0x80] sm:$0xf]
      %v8413 = vld [vmem:[#allocation2 + $0x84] sm:$0xf]
      %v8414 = vld [vmem:[#allocation2 + $0x88] sm:$0xf]
      %v8415 = vld [vmem:[#allocation2 + $0x8c] sm:$0xf]
      %v8416 = vld [vmem:[#allocation2 + $0x90] sm:$0xf]
      %v8417 = vld [vmem:[#allocation2 + $0x94] sm:$0xf]
      %v8418 = vld [vmem:[#allocation2 + $0x98] sm:$0xf]
      %v8419 = vld [vmem:[#allocation2 + $0x9c] sm:$0xf]
      %v8420 = vld [vmem:[#allocation2 + $0xa0] sm:$0xf]
      %v8421 = vld [vmem:[#allocation2 + $0xa4] sm:$0xf]
      %v8422 = vld [vmem:[#allocation2 + $0xa8] sm:$0xf]
      %v8423 = vld [vmem:[#allocation2 + $0xac] sm:$0x3]
      %s8424 = scalar_lea.vmem %s3, 12
      %v8425 = vld [vmem:[%s8424] sm:$0x3]
      %v8463 = vunpack.c.l.b16 %v8387
      %v8464 = vunpack.c.l.b16 %v8388
      %v8465 = vunpack.c.l.b16 %v8389
      %v8466 = vunpack.c.l.b16 %v8390
      %v8467 = vunpack.c.l.b16 %v8391
      %v8468 = vunpack.c.l.b16 %v8392
      %v8469 = vunpack.c.l.b16 %v8393
      %v8470 = vunpack.c.l.b16 %v8394
      %v8471 = vunpack.c.l.b16 %v8395
      %v8472 = vunpack.c.l.b16 %v8396
      %v8473 = vunpack.c.l.b16 %v8397
      %v8474 = vunpack.c.l.b16 %v8398
      %v8475 = vunpack.c.l.b16 %v8399
      %v8476 = vunpack.c.l.b16 %v8400
      %v8477 = vunpack.c.l.b16 %v8401
      %v8478 = vunpack.c.l.b16 %v8402
      %v8479 = vunpack.c.l.b16 %v8403
      %v8480 = vunpack.c.l.b16 %v8404
      %v8481 = vunpack.c.l.b16 %v8405
      %v8482 = vunpack.c.l.b16 %v8406
      %v8483 = vunpack.c.l.b16 %v8407
      %v8484 = vunpack.c.l.b16 %v8408
      %v8485 = vunpack.c.l.b16 %v8409
      %v8486 = vunpack.c.l.b16 %v8410
      %v8487 = vunpack.c.l.b16 %v8411
      %v8488 = vunpack.c.l.b16 %v8412
      %v8489 = vunpack.c.l.b16 %v8413
      %v8490 = vunpack.c.l.b16 %v8414
      %v8491 = vunpack.c.l.b16 %v8415
      %v8492 = vunpack.c.l.b16 %v8416
      %v8493 = vunpack.c.l.b16 %v8417
      %v8494 = vunpack.c.l.b16 %v8418
      %v8495 = vunpack.c.l.b16 %v8419
      %v8496 = vunpack.c.l.b16 %v8420
      %v8497 = vunpack.c.l.b16 %v8421
      %v8498 = vunpack.c.l.b16 %v8422
      %v8499 = vunpack.c.l.b16 %v8423
      %v8500 = vpack.c.b16 %v8464, %v8463
      %v8501 = vpack.c.b16 %v8466, %v8465
      %v8502 = vpack.c.b16 %v8468, %v8467
      %v8503 = vpack.c.b16 %v8470, %v8469
      %v8504 = vpack.c.b16 %v8472, %v8471
      %v8505 = vpack.c.b16 %v8474, %v8473
      %v8506 = vpack.c.b16 %v8476, %v8475
      %v8507 = vpack.c.b16 %v8478, %v8477
      %v8508 = vpack.c.b16 %v8480, %v8479
      %v8509 = vpack.c.b16 %v8482, %v8481
      %v8510 = vpack.c.b16 %v8484, %v8483
      %v8511 = vpack.c.b16 %v8486, %v8485
      %v8512 = vpack.c.b16 %v8488, %v8487
      %v8513 = vpack.c.b16 %v8490, %v8489
      %v8514 = vpack.c.b16 %v8492, %v8491
      %v8515 = vpack.c.b16 %v8494, %v8493
      %v8516 = vpack.c.b16 %v8496, %v8495
      %v8517 = vpack.c.b16 %v8498, %v8497
      %v8518 = vpack.c.b16 %v8499, %v8499
      %v8520 = vshrl.u32 %v8500, 16
      %v8522 = vrot.slane %v8520, 1
      %v8523 = vshll.u32 %v8500, 16
      %v8525 = vrot.slane %v8523, 2
      %v8526 = vor.u32 %v8522, %v8525
      %v8528 = vshrl.u32 %v8501, 16
      %v8530 = vrot.slane %v8528, 1
      %v8531 = vshll.u32 %v8501, 16
      %v8533 = vrot.slane %v8531, 2
      %v8534 = vor.u32 %v8530, %v8533
      %v8535 = vsel %vm4049, %v8526, %v8534
      %v8537 = vshrl.u32 %v8502, 16
      %v8539 = vrot.slane %v8537, 1
      %v8540 = vshll.u32 %v8502, 16
      %v8542 = vrot.slane %v8540, 2
      %v8543 = vor.u32 %v8539, %v8542
      %v8544 = vsel %vm4049, %v8534, %v8543
      %v8546 = vshrl.u32 %v8503, 16
      %v8548 = vrot.slane %v8546, 1
      %v8549 = vshll.u32 %v8503, 16
      %v8551 = vrot.slane %v8549, 2
      %v8552 = vor.u32 %v8548, %v8551
      %v8553 = vsel %vm4049, %v8543, %v8552
      %v8555 = vshrl.u32 %v8504, 16
      %v8557 = vrot.slane %v8555, 1
      %v8558 = vshll.u32 %v8504, 16
      %v8560 = vrot.slane %v8558, 2
      %v8561 = vor.u32 %v8557, %v8560
      %v8562 = vsel %vm4049, %v8552, %v8561
      %v8564 = vshrl.u32 %v8505, 16
      %v8566 = vrot.slane %v8564, 1
      %v8567 = vshll.u32 %v8505, 16
      %v8569 = vrot.slane %v8567, 2
      %v8570 = vor.u32 %v8566, %v8569
      %v8571 = vsel %vm4049, %v8561, %v8570
      %v8573 = vshrl.u32 %v8506, 16
      %v8575 = vrot.slane %v8573, 1
      %v8576 = vshll.u32 %v8506, 16
      %v8578 = vrot.slane %v8576, 2
      %v8579 = vor.u32 %v8575, %v8578
      %v8580 = vsel %vm4049, %v8570, %v8579
      %v8582 = vshrl.u32 %v8507, 16
      %v8584 = vrot.slane %v8582, 1
      %v8585 = vshll.u32 %v8507, 16
      %v8587 = vrot.slane %v8585, 2
      %v8588 = vor.u32 %v8584, %v8587
      %v8589 = vsel %vm4049, %v8579, %v8588
      %v8591 = vshrl.u32 %v8508, 16
      %v8593 = vrot.slane %v8591, 1
      %v8594 = vshll.u32 %v8508, 16
      %v8596 = vrot.slane %v8594, 2
      %v8597 = vor.u32 %v8593, %v8596
      %v8598 = vsel %vm4049, %v8588, %v8597
      %v8600 = vshrl.u32 %v8509, 16
      %v8602 = vrot.slane %v8600, 1
      %v8603 = vshll.u32 %v8509, 16
      %v8605 = vrot.slane %v8603, 2
      %v8606 = vor.u32 %v8602, %v8605
      %v8607 = vsel %vm4049, %v8597, %v8606
      %v8609 = vshrl.u32 %v8510, 16
      %v8611 = vrot.slane %v8609, 1
      %v8612 = vshll.u32 %v8510, 16
      %v8614 = vrot.slane %v8612, 2
      %v8615 = vor.u32 %v8611, %v8614
      %v8616 = vsel %vm4049, %v8606, %v8615
      %v8618 = vshrl.u32 %v8511, 16
      %v8620 = vrot.slane %v8618, 1
      %v8621 = vshll.u32 %v8511, 16
      %v8623 = vrot.slane %v8621, 2
      %v8624 = vor.u32 %v8620, %v8623
      %v8625 = vsel %vm4049, %v8615, %v8624
      %v8627 = vshrl.u32 %v8512, 16
      %v8629 = vrot.slane %v8627, 1
      %v8630 = vshll.u32 %v8512, 16
      %v8632 = vrot.slane %v8630, 2
      %v8633 = vor.u32 %v8629, %v8632
      %v8634 = vsel %vm4049, %v8624, %v8633
      %v8636 = vshrl.u32 %v8513, 16
      %v8638 = vrot.slane %v8636, 1
      %v8639 = vshll.u32 %v8513, 16
      %v8641 = vrot.slane %v8639, 2
      %v8642 = vor.u32 %v8638, %v8641
      %v8643 = vsel %vm4049, %v8633, %v8642
      %v8645 = vshrl.u32 %v8514, 16
      %v8647 = vrot.slane %v8645, 1
      %v8648 = vshll.u32 %v8514, 16
      %v8650 = vrot.slane %v8648, 2
      %v8651 = vor.u32 %v8647, %v8650
      %v8652 = vsel %vm4049, %v8642, %v8651
      %v8654 = vshrl.u32 %v8515, 16
      %v8656 = vrot.slane %v8654, 1
      %v8657 = vshll.u32 %v8515, 16
      %v8659 = vrot.slane %v8657, 2
      %v8660 = vor.u32 %v8656, %v8659
      %v8661 = vsel %vm4049, %v8651, %v8660
      %v8663 = vshrl.u32 %v8516, 16
      %v8665 = vrot.slane %v8663, 1
      %v8666 = vshll.u32 %v8516, 16
      %v8668 = vrot.slane %v8666, 2
      %v8669 = vor.u32 %v8665, %v8668
      %v8670 = vsel %vm4049, %v8660, %v8669
      %v8672 = vshrl.u32 %v8517, 16
      %v8674 = vrot.slane %v8672, 1
      %v8675 = vshll.u32 %v8517, 16
      %v8677 = vrot.slane %v8675, 2
      %v8678 = vor.u32 %v8674, %v8677
      %v8679 = vsel %vm4049, %v8669, %v8678
      %v8681 = vshrl.u32 %v8518, 16
      %v8683 = vrot.slane %v8681, 1
      %v8684 = vshll.u32 %v8518, 16
      %v8686 = vrot.slane %v8684, 2
      %v8687 = vor.u32 %v8683, %v8686
      %v8688 = vsel %vm4049, %v8678, %v8687
      %v8690 = vsel %vm5952, %v8535, 0
      %v8693 = vsel %vm5952, %v8544, 0
      %v8696 = vsel %vm5952, %v8553, 0
      %v8699 = vsel %vm5952, %v8562, 0
      %v8702 = vsel %vm5952, %v8571, 0
      %v8705 = vsel %vm5952, %v8580, 0
      %v8708 = vsel %vm5952, %v8589, 0
      %v8711 = vsel %vm5952, %v8598, 0
      %v8714 = vsel %vm5952, %v8607, 0
      %v8717 = vsel %vm5952, %v8616, 0
      %v8720 = vsel %vm5952, %v8625, 0
      %v8723 = vsel %vm5952, %v8634, 0
      %v8726 = vsel %vm5952, %v8643, 0
      %v8729 = vsel %vm5952, %v8652, 0
      %v8732 = vsel %vm5952, %v8661, 0
      %v8735 = vsel %vm5952, %v8670, 0
      %v8738 = vsel %vm5952, %v8679, 0
      %v8741 = vsel %vm5952, %v8688, 0
      %v8744 = vsel %vm6007, %v8425, 0
      %8746 = vmatprep.subr.bf16.mxu0 0
      %8747 = vmatpush1.bf16.msra.mxu0 %v8744
      %8748 = vmatprep.subr.bf16.mxu0 0
      %8749 = vmatpush1.bf16.msra.mxu0 0
      %8750 = vmatprep.subr.bf16.mxu0 0
      %8751 = vmatpush1.bf16.msra.mxu0 0
      %8752 = vmatprep.subr.bf16.mxu0 0
      %8753 = vmatpush1.bf16.msra.mxu0 0
      %8754 = vmatprep.subr.bf16.mxu0 0
      %8755 = vmatpush1.bf16.msra.mxu0 0
      %8756 = vmatprep.subr.bf16.mxu0 0
      %8757 = vmatpush1.bf16.msra.mxu0 0
      %8758 = vmatprep.subr.bf16.mxu0 0
      %8759 = vmatpush1.bf16.msra.mxu0 0
      %8760 = vmatprep.subr.bf16.mxu0 0
      %8761 = vmatpush1.bf16.msra.mxu0 0
      %8762 = vmatprep.subr.bf16.mxu0 0
      %8763 = vmatpush1.bf16.msra.mxu0 0
      %8764 = vmatprep.subr.bf16.mxu0 0
      %8765 = vmatpush1.bf16.msra.mxu0 0
      %8766 = vmatprep.subr.bf16.mxu0 0
      %8767 = vmatpush1.bf16.msra.mxu0 0
      %8768 = vmatprep.subr.bf16.mxu0 0
      %8769 = vmatpush1.bf16.msra.mxu0 0
      %8770 = vmatprep.subr.bf16.mxu0 0
      %8771 = vmatpush1.bf16.msra.mxu0 0
      %8772 = vmatprep.subr.bf16.mxu0 0
      %8773 = vmatpush1.bf16.msra.mxu0 0
      %8774 = vmatprep.subr.bf16.mxu0 0
      %8775 = vmatpush1.bf16.msra.mxu0 0
      %8776 = vmatprep.subr.bf16.mxu0 0
      %8777 = vmatpush1.bf16.msra.mxu0 0
      %8778 = vmatprep.mubr.bf16.mxu0 0
      %8779 = vmatmul.mubr.bf16.gmra.mrb[0].mxu0 %v8690
      %v8780 = vpop.f32.mrb[0].mxu0
      %v8781 = vadd.f32 0.0, %v8780
      %v8782 = vpop.f32.mrb[0].mxu0
      %v8783 = vpop.f32.mrb[0].mxu0
      %v8784 = vadd.f32 0.0, %v8783
      %v8785 = vpop.f32.mrb[0].mxu0
      %8786 = vmatprep.mubr.bf16.mxu0 0
      %8787 = vmatmul.mubr.bf16.gmra.mrb[0].mxu0 %v8693
      %v8788 = vpop.f32.mrb[0].mxu0
      %v8789 = vadd.f32 0.0, %v8788
      %v8790 = vpop.f32.mrb[0].mxu0
      %v8791 = vpop.f32.mrb[0].mxu0
      %v8792 = vadd.f32 0.0, %v8791
      %v8793 = vpop.f32.mrb[0].mxu0
      %8794 = vmatprep.mubr.bf16.mxu0 0
      %8795 = vmatmul.mubr.bf16.gmra.mrb[0].mxu0 %v8696
      %v8796 = vpop.f32.mrb[0].mxu0
      %v8797 = vadd.f32 0.0, %v8796
      %v8798 = vpop.f32.mrb[0].mxu0
      %v8799 = vpop.f32.mrb[0].mxu0
      %v8800 = vadd.f32 0.0, %v8799
      %v8801 = vpop.f32.mrb[0].mxu0
      %8802 = vmatprep.mubr.bf16.mxu0 0
      %8803 = vmatmul.mubr.bf16.gmra.mrb[0].mxu0 %v8699
      %v8804 = vpop.f32.mrb[0].mxu0
      %v8805 = vadd.f32 0.0, %v8804
      %v8806 = vpop.f32.mrb[0].mxu0
      %v8807 = vpop.f32.mrb[0].mxu0
      %v8808 = vadd.f32 0.0, %v8807
      %v8809 = vpop.f32.mrb[0].mxu0
      %8810 = vmatprep.mubr.bf16.mxu0 0
      %8811 = vmatmul.mubr.bf16.gmra.mrb[0].mxu0 %v8702
      %v8812 = vpop.f32.mrb[0].mxu0
      %v8813 = vadd.f32 0.0, %v8812
      %v8814 = vpop.f32.mrb[0].mxu0
      %v8815 = vpop.f32.mrb[0].mxu0
      %v8816 = vadd.f32 0.0, %v8815
      %v8817 = vpop.f32.mrb[0].mxu0
      %8818 = vmatprep.mubr.bf16.mxu0 0
      %8819 = vmatmul.mubr.bf16.gmra.mrb[0].mxu0 %v8705
      %v8820 = vpop.f32.mrb[0].mxu0
      %v8821 = vadd.f32 0.0, %v8820
      %v8822 = vpop.f32.mrb[0].mxu0
      %v8823 = vpop.f32.mrb[0].mxu0
      %v8824 = vadd.f32 0.0, %v8823
      %v8825 = vpop.f32.mrb[0].mxu0
      %8826 = vmatprep.mubr.bf16.mxu0 0
      %8827 = vmatmul.mubr.bf16.gmra.mrb[0].mxu0 %v8708
      %v8828 = vpop.f32.mrb[0].mxu0
      %v8829 = vadd.f32 0.0, %v8828
      %v8830 = vpop.f32.mrb[0].mxu0
      %v8831 = vpop.f32.mrb[0].mxu0
      %v8832 = vadd.f32 0.0, %v8831
      %v8833 = vpop.f32.mrb[0].mxu0
      %8834 = vmatprep.mubr.bf16.mxu0 0
      %8835 = vmatmul.mubr.bf16.gmra.mrb[0].mxu0 %v8711
      %v8836 = vpop.f32.mrb[0].mxu0
      %v8837 = vadd.f32 0.0, %v8836
      %v8838 = vpop.f32.mrb[0].mxu0
      %v8839 = vpop.f32.mrb[0].mxu0
      %v8840 = vadd.f32 0.0, %v8839
      %v8841 = vpop.f32.mrb[0].mxu0
      %8842 = vmatprep.mubr.bf16.mxu0 0
      %8843 = vmatmul.mubr.bf16.gmra.mrb[0].mxu0 %v8714
      %v8844 = vpop.f32.mrb[0].mxu0
      %v8845 = vadd.f32 0.0, %v8844
      %v8846 = vpop.f32.mrb[0].mxu0
      %v8847 = vpop.f32.mrb[0].mxu0
      %v8848 = vadd.f32 0.0, %v8847
      %v8849 = vpop.f32.mrb[0].mxu0
      %8850 = vmatprep.mubr.bf16.mxu0 0
      %8851 = vmatmul.mubr.bf16.gmra.mrb[0].mxu0 %v8717
      %v8852 = vpop.f32.mrb[0].mxu0
      %v8853 = vadd.f32 0.0, %v8852
      %v8854 = vpop.f32.mrb[0].mxu0
      %v8855 = vpop.f32.mrb[0].mxu0
      %v8856 = vadd.f32 0.0, %v8855
      %v8857 = vpop.f32.mrb[0].mxu0
      %8858 = vmatprep.mubr.bf16.mxu0 0
      %8859 = vmatmul.mubr.bf16.gmra.mrb[0].mxu0 %v8720
      %v8860 = vpop.f32.mrb[0].mxu0
      %v8861 = vadd.f32 0.0, %v8860
      %v8862 = vpop.f32.mrb[0].mxu0
      %v8863 = vpop.f32.mrb[0].mxu0
      %v8864 = vadd.f32 0.0, %v8863
      %v8865 = vpop.f32.mrb[0].mxu0
      %8866 = vmatprep.mubr.bf16.mxu0 0
      %8867 = vmatmul.mubr.bf16.gmra.mrb[0].mxu0 %v8723
      %v8868 = vpop.f32.mrb[0].mxu0
      %v8869 = vadd.f32 0.0, %v8868
      %v8870 = vpop.f32.mrb[0].mxu0
      %v8871 = vpop.f32.mrb[0].mxu0
      %v8872 = vadd.f32 0.0, %v8871
      %v8873 = vpop.f32.mrb[0].mxu0
      %8874 = vmatprep.mubr.bf16.mxu0 0
      %8875 = vmatmul.mubr.bf16.gmra.mrb[0].mxu0 %v8726
      %v8876 = vpop.f32.mrb[0].mxu0
      %v8877 = vadd.f32 0.0, %v8876
      %v8878 = vpop.f32.mrb[0].mxu0
      %v8879 = vpop.f32.mrb[0].mxu0
      %v8880 = vadd.f32 0.0, %v8879
      %v8881 = vpop.f32.mrb[0].mxu0
      %8882 = vmatprep.mubr.bf16.mxu0 0
      %8883 = vmatmul.mubr.bf16.gmra.mrb[0].mxu0 %v8729
      %v8884 = vpop.f32.mrb[0].mxu0
      %v8885 = vadd.f32 0.0, %v8884
      %v8886 = vpop.f32.mrb[0].mxu0
      %v8887 = vpop.f32.mrb[0].mxu0
      %v8888 = vadd.f32 0.0, %v8887
      %v8889 = vpop.f32.mrb[0].mxu0
      %8890 = vmatprep.mubr.bf16.mxu0 0
      %8891 = vmatmul.mubr.bf16.gmra.mrb[0].mxu0 %v8732
      %v8892 = vpop.f32.mrb[0].mxu0
      %v8893 = vadd.f32 0.0, %v8892
      %v8894 = vpop.f32.mrb[0].mxu0
      %v8895 = vpop.f32.mrb[0].mxu0
      %v8896 = vadd.f32 0.0, %v8895
      %v8897 = vpop.f32.mrb[0].mxu0
      %8898 = vmatprep.mubr.bf16.mxu0 0
      %8899 = vmatmul.mubr.bf16.gmra.mrb[0].mxu0 %v8735
      %v8900 = vpop.f32.mrb[0].mxu0
      %v8901 = vadd.f32 0.0, %v8900
      %v8902 = vpop.f32.mrb[0].mxu0
      %v8903 = vpop.f32.mrb[0].mxu0
      %v8904 = vadd.f32 0.0, %v8903
      %v8905 = vpop.f32.mrb[0].mxu0
      %8906 = vmatprep.mubr.bf16.mxu0 0
      %8907 = vmatmul.mubr.bf16.gmra.mrb[0].mxu0 %v8738
      %v8908 = vpop.f32.mrb[0].mxu0
      %v8909 = vadd.f32 0.0, %v8908
      %v8910 = vpop.f32.mrb[0].mxu0
      %v8911 = vpop.f32.mrb[0].mxu0
      %v8912 = vadd.f32 0.0, %v8911
      %v8913 = vpop.f32.mrb[0].mxu0
      %8914 = vmatprep.mubr.bf16.mxu0 0
      %8915 = vmatmul.mubr.bf16.gmra.mrb[0].mxu0 %v8741
      %v8916 = vpop.f32.mrb[0].mxu0
      %v8917 = vadd.f32 0.0, %v8916
      %v8918 = vpop.f32.mrb[0].mxu0
      %v8919 = vpop.f32.mrb[0].mxu0
      %v8920 = vadd.f32 0.0, %v8919
      %v8921 = vpop.f32.mrb[0].mxu0
      %8922 = vdwg.mxu0
      %v8923 = vadd.f32 %v8351, %v8781
      %v8924 = vadd.f32 %v8352, %v8784
      %v8925 = vadd.f32 %v8353, %v8789
      %v8926 = vadd.f32 %v8354, %v8792
      %v8927 = vadd.f32 %v8355, %v8797
      %v8928 = vadd.f32 %v8356, %v8800
      %v8929 = vadd.f32 %v8357, %v8805
      %v8930 = vadd.f32 %v8358, %v8808
      %v8931 = vadd.f32 %v8359, %v8813
      %v8932 = vadd.f32 %v8360, %v8816
      %v8933 = vadd.f32 %v8361, %v8821
      %v8934 = vadd.f32 %v8362, %v8824
      %v8935 = vadd.f32 %v8363, %v8829
      %v8936 = vadd.f32 %v8364, %v8832
      %v8937 = vadd.f32 %v8365, %v8837
      %v8938 = vadd.f32 %v8366, %v8840
      %v8939 = vadd.f32 %v8367, %v8845
      %v8940 = vadd.f32 %v8368, %v8848
      %v8941 = vadd.f32 %v8369, %v8853
      %v8942 = vadd.f32 %v8370, %v8856
      %v8943 = vadd.f32 %v8371, %v8861
      %v8944 = vadd.f32 %v8372, %v8864
      %v8945 = vadd.f32 %v8373, %v8869
      %v8946 = vadd.f32 %v8374, %v8872
      %v8947 = vadd.f32 %v8375, %v8877
      %v8948 = vadd.f32 %v8376, %v8880
      %v8949 = vadd.f32 %v8377, %v8885
      %v8950 = vadd.f32 %v8378, %v8888
      %v8951 = vadd.f32 %v8379, %v8893
      %v8952 = vadd.f32 %v8380, %v8896
      %v8953 = vadd.f32 %v8381, %v8901
      %v8954 = vadd.f32 %v8382, %v8904
      %v8955 = vadd.f32 %v8383, %v8909
      %v8956 = vadd.f32 %v8384, %v8912
      %v8957 = vadd.f32 %v8385, %v8917
      %v8958 = vadd.f32 %v8386, %v8920
      %v8959 = vld [vmem:[#allocation2 + $0x1c] sm:$0xc]
      %s8960 = scalar_lea.vmem %s3, 14
      %v8961 = vld [vmem:[%s8960] sm:$0x3]
      %v8963 = vunpack.c.l.b16 %v8959
      %v8964 = vpack.c.b16 %v8464, %v8963
      %vm8965 = vcmask 1045504
      %v8966 = vrot.slane %v8964, 2
      %v8967 = vrot.slane %v8501, 2
      %v8968 = vsel %vm8965, %v8966, %v8967
      %v8969 = vrot.slane %v8502, 2
      %v8970 = vsel %vm8965, %v8967, %v8969
      %v8971 = vrot.slane %v8503, 2
      %v8972 = vsel %vm8965, %v8969, %v8971
      %v8973 = vrot.slane %v8504, 2
      %v8974 = vsel %vm8965, %v8971, %v8973
      %v8975 = vrot.slane %v8505, 2
      %v8976 = vsel %vm8965, %v8973, %v8975
      %v8977 = vrot.slane %v8506, 2
      %v8978 = vsel %vm8965, %v8975, %v8977
      %v8979 = vrot.slane %v8507, 2
      %v8980 = vsel %vm8965, %v8977, %v8979
      %v8981 = vrot.slane %v8508, 2
      %v8982 = vsel %vm8965, %v8979, %v8981
      %v8983 = vrot.slane %v8509, 2
      %v8984 = vsel %vm8965, %v8981, %v8983
      %v8985 = vrot.slane %v8510, 2
      %v8986 = vsel %vm8965, %v8983, %v8985
      %v8987 = vrot.slane %v8511, 2
      %v8988 = vsel %vm8965, %v8985, %v8987
      %v8989 = vrot.slane %v8512, 2
      %v8990 = vsel %vm8965, %v8987, %v8989
      %v8991 = vrot.slane %v8513, 2
      %v8992 = vsel %vm8965, %v8989, %v8991
      %v8993 = vrot.slane %v8514, 2
      %v8994 = vsel %vm8965, %v8991, %v8993
      %v8995 = vrot.slane %v8515, 2
      %v8996 = vsel %vm8965, %v8993, %v8995
      %v8997 = vrot.slane %v8516, 2
      %v8998 = vsel %vm8965, %v8995, %v8997
      %v8999 = vrot.slane %v8517, 2
      %v9000 = vsel %vm8965, %v8997, %v8999
      %v9001 = vrot.slane %v8518, 2
      %v9002 = vsel %vm8965, %v8999, %v9001
      %v9004 = vsel %vm5952, %v8968, 0
      %v9007 = vsel %vm5952, %v8970, 0
      %v9010 = vsel %vm5952, %v8972, 0
      %v9013 = vsel %vm5952, %v8974, 0
      %v9016 = vsel %vm5952, %v8976, 0
      %v9019 = vsel %vm5952, %v8978, 0
      %v9022 = vsel %vm5952, %v8980, 0
      %v9025 = vsel %vm5952, %v8982, 0
      %v9028 = vsel %vm5952, %v8984, 0
      %v9031 = vsel %vm5952, %v8986, 0
      %v9034 = vsel %vm5952, %v8988, 0
      %v9037 = vsel %vm5952, %v8990, 0
      %v9040 = vsel %vm5952, %v8992, 0
      %v9043 = vsel %vm5952, %v8994, 0
      %v9046 = vsel %vm5952, %v8996, 0
      %v9049 = vsel %vm5952, %v8998, 0
      %v9052 = vsel %vm5952, %v9000, 0
      %v9055 = vsel %vm5952, %v9002, 0
      %v9058 = vsel %vm6007, %v8961, 0
      %9060 = vmatprep.subr.bf16.mxu0 0
      %9061 = vmatpush1.bf16.msra.mxu0 %v9058
      %9062 = vmatprep.subr.bf16.mxu0 0
      %9063 = vmatpush1.bf16.msra.mxu0 0
      %9064 = vmatprep.subr.bf16.mxu0 0
      %9065 = vmatpush1.bf16.msra.mxu0 0
      %9066 = vmatprep.subr.bf16.mxu0 0
      %9067 = vmatpush1.bf16.msra.mxu0 0
      %9068 = vmatprep.subr.bf16.mxu0 0
      %9069 = vmatpush1.bf16.msra.mxu0 0
      %9070 = vmatprep.subr.bf16.mxu0 0
      %9071 = vmatpush1.bf16.msra.mxu0 0
      %9072 = vmatprep.subr.bf16.mxu0 0
      %9073 = vmatpush1.bf16.msra.mxu0 0
      %9074 = vmatprep.subr.bf16.mxu0 0
      %9075 = vmatpush1.bf16.msra.mxu0 0
      %9076 = vmatprep.subr.bf16.mxu0 0
      %9077 = vmatpush1.bf16.msra.mxu0 0
      %9078 = vmatprep.subr.bf16.mxu0 0
      %9079 = vmatpush1.bf16.msra.mxu0 0
      %9080 = vmatprep.subr.bf16.mxu0 0
      %9081 = vmatpush1.bf16.msra.mxu0 0
      %9082 = vmatprep.subr.bf16.mxu0 0
      %9083 = vmatpush1.bf16.msra.mxu0 0
      %9084 = vmatprep.subr.bf16.mxu0 0
      %9085 = vmatpush1.bf16.msra.mxu0 0
      %9086 = vmatprep.subr.bf16.mxu0 0
      %9087 = vmatpush1.bf16.msra.mxu0 0
      %9088 = vmatprep.subr.bf16.mxu0 0
      %9089 = vmatpush1.bf16.msra.mxu0 0
      %9090 = vmatprep.subr.bf16.mxu0 0
      %9091 = vmatpush1.bf16.msra.mxu0 0
      %9092 = vmatprep.mubr.bf16.mxu0 0
      %9093 = vmatmul.mubr.bf16.gmra.mrb[0].mxu0 %v9004
      %v9094 = vpop.f32.mrb[0].mxu0
      %v9095 = vadd.f32 0.0, %v9094
      %v9096 = vpop.f32.mrb[0].mxu0
      %v9097 = vpop.f32.mrb[0].mxu0
      %v9098 = vadd.f32 0.0, %v9097
      %v9099 = vpop.f32.mrb[0].mxu0
      %9100 = vmatprep.mubr.bf16.mxu0 0
      %9101 = vmatmul.mubr.bf16.gmra.mrb[0].mxu0 %v9007
      %v9102 = vpop.f32.mrb[0].mxu0
      %v9103 = vadd.f32 0.0, %v9102
      %v9104 = vpop.f32.mrb[0].mxu0
      %v9105 = vpop.f32.mrb[0].mxu0
      %v9106 = vadd.f32 0.0, %v9105
      %v9107 = vpop.f32.mrb[0].mxu0
      %9108 = vmatprep.mubr.bf16.mxu0 0
      %9109 = vmatmul.mubr.bf16.gmra.mrb[0].mxu0 %v9010
      %v9110 = vpop.f32.mrb[0].mxu0
      %v9111 = vadd.f32 0.0, %v9110
      %v9112 = vpop.f32.mrb[0].mxu0
      %v9113 = vpop.f32.mrb[0].mxu0
      %v9114 = vadd.f32 0.0, %v9113
      %v9115 = vpop.f32.mrb[0].mxu0
      %9116 = vmatprep.mubr.bf16.mxu0 0
      %9117 = vmatmul.mubr.bf16.gmra.mrb[0].mxu0 %v9013
      %v9118 = vpop.f32.mrb[0].mxu0
      %v9119 = vadd.f32 0.0, %v9118
      %v9120 = vpop.f32.mrb[0].mxu0
      %v9121 = vpop.f32.mrb[0].mxu0
      %v9122 = vadd.f32 0.0, %v9121
      %v9123 = vpop.f32.mrb[0].mxu0
      %9124 = vmatprep.mubr.bf16.mxu0 0
      %9125 = vmatmul.mubr.bf16.gmra.mrb[0].mxu0 %v9016
      %v9126 = vpop.f32.mrb[0].mxu0
      %v9127 = vadd.f32 0.0, %v9126
      %v9128 = vpop.f32.mrb[0].mxu0
      %v9129 = vpop.f32.mrb[0].mxu0
      %v9130 = vadd.f32 0.0, %v9129
      %v9131 = vpop.f32.mrb[0].mxu0
      %9132 = vmatprep.mubr.bf16.mxu0 0
      %9133 = vmatmul.mubr.bf16.gmra.mrb[0].mxu0 %v9019
      %v9134 = vpop.f32.mrb[0].mxu0
      %v9135 = vadd.f32 0.0, %v9134
      %v9136 = vpop.f32.mrb[0].mxu0
      %v9137 = vpop.f32.mrb[0].mxu0
      %v9138 = vadd.f32 0.0, %v9137
      %v9139 = vpop.f32.mrb[0].mxu0
      %9140 = vmatprep.mubr.bf16.mxu0 0
      %9141 = vmatmul.mubr.bf16.gmra.mrb[0].mxu0 %v9022
      %v9142 = vpop.f32.mrb[0].mxu0
      %v9143 = vadd.f32 0.0, %v9142
      %v9144 = vpop.f32.mrb[0].mxu0
      %v9145 = vpop.f32.mrb[0].mxu0
      %v9146 = vadd.f32 0.0, %v9145
      %v9147 = vpop.f32.mrb[0].mxu0
      %9148 = vmatprep.mubr.bf16.mxu0 0
      %9149 = vmatmul.mubr.bf16.gmra.mrb[0].mxu0 %v9025
      %v9150 = vpop.f32.mrb[0].mxu0
      %v9151 = vadd.f32 0.0, %v9150
      %v9152 = vpop.f32.mrb[0].mxu0
      %v9153 = vpop.f32.mrb[0].mxu0
      %v9154 = vadd.f32 0.0, %v9153
      %v9155 = vpop.f32.mrb[0].mxu0
      %9156 = vmatprep.mubr.bf16.mxu0 0
      %9157 = vmatmul.mubr.bf16.gmra.mrb[0].mxu0 %v9028
      %v9158 = vpop.f32.mrb[0].mxu0
      %v9159 = vadd.f32 0.0, %v9158
      %v9160 = vpop.f32.mrb[0].mxu0
      %v9161 = vpop.f32.mrb[0].mxu0
      %v9162 = vadd.f32 0.0, %v9161
      %v9163 = vpop.f32.mrb[0].mxu0
      %9164 = vmatprep.mubr.bf16.mxu0 0
      %9165 = vmatmul.mubr.bf16.gmra.mrb[0].mxu0 %v9031
      %v9166 = vpop.f32.mrb[0].mxu0
      %v9167 = vadd.f32 0.0, %v9166
      %v9168 = vpop.f32.mrb[0].mxu0
      %v9169 = vpop.f32.mrb[0].mxu0
      %v9170 = vadd.f32 0.0, %v9169
      %v9171 = vpop.f32.mrb[0].mxu0
      %9172 = vmatprep.mubr.bf16.mxu0 0
      %9173 = vmatmul.mubr.bf16.gmra.mrb[0].mxu0 %v9034
      %v9174 = vpop.f32.mrb[0].mxu0
      %v9175 = vadd.f32 0.0, %v9174
      %v9176 = vpop.f32.mrb[0].mxu0
      %v9177 = vpop.f32.mrb[0].mxu0
      %v9178 = vadd.f32 0.0, %v9177
      %v9179 = vpop.f32.mrb[0].mxu0
      %9180 = vmatprep.mubr.bf16.mxu0 0
      %9181 = vmatmul.mubr.bf16.gmra.mrb[0].mxu0 %v9037
      %v9182 = vpop.f32.mrb[0].mxu0
      %v9183 = vadd.f32 0.0, %v9182
      %v9184 = vpop.f32.mrb[0].mxu0
      %v9185 = vpop.f32.mrb[0].mxu0
      %v9186 = vadd.f32 0.0, %v9185
      %v9187 = vpop.f32.mrb[0].mxu0
      %9188 = vmatprep.mubr.bf16.mxu0 0
      %9189 = vmatmul.mubr.bf16.gmra.mrb[0].mxu0 %v9040
      %v9190 = vpop.f32.mrb[0].mxu0
      %v9191 = vadd.f32 0.0, %v9190
      %v9192 = vpop.f32.mrb[0].mxu0
      %v9193 = vpop.f32.mrb[0].mxu0
      %v9194 = vadd.f32 0.0, %v9193
      %v9195 = vpop.f32.mrb[0].mxu0
      %9196 = vmatprep.mubr.bf16.mxu0 0
      %9197 = vmatmul.mubr.bf16.gmra.mrb[0].mxu0 %v9043
      %v9198 = vpop.f32.mrb[0].mxu0
      %v9199 = vadd.f32 0.0, %v9198
      %v9200 = vpop.f32.mrb[0].mxu0
      %v9201 = vpop.f32.mrb[0].mxu0
      %v9202 = vadd.f32 0.0, %v9201
      %v9203 = vpop.f32.mrb[0].mxu0
      %9204 = vmatprep.mubr.bf16.mxu0 0
      %9205 = vmatmul.mubr.bf16.gmra.mrb[0].mxu0 %v9046
      %v9206 = vpop.f32.mrb[0].mxu0
      %v9207 = vadd.f32 0.0, %v9206
      %v9208 = vpop.f32.mrb[0].mxu0
      %v9209 = vpop.f32.mrb[0].mxu0
      %v9210 = vadd.f32 0.0, %v9209
      %v9211 = vpop.f32.mrb[0].mxu0
      %9212 = vmatprep.mubr.bf16.mxu0 0
      %9213 = vmatmul.mubr.bf16.gmra.mrb[0].mxu0 %v9049
      %v9214 = vpop.f32.mrb[0].mxu0
      %v9215 = vadd.f32 0.0, %v9214
      %v9216 = vpop.f32.mrb[0].mxu0
      %v9217 = vpop.f32.mrb[0].mxu0
      %v9218 = vadd.f32 0.0, %v9217
      %v9219 = vpop.f32.mrb[0].mxu0
      %9220 = vmatprep.mubr.bf16.mxu0 0
      %9221 = vmatmul.mubr.bf16.gmra.mrb[0].mxu0 %v9052
      %v9222 = vpop.f32.mrb[0].mxu0
      %v9223 = vadd.f32 0.0, %v9222
      %v9224 = vpop.f32.mrb[0].mxu0
      %v9225 = vpop.f32.mrb[0].mxu0
      %v9226 = vadd.f32 0.0, %v9225
      %v9227 = vpop.f32.mrb[0].mxu0
      %9228 = vmatprep.mubr.bf16.mxu0 0
      %9229 = vmatmul.mubr.bf16.gmra.mrb[0].mxu0 %v9055
      %v9230 = vpop.f32.mrb[0].mxu0
      %v9231 = vadd.f32 0.0, %v9230
      %v9232 = vpop.f32.mrb[0].mxu0
      %v9233 = vpop.f32.mrb[0].mxu0
      %v9234 = vadd.f32 0.0, %v9233
      %v9235 = vpop.f32.mrb[0].mxu0
      %9236 = vdwg.mxu0
      %v9237 = vadd.f32 %v8923, %v9095
      %v9238 = vadd.f32 %v8924, %v9098
      %v9239 = vadd.f32 %v8925, %v9103
      %v9240 = vadd.f32 %v8926, %v9106
      %v9241 = vadd.f32 %v8927, %v9111
      %v9242 = vadd.f32 %v8928, %v9114
      %v9243 = vadd.f32 %v8929, %v9119
      %v9244 = vadd.f32 %v8930, %v9122
      %v9245 = vadd.f32 %v8931, %v9127
      %v9246 = vadd.f32 %v8932, %v9130
      %v9247 = vadd.f32 %v8933, %v9135
      %v9248 = vadd.f32 %v8934, %v9138
      %v9249 = vadd.f32 %v8935, %v9143
      %v9250 = vadd.f32 %v8936, %v9146
      %v9251 = vadd.f32 %v8937, %v9151
      %v9252 = vadd.f32 %v8938, %v9154
      %v9253 = vadd.f32 %v8939, %v9159
      %v9254 = vadd.f32 %v8940, %v9162
      %v9255 = vadd.f32 %v8941, %v9167
      %v9256 = vadd.f32 %v8942, %v9170
      %v9257 = vadd.f32 %v8943, %v9175
      %v9258 = vadd.f32 %v8944, %v9178
      %v9259 = vadd.f32 %v8945, %v9183
      %v9260 = vadd.f32 %v8946, %v9186
      %v9261 = vadd.f32 %v8947, %v9191
      %v9262 = vadd.f32 %v8948, %v9194
      %v9263 = vadd.f32 %v8949, %v9199
      %v9264 = vadd.f32 %v8950, %v9202
      %v9265 = vadd.f32 %v8951, %v9207
      %v9266 = vadd.f32 %v8952, %v9210
      %v9267 = vadd.f32 %v8953, %v9215
      %v9268 = vadd.f32 %v8954, %v9218
      %v9269 = vadd.f32 %v8955, %v9223
      %v9270 = vadd.f32 %v8956, %v9226
      %v9271 = vadd.f32 %v8957, %v9231
      %v9272 = vadd.f32 %v8958, %v9234
      %v9273 = vld [vmem:[#allocation2 + $0xac] sm:$0x7]
      %s9274 = scalar_lea.vmem %s3, 16
      %v9275 = vld [vmem:[%s9274] sm:$0x3]
      %v9277 = vunpack.c.l.b16 %v9273
      %v9278 = vpack.c.b16 %v9277, %v9277
      %v9280 = vshrl.u32 %v8964, 16
      %v9282 = vrot.slane %v9280, 2
      %v9283 = vshll.u32 %v8964, 16
      %v9285 = vrot.slane %v9283, 3
      %v9286 = vor.u32 %v9282, %v9285
      %v9287 = vrot.slane %v8528, 2
      %v9288 = vrot.slane %v8531, 3
      %v9289 = vor.u32 %v9287, %v9288
      %v9290 = vsel %vm771, %v9286, %v9289
      %v9291 = vrot.slane %v8537, 2
      %v9292 = vrot.slane %v8540, 3
      %v9293 = vor.u32 %v9291, %v9292
      %v9294 = vsel %vm771, %v9289, %v9293
      %v9295 = vrot.slane %v8546, 2
      %v9296 = vrot.slane %v8549, 3
      %v9297 = vor.u32 %v9295, %v9296
      %v9298 = vsel %vm771, %v9293, %v9297
      %v9299 = vrot.slane %v8555, 2
      %v9300 = vrot.slane %v8558, 3
      %v9301 = vor.u32 %v9299, %v9300
      %v9302 = vsel %vm771, %v9297, %v9301
      %v9303 = vrot.slane %v8564, 2
      %v9304 = vrot.slane %v8567, 3
      %v9305 = vor.u32 %v9303, %v9304
      %v9306 = vsel %vm771, %v9301, %v9305
      %v9307 = vrot.slane %v8573, 2
      %v9308 = vrot.slane %v8576, 3
      %v9309 = vor.u32 %v9307, %v9308
      %v9310 = vsel %vm771, %v9305, %v9309
      %v9311 = vrot.slane %v8582, 2
      %v9312 = vrot.slane %v8585, 3
      %v9313 = vor.u32 %v9311, %v9312
      %v9314 = vsel %vm771, %v9309, %v9313
      %v9315 = vrot.slane %v8591, 2
      %v9316 = vrot.slane %v8594, 3
      %v9317 = vor.u32 %v9315, %v9316
      %v9318 = vsel %vm771, %v9313, %v9317
      %v9319 = vrot.slane %v8600, 2
      %v9320 = vrot.slane %v8603, 3
      %v9321 = vor.u32 %v9319, %v9320
      %v9322 = vsel %vm771, %v9317, %v9321
      %v9323 = vrot.slane %v8609, 2
      %v9324 = vrot.slane %v8612, 3
      %v9325 = vor.u32 %v9323, %v9324
      %v9326 = vsel %vm771, %v9321, %v9325
      %v9327 = vrot.slane %v8618, 2
      %v9328 = vrot.slane %v8621, 3
      %v9329 = vor.u32 %v9327, %v9328
      %v9330 = vsel %vm771, %v9325, %v9329
      %v9331 = vrot.slane %v8627, 2
      %v9332 = vrot.slane %v8630, 3
      %v9333 = vor.u32 %v9331, %v9332
      %v9334 = vsel %vm771, %v9329, %v9333
      %v9335 = vrot.slane %v8636, 2
      %v9336 = vrot.slane %v8639, 3
      %v9337 = vor.u32 %v9335, %v9336
      %v9338 = vsel %vm771, %v9333, %v9337
      %v9339 = vrot.slane %v8645, 2
      %v9340 = vrot.slane %v8648, 3
      %v9341 = vor.u32 %v9339, %v9340
      %v9342 = vsel %vm771, %v9337, %v9341
      %v9343 = vrot.slane %v8654, 2
      %v9344 = vrot.slane %v8657, 3
      %v9345 = vor.u32 %v9343, %v9344
      %v9346 = vsel %vm771, %v9341, %v9345
      %v9347 = vrot.slane %v8663, 2
      %v9348 = vrot.slane %v8666, 3
      %v9349 = vor.u32 %v9347, %v9348
      %v9350 = vsel %vm771, %v9345, %v9349
      %v9351 = vrot.slane %v8672, 2
      %v9352 = vrot.slane %v8675, 3
      %v9353 = vor.u32 %v9351, %v9352
      %v9354 = vsel %vm771, %v9349, %v9353
      %v9356 = vshrl.u32 %v9278, 16
      %v9358 = vrot.slane %v9356, 2
      %v9359 = vshll.u32 %v9278, 16
      %v9361 = vrot.slane %v9359, 3
      %v9362 = vor.u32 %v9358, %v9361
      %v9363 = vsel %vm771, %v9353, %v9362
      %v9365 = vsel %vm5952, %v9290, 0
      %v9368 = vsel %vm5952, %v9294, 0
      %v9371 = vsel %vm5952, %v9298, 0
      %v9374 = vsel %vm5952, %v9302, 0
      %v9377 = vsel %vm5952, %v9306, 0
      %v9380 = vsel %vm5952, %v9310, 0
      %v9383 = vsel %vm5952, %v9314, 0
      %v9386 = vsel %vm5952, %v9318, 0
      %v9389 = vsel %vm5952, %v9322, 0
      %v9392 = vsel %vm5952, %v9326, 0
      %v9395 = vsel %vm5952, %v9330, 0
      %v9398 = vsel %vm5952, %v9334, 0
      %v9401 = vsel %vm5952, %v9338, 0
      %v9404 = vsel %vm5952, %v9342, 0
      %v9407 = vsel %vm5952, %v9346, 0
      %v9410 = vsel %vm5952, %v9350, 0
      %v9413 = vsel %vm5952, %v9354, 0
      %v9416 = vsel %vm5952, %v9363, 0
      %v9419 = vsel %vm6007, %v9275, 0
      %9421 = vmatprep.subr.bf16.mxu0 0
      %9422 = vmatpush1.bf16.msra.mxu0 %v9419
      %9423 = vmatprep.subr.bf16.mxu0 0
      %9424 = vmatpush1.bf16.msra.mxu0 0
      %9425 = vmatprep.subr.bf16.mxu0 0
      %9426 = vmatpush1.bf16.msra.mxu0 0
      %9427 = vmatprep.subr.bf16.mxu0 0
      %9428 = vmatpush1.bf16.msra.mxu0 0
      %9429 = vmatprep.subr.bf16.mxu0 0
      %9430 = vmatpush1.bf16.msra.mxu0 0
      %9431 = vmatprep.subr.bf16.mxu0 0
      %9432 = vmatpush1.bf16.msra.mxu0 0
      %9433 = vmatprep.subr.bf16.mxu0 0
      %9434 = vmatpush1.bf16.msra.mxu0 0
      %9435 = vmatprep.subr.bf16.mxu0 0
      %9436 = vmatpush1.bf16.msra.mxu0 0
      %9437 = vmatprep.subr.bf16.mxu0 0
      %9438 = vmatpush1.bf16.msra.mxu0 0
      %9439 = vmatprep.subr.bf16.mxu0 0
      %9440 = vmatpush1.bf16.msra.mxu0 0
      %9441 = vmatprep.subr.bf16.mxu0 0
      %9442 = vmatpush1.bf16.msra.mxu0 0
      %9443 = vmatprep.subr.bf16.mxu0 0
      %9444 = vmatpush1.bf16.msra.mxu0 0
      %9445 = vmatprep.subr.bf16.mxu0 0
      %9446 = vmatpush1.bf16.msra.mxu0 0
      %9447 = vmatprep.subr.bf16.mxu0 0
      %9448 = vmatpush1.bf16.msra.mxu0 0
      %9449 = vmatprep.subr.bf16.mxu0 0
      %9450 = vmatpush1.bf16.msra.mxu0 0
      %9451 = vmatprep.subr.bf16.mxu0 0
      %9452 = vmatpush1.bf16.msra.mxu0 0
      %9453 = vmatprep.mubr.bf16.mxu0 0
      %9454 = vmatmul.mubr.bf16.gmra.mrb[0].mxu0 %v9365
      %v9455 = vpop.f32.mrb[0].mxu0
      %v9456 = vadd.f32 0.0, %v9455
      %v9457 = vpop.f32.mrb[0].mxu0
      %v9458 = vpop.f32.mrb[0].mxu0
      %v9459 = vadd.f32 0.0, %v9458
      %v9460 = vpop.f32.mrb[0].mxu0
      %9461 = vmatprep.mubr.bf16.mxu0 0
      %9462 = vmatmul.mubr.bf16.gmra.mrb[0].mxu0 %v9368
      %v9463 = vpop.f32.mrb[0].mxu0
      %v9464 = vadd.f32 0.0, %v9463
      %v9465 = vpop.f32.mrb[0].mxu0
      %v9466 = vpop.f32.mrb[0].mxu0
      %v9467 = vadd.f32 0.0, %v9466
      %v9468 = vpop.f32.mrb[0].mxu0
      %9469 = vmatprep.mubr.bf16.mxu0 0
      %9470 = vmatmul.mubr.bf16.gmra.mrb[0].mxu0 %v9371
      %v9471 = vpop.f32.mrb[0].mxu0
      %v9472 = vadd.f32 0.0, %v9471
      %v9473 = vpop.f32.mrb[0].mxu0
      %v9474 = vpop.f32.mrb[0].mxu0
      %v9475 = vadd.f32 0.0, %v9474
      %v9476 = vpop.f32.mrb[0].mxu0
      %9477 = vmatprep.mubr.bf16.mxu0 0
      %9478 = vmatmul.mubr.bf16.gmra.mrb[0].mxu0 %v9374
      %v9479 = vpop.f32.mrb[0].mxu0
      %v9480 = vadd.f32 0.0, %v9479
      %v9481 = vpop.f32.mrb[0].mxu0
      %v9482 = vpop.f32.mrb[0].mxu0
      %v9483 = vadd.f32 0.0, %v9482
      %v9484 = vpop.f32.mrb[0].mxu0
      %9485 = vmatprep.mubr.bf16.mxu0 0
      %9486 = vmatmul.mubr.bf16.gmra.mrb[0].mxu0 %v9377
      %v9487 = vpop.f32.mrb[0].mxu0
      %v9488 = vadd.f32 0.0, %v9487
      %v9489 = vpop.f32.mrb[0].mxu0
      %v9490 = vpop.f32.mrb[0].mxu0
      %v9491 = vadd.f32 0.0, %v9490
      %v9492 = vpop.f32.mrb[0].mxu0
      %9493 = vmatprep.mubr.bf16.mxu0 0
      %9494 = vmatmul.mubr.bf16.gmra.mrb[0].mxu0 %v9380
      %v9495 = vpop.f32.mrb[0].mxu0
      %v9496 = vadd.f32 0.0, %v9495
      %v9497 = vpop.f32.mrb[0].mxu0
      %v9498 = vpop.f32.mrb[0].mxu0
      %v9499 = vadd.f32 0.0, %v9498
      %v9500 = vpop.f32.mrb[0].mxu0
      %9501 = vmatprep.mubr.bf16.mxu0 0
      %9502 = vmatmul.mubr.bf16.gmra.mrb[0].mxu0 %v9383
      %v9503 = vpop.f32.mrb[0].mxu0
      %v9504 = vadd.f32 0.0, %v9503
      %v9505 = vpop.f32.mrb[0].mxu0
      %v9506 = vpop.f32.mrb[0].mxu0
      %v9507 = vadd.f32 0.0, %v9506
      %v9508 = vpop.f32.mrb[0].mxu0
      %9509 = vmatprep.mubr.bf16.mxu0 0
      %9510 = vmatmul.mubr.bf16.gmra.mrb[0].mxu0 %v9386
      %v9511 = vpop.f32.mrb[0].mxu0
      %v9512 = vadd.f32 0.0, %v9511
      %v9513 = vpop.f32.mrb[0].mxu0
      %v9514 = vpop.f32.mrb[0].mxu0
      %v9515 = vadd.f32 0.0, %v9514
      %v9516 = vpop.f32.mrb[0].mxu0
      %9517 = vmatprep.mubr.bf16.mxu0 0
      %9518 = vmatmul.mubr.bf16.gmra.mrb[0].mxu0 %v9389
      %v9519 = vpop.f32.mrb[0].mxu0
      %v9520 = vadd.f32 0.0, %v9519
      %v9521 = vpop.f32.mrb[0].mxu0
      %v9522 = vpop.f32.mrb[0].mxu0
      %v9523 = vadd.f32 0.0, %v9522
      %v9524 = vpop.f32.mrb[0].mxu0
      %9525 = vmatprep.mubr.bf16.mxu0 0
      %9526 = vmatmul.mubr.bf16.gmra.mrb[0].mxu0 %v9392
      %v9527 = vpop.f32.mrb[0].mxu0
      %v9528 = vadd.f32 0.0, %v9527
      %v9529 = vpop.f32.mrb[0].mxu0
      %v9530 = vpop.f32.mrb[0].mxu0
      %v9531 = vadd.f32 0.0, %v9530
      %v9532 = vpop.f32.mrb[0].mxu0
      %9533 = vmatprep.mubr.bf16.mxu0 0
      %9534 = vmatmul.mubr.bf16.gmra.mrb[0].mxu0 %v9395
      %v9535 = vpop.f32.mrb[0].mxu0
      %v9536 = vadd.f32 0.0, %v9535
      %v9537 = vpop.f32.mrb[0].mxu0
      %v9538 = vpop.f32.mrb[0].mxu0
      %v9539 = vadd.f32 0.0, %v9538
      %v9540 = vpop.f32.mrb[0].mxu0
      %9541 = vmatprep.mubr.bf16.mxu0 0
      %9542 = vmatmul.mubr.bf16.gmra.mrb[0].mxu0 %v9398
      %v9543 = vpop.f32.mrb[0].mxu0
      %v9544 = vadd.f32 0.0, %v9543
      %v9545 = vpop.f32.mrb[0].mxu0
      %v9546 = vpop.f32.mrb[0].mxu0
      %v9547 = vadd.f32 0.0, %v9546
      %v9548 = vpop.f32.mrb[0].mxu0
      %9549 = vmatprep.mubr.bf16.mxu0 0
      %9550 = vmatmul.mubr.bf16.gmra.mrb[0].mxu0 %v9401
      %v9551 = vpop.f32.mrb[0].mxu0
      %v9552 = vadd.f32 0.0, %v9551
      %v9553 = vpop.f32.mrb[0].mxu0
      %v9554 = vpop.f32.mrb[0].mxu0
      %v9555 = vadd.f32 0.0, %v9554
      %v9556 = vpop.f32.mrb[0].mxu0
      %9557 = vmatprep.mubr.bf16.mxu0 0
      %9558 = vmatmul.mubr.bf16.gmra.mrb[0].mxu0 %v9404
      %v9559 = vpop.f32.mrb[0].mxu0
      %v9560 = vadd.f32 0.0, %v9559
      %v9561 = vpop.f32.mrb[0].mxu0
      %v9562 = vpop.f32.mrb[0].mxu0
      %v9563 = vadd.f32 0.0, %v9562
      %v9564 = vpop.f32.mrb[0].mxu0
      %9565 = vmatprep.mubr.bf16.mxu0 0
      %9566 = vmatmul.mubr.bf16.gmra.mrb[0].mxu0 %v9407
      %v9567 = vpop.f32.mrb[0].mxu0
      %v9568 = vadd.f32 0.0, %v9567
      %v9569 = vpop.f32.mrb[0].mxu0
      %v9570 = vpop.f32.mrb[0].mxu0
      %v9571 = vadd.f32 0.0, %v9570
      %v9572 = vpop.f32.mrb[0].mxu0
      %9573 = vmatprep.mubr.bf16.mxu0 0
      %9574 = vmatmul.mubr.bf16.gmra.mrb[0].mxu0 %v9410
      %v9575 = vpop.f32.mrb[0].mxu0
      %v9576 = vadd.f32 0.0, %v9575
      %v9577 = vpop.f32.mrb[0].mxu0
      %v9578 = vpop.f32.mrb[0].mxu0
      %v9579 = vadd.f32 0.0, %v9578
      %v9580 = vpop.f32.mrb[0].mxu0
      %9581 = vmatprep.mubr.bf16.mxu0 0
      %9582 = vmatmul.mubr.bf16.gmra.mrb[0].mxu0 %v9413
      %v9583 = vpop.f32.mrb[0].mxu0
      %v9584 = vadd.f32 0.0, %v9583
      %v9585 = vpop.f32.mrb[0].mxu0
      %v9586 = vpop.f32.mrb[0].mxu0
      %v9587 = vadd.f32 0.0, %v9586
      %v9588 = vpop.f32.mrb[0].mxu0
      %9589 = vmatprep.mubr.bf16.mxu0 0
      %9590 = vmatmul.mubr.bf16.gmra.mrb[0].mxu0 %v9416
      %v9591 = vpop.f32.mrb[0].mxu0
      %v9592 = vadd.f32 0.0, %v9591
      %v9593 = vpop.f32.mrb[0].mxu0
      %v9594 = vpop.f32.mrb[0].mxu0
      %v9595 = vadd.f32 0.0, %v9594
      %v9596 = vpop.f32.mrb[0].mxu0
      %9597 = vdwg.mxu0
      %v9598 = vadd.f32 %v9237, %v9456
      %v9599 = vadd.f32 %v9238, %v9459
      %v9600 = vadd.f32 %v9239, %v9464
      %v9601 = vadd.f32 %v9240, %v9467
      %v9602 = vadd.f32 %v9241, %v9472
      %v9603 = vadd.f32 %v9242, %v9475
      %v9604 = vadd.f32 %v9243, %v9480
      %v9605 = vadd.f32 %v9244, %v9483
      %v9606 = vadd.f32 %v9245, %v9488
      %v9607 = vadd.f32 %v9246, %v9491
      %v9608 = vadd.f32 %v9247, %v9496
      %v9609 = vadd.f32 %v9248, %v9499
      %v9610 = vadd.f32 %v9249, %v9504
      %v9611 = vadd.f32 %v9250, %v9507
      %v9612 = vadd.f32 %v9251, %v9512
      %v9613 = vadd.f32 %v9252, %v9515
      %v9614 = vadd.f32 %v9253, %v9520
      %v9615 = vadd.f32 %v9254, %v9523
      %v9616 = vadd.f32 %v9255, %v9528
      %v9617 = vadd.f32 %v9256, %v9531
      %v9618 = vadd.f32 %v9257, %v9536
      %v9619 = vadd.f32 %v9258, %v9539
      %v9620 = vadd.f32 %v9259, %v9544
      %v9621 = vadd.f32 %v9260, %v9547
      %v9622 = vadd.f32 %v9261, %v9552
      %v9623 = vadd.f32 %v9262, %v9555
      %v9624 = vadd.f32 %v9263, %v9560
      %v9625 = vadd.f32 %v9264, %v9563
      %v9626 = vadd.f32 %v9265, %v9568
      %v9627 = vadd.f32 %v9266, %v9571
      %v9628 = vadd.f32 %v9267, %v9576
      %v9629 = vadd.f32 %v9268, %v9579
      %v9630 = vadd.f32 %v9269, %v9584
      %v9631 = vadd.f32 %v9270, %v9587
      %v9632 = vadd.f32 %v9271, %v9592
      %v9633 = vadd.f32 %v9272, %v9595
      %v9634 = vld [vmem:[%s4] sm:$0x1]
      %v9636 = vlaneseq
      %v9637 = vshrl.u32 %v9636, 7
      %v9638 = vsub.s32 0, %v9637
      %v9639 = vrot.slane %v9634, %v9638
      %v9641 = vadd.f32 %v9598, %v9639
      %v9642 = vadd.f32 %v9599, %v9639
      %v9643 = vadd.f32 %v9600, %v9639
      %v9644 = vadd.f32 %v9601, %v9639
      %v9645 = vadd.f32 %v9602, %v9639
      %v9646 = vadd.f32 %v9603, %v9639
      %v9647 = vadd.f32 %v9604, %v9639
      %v9648 = vadd.f32 %v9605, %v9639
      %v9649 = vadd.f32 %v9606, %v9639
      %v9650 = vadd.f32 %v9607, %v9639
      %v9651 = vadd.f32 %v9608, %v9639
      %v9652 = vadd.f32 %v9609, %v9639
      %v9653 = vadd.f32 %v9610, %v9639
      %v9654 = vadd.f32 %v9611, %v9639
      %v9655 = vadd.f32 %v9612, %v9639
      %v9656 = vadd.f32 %v9613, %v9639
      %v9657 = vadd.f32 %v9614, %v9639
      %v9658 = vadd.f32 %v9615, %v9639
      %v9659 = vadd.f32 %v9616, %v9639
      %v9660 = vadd.f32 %v9617, %v9639
      %v9661 = vadd.f32 %v9618, %v9639
      %v9662 = vadd.f32 %v9619, %v9639
      %v9663 = vadd.f32 %v9620, %v9639
      %v9664 = vadd.f32 %v9621, %v9639
      %v9665 = vadd.f32 %v9622, %v9639
      %v9666 = vadd.f32 %v9623, %v9639
      %v9667 = vadd.f32 %v9624, %v9639
      %v9668 = vadd.f32 %v9625, %v9639
      %v9669 = vadd.f32 %v9626, %v9639
      %v9670 = vadd.f32 %v9627, %v9639
      %v9671 = vadd.f32 %v9628, %v9639
      %v9672 = vadd.f32 %v9629, %v9639
      %v9673 = vadd.f32 %v9630, %v9639
      %v9674 = vadd.f32 %v9631, %v9639
      %v9675 = vadd.f32 %v9632, %v9639
      %v9676 = vadd.f32 %v9633, %v9639
      %v9677 = vmin.f32 %v9641, 30.0
      %v9678 = vmin.f32 %v9642, 30.0
      %v9679 = vmin.f32 %v9643, 30.0
      %v9680 = vmin.f32 %v9644, 30.0
      %v9681 = vmin.f32 %v9645, 30.0
      %v9682 = vmin.f32 %v9646, 30.0
      %v9683 = vmin.f32 %v9647, 30.0
      %v9684 = vmin.f32 %v9648, 30.0
      %v9685 = vmin.f32 %v9649, 30.0
      %v9686 = vmin.f32 %v9650, 30.0
      %v9687 = vmin.f32 %v9651, 30.0
      %v9688 = vmin.f32 %v9652, 30.0
      %v9689 = vmin.f32 %v9653, 30.0
      %v9690 = vmin.f32 %v9654, 30.0
      %v9691 = vmin.f32 %v9655, 30.0
      %v9692 = vmin.f32 %v9656, 30.0
      %v9693 = vmin.f32 %v9657, 30.0
      %v9694 = vmin.f32 %v9658, 30.0
      %v9695 = vmin.f32 %v9659, 30.0
      %v9696 = vmin.f32 %v9660, 30.0
      %v9697 = vmin.f32 %v9661, 30.0
      %v9698 = vmin.f32 %v9662, 30.0
      %v9699 = vmin.f32 %v9663, 30.0
      %v9700 = vmin.f32 %v9664, 30.0
      %v9701 = vmin.f32 %v9665, 30.0
      %v9702 = vmin.f32 %v9666, 30.0
      %v9703 = vmin.f32 %v9667, 30.0
      %v9704 = vmin.f32 %v9668, 30.0
      %v9705 = vmin.f32 %v9669, 30.0
      %v9706 = vmin.f32 %v9670, 30.0
      %v9707 = vmin.f32 %v9671, 30.0
      %v9708 = vmin.f32 %v9672, 30.0
      %v9709 = vmin.f32 %v9673, 30.0
      %v9710 = vmin.f32 %v9674, 30.0
      %v9711 = vmin.f32 %v9675, 30.0
      %v9712 = vmin.f32 %v9676, 30.0
      %v9713 = vmul.f32 %v9677, 1.442695
      %v9714 = vpow.pop %v9713
      %v9715 = vmul.f32 %v9678, 1.442695
      %v9716 = vpow.pop %v9715
      %v9717 = vmul.f32 %v9679, 1.442695
      %v9718 = vpow.pop %v9717
      %v9719 = vmul.f32 %v9680, 1.442695
      %v9720 = vpow.pop %v9719
      %v9721 = vmul.f32 %v9681, 1.442695
      %v9722 = vpow.pop %v9721
      %v9723 = vmul.f32 %v9682, 1.442695
      %v9724 = vpow.pop %v9723
      %v9725 = vmul.f32 %v9683, 1.442695
      %v9726 = vpow.pop %v9725
      %v9727 = vmul.f32 %v9684, 1.442695
      %v9728 = vpow.pop %v9727
      %v9729 = vmul.f32 %v9685, 1.442695
      %v9730 = vpow.pop %v9729
      %v9731 = vmul.f32 %v9686, 1.442695
      %v9732 = vpow.pop %v9731
      %v9733 = vmul.f32 %v9687, 1.442695
      %v9734 = vpow.pop %v9733
      %v9735 = vmul.f32 %v9688, 1.442695
      %v9736 = vpow.pop %v9735
      %v9737 = vmul.f32 %v9689, 1.442695
      %v9738 = vpow.pop %v9737
      %v9739 = vmul.f32 %v9690, 1.442695
      %v9740 = vpow.pop %v9739
      %v9741 = vmul.f32 %v9691, 1.442695
      %v9742 = vpow.pop %v9741
      %v9743 = vmul.f32 %v9692, 1.442695
      %v9744 = vpow.pop %v9743
      %v9745 = vmul.f32 %v9693, 1.442695
      %v9746 = vpow.pop %v9745
      %v9747 = vmul.f32 %v9694, 1.442695
      %v9748 = vpow.pop %v9747
      %v9749 = vmul.f32 %v9695, 1.442695
      %v9750 = vpow.pop %v9749
      %v9751 = vmul.f32 %v9696, 1.442695
      %v9752 = vpow.pop %v9751
      %v9753 = vmul.f32 %v9697, 1.442695
      %v9754 = vpow.pop %v9753
      %v9755 = vmul.f32 %v9698, 1.442695
      %v9756 = vpow.pop %v9755
      %v9757 = vmul.f32 %v9699, 1.442695
      %v9758 = vpow.pop %v9757
      %v9759 = vmul.f32 %v9700, 1.442695
      %v9760 = vpow.pop %v9759
      %v9761 = vmul.f32 %v9701, 1.442695
      %v9762 = vpow.pop %v9761
      %v9763 = vmul.f32 %v9702, 1.442695
      %v9764 = vpow.pop %v9763
      %v9765 = vmul.f32 %v9703, 1.442695
      %v9766 = vpow.pop %v9765
      %v9767 = vmul.f32 %v9704, 1.442695
      %v9768 = vpow.pop %v9767
      %v9769 = vmul.f32 %v9705, 1.442695
      %v9770 = vpow.pop %v9769
      %v9771 = vmul.f32 %v9706, 1.442695
      %v9772 = vpow.pop %v9771
      %v9773 = vmul.f32 %v9707, 1.442695
      %v9774 = vpow.pop %v9773
      %v9775 = vmul.f32 %v9708, 1.442695
      %v9776 = vpow.pop %v9775
      %v9777 = vmul.f32 %v9709, 1.442695
      %v9778 = vpow.pop %v9777
      %v9779 = vmul.f32 %v9710, 1.442695
      %v9780 = vpow.pop %v9779
      %v9781 = vmul.f32 %v9711, 1.442695
      %v9782 = vpow.pop %v9781
      %v9783 = vmul.f32 %v9712, 1.442695
      %v9784 = vpow.pop %v9783
      %v9785 = vadd.f32 %v9714, 1.0
      %v9786 = vadd.f32 %v9716, 1.0
      %v9787 = vadd.f32 %v9718, 1.0
      %v9788 = vadd.f32 %v9720, 1.0
      %v9789 = vadd.f32 %v9722, 1.0
      %v9790 = vadd.f32 %v9724, 1.0
      %v9791 = vadd.f32 %v9726, 1.0
      %v9792 = vadd.f32 %v9728, 1.0
      %v9793 = vadd.f32 %v9730, 1.0
      %v9794 = vadd.f32 %v9732, 1.0
      %v9795 = vadd.f32 %v9734, 1.0
      %v9796 = vadd.f32 %v9736, 1.0
      %v9797 = vadd.f32 %v9738, 1.0
      %v9798 = vadd.f32 %v9740, 1.0
      %v9799 = vadd.f32 %v9742, 1.0
      %v9800 = vadd.f32 %v9744, 1.0
      %v9801 = vadd.f32 %v9746, 1.0
      %v9802 = vadd.f32 %v9748, 1.0
      %v9803 = vadd.f32 %v9750, 1.0
      %v9804 = vadd.f32 %v9752, 1.0
      %v9805 = vadd.f32 %v9754, 1.0
      %v9806 = vadd.f32 %v9756, 1.0
      %v9807 = vadd.f32 %v9758, 1.0
      %v9808 = vadd.f32 %v9760, 1.0
      %v9809 = vadd.f32 %v9762, 1.0
      %v9810 = vadd.f32 %v9764, 1.0
      %v9811 = vadd.f32 %v9766, 1.0
      %v9812 = vadd.f32 %v9768, 1.0
      %v9813 = vadd.f32 %v9770, 1.0
      %v9814 = vadd.f32 %v9772, 1.0
      %v9815 = vadd.f32 %v9774, 1.0
      %v9816 = vadd.f32 %v9776, 1.0
      %v9817 = vadd.f32 %v9778, 1.0
      %v9818 = vadd.f32 %v9780, 1.0
      %v9819 = vadd.f32 %v9782, 1.0
      %v9820 = vadd.f32 %v9784, 1.0
      %v9821 = vmul.f32 %v9785, %v9785
      %v9822 = vmul.f32 %v9786, %v9786
      %v9823 = vmul.f32 %v9787, %v9787
      %v9824 = vmul.f32 %v9788, %v9788
      %v9825 = vmul.f32 %v9789, %v9789
      %v9826 = vmul.f32 %v9790, %v9790
      %v9827 = vmul.f32 %v9791, %v9791
      %v9828 = vmul.f32 %v9792, %v9792
      %v9829 = vmul.f32 %v9793, %v9793
      %v9830 = vmul.f32 %v9794, %v9794
      %v9831 = vmul.f32 %v9795, %v9795
      %v9832 = vmul.f32 %v9796, %v9796
      %v9833 = vmul.f32 %v9797, %v9797
      %v9834 = vmul.f32 %v9798, %v9798
      %v9835 = vmul.f32 %v9799, %v9799
      %v9836 = vmul.f32 %v9800, %v9800
      %v9837 = vmul.f32 %v9801, %v9801
      %v9838 = vmul.f32 %v9802, %v9802
      %v9839 = vmul.f32 %v9803, %v9803
      %v9840 = vmul.f32 %v9804, %v9804
      %v9841 = vmul.f32 %v9805, %v9805
      %v9842 = vmul.f32 %v9806, %v9806
      %v9843 = vmul.f32 %v9807, %v9807
      %v9844 = vmul.f32 %v9808, %v9808
      %v9845 = vmul.f32 %v9809, %v9809
      %v9846 = vmul.f32 %v9810, %v9810
      %v9847 = vmul.f32 %v9811, %v9811
      %v9848 = vmul.f32 %v9812, %v9812
      %v9849 = vmul.f32 %v9813, %v9813
      %v9850 = vmul.f32 %v9814, %v9814
      %v9851 = vmul.f32 %v9815, %v9815
      %v9852 = vmul.f32 %v9816, %v9816
      %v9853 = vmul.f32 %v9817, %v9817
      %v9854 = vmul.f32 %v9818, %v9818
      %v9855 = vmul.f32 %v9819, %v9819
      %v9856 = vmul.f32 %v9820, %v9820
      %v9857 = vsub.f32 %v9821, 1.0
      %v9858 = vsub.f32 %v9822, 1.0
      %v9859 = vsub.f32 %v9823, 1.0
      %v9860 = vsub.f32 %v9824, 1.0
      %v9861 = vsub.f32 %v9825, 1.0
      %v9862 = vsub.f32 %v9826, 1.0
      %v9863 = vsub.f32 %v9827, 1.0
      %v9864 = vsub.f32 %v9828, 1.0
      %v9865 = vsub.f32 %v9829, 1.0
      %v9866 = vsub.f32 %v9830, 1.0
      %v9867 = vsub.f32 %v9831, 1.0
      %v9868 = vsub.f32 %v9832, 1.0
      %v9869 = vsub.f32 %v9833, 1.0
      %v9870 = vsub.f32 %v9834, 1.0
      %v9871 = vsub.f32 %v9835, 1.0
      %v9872 = vsub.f32 %v9836, 1.0
      %v9873 = vsub.f32 %v9837, 1.0
      %v9874 = vsub.f32 %v9838, 1.0
      %v9875 = vsub.f32 %v9839, 1.0
      %v9876 = vsub.f32 %v9840, 1.0
      %v9877 = vsub.f32 %v9841, 1.0
      %v9878 = vsub.f32 %v9842, 1.0
      %v9879 = vsub.f32 %v9843, 1.0
      %v9880 = vsub.f32 %v9844, 1.0
      %v9881 = vsub.f32 %v9845, 1.0
      %v9882 = vsub.f32 %v9846, 1.0
      %v9883 = vsub.f32 %v9847, 1.0
      %v9884 = vsub.f32 %v9848, 1.0
      %v9885 = vsub.f32 %v9849, 1.0
      %v9886 = vsub.f32 %v9850, 1.0
      %v9887 = vsub.f32 %v9851, 1.0
      %v9888 = vsub.f32 %v9852, 1.0
      %v9889 = vsub.f32 %v9853, 1.0
      %v9890 = vsub.f32 %v9854, 1.0
      %v9891 = vsub.f32 %v9855, 1.0
      %v9892 = vsub.f32 %v9856, 1.0
      %v9893 = vmul.f32 %v9641, %v9857
      %v9894 = vmul.f32 %v9642, %v9858
      %v9895 = vmul.f32 %v9643, %v9859
      %v9896 = vmul.f32 %v9644, %v9860
      %v9897 = vmul.f32 %v9645, %v9861
      %v9898 = vmul.f32 %v9646, %v9862
      %v9899 = vmul.f32 %v9647, %v9863
      %v9900 = vmul.f32 %v9648, %v9864
      %v9901 = vmul.f32 %v9649, %v9865
      %v9902 = vmul.f32 %v9650, %v9866
      %v9903 = vmul.f32 %v9651, %v9867
      %v9904 = vmul.f32 %v9652, %v9868
      %v9905 = vmul.f32 %v9653, %v9869
      %v9906 = vmul.f32 %v9654, %v9870
      %v9907 = vmul.f32 %v9655, %v9871
      %v9908 = vmul.f32 %v9656, %v9872
      %v9909 = vmul.f32 %v9657, %v9873
      %v9910 = vmul.f32 %v9658, %v9874
      %v9911 = vmul.f32 %v9659, %v9875
      %v9912 = vmul.f32 %v9660, %v9876
      %v9913 = vmul.f32 %v9661, %v9877
      %v9914 = vmul.f32 %v9662, %v9878
      %v9915 = vmul.f32 %v9663, %v9879
      %v9916 = vmul.f32 %v9664, %v9880
      %v9917 = vmul.f32 %v9665, %v9881
      %v9918 = vmul.f32 %v9666, %v9882
      %v9919 = vmul.f32 %v9667, %v9883
      %v9920 = vmul.f32 %v9668, %v9884
      %v9921 = vmul.f32 %v9669, %v9885
      %v9922 = vmul.f32 %v9670, %v9886
      %v9923 = vmul.f32 %v9671, %v9887
      %v9924 = vmul.f32 %v9672, %v9888
      %v9925 = vmul.f32 %v9673, %v9889
      %v9926 = vmul.f32 %v9674, %v9890
      %v9927 = vmul.f32 %v9675, %v9891
      %v9928 = vmul.f32 %v9676, %v9892
      %v9929 = vadd.f32 %v9821, 1.0
      %v9930 = vadd.f32 %v9822, 1.0
      %v9931 = vadd.f32 %v9823, 1.0
      %v9932 = vadd.f32 %v9824, 1.0
      %v9933 = vadd.f32 %v9825, 1.0
      %v9934 = vadd.f32 %v9826, 1.0
      %v9935 = vadd.f32 %v9827, 1.0
      %v9936 = vadd.f32 %v9828, 1.0
      %v9937 = vadd.f32 %v9829, 1.0
      %v9938 = vadd.f32 %v9830, 1.0
      %v9939 = vadd.f32 %v9831, 1.0
      %v9940 = vadd.f32 %v9832, 1.0
      %v9941 = vadd.f32 %v9833, 1.0
      %v9942 = vadd.f32 %v9834, 1.0
      %v9943 = vadd.f32 %v9835, 1.0
      %v9944 = vadd.f32 %v9836, 1.0
      %v9945 = vadd.f32 %v9837, 1.0
      %v9946 = vadd.f32 %v9838, 1.0
      %v9947 = vadd.f32 %v9839, 1.0
      %v9948 = vadd.f32 %v9840, 1.0
      %v9949 = vadd.f32 %v9841, 1.0
      %v9950 = vadd.f32 %v9842, 1.0
      %v9951 = vadd.f32 %v9843, 1.0
      %v9952 = vadd.f32 %v9844, 1.0
      %v9953 = vadd.f32 %v9845, 1.0
      %v9954 = vadd.f32 %v9846, 1.0
      %v9955 = vadd.f32 %v9847, 1.0
      %v9956 = vadd.f32 %v9848, 1.0
      %v9957 = vadd.f32 %v9849, 1.0
      %v9958 = vadd.f32 %v9850, 1.0
      %v9959 = vadd.f32 %v9851, 1.0
      %v9960 = vadd.f32 %v9852, 1.0
      %v9961 = vadd.f32 %v9853, 1.0
      %v9962 = vadd.f32 %v9854, 1.0
      %v9963 = vadd.f32 %v9855, 1.0
      %v9964 = vadd.f32 %v9856, 1.0
      %v9965 = vrcp.pop %v9929
      %v9966 = vrcp.pop %v9930
      %v9967 = vrcp.pop %v9931
      %v9968 = vrcp.pop %v9932
      %v9969 = vrcp.pop %v9933
      %v9970 = vrcp.pop %v9934
      %v9971 = vrcp.pop %v9935
      %v9972 = vrcp.pop %v9936
      %v9973 = vrcp.pop %v9937
      %v9974 = vrcp.pop %v9938
      %v9975 = vrcp.pop %v9939
      %v9976 = vrcp.pop %v9940
      %v9977 = vrcp.pop %v9941
      %v9978 = vrcp.pop %v9942
      %v9979 = vrcp.pop %v9943
      %v9980 = vrcp.pop %v9944
      %v9981 = vrcp.pop %v9945
      %v9982 = vrcp.pop %v9946
      %v9983 = vrcp.pop %v9947
      %v9984 = vrcp.pop %v9948
      %v9985 = vrcp.pop %v9949
      %v9986 = vrcp.pop %v9950
      %v9987 = vrcp.pop %v9951
      %v9988 = vrcp.pop %v9952
      %v9989 = vrcp.pop %v9953
      %v9990 = vrcp.pop %v9954
      %v9991 = vrcp.pop %v9955
      %v9992 = vrcp.pop %v9956
      %v9993 = vrcp.pop %v9957
      %v9994 = vrcp.pop %v9958
      %v9995 = vrcp.pop %v9959
      %v9996 = vrcp.pop %v9960
      %v9997 = vrcp.pop %v9961
      %v9998 = vrcp.pop %v9962
      %v9999 = vrcp.pop %v9963
      %v10000 = vrcp.pop %v9964
      %v10001 = vmul.f32 %v9893, %v9965
      %v10002 = vmul.f32 %v9894, %v9966
      %v10003 = vmul.f32 %v9895, %v9967
      %v10004 = vmul.f32 %v9896, %v9968
      %v10005 = vmul.f32 %v9897, %v9969
      %v10006 = vmul.f32 %v9898, %v9970
      %v10007 = vmul.f32 %v9899, %v9971
      %v10008 = vmul.f32 %v9900, %v9972
      %v10009 = vmul.f32 %v9901, %v9973
      %v10010 = vmul.f32 %v9902, %v9974
      %v10011 = vmul.f32 %v9903, %v9975
      %v10012 = vmul.f32 %v9904, %v9976
      %v10013 = vmul.f32 %v9905, %v9977
      %v10014 = vmul.f32 %v9906, %v9978
      %v10015 = vmul.f32 %v9907, %v9979
      %v10016 = vmul.f32 %v9908, %v9980
      %v10017 = vmul.f32 %v9909, %v9981
      %v10018 = vmul.f32 %v9910, %v9982
      %v10019 = vmul.f32 %v9911, %v9983
      %v10020 = vmul.f32 %v9912, %v9984
      %v10021 = vmul.f32 %v9913, %v9985
      %v10022 = vmul.f32 %v9914, %v9986
      %v10023 = vmul.f32 %v9915, %v9987
      %v10024 = vmul.f32 %v9916, %v9988
      %v10025 = vmul.f32 %v9917, %v9989
      %v10026 = vmul.f32 %v9918, %v9990
      %v10027 = vmul.f32 %v9919, %v9991
      %v10028 = vmul.f32 %v9920, %v9992
      %v10029 = vmul.f32 %v9921, %v9993
      %v10030 = vmul.f32 %v9922, %v9994
      %v10031 = vmul.f32 %v9923, %v9995
      %v10032 = vmul.f32 %v9924, %v9996
      %v10033 = vmul.f32 %v9925, %v9997
      %v10034 = vmul.f32 %v9926, %v9998
      %v10035 = vmul.f32 %v9927, %v9999
      %v10036 = vmul.f32 %v9928, %v10000
      %v10037 = vld [vmem:[%s5] sm:$0x3]
      %v10038 = vpack.c.bf16 %v10002, %v10001
      %v10039 = vpack.c.bf16 %v10004, %v10003
      %v10040 = vpack.c.bf16 %v10006, %v10005
      %v10041 = vpack.c.bf16 %v10008, %v10007
      %v10042 = vpack.c.bf16 %v10010, %v10009
      %v10043 = vpack.c.bf16 %v10012, %v10011
      %v10044 = vpack.c.bf16 %v10014, %v10013
      %v10045 = vpack.c.bf16 %v10016, %v10015
      %v10046 = vpack.c.bf16 %v10018, %v10017
      %v10047 = vpack.c.bf16 %v10020, %v10019
      %v10048 = vpack.c.bf16 %v10022, %v10021
      %v10049 = vpack.c.bf16 %v10024, %v10023
      %v10050 = vpack.c.bf16 %v10026, %v10025
      %v10051 = vpack.c.bf16 %v10028, %v10027
      %v10052 = vpack.c.bf16 %v10030, %v10029
      %v10053 = vpack.c.bf16 %v10032, %v10031
      %v10054 = vpack.c.bf16 %v10034, %v10033
      %v10055 = vpack.c.bf16 %v10036, %v10035
      %v10056 = vld [vmem:[%s6] sm:$0x3]
      %v10058 = vsel %vm5952, %v10038, 0
      %v10061 = vsel %vm5952, %v10039, 0
      %v10064 = vsel %vm5952, %v10040, 0
      %v10067 = vsel %vm5952, %v10041, 0
      %v10070 = vsel %vm5952, %v10042, 0
      %v10073 = vsel %vm5952, %v10043, 0
      %v10076 = vsel %vm5952, %v10044, 0
      %v10079 = vsel %vm5952, %v10045, 0
      %v10082 = vsel %vm5952, %v10046, 0
      %v10085 = vsel %vm5952, %v10047, 0
      %v10088 = vsel %vm5952, %v10048, 0
      %v10091 = vsel %vm5952, %v10049, 0
      %v10094 = vsel %vm5952, %v10050, 0
      %v10097 = vsel %vm5952, %v10051, 0
      %v10100 = vsel %vm5952, %v10052, 0
      %v10103 = vsel %vm5952, %v10053, 0
      %v10106 = vsel %vm5952, %v10054, 0
      %v10109 = vsel %vm5952, %v10055, 0
      %v10112 = vsel %vm6007, %v10056, 0
      %10114 = vmatprep.subr.bf16.mxu0 0
      %10115 = vmatpush1.bf16.msra.mxu0 %v10112
      %10116 = vmatprep.subr.bf16.mxu0 0
      %10117 = vmatpush1.bf16.msra.mxu0 0
      %10118 = vmatprep.subr.bf16.mxu0 0
      %10119 = vmatpush1.bf16.msra.mxu0 0
      %10120 = vmatprep.subr.bf16.mxu0 0
      %10121 = vmatpush1.bf16.msra.mxu0 0
      %10122 = vmatprep.subr.bf16.mxu0 0
      %10123 = vmatpush1.bf16.msra.mxu0 0
      %10124 = vmatprep.subr.bf16.mxu0 0
      %10125 = vmatpush1.bf16.msra.mxu0 0
      %10126 = vmatprep.subr.bf16.mxu0 0
      %10127 = vmatpush1.bf16.msra.mxu0 0
      %10128 = vmatprep.subr.bf16.mxu0 0
      %10129 = vmatpush1.bf16.msra.mxu0 0
      %10130 = vmatprep.subr.bf16.mxu0 0
      %10131 = vmatpush1.bf16.msra.mxu0 0
      %10132 = vmatprep.subr.bf16.mxu0 0
      %10133 = vmatpush1.bf16.msra.mxu0 0
      %10134 = vmatprep.subr.bf16.mxu0 0
      %10135 = vmatpush1.bf16.msra.mxu0 0
      %10136 = vmatprep.subr.bf16.mxu0 0
      %10137 = vmatpush1.bf16.msra.mxu0 0
      %10138 = vmatprep.subr.bf16.mxu0 0
      %10139 = vmatpush1.bf16.msra.mxu0 0
      %10140 = vmatprep.subr.bf16.mxu0 0
      %10141 = vmatpush1.bf16.msra.mxu0 0
      %10142 = vmatprep.subr.bf16.mxu0 0
      %10143 = vmatpush1.bf16.msra.mxu0 0
      %10144 = vmatprep.subr.bf16.mxu0 0
      %10145 = vmatpush1.bf16.msra.mxu0 0
      %10146 = vmatprep.mubr.bf16.mxu0 0
      %10147 = vmatmul.mubr.bf16.gmra.mrb[0].mxu0 %v10058
      %v10148 = vpop.f32.mrb[0].mxu0
      %v10149 = vadd.f32 0.0, %v10148
      %v10150 = vpop.f32.mrb[0].mxu0
      %v10151 = vpop.f32.mrb[0].mxu0
      %v10152 = vadd.f32 0.0, %v10151
      %v10153 = vpop.f32.mrb[0].mxu0
      %10154 = vmatprep.mubr.bf16.mxu0 0
      %10155 = vmatmul.mubr.bf16.gmra.mrb[0].mxu0 %v10061
      %v10156 = vpop.f32.mrb[0].mxu0
      %v10157 = vadd.f32 0.0, %v10156
      %v10158 = vpop.f32.mrb[0].mxu0
      %v10159 = vpop.f32.mrb[0].mxu0
      %v10160 = vadd.f32 0.0, %v10159
      %v10161 = vpop.f32.mrb[0].mxu0
      %10162 = vmatprep.mubr.bf16.mxu0 0
      %10163 = vmatmul.mubr.bf16.gmra.mrb[0].mxu0 %v10064
      %v10164 = vpop.f32.mrb[0].mxu0
      %v10165 = vadd.f32 0.0, %v10164
      %v10166 = vpop.f32.mrb[0].mxu0
      %v10167 = vpop.f32.mrb[0].mxu0
      %v10168 = vadd.f32 0.0, %v10167
      %v10169 = vpop.f32.mrb[0].mxu0
      %10170 = vmatprep.mubr.bf16.mxu0 0
      %10171 = vmatmul.mubr.bf16.gmra.mrb[0].mxu0 %v10067
      %v10172 = vpop.f32.mrb[0].mxu0
      %v10173 = vadd.f32 0.0, %v10172
      %v10174 = vpop.f32.mrb[0].mxu0
      %v10175 = vpop.f32.mrb[0].mxu0
      %v10176 = vadd.f32 0.0, %v10175
      %v10177 = vpop.f32.mrb[0].mxu0
      %10178 = vmatprep.mubr.bf16.mxu0 0
      %10179 = vmatmul.mubr.bf16.gmra.mrb[0].mxu0 %v10070
      %v10180 = vpop.f32.mrb[0].mxu0
      %v10181 = vadd.f32 0.0, %v10180
      %v10182 = vpop.f32.mrb[0].mxu0
      %v10183 = vpop.f32.mrb[0].mxu0
      %v10184 = vadd.f32 0.0, %v10183
      %v10185 = vpop.f32.mrb[0].mxu0
      %10186 = vmatprep.mubr.bf16.mxu0 0
      %10187 = vmatmul.mubr.bf16.gmra.mrb[0].mxu0 %v10073
      %v10188 = vpop.f32.mrb[0].mxu0
      %v10189 = vadd.f32 0.0, %v10188
      %v10190 = vpop.f32.mrb[0].mxu0
      %v10191 = vpop.f32.mrb[0].mxu0
      %v10192 = vadd.f32 0.0, %v10191
      %v10193 = vpop.f32.mrb[0].mxu0
      %10194 = vmatprep.mubr.bf16.mxu0 0
      %10195 = vmatmul.mubr.bf16.gmra.mrb[0].mxu0 %v10076
      %v10196 = vpop.f32.mrb[0].mxu0
      %v10197 = vadd.f32 0.0, %v10196
      %v10198 = vpop.f32.mrb[0].mxu0
      %v10199 = vpop.f32.mrb[0].mxu0
      %v10200 = vadd.f32 0.0, %v10199
      %v10201 = vpop.f32.mrb[0].mxu0
      %10202 = vmatprep.mubr.bf16.mxu0 0
      %10203 = vmatmul.mubr.bf16.gmra.mrb[0].mxu0 %v10079
      %v10204 = vpop.f32.mrb[0].mxu0
      %v10205 = vadd.f32 0.0, %v10204
      %v10206 = vpop.f32.mrb[0].mxu0
      %v10207 = vpop.f32.mrb[0].mxu0
      %v10208 = vadd.f32 0.0, %v10207
      %v10209 = vpop.f32.mrb[0].mxu0
      %10210 = vmatprep.mubr.bf16.mxu0 0
      %10211 = vmatmul.mubr.bf16.gmra.mrb[0].mxu0 %v10082
      %v10212 = vpop.f32.mrb[0].mxu0
      %v10213 = vadd.f32 0.0, %v10212
      %v10214 = vpop.f32.mrb[0].mxu0
      %v10215 = vpop.f32.mrb[0].mxu0
      %v10216 = vadd.f32 0.0, %v10215
      %v10217 = vpop.f32.mrb[0].mxu0
      %10218 = vmatprep.mubr.bf16.mxu0 0
      %10219 = vmatmul.mubr.bf16.gmra.mrb[0].mxu0 %v10085
      %v10220 = vpop.f32.mrb[0].mxu0
      %v10221 = vadd.f32 0.0, %v10220
      %v10222 = vpop.f32.mrb[0].mxu0
      %v10223 = vpop.f32.mrb[0].mxu0
      %v10224 = vadd.f32 0.0, %v10223
      %v10225 = vpop.f32.mrb[0].mxu0
      %10226 = vmatprep.mubr.bf16.mxu0 0
      %10227 = vmatmul.mubr.bf16.gmra.mrb[0].mxu0 %v10088
      %v10228 = vpop.f32.mrb[0].mxu0
      %v10229 = vadd.f32 0.0, %v10228
      %v10230 = vpop.f32.mrb[0].mxu0
      %v10231 = vpop.f32.mrb[0].mxu0
      %v10232 = vadd.f32 0.0, %v10231
      %v10233 = vpop.f32.mrb[0].mxu0
      %10234 = vmatprep.mubr.bf16.mxu0 0
      %10235 = vmatmul.mubr.bf16.gmra.mrb[0].mxu0 %v10091
      %v10236 = vpop.f32.mrb[0].mxu0
      %v10237 = vadd.f32 0.0, %v10236
      %v10238 = vpop.f32.mrb[0].mxu0
      %v10239 = vpop.f32.mrb[0].mxu0
      %v10240 = vadd.f32 0.0, %v10239
      %v10241 = vpop.f32.mrb[0].mxu0
      %10242 = vmatprep.mubr.bf16.mxu0 0
      %10243 = vmatmul.mubr.bf16.gmra.mrb[0].mxu0 %v10094
      %v10244 = vpop.f32.mrb[0].mxu0
      %v10245 = vadd.f32 0.0, %v10244
      %v10246 = vpop.f32.mrb[0].mxu0
      %v10247 = vpop.f32.mrb[0].mxu0
      %v10248 = vadd.f32 0.0, %v10247
      %v10249 = vpop.f32.mrb[0].mxu0
      %10250 = vmatprep.mubr.bf16.mxu0 0
      %10251 = vmatmul.mubr.bf16.gmra.mrb[0].mxu0 %v10097
      %v10252 = vpop.f32.mrb[0].mxu0
      %v10253 = vadd.f32 0.0, %v10252
      %v10254 = vpop.f32.mrb[0].mxu0
      %v10255 = vpop.f32.mrb[0].mxu0
      %v10256 = vadd.f32 0.0, %v10255
      %v10257 = vpop.f32.mrb[0].mxu0
      %10258 = vmatprep.mubr.bf16.mxu0 0
      %10259 = vmatmul.mubr.bf16.gmra.mrb[0].mxu0 %v10100
      %v10260 = vpop.f32.mrb[0].mxu0
      %v10261 = vadd.f32 0.0, %v10260
      %v10262 = vpop.f32.mrb[0].mxu0
      %v10263 = vpop.f32.mrb[0].mxu0
      %v10264 = vadd.f32 0.0, %v10263
      %v10265 = vpop.f32.mrb[0].mxu0
      %10266 = vmatprep.mubr.bf16.mxu0 0
      %10267 = vmatmul.mubr.bf16.gmra.mrb[0].mxu0 %v10103
      %v10268 = vpop.f32.mrb[0].mxu0
      %v10269 = vadd.f32 0.0, %v10268
      %v10270 = vpop.f32.mrb[0].mxu0
      %v10271 = vpop.f32.mrb[0].mxu0
      %v10272 = vadd.f32 0.0, %v10271
      %v10273 = vpop.f32.mrb[0].mxu0
      %10274 = vmatprep.mubr.bf16.mxu0 0
      %10275 = vmatmul.mubr.bf16.gmra.mrb[0].mxu0 %v10106
      %v10276 = vpop.f32.mrb[0].mxu0
      %v10277 = vadd.f32 0.0, %v10276
      %v10278 = vpop.f32.mrb[0].mxu0
      %v10279 = vpop.f32.mrb[0].mxu0
      %v10280 = vadd.f32 0.0, %v10279
      %v10281 = vpop.f32.mrb[0].mxu0
      %10282 = vmatprep.mubr.bf16.mxu0 0
      %10283 = vmatmul.mubr.bf16.gmra.mrb[0].mxu0 %v10109
      %v10284 = vpop.f32.mrb[0].mxu0
      %v10285 = vadd.f32 0.0, %v10284
      %v10286 = vpop.f32.mrb[0].mxu0
      %v10287 = vpop.f32.mrb[0].mxu0
      %v10288 = vadd.f32 0.0, %v10287
      %v10289 = vpop.f32.mrb[0].mxu0
      %10290 = vdwg.mxu0
      %v10292 = vsel %vm6007, %v10037, 0
      %10294 = vmatprep.subr.bf16.mxu0 0
      %10295 = vmatpush1.bf16.msra.mxu0 %v10292
      %10296 = vmatprep.subr.bf16.mxu0 0
      %10297 = vmatpush1.bf16.msra.mxu0 0
      %10298 = vmatprep.subr.bf16.mxu0 0
      %10299 = vmatpush1.bf16.msra.mxu0 0
      %10300 = vmatprep.subr.bf16.mxu0 0
      %10301 = vmatpush1.bf16.msra.mxu0 0
      %10302 = vmatprep.subr.bf16.mxu0 0
      %10303 = vmatpush1.bf16.msra.mxu0 0
      %10304 = vmatprep.subr.bf16.mxu0 0
      %10305 = vmatpush1.bf16.msra.mxu0 0
      %10306 = vmatprep.subr.bf16.mxu0 0
      %10307 = vmatpush1.bf16.msra.mxu0 0
      %10308 = vmatprep.subr.bf16.mxu0 0
      %10309 = vmatpush1.bf16.msra.mxu0 0
      %10310 = vmatprep.subr.bf16.mxu0 0
      %10311 = vmatpush1.bf16.msra.mxu0 0
      %10312 = vmatprep.subr.bf16.mxu0 0
      %10313 = vmatpush1.bf16.msra.mxu0 0
      %10314 = vmatprep.subr.bf16.mxu0 0
      %10315 = vmatpush1.bf16.msra.mxu0 0
      %10316 = vmatprep.subr.bf16.mxu0 0
      %10317 = vmatpush1.bf16.msra.mxu0 0
      %10318 = vmatprep.subr.bf16.mxu0 0
      %10319 = vmatpush1.bf16.msra.mxu0 0
      %10320 = vmatprep.subr.bf16.mxu0 0
      %10321 = vmatpush1.bf16.msra.mxu0 0
      %10322 = vmatprep.subr.bf16.mxu0 0
      %10323 = vmatpush1.bf16.msra.mxu0 0
      %10324 = vmatprep.subr.bf16.mxu0 0
      %10325 = vmatpush1.bf16.msra.mxu0 0
      %10326 = vmatprep.mubr.bf16.mxu0 0
      %10327 = vmatmul.mubr.bf16.gmra.mrb[0].mxu0 %v7757
      %v10328 = vpop.f32.mrb[0].mxu0
      %v10329 = vadd.f32 %v10149, %v10328
      %v10330 = vpop.f32.mrb[0].mxu0
      %v10331 = vpop.f32.mrb[0].mxu0
      %v10332 = vadd.f32 %v10152, %v10331
      %v10333 = vpop.f32.mrb[0].mxu0
      %10334 = vmatprep.mubr.bf16.mxu0 0
      %10335 = vmatmul.mubr.bf16.gmra.mrb[0].mxu0 %v7760
      %v10336 = vpop.f32.mrb[0].mxu0
      %v10337 = vadd.f32 %v10157, %v10336
      %v10338 = vpop.f32.mrb[0].mxu0
      %v10339 = vpop.f32.mrb[0].mxu0
      %v10340 = vadd.f32 %v10160, %v10339
      %v10341 = vpop.f32.mrb[0].mxu0
      %10342 = vmatprep.mubr.bf16.mxu0 0
      %10343 = vmatmul.mubr.bf16.gmra.mrb[0].mxu0 %v7763
      %v10344 = vpop.f32.mrb[0].mxu0
      %v10345 = vadd.f32 %v10165, %v10344
      %v10346 = vpop.f32.mrb[0].mxu0
      %v10347 = vpop.f32.mrb[0].mxu0
      %v10348 = vadd.f32 %v10168, %v10347
      %v10349 = vpop.f32.mrb[0].mxu0
      %10350 = vmatprep.mubr.bf16.mxu0 0
      %10351 = vmatmul.mubr.bf16.gmra.mrb[0].mxu0 %v7766
      %v10352 = vpop.f32.mrb[0].mxu0
      %v10353 = vadd.f32 %v10173, %v10352
      %v10354 = vpop.f32.mrb[0].mxu0
      %v10355 = vpop.f32.mrb[0].mxu0
      %v10356 = vadd.f32 %v10176, %v10355
      %v10357 = vpop.f32.mrb[0].mxu0
      %10358 = vmatprep.mubr.bf16.mxu0 0
      %10359 = vmatmul.mubr.bf16.gmra.mrb[0].mxu0 %v7769
      %v10360 = vpop.f32.mrb[0].mxu0
      %v10361 = vadd.f32 %v10181, %v10360
      %v10362 = vpop.f32.mrb[0].mxu0
      %v10363 = vpop.f32.mrb[0].mxu0
      %v10364 = vadd.f32 %v10184, %v10363
      %v10365 = vpop.f32.mrb[0].mxu0
      %10366 = vmatprep.mubr.bf16.mxu0 0
      %10367 = vmatmul.mubr.bf16.gmra.mrb[0].mxu0 %v7772
      %v10368 = vpop.f32.mrb[0].mxu0
      %v10369 = vadd.f32 %v10189, %v10368
      %v10370 = vpop.f32.mrb[0].mxu0
      %v10371 = vpop.f32.mrb[0].mxu0
      %v10372 = vadd.f32 %v10192, %v10371
      %v10373 = vpop.f32.mrb[0].mxu0
      %10374 = vmatprep.mubr.bf16.mxu0 0
      %10375 = vmatmul.mubr.bf16.gmra.mrb[0].mxu0 %v7775
      %v10376 = vpop.f32.mrb[0].mxu0
      %v10377 = vadd.f32 %v10197, %v10376
      %v10378 = vpop.f32.mrb[0].mxu0
      %v10379 = vpop.f32.mrb[0].mxu0
      %v10380 = vadd.f32 %v10200, %v10379
      %v10381 = vpop.f32.mrb[0].mxu0
      %10382 = vmatprep.mubr.bf16.mxu0 0
      %10383 = vmatmul.mubr.bf16.gmra.mrb[0].mxu0 %v7778
      %v10384 = vpop.f32.mrb[0].mxu0
      %v10385 = vadd.f32 %v10205, %v10384
      %v10386 = vpop.f32.mrb[0].mxu0
      %v10387 = vpop.f32.mrb[0].mxu0
      %v10388 = vadd.f32 %v10208, %v10387
      %v10389 = vpop.f32.mrb[0].mxu0
      %10390 = vmatprep.mubr.bf16.mxu0 0
      %10391 = vmatmul.mubr.bf16.gmra.mrb[0].mxu0 %v7781
      %v10392 = vpop.f32.mrb[0].mxu0
      %v10393 = vadd.f32 %v10213, %v10392
      %v10394 = vpop.f32.mrb[0].mxu0
      %v10395 = vpop.f32.mrb[0].mxu0
      %v10396 = vadd.f32 %v10216, %v10395
      %v10397 = vpop.f32.mrb[0].mxu0
      %10398 = vmatprep.mubr.bf16.mxu0 0
      %10399 = vmatmul.mubr.bf16.gmra.mrb[0].mxu0 %v7784
      %v10400 = vpop.f32.mrb[0].mxu0
      %v10401 = vadd.f32 %v10221, %v10400
      %v10402 = vpop.f32.mrb[0].mxu0
      %v10403 = vpop.f32.mrb[0].mxu0
      %v10404 = vadd.f32 %v10224, %v10403
      %v10405 = vpop.f32.mrb[0].mxu0
      %10406 = vmatprep.mubr.bf16.mxu0 0
      %10407 = vmatmul.mubr.bf16.gmra.mrb[0].mxu0 %v7787
      %v10408 = vpop.f32.mrb[0].mxu0
      %v10409 = vadd.f32 %v10229, %v10408
      %v10410 = vpop.f32.mrb[0].mxu0
      %v10411 = vpop.f32.mrb[0].mxu0
      %v10412 = vadd.f32 %v10232, %v10411
      %v10413 = vpop.f32.mrb[0].mxu0
      %10414 = vmatprep.mubr.bf16.mxu0 0
      %10415 = vmatmul.mubr.bf16.gmra.mrb[0].mxu0 %v7790
      %v10416 = vpop.f32.mrb[0].mxu0
      %v10417 = vadd.f32 %v10237, %v10416
      %v10418 = vpop.f32.mrb[0].mxu0
      %v10419 = vpop.f32.mrb[0].mxu0
      %v10420 = vadd.f32 %v10240, %v10419
      %v10421 = vpop.f32.mrb[0].mxu0
      %10422 = vmatprep.mubr.bf16.mxu0 0
      %10423 = vmatmul.mubr.bf16.gmra.mrb[0].mxu0 %v7793
      %v10424 = vpop.f32.mrb[0].mxu0
      %v10425 = vadd.f32 %v10245, %v10424
      %v10426 = vpop.f32.mrb[0].mxu0
      %v10427 = vpop.f32.mrb[0].mxu0
      %v10428 = vadd.f32 %v10248, %v10427
      %v10429 = vpop.f32.mrb[0].mxu0
      %10430 = vmatprep.mubr.bf16.mxu0 0
      %10431 = vmatmul.mubr.bf16.gmra.mrb[0].mxu0 %v7796
      %v10432 = vpop.f32.mrb[0].mxu0
      %v10433 = vadd.f32 %v10253, %v10432
      %v10434 = vpop.f32.mrb[0].mxu0
      %v10435 = vpop.f32.mrb[0].mxu0
      %v10436 = vadd.f32 %v10256, %v10435
      %v10437 = vpop.f32.mrb[0].mxu0
      %10438 = vmatprep.mubr.bf16.mxu0 0
      %10439 = vmatmul.mubr.bf16.gmra.mrb[0].mxu0 %v7799
      %v10440 = vpop.f32.mrb[0].mxu0
      %v10441 = vadd.f32 %v10261, %v10440
      %v10442 = vpop.f32.mrb[0].mxu0
      %v10443 = vpop.f32.mrb[0].mxu0
      %v10444 = vadd.f32 %v10264, %v10443
      %v10445 = vpop.f32.mrb[0].mxu0
      %10446 = vmatprep.mubr.bf16.mxu0 0
      %10447 = vmatmul.mubr.bf16.gmra.mrb[0].mxu0 %v7802
      %v10448 = vpop.f32.mrb[0].mxu0
      %v10449 = vadd.f32 %v10269, %v10448
      %v10450 = vpop.f32.mrb[0].mxu0
      %v10451 = vpop.f32.mrb[0].mxu0
      %v10452 = vadd.f32 %v10272, %v10451
      %v10453 = vpop.f32.mrb[0].mxu0
      %10454 = vmatprep.mubr.bf16.mxu0 0
      %10455 = vmatmul.mubr.bf16.gmra.mrb[0].mxu0 %v7805
      %v10456 = vpop.f32.mrb[0].mxu0
      %v10457 = vadd.f32 %v10277, %v10456
      %v10458 = vpop.f32.mrb[0].mxu0
      %v10459 = vpop.f32.mrb[0].mxu0
      %v10460 = vadd.f32 %v10280, %v10459
      %v10461 = vpop.f32.mrb[0].mxu0
      %10462 = vmatprep.mubr.bf16.mxu0 0
      %10463 = vmatmul.mubr.bf16.gmra.mrb[0].mxu0 %v7808
      %v10464 = vpop.f32.mrb[0].mxu0
      %v10465 = vadd.f32 %v10285, %v10464
      %v10466 = vpop.f32.mrb[0].mxu0
      %v10467 = vpop.f32.mrb[0].mxu0
      %v10468 = vadd.f32 %v10288, %v10467
      %v10469 = vpop.f32.mrb[0].mxu0
      %10470 = vdwg.mxu0
      %v10471 = vld [vmem:[%s7] sm:$0x1]
      %v10473 = vlaneseq
      %v10474 = vshrl.u32 %v10473, 7
      %v10475 = vsub.s32 0, %v10474
      %v10476 = vrot.slane %v10471, %v10475
      %v10478 = vadd.f32 %v10329, %v10476
      %v10479 = vadd.f32 %v10332, %v10476
      %v10480 = vadd.f32 %v10337, %v10476
      %v10481 = vadd.f32 %v10340, %v10476
      %v10482 = vadd.f32 %v10345, %v10476
      %v10483 = vadd.f32 %v10348, %v10476
      %v10484 = vadd.f32 %v10353, %v10476
      %v10485 = vadd.f32 %v10356, %v10476
      %v10486 = vadd.f32 %v10361, %v10476
      %v10487 = vadd.f32 %v10364, %v10476
      %v10488 = vadd.f32 %v10369, %v10476
      %v10489 = vadd.f32 %v10372, %v10476
      %v10490 = vadd.f32 %v10377, %v10476
      %v10491 = vadd.f32 %v10380, %v10476
      %v10492 = vadd.f32 %v10385, %v10476
      %v10493 = vadd.f32 %v10388, %v10476
      %v10494 = vadd.f32 %v10393, %v10476
      %v10495 = vadd.f32 %v10396, %v10476
      %v10496 = vadd.f32 %v10401, %v10476
      %v10497 = vadd.f32 %v10404, %v10476
      %v10498 = vadd.f32 %v10409, %v10476
      %v10499 = vadd.f32 %v10412, %v10476
      %v10500 = vadd.f32 %v10417, %v10476
      %v10501 = vadd.f32 %v10420, %v10476
      %v10502 = vadd.f32 %v10425, %v10476
      %v10503 = vadd.f32 %v10428, %v10476
      %v10504 = vadd.f32 %v10433, %v10476
      %v10505 = vadd.f32 %v10436, %v10476
      %v10506 = vadd.f32 %v10441, %v10476
      %v10507 = vadd.f32 %v10444, %v10476
      %v10508 = vadd.f32 %v10449, %v10476
      %v10509 = vadd.f32 %v10452, %v10476
      %v10510 = vadd.f32 %v10457, %v10476
      %v10511 = vadd.f32 %v10460, %v10476
      %v10512 = vadd.f32 %v10465, %v10476
      %v10513 = vadd.f32 %v10468, %v10476
      %v10514 = vmin.f32 %v10478, 30.0
      %v10515 = vmin.f32 %v10479, 30.0
      %v10516 = vmin.f32 %v10480, 30.0
      %v10517 = vmin.f32 %v10481, 30.0
      %v10518 = vmin.f32 %v10482, 30.0
      %v10519 = vmin.f32 %v10483, 30.0
      %v10520 = vmin.f32 %v10484, 30.0
      %v10521 = vmin.f32 %v10485, 30.0
      %v10522 = vmin.f32 %v10486, 30.0
      %v10523 = vmin.f32 %v10487, 30.0
      %v10524 = vmin.f32 %v10488, 30.0
      %v10525 = vmin.f32 %v10489, 30.0
      %v10526 = vmin.f32 %v10490, 30.0
      %v10527 = vmin.f32 %v10491, 30.0
      %v10528 = vmin.f32 %v10492, 30.0
      %v10529 = vmin.f32 %v10493, 30.0
      %v10530 = vmin.f32 %v10494, 30.0
      %v10531 = vmin.f32 %v10495, 30.0
      %v10532 = vmin.f32 %v10496, 30.0
      %v10533 = vmin.f32 %v10497, 30.0
      %v10534 = vmin.f32 %v10498, 30.0
      %v10535 = vmin.f32 %v10499, 30.0
      %v10536 = vmin.f32 %v10500, 30.0
      %v10537 = vmin.f32 %v10501, 30.0
      %v10538 = vmin.f32 %v10502, 30.0
      %v10539 = vmin.f32 %v10503, 30.0
      %v10540 = vmin.f32 %v10504, 30.0
      %v10541 = vmin.f32 %v10505, 30.0
      %v10542 = vmin.f32 %v10506, 30.0
      %v10543 = vmin.f32 %v10507, 30.0
      %v10544 = vmin.f32 %v10508, 30.0
      %v10545 = vmin.f32 %v10509, 30.0
      %v10546 = vmin.f32 %v10510, 30.0
      %v10547 = vmin.f32 %v10511, 30.0
      %v10548 = vmin.f32 %v10512, 30.0
      %v10549 = vmin.f32 %v10513, 30.0
      %v10550 = vmul.f32 %v10514, 1.442695
      %v10551 = vpow.pop %v10550
      %v10552 = vmul.f32 %v10515, 1.442695
      %v10553 = vpow.pop %v10552
      %v10554 = vmul.f32 %v10516, 1.442695
      %v10555 = vpow.pop %v10554
      %v10556 = vmul.f32 %v10517, 1.442695
      %v10557 = vpow.pop %v10556
      %v10558 = vmul.f32 %v10518, 1.442695
      %v10559 = vpow.pop %v10558
      %v10560 = vmul.f32 %v10519, 1.442695
      %v10561 = vpow.pop %v10560
      %v10562 = vmul.f32 %v10520, 1.442695
      %v10563 = vpow.pop %v10562
      %v10564 = vmul.f32 %v10521, 1.442695
      %v10565 = vpow.pop %v10564
      %v10566 = vmul.f32 %v10522, 1.442695
      %v10567 = vpow.pop %v10566
      %v10568 = vmul.f32 %v10523, 1.442695
      %v10569 = vpow.pop %v10568
      %v10570 = vmul.f32 %v10524, 1.442695
      %v10571 = vpow.pop %v10570
      %v10572 = vmul.f32 %v10525, 1.442695
      %v10573 = vpow.pop %v10572
      %v10574 = vmul.f32 %v10526, 1.442695
      %v10575 = vpow.pop %v10574
      %v10576 = vmul.f32 %v10527, 1.442695
      %v10577 = vpow.pop %v10576
      %v10578 = vmul.f32 %v10528, 1.442695
      %v10579 = vpow.pop %v10578
      %v10580 = vmul.f32 %v10529, 1.442695
      %v10581 = vpow.pop %v10580
      %v10582 = vmul.f32 %v10530, 1.442695
      %v10583 = vpow.pop %v10582
      %v10584 = vmul.f32 %v10531, 1.442695
      %v10585 = vpow.pop %v10584
      %v10586 = vmul.f32 %v10532, 1.442695
      %v10587 = vpow.pop %v10586
      %v10588 = vmul.f32 %v10533, 1.442695
      %v10589 = vpow.pop %v10588
      %v10590 = vmul.f32 %v10534, 1.442695
      %v10591 = vpow.pop %v10590
      %v10592 = vmul.f32 %v10535, 1.442695
      %v10593 = vpow.pop %v10592
      %v10594 = vmul.f32 %v10536, 1.442695
      %v10595 = vpow.pop %v10594
      %v10596 = vmul.f32 %v10537, 1.442695
      %v10597 = vpow.pop %v10596
      %v10598 = vmul.f32 %v10538, 1.442695
      %v10599 = vpow.pop %v10598
      %v10600 = vmul.f32 %v10539, 1.442695
      %v10601 = vpow.pop %v10600
      %v10602 = vmul.f32 %v10540, 1.442695
      %v10603 = vpow.pop %v10602
      %v10604 = vmul.f32 %v10541, 1.442695
      %v10605 = vpow.pop %v10604
      %v10606 = vmul.f32 %v10542, 1.442695
      %v10607 = vpow.pop %v10606
      %v10608 = vmul.f32 %v10543, 1.442695
      %v10609 = vpow.pop %v10608
      %v10610 = vmul.f32 %v10544, 1.442695
      %v10611 = vpow.pop %v10610
      %v10612 = vmul.f32 %v10545, 1.442695
      %v10613 = vpow.pop %v10612
      %v10614 = vmul.f32 %v10546, 1.442695
      %v10615 = vpow.pop %v10614
      %v10616 = vmul.f32 %v10547, 1.442695
      %v10617 = vpow.pop %v10616
      %v10618 = vmul.f32 %v10548, 1.442695
      %v10619 = vpow.pop %v10618
      %v10620 = vmul.f32 %v10549, 1.442695
      %v10621 = vpow.pop %v10620
      %v10622 = vadd.f32 %v10551, 1.0
      %v10623 = vadd.f32 %v10553, 1.0
      %v10624 = vadd.f32 %v10555, 1.0
      %v10625 = vadd.f32 %v10557, 1.0
      %v10626 = vadd.f32 %v10559, 1.0
      %v10627 = vadd.f32 %v10561, 1.0
      %v10628 = vadd.f32 %v10563, 1.0
      %v10629 = vadd.f32 %v10565, 1.0
      %v10630 = vadd.f32 %v10567, 1.0
      %v10631 = vadd.f32 %v10569, 1.0
      %v10632 = vadd.f32 %v10571, 1.0
      %v10633 = vadd.f32 %v10573, 1.0
      %v10634 = vadd.f32 %v10575, 1.0
      %v10635 = vadd.f32 %v10577, 1.0
      %v10636 = vadd.f32 %v10579, 1.0
      %v10637 = vadd.f32 %v10581, 1.0
      %v10638 = vadd.f32 %v10583, 1.0
      %v10639 = vadd.f32 %v10585, 1.0
      %v10640 = vadd.f32 %v10587, 1.0
      %v10641 = vadd.f32 %v10589, 1.0
      %v10642 = vadd.f32 %v10591, 1.0
      %v10643 = vadd.f32 %v10593, 1.0
      %v10644 = vadd.f32 %v10595, 1.0
      %v10645 = vadd.f32 %v10597, 1.0
      %v10646 = vadd.f32 %v10599, 1.0
      %v10647 = vadd.f32 %v10601, 1.0
      %v10648 = vadd.f32 %v10603, 1.0
      %v10649 = vadd.f32 %v10605, 1.0
      %v10650 = vadd.f32 %v10607, 1.0
      %v10651 = vadd.f32 %v10609, 1.0
      %v10652 = vadd.f32 %v10611, 1.0
      %v10653 = vadd.f32 %v10613, 1.0
      %v10654 = vadd.f32 %v10615, 1.0
      %v10655 = vadd.f32 %v10617, 1.0
      %v10656 = vadd.f32 %v10619, 1.0
      %v10657 = vadd.f32 %v10621, 1.0
      %v10658 = vmul.f32 %v10622, %v10622
      %v10659 = vmul.f32 %v10623, %v10623
      %v10660 = vmul.f32 %v10624, %v10624
      %v10661 = vmul.f32 %v10625, %v10625
      %v10662 = vmul.f32 %v10626, %v10626
      %v10663 = vmul.f32 %v10627, %v10627
      %v10664 = vmul.f32 %v10628, %v10628
      %v10665 = vmul.f32 %v10629, %v10629
      %v10666 = vmul.f32 %v10630, %v10630
      %v10667 = vmul.f32 %v10631, %v10631
      %v10668 = vmul.f32 %v10632, %v10632
      %v10669 = vmul.f32 %v10633, %v10633
      %v10670 = vmul.f32 %v10634, %v10634
      %v10671 = vmul.f32 %v10635, %v10635
      %v10672 = vmul.f32 %v10636, %v10636
      %v10673 = vmul.f32 %v10637, %v10637
      %v10674 = vmul.f32 %v10638, %v10638
      %v10675 = vmul.f32 %v10639, %v10639
      %v10676 = vmul.f32 %v10640, %v10640
      %v10677 = vmul.f32 %v10641, %v10641
      %v10678 = vmul.f32 %v10642, %v10642
      %v10679 = vmul.f32 %v10643, %v10643
      %v10680 = vmul.f32 %v10644, %v10644
      %v10681 = vmul.f32 %v10645, %v10645
      %v10682 = vmul.f32 %v10646, %v10646
      %v10683 = vmul.f32 %v10647, %v10647
      %v10684 = vmul.f32 %v10648, %v10648
      %v10685 = vmul.f32 %v10649, %v10649
      %v10686 = vmul.f32 %v10650, %v10650
      %v10687 = vmul.f32 %v10651, %v10651
      %v10688 = vmul.f32 %v10652, %v10652
      %v10689 = vmul.f32 %v10653, %v10653
      %v10690 = vmul.f32 %v10654, %v10654
      %v10691 = vmul.f32 %v10655, %v10655
      %v10692 = vmul.f32 %v10656, %v10656
      %v10693 = vmul.f32 %v10657, %v10657
      %v10694 = vsub.f32 %v10658, 1.0
      %v10695 = vsub.f32 %v10659, 1.0
      %v10696 = vsub.f32 %v10660, 1.0
      %v10697 = vsub.f32 %v10661, 1.0
      %v10698 = vsub.f32 %v10662, 1.0
      %v10699 = vsub.f32 %v10663, 1.0
      %v10700 = vsub.f32 %v10664, 1.0
      %v10701 = vsub.f32 %v10665, 1.0
      %v10702 = vsub.f32 %v10666, 1.0
      %v10703 = vsub.f32 %v10667, 1.0
      %v10704 = vsub.f32 %v10668, 1.0
      %v10705 = vsub.f32 %v10669, 1.0
      %v10706 = vsub.f32 %v10670, 1.0
      %v10707 = vsub.f32 %v10671, 1.0
      %v10708 = vsub.f32 %v10672, 1.0
      %v10709 = vsub.f32 %v10673, 1.0
      %v10710 = vsub.f32 %v10674, 1.0
      %v10711 = vsub.f32 %v10675, 1.0
      %v10712 = vsub.f32 %v10676, 1.0
      %v10713 = vsub.f32 %v10677, 1.0
      %v10714 = vsub.f32 %v10678, 1.0
      %v10715 = vsub.f32 %v10679, 1.0
      %v10716 = vsub.f32 %v10680, 1.0
      %v10717 = vsub.f32 %v10681, 1.0
      %v10718 = vsub.f32 %v10682, 1.0
      %v10719 = vsub.f32 %v10683, 1.0
      %v10720 = vsub.f32 %v10684, 1.0
      %v10721 = vsub.f32 %v10685, 1.0
      %v10722 = vsub.f32 %v10686, 1.0
      %v10723 = vsub.f32 %v10687, 1.0
      %v10724 = vsub.f32 %v10688, 1.0
      %v10725 = vsub.f32 %v10689, 1.0
      %v10726 = vsub.f32 %v10690, 1.0
      %v10727 = vsub.f32 %v10691, 1.0
      %v10728 = vsub.f32 %v10692, 1.0
      %v10729 = vsub.f32 %v10693, 1.0
      %v10730 = vmul.f32 %v10478, %v10694
      %v10731 = vmul.f32 %v10479, %v10695
      %v10732 = vmul.f32 %v10480, %v10696
      %v10733 = vmul.f32 %v10481, %v10697
      %v10734 = vmul.f32 %v10482, %v10698
      %v10735 = vmul.f32 %v10483, %v10699
      %v10736 = vmul.f32 %v10484, %v10700
      %v10737 = vmul.f32 %v10485, %v10701
      %v10738 = vmul.f32 %v10486, %v10702
      %v10739 = vmul.f32 %v10487, %v10703
      %v10740 = vmul.f32 %v10488, %v10704
      %v10741 = vmul.f32 %v10489, %v10705
      %v10742 = vmul.f32 %v10490, %v10706
      %v10743 = vmul.f32 %v10491, %v10707
      %v10744 = vmul.f32 %v10492, %v10708
      %v10745 = vmul.f32 %v10493, %v10709
      %v10746 = vmul.f32 %v10494, %v10710
      %v10747 = vmul.f32 %v10495, %v10711
      %v10748 = vmul.f32 %v10496, %v10712
      %v10749 = vmul.f32 %v10497, %v10713
      %v10750 = vmul.f32 %v10498, %v10714
      %v10751 = vmul.f32 %v10499, %v10715
      %v10752 = vmul.f32 %v10500, %v10716
      %v10753 = vmul.f32 %v10501, %v10717
      %v10754 = vmul.f32 %v10502, %v10718
      %v10755 = vmul.f32 %v10503, %v10719
      %v10756 = vmul.f32 %v10504, %v10720
      %v10757 = vmul.f32 %v10505, %v10721
      %v10758 = vmul.f32 %v10506, %v10722
      %v10759 = vmul.f32 %v10507, %v10723
      %v10760 = vmul.f32 %v10508, %v10724
      %v10761 = vmul.f32 %v10509, %v10725
      %v10762 = vmul.f32 %v10510, %v10726
      %v10763 = vmul.f32 %v10511, %v10727
      %v10764 = vmul.f32 %v10512, %v10728
      %v10765 = vmul.f32 %v10513, %v10729
      %v10766 = vadd.f32 %v10658, 1.0
      %v10767 = vadd.f32 %v10659, 1.0
      %v10768 = vadd.f32 %v10660, 1.0
      %v10769 = vadd.f32 %v10661, 1.0
      %v10770 = vadd.f32 %v10662, 1.0
      %v10771 = vadd.f32 %v10663, 1.0
      %v10772 = vadd.f32 %v10664, 1.0
      %v10773 = vadd.f32 %v10665, 1.0
      %v10774 = vadd.f32 %v10666, 1.0
      %v10775 = vadd.f32 %v10667, 1.0
      %v10776 = vadd.f32 %v10668, 1.0
      %v10777 = vadd.f32 %v10669, 1.0
      %v10778 = vadd.f32 %v10670, 1.0
      %v10779 = vadd.f32 %v10671, 1.0
      %v10780 = vadd.f32 %v10672, 1.0
      %v10781 = vadd.f32 %v10673, 1.0
      %v10782 = vadd.f32 %v10674, 1.0
      %v10783 = vadd.f32 %v10675, 1.0
      %v10784 = vadd.f32 %v10676, 1.0
      %v10785 = vadd.f32 %v10677, 1.0
      %v10786 = vadd.f32 %v10678, 1.0
      %v10787 = vadd.f32 %v10679, 1.0
      %v10788 = vadd.f32 %v10680, 1.0
      %v10789 = vadd.f32 %v10681, 1.0
      %v10790 = vadd.f32 %v10682, 1.0
      %v10791 = vadd.f32 %v10683, 1.0
      %v10792 = vadd.f32 %v10684, 1.0
      %v10793 = vadd.f32 %v10685, 1.0
      %v10794 = vadd.f32 %v10686, 1.0
      %v10795 = vadd.f32 %v10687, 1.0
      %v10796 = vadd.f32 %v10688, 1.0
      %v10797 = vadd.f32 %v10689, 1.0
      %v10798 = vadd.f32 %v10690, 1.0
      %v10799 = vadd.f32 %v10691, 1.0
      %v10800 = vadd.f32 %v10692, 1.0
      %v10801 = vadd.f32 %v10693, 1.0
      %v10802 = vrcp.pop %v10766
      %v10803 = vrcp.pop %v10767
      %v10804 = vrcp.pop %v10768
      %v10805 = vrcp.pop %v10769
      %v10806 = vrcp.pop %v10770
      %v10807 = vrcp.pop %v10771
      %v10808 = vrcp.pop %v10772
      %v10809 = vrcp.pop %v10773
      %v10810 = vrcp.pop %v10774
      %v10811 = vrcp.pop %v10775
      %v10812 = vrcp.pop %v10776
      %v10813 = vrcp.pop %v10777
      %v10814 = vrcp.pop %v10778
      %v10815 = vrcp.pop %v10779
      %v10816 = vrcp.pop %v10780
      %v10817 = vrcp.pop %v10781
      %v10818 = vrcp.pop %v10782
      %v10819 = vrcp.pop %v10783
      %v10820 = vrcp.pop %v10784
      %v10821 = vrcp.pop %v10785
      %v10822 = vrcp.pop %v10786
      %v10823 = vrcp.pop %v10787
      %v10824 = vrcp.pop %v10788
      %v10825 = vrcp.pop %v10789
      %v10826 = vrcp.pop %v10790
      %v10827 = vrcp.pop %v10791
      %v10828 = vrcp.pop %v10792
      %v10829 = vrcp.pop %v10793
      %v10830 = vrcp.pop %v10794
      %v10831 = vrcp.pop %v10795
      %v10832 = vrcp.pop %v10796
      %v10833 = vrcp.pop %v10797
      %v10834 = vrcp.pop %v10798
      %v10835 = vrcp.pop %v10799
      %v10836 = vrcp.pop %v10800
      %v10837 = vrcp.pop %v10801
      %v10838 = vmul.f32 %v10730, %v10802
      %v10839 = vmul.f32 %v10731, %v10803
      %v10840 = vmul.f32 %v10732, %v10804
      %v10841 = vmul.f32 %v10733, %v10805
      %v10842 = vmul.f32 %v10734, %v10806
      %v10843 = vmul.f32 %v10735, %v10807
      %v10844 = vmul.f32 %v10736, %v10808
      %v10845 = vmul.f32 %v10737, %v10809
      %v10846 = vmul.f32 %v10738, %v10810
      %v10847 = vmul.f32 %v10739, %v10811
      %v10848 = vmul.f32 %v10740, %v10812
      %v10849 = vmul.f32 %v10741, %v10813
      %v10850 = vmul.f32 %v10742, %v10814
      %v10851 = vmul.f32 %v10743, %v10815
      %v10852 = vmul.f32 %v10744, %v10816
      %v10853 = vmul.f32 %v10745, %v10817
      %v10854 = vmul.f32 %v10746, %v10818
      %v10855 = vmul.f32 %v10747, %v10819
      %v10856 = vmul.f32 %v10748, %v10820
      %v10857 = vmul.f32 %v10749, %v10821
      %v10858 = vmul.f32 %v10750, %v10822
      %v10859 = vmul.f32 %v10751, %v10823
      %v10860 = vmul.f32 %v10752, %v10824
      %v10861 = vmul.f32 %v10753, %v10825
      %v10862 = vmul.f32 %v10754, %v10826
      %v10863 = vmul.f32 %v10755, %v10827
      %v10864 = vmul.f32 %v10756, %v10828
      %v10865 = vmul.f32 %v10757, %v10829
      %v10866 = vmul.f32 %v10758, %v10830
      %v10867 = vmul.f32 %v10759, %v10831
      %v10868 = vmul.f32 %v10760, %v10832
      %v10869 = vmul.f32 %v10761, %v10833
      %v10870 = vmul.f32 %v10762, %v10834
      %v10871 = vmul.f32 %v10763, %v10835
      %v10872 = vmul.f32 %v10764, %v10836
      %v10873 = vmul.f32 %v10765, %v10837
      %vm10874 = vcmask 64512
      %10875 = vst.msk [vmem:[%s305] sm:$0xff] %vm10874, %v10838
      %10876 = vst.msk [vmem:[%s305 + $0x8] sm:$0xff] %vm10874, %v10839
      %10877 = vst.msk [vmem:[%s305 + $0x10] sm:$0xff] %vm10874, %v10840
      %10878 = vst.msk [vmem:[%s305 + $0x18] sm:$0xff] %vm10874, %v10841
      %10879 = vst.msk [vmem:[%s305 + $0x20] sm:$0xff] %vm10874, %v10842
      %10880 = vst.msk [vmem:[%s305 + $0x28] sm:$0xff] %vm10874, %v10843
      %10881 = vst.msk [vmem:[%s305 + $0x30] sm:$0xff] %vm10874, %v10844
      %10882 = vst.msk [vmem:[%s305 + $0x38] sm:$0xff] %vm10874, %v10845
      %10883 = vst.msk [vmem:[%s305 + $0x40] sm:$0xff] %vm10874, %v10846
      %10884 = vst.msk [vmem:[%s305 + $0x48] sm:$0xff] %vm10874, %v10847
      %10885 = vst.msk [vmem:[%s305 + $0x50] sm:$0xff] %vm10874, %v10848
      %10886 = vst.msk [vmem:[%s305 + $0x58] sm:$0xff] %vm10874, %v10849
      %10887 = vst.msk [vmem:[%s305 + $0x60] sm:$0xff] %vm10874, %v10850
      %10888 = vst.msk [vmem:[%s305 + $0x68] sm:$0xff] %vm10874, %v10851
      %10889 = vst.msk [vmem:[%s305 + $0x70] sm:$0xff] %vm10874, %v10852
      %10890 = vst.msk [vmem:[%s305 + $0x78] sm:$0xff] %vm10874, %v10853
      %10891 = vst.msk [vmem:[%s305 + $0x80] sm:$0xff] %vm10874, %v10854
      %10892 = vst.msk [vmem:[%s305 + $0x88] sm:$0xff] %vm10874, %v10855
      %10893 = vst.msk [vmem:[%s305 + $0x90] sm:$0xff] %vm10874, %v10856
      %10894 = vst.msk [vmem:[%s305 + $0x98] sm:$0xff] %vm10874, %v10857
      %10895 = vst.msk [vmem:[%s305 + $0xa0] sm:$0xff] %vm10874, %v10858
      %10896 = vst.msk [vmem:[%s305 + $0xa8] sm:$0xff] %vm10874, %v10859
      %10897 = vst.msk [vmem:[%s305 + $0xb0] sm:$0xff] %vm10874, %v10860
      %10898 = vst.msk [vmem:[%s305 + $0xb8] sm:$0xff] %vm10874, %v10861
      %10899 = vst.msk [vmem:[%s305 + $0xc0] sm:$0xff] %vm10874, %v10862
      %10900 = vst.msk [vmem:[%s305 + $0xc8] sm:$0xff] %vm10874, %v10863
      %10901 = vst.msk [vmem:[%s305 + $0xd0] sm:$0xff] %vm10874, %v10864
      %10902 = vst.msk [vmem:[%s305 + $0xd8] sm:$0xff] %vm10874, %v10865
      %10903 = vst.msk [vmem:[%s305 + $0xe0] sm:$0xff] %vm10874, %v10866
      %10904 = vst.msk [vmem:[%s305 + $0xe8] sm:$0xff] %vm10874, %v10867
      %10905 = vst.msk [vmem:[%s305 + $0xf0] sm:$0xff] %vm10874, %v10868
      %10906 = vst.msk [vmem:[%s305 + $0xf8] sm:$0xff] %vm10874, %v10869
      %10907 = vst.msk [vmem:[%s305 + $0x100] sm:$0xff] %vm10874, %v10870
      %10908 = vst.msk [vmem:[%s305 + $0x108] sm:$0xff] %vm10874, %v10871
      %10909 = vst.msk [vmem:[%s305 + $0x110] sm:$0xff] %vm10874, %v10872
      %10910 = vst.msk [vmem:[%s305 + $0x118] sm:$0xff] %vm10874, %v10873
      %p10911 = scmp.lt.s32.totalorder %s19, 1
      %s10912 = scalar_select %p10911, %s19, 1
      %s10913 = smul.addr %s10912, 36
      %s10914 = smul.addr %s10913, 8
      %s10915 = scalar_lea.vmem %s8, %s10914
      // Predicated region
      $region53: #{tpu_custom_call.1} parent=51 // pred_check
        %p10916 = pneg %p210
      $region54: #{tpu_custom_call.1} parent=51 // pred_check_branch
        %10918 = sbr.rel (%p10916) target = $region56
      $region55: #{tpu_custom_call.1} parent=51 // pred_region
        _
      $region56: #{tpu_custom_call.1} parent=51 // pred_fallthru
        _
    $region52: #{tpu_custom_call.1} parent=5 // pred_fallthru
      _
    %p10919 = scmp.le.s32.totalorder 2, %s14
    // Predicated region
    $region57: #{tpu_custom_call.1} parent=5 // pred_check
      %p10920 = pneg %p10919
    $region58: #{tpu_custom_call.1} parent=5 // pred_check_branch
      %10922 = sbr.rel (%p10920) target = $region60
    $region59: #{tpu_custom_call.1} parent=5 // pred_region
      %s10923 = ssub.s32 %s14, 2
      // Predicated region
      $region61: #{tpu_custom_call.1} parent=59 // pred_check
        %p10924 = pneg %p216
      $region62: #{tpu_custom_call.1} parent=59 // pred_check_branch
        %10926 = sbr.rel (%p10924) target = $region64
      $region63: #{tpu_custom_call.1} parent=59 // pred_region
        %p10927 = scmp.lt.s32.totalorder %s20, 1
        %s10928 = scalar_select %p10927, %s20, 1
        %s10929 = smul.addr %s10928, 36
        %s10930 = smul.addr %s10929, 8
        %s10931 = scalar_lea.vmem %s8, %s10930
      $region64: #{tpu_custom_call.1} parent=59 // pred_fallthru
        _
    $region60: #{tpu_custom_call.1} parent=5 // pred_fallthru
      _
  $region6: #{tpu_custom_call.1} parent=0 // loop_footer
    %s18 = sadd.s32 1, %s14
  $region7: #{tpu_custom_call.1} parent=0 // loop_footer_branch
    %13 = sbr.rel target = $region3
  $region8: #{tpu_custom_call.1} parent=0 // loop_exit
    _

</llo_original>
